<compile_context>
chip_gen: v6e
topology: v6e:2x2x1
jax: 0.10.0
libtpu: 0.0.40
codegen_flags: <defaults>
</compile_context>

<pallas_src>
import functools
import math

import jax
import jax.numpy as jnp
from jax.experimental import pallas as pl
from jax.experimental.pallas import tpu as pltpu


def _ra_kernel(y_ref, x_ref, pool_ref, w1kt_ref, w2kt_ref, o_ref, fc_sc, *, hw, k):
    """One (batch b, folded-channel-tile ci) grid step.

    y_ref   : (1, Cf, k*HW)   full folded y block for batch b (native layout view)
    x_ref   : (1, TCF, k*HW)  folded-channel tile of x for (b, ci)
    pool_ref: (k, k*HW, 1)    pooling columns; pool[kk] has 1/HW on lane group kk
    w1kt_ref: (k, HID, Cf)    w1[kk::k, :].T  (first FC, per-fold slice)
    w2kt_ref: (k, Cf, HID)    w2[:, kk::k].T  (second FC, per-fold slice)
    o_ref   : (1, TCF, k*HW)
    fc_sc   : VMEM (Cf, k*HW) f32 — lane-dense expanded sigmoid gate for batch b
    """
    ci = pl.program_id(1)
    tcf = x_ref.shape[1]
    khw = x_ref.shape[2]
    hid = w1kt_ref.shape[1]
    cf_total = y_ref.shape[1]

    # ---- gate: computed once per batch element (first channel-tile step) ----
    @pl.when(ci == 0)
    def _compute_gate():
        y = y_ref[0]                                                # (Cf, k*HW)

        # Global average pool per original channel, done on the MXU:
        #   a_kk[cf] = mean_s y[channel cf*k + kk, s] = (y @ pool[kk])[cf]
        # fused directly into the first FC (column form, no relayouts).
        h = jnp.zeros((hid, 1), jnp.float32)
        for kk in range(k):                                         # unrolled, k is small
            a_kk = jnp.dot(y, pool_ref[kk],
                           preferred_element_type=jnp.float32)      # (Cf, 1)
            h = h + jnp.dot(w1kt_ref[kk], a_kk,
                            preferred_element_type=jnp.float32)     # (HID, 1)
        h = jnp.maximum(h, 0.0)                                     # ReLU

        # Second FC per fold slice, then expand to the lane-dense folded layout:
        #   gate_exp[cf, kk*HW + s] = sigmoid(q_kk[cf])
        lane = jax.lax.broadcasted_iota(jnp.int32, (1, khw), 1)     # (1, k*HW)
        q = jnp.zeros((cf_total, khw), jnp.float32)
        for kk in range(k):
            q_kk = jnp.dot(w2kt_ref[kk], h,
                           preferred_element_type=jnp.float32)      # (Cf, 1)
            sel = jnp.logical_and(lane >= kk * hw, lane < (kk + 1) * hw)
            q = q + q_kk * sel.astype(jnp.float32)                  # (Cf, k*HW)
        fc_sc[...] = jax.nn.sigmoid(q)

    # ---- lane-dense elementwise apply for this folded-channel tile ----
    off = pl.multiple_of(ci * tcf, tcf)
    o_ref[0] = x_ref[0] * fc_sc[pl.ds(off, tcf), :]


def ra_forward(x_nchw, y_nchw, w1, w2, *, tc=1024):
    """x_nchw, y_nchw: (B, C, H, W) float32.  w1: (C, HIDDEN), w2: (HIDDEN, C)."""
    B, C, H, W = x_nchw.shape
    assert y_nchw.shape == (B, C, H, W)
    HW = H * W
    hidden = w1.shape[1]
    assert w1.shape == (C, hidden) and w2.shape == (hidden, C)

    # Fold factor so the folded spatial axis (k*HW lanes) is a multiple of 128.
    k = 128 // math.gcd(HW, 128)
    khw = k * HW
    assert C % k == 0, "channels must be divisible by the lane-fold factor"
    Cf = C // k

    tc = min(tc, C)
    assert tc % k == 0
    tcf = tc // k
    assert Cf % tcf == 0 and tcf % 8 == 0, "folded channel tile must divide Cf and be a multiple of 8"
    nc = Cf // tcf

    # Native-layout lane-dense views (contiguous reshapes: no data movement).
    x3 = x_nchw.reshape(B, Cf, khw)
    y3 = y_nchw.reshape(B, Cf, khw)

    # One-time (tiny) weight preparation in the wrapper:
    #   per-fold transposed FC slices + constant pooling columns (1/HW folded in).
    w1kt = jnp.stack([w1[kk::k, :].T for kk in range(k)], axis=0)         # (k, HID, Cf)
    w2kt = jnp.stack([w2[:, kk::k].T for kk in range(k)], axis=0)         # (k, Cf, HID)
    pool = (jnp.repeat(jnp.eye(k, dtype=jnp.float32), HW, axis=1) / HW    # (k, k*HW)
            ).reshape(k, khw, 1)

    kernel = functools.partial(_ra_kernel, hw=HW, k=k)

    out = pl.pallas_call(
        kernel,
        out_shape=jax.ShapeDtypeStruct((B, Cf, khw), jnp.float32),
        grid_spec=pltpu.PrefetchScalarGridSpec(
            num_scalar_prefetch=0,
            grid=(B, nc),
            in_specs=[
                # y: full folded channels for batch b; constant in ci -> DMA'd once per batch.
                pl.BlockSpec((1, Cf, khw), lambda b, ci: (b, 0, 0)),
                # x: folded-channel tile for (b, ci); lane-dense (k*HW multiple of 128).
                pl.BlockSpec((1, tcf, khw), lambda b, ci: (b, ci, 0)),
                # constants / weights: constant block index -> DMA'd once total.
                pl.BlockSpec((k, khw, 1), lambda b, ci: (0, 0, 0)),
                pl.BlockSpec((k, hidden, Cf), lambda b, ci: (0, 0, 0)),
                pl.BlockSpec((k, Cf, hidden), lambda b, ci: (0, 0, 0)),
            ],
            out_specs=pl.BlockSpec((1, tcf, khw), lambda b, ci: (b, ci, 0)),
            # Lane-dense expanded gate for the current batch.
            scratch_shapes=[pltpu.VMEM((Cf, khw), jnp.float32)],
        ),
        compiler_params=pltpu.CompilerParams(
            # Batch axis parallel (megacore / v7x 2-TC); channel-tile axis MUST stay
            # arbitrary (sequential) because fc_sc is written at ci==0 and read later.
            dimension_semantics=("parallel", "arbitrary")),
    )(y3, x3, pool, w1kt, w2kt)

    # Contiguous reshape back to NCHW (free).
    return out.reshape(B, C, H, W)


def ra_reference(x_nchw, y_nchw, w1, w2):
    avg = jnp.mean(y_nchw, axis=(2, 3))                   # (B, C)
    h = jnp.maximum(avg @ w1, 0.0)
    fc = jax.nn.sigmoid(h @ w2)                           # (B, C)
    return x_nchw * fc[:, :, None, None]


if __name__ == "__main__":
    # Module hard-codes C = 2048 (fc: 2048 -> 2048//32 -> 2048); keep spatial small.
    B, C, H, W = 2, 2048, 8, 8
    HIDDEN = C // 32

    key = jax.random.PRNGKey(0)
    kx, ky, kw1, kw2 = jax.random.split(key, 4)

    x = jax.random.normal(kx, (B, C, H, W), dtype=jnp.float32)
    y = jax.random.normal(ky, (B, C, H, W), dtype=jnp.float32)

    # Deterministic synthetic weights (Linear without bias; stored so forward is
    # `avg @ w1` / `h @ w2`, matching PyTorch's x @ W.T convention).
    bound1 = 1.0 / (C ** 0.5)
    bound2 = 1.0 / (HIDDEN ** 0.5)
    w1 = jax.random.uniform(kw1, (C, HIDDEN), jnp.float32, -bound1, bound1)
    w2 = jax.random.uniform(kw2, (HIDDEN, C), jnp.float32, -bound2, bound2)

    out = jax.jit(ra_forward)(x, y, w1, w2)
    out = jax.block_until_ready(out)

    ref = ra_reference(x, y, w1, w2)
    assert out.shape == (B, C, H, W)
    assert jnp.allclose(out, ref, atol=1e-4, rtol=1e-4), "mismatch vs reference"

    print("KERNEL_OK")
</pallas_src>

<mosaic_0001>
module attributes {stable_mosaic.version = 11 : i64} {
  func.func @_ra_kernel(%arg0: i32, %arg1: i32, %arg2: memref<1x1024x128xf32, #tpu.memory_space<vmem>>, %arg3: memref<1x512x128xf32, #tpu.memory_space<vmem>>, %arg4: memref<2x128x1xf32, #tpu.memory_space<vmem>>, %arg5: memref<2x64x1024xf32, #tpu.memory_space<vmem>>, %arg6: memref<2x1024x64xf32, #tpu.memory_space<vmem>>, %arg7: memref<1x512x128xf32, #tpu.memory_space<vmem>>, %arg8: memref<1024x128xf32, #tpu.memory_space<vmem>>) attributes {dimension_semantics = [#tpu.dimension_semantics<parallel>, #tpu.dimension_semantics<arbitrary>], iteration_bounds = array<i64: 2, 2>, scalar_prefetch = 0 : i64, scratch_operands = 1 : i64, tpu.core_type = #tpu.core_type<tc>, window_params = [{transform_indices = @transform_0, window_bounds = array<i64: 1, 1024, 128>}, {transform_indices = @transform_1, window_bounds = array<i64: 1, 512, 128>}, {pipeline_mode = #tpu.pipeline_mode<synchronous>, transform_indices = @transform_2, window_bounds = array<i64: 2, 128, 1>}, {pipeline_mode = #tpu.pipeline_mode<synchronous>, transform_indices = @transform_3, window_bounds = array<i64: 2, 64, 1024>}, {pipeline_mode = #tpu.pipeline_mode<synchronous>, transform_indices = @transform_4, window_bounds = array<i64: 2, 1024, 64>}, {transform_indices = @transform_5, window_bounds = array<i64: 1, 512, 128>}]} {
    %c0_i32 = arith.constant 0 : i32
    %0 = arith.cmpi eq, %arg1, %c0_i32 : i32
    %1 = arith.extui %0 : i1 to i32
    %c0_i32_0 = arith.constant 0 : i32
    %2 = arith.cmpi ne, %1, %c0_i32_0 : i32
    scf.if %2 {
      %c0_7 = arith.constant 0 : index
      %c0_8 = arith.constant 0 : index
      %c0_9 = arith.constant 0 : index
      %13 = vector.load %arg2[%c0_7, %c0_8, %c0_9] : memref<1x1024x128xf32, #tpu.memory_space<vmem>>, vector<1x1024x128xf32>
      %14 = vector.shape_cast %13 : vector<1x1024x128xf32> to vector<1024x128xf32>
      %cst = arith.constant 0.000000e+00 : f32
      %15 = vector.broadcast %cst : f32 to vector<64x1xf32>
      %c0_10 = arith.constant 0 : index
      %c0_11 = arith.constant 0 : index
      %c0_12 = arith.constant 0 : index
      %16 = vector.load %arg4[%c0_10, %c0_11, %c0_12] : memref<2x128x1xf32, #tpu.memory_space<vmem>>, vector<1x128x1xf32>
      %17 = vector.shape_cast %16 : vector<1x128x1xf32> to vector<128x1xf32>
      %cst_13 = arith.constant dense<0.000000e+00> : vector<1024x1xf32>
      %18 = tpu.matmul %14, %17, %cst_13 {dimension_numbers = #tpu.dot_dimension_numbers<[1], [0], [0], [1], [0, 0, 1, 1], [], []>} : vector<1024x128xf32>, vector<128x1xf32>, vector<1024x1xf32> -> vector<1024x1xf32>
      %c0_14 = arith.constant 0 : index
      %c0_15 = arith.constant 0 : index
      %c0_16 = arith.constant 0 : index
      %19 = vector.load %arg5[%c0_14, %c0_15, %c0_16] : memref<2x64x1024xf32, #tpu.memory_space<vmem>>, vector<1x64x1024xf32>
      %20 = vector.shape_cast %19 : vector<1x64x1024xf32> to vector<64x1024xf32>
      %cst_17 = arith.constant dense<0.000000e+00> : vector<64x1xf32>
      %21 = tpu.matmul %20, %18, %cst_17 {dimension_numbers = #tpu.dot_dimension_numbers<[1], [0], [0], [1], [0, 0, 1, 1], [], []>} : vector<64x1024xf32>, vector<1024x1xf32>, vector<64x1xf32> -> vector<64x1xf32>
      %22 = arith.addf %15, %21 : vector<64x1xf32>
      %c1 = arith.constant 1 : index
      %c0_18 = arith.constant 0 : index
      %c0_19 = arith.constant 0 : index
      %23 = vector.load %arg4[%c1, %c0_18, %c0_19] : memref<2x128x1xf32, #tpu.memory_space<vmem>>, vector<1x128x1xf32>
      %24 = vector.shape_cast %23 : vector<1x128x1xf32> to vector<128x1xf32>
      %cst_20 = arith.constant dense<0.000000e+00> : vector<1024x1xf32>
      %25 = tpu.matmul %14, %24, %cst_20 {dimension_numbers = #tpu.dot_dimension_numbers<[1], [0], [0], [1], [0, 0, 1, 1], [], []>} : vector<1024x128xf32>, vector<128x1xf32>, vector<1024x1xf32> -> vector<1024x1xf32>
      %c1_21 = arith.constant 1 : index
      %c0_22 = arith.constant 0 : index
      %c0_23 = arith.constant 0 : index
      %26 = vector.load %arg5[%c1_21, %c0_22, %c0_23] : memref<2x64x1024xf32, #tpu.memory_space<vmem>>, vector<1x64x1024xf32>
      %27 = vector.shape_cast %26 : vector<1x64x1024xf32> to vector<64x1024xf32>
      %cst_24 = arith.constant dense<0.000000e+00> : vector<64x1xf32>
      %28 = tpu.matmul %27, %25, %cst_24 {dimension_numbers = #tpu.dot_dimension_numbers<[1], [0], [0], [1], [0, 0, 1, 1], [], []>} : vector<64x1024xf32>, vector<1024x1xf32>, vector<64x1xf32> -> vector<64x1xf32>
      %29 = arith.addf %22, %28 : vector<64x1xf32>
      %cst_25 = arith.constant 0.000000e+00 : f32
      %30 = vector.broadcast %cst_25 : f32 to vector<64x1xf32>
      %31 = arith.maximumf %29, %30 : vector<64x1xf32>
      %32 = tpu.iota {dimensions = array<i32: 1>} : vector<1x128xi32>
      %cst_26 = arith.constant 0.000000e+00 : f32
      %33 = vector.broadcast %cst_26 : f32 to vector<1024x128xf32>
      %c0_27 = arith.constant 0 : index
      %c0_28 = arith.constant 0 : index
      %c0_29 = arith.constant 0 : index
      %34 = vector.load %arg6[%c0_27, %c0_28, %c0_29] : memref<2x1024x64xf32, #tpu.memory_space<vmem>>, vector<1x1024x64xf32>
      %35 = vector.shape_cast %34 : vector<1x1024x64xf32> to vector<1024x64xf32>
      %cst_30 = arith.constant dense<0.000000e+00> : vector<1024x1xf32>
      %36 = tpu.matmul %35, %31, %cst_30 {dimension_numbers = #tpu.dot_dimension_numbers<[1], [0], [0], [1], [0, 0, 1, 1], [], []>} : vector<1024x64xf32>, vector<64x1xf32>, vector<1024x1xf32> -> vector<1024x1xf32>
      %c0_i32_31 = arith.constant 0 : i32
      %37 = vector.broadcast %c0_i32_31 : i32 to vector<1x128xi32>
      %38 = arith.cmpi sge, %32, %37 : vector<1x128xi32>
      %c64_i32 = arith.constant 64 : i32
      %39 = vector.broadcast %c64_i32 : i32 to vector<1x128xi32>
      %40 = arith.cmpi slt, %32, %39 : vector<1x128xi32>
      %41 = arith.andi %38, %40 : vector<1x128xi1>
      %42 = arith.extui %41 : vector<1x128xi1> to vector<1x128xi32>
      %43 = arith.sitofp %42 : vector<1x128xi32> to vector<1x128xf32>
      %44 = vector.broadcast %36 : vector<1024x1xf32> to vector<1024x128xf32>
      %45 = vector.broadcast %43 : vector<1x128xf32> to vector<1024x128xf32>
      %46 = arith.mulf %44, %45 : vector<1024x128xf32>
      %47 = arith.addf %33, %46 : vector<1024x128xf32>
      %c1_32 = arith.constant 1 : index
      %c0_33 = arith.constant 0 : index
      %c0_34 = arith.constant 0 : index
      %48 = vector.load %arg6[%c1_32, %c0_33, %c0_34] : memref<2x1024x64xf32, #tpu.memory_space<vmem>>, vector<1x1024x64xf32>
      %49 = vector.shape_cast %48 : vector<1x1024x64xf32> to vector<1024x64xf32>
      %cst_35 = arith.constant dense<0.000000e+00> : vector<1024x1xf32>
      %50 = tpu.matmul %49, %31, %cst_35 {dimension_numbers = #tpu.dot_dimension_numbers<[1], [0], [0], [1], [0, 0, 1, 1], [], []>} : vector<1024x64xf32>, vector<64x1xf32>, vector<1024x1xf32> -> vector<1024x1xf32>
      %c64_i32_36 = arith.constant 64 : i32
      %51 = vector.broadcast %c64_i32_36 : i32 to vector<1x128xi32>
      %52 = arith.cmpi sge, %32, %51 : vector<1x128xi32>
      %c128_i32 = arith.constant 128 : i32
      %53 = vector.broadcast %c128_i32 : i32 to vector<1x128xi32>
      %54 = arith.cmpi slt, %32, %53 : vector<1x128xi32>
      %55 = arith.andi %52, %54 : vector<1x128xi1>
      %56 = arith.extui %55 : vector<1x128xi1> to vector<1x128xi32>
      %57 = arith.sitofp %56 : vector<1x128xi32> to vector<1x128xf32>
      %58 = vector.broadcast %50 : vector<1024x1xf32> to vector<1024x128xf32>
      %59 = vector.broadcast %57 : vector<1x128xf32> to vector<1024x128xf32>
      %60 = arith.mulf %58, %59 : vector<1024x128xf32>
      %61 = arith.addf %47, %60 : vector<1024x128xf32>
      %62 = arith.negf %61 : vector<1024x128xf32>
      %63 = math.exp %62 : vector<1024x128xf32>
      %cst_37 = arith.constant 1.000000e+00 : f32
      %64 = vector.broadcast %cst_37 : f32 to vector<1024x128xf32>
      %65 = arith.addf %64, %63 : vector<1024x128xf32>
      %66 = arith.divf %64, %65 : vector<1024x128xf32>
      %c0_38 = arith.constant 0 : index
      %c0_39 = arith.constant 0 : index
      %67 = vector.load %arg8[%c0_38, %c0_39] : memref<1024x128xf32, #tpu.memory_space<vmem>>, vector<1024x128xf32>
      tpu.vector_store %arg8[%c0_38, %c0_39], %66 {strides = array<i32>} : memref<1024x128xf32, #tpu.memory_space<vmem>>, vector<1024x128xf32>,
    } else {
    }
    %c512_i32 = arith.constant 512 : i32
    %3 = arith.muli %arg1, %c512_i32 : i32
    %4 = tpu.assume_multiple %3, 512 : i32
    %c0 = arith.constant 0 : index
    %c0_1 = arith.constant 0 : index
    %c0_2 = arith.constant 0 : index
    %5 = vector.load %arg3[%c0, %c0_1, %c0_2] : memref<1x512x128xf32, #tpu.memory_space<vmem>>, vector<1x512x128xf32>
    %6 = vector.shape_cast %5 : vector<1x512x128xf32> to vector<512x128xf32>
    %7 = arith.index_cast %4 : i32 to index
    %c0_3 = arith.constant 0 : index
    %8 = vector.load %arg8[%7, %c0_3] : memref<1024x128xf32, #tpu.memory_space<vmem>>, vector<512x128xf32>
    %9 = arith.mulf %6, %8 : vector<512x128xf32>
    %c0_4 = arith.constant 0 : index
    %c0_5 = arith.constant 0 : index
    %c0_6 = arith.constant 0 : index
    %10 = vector.load %arg7[%c0_4, %c0_5, %c0_6] : memref<1x512x128xf32, #tpu.memory_space<vmem>>, vector<1x512x128xf32>
    %11 = vector.shape_cast %10 : vector<1x512x128xf32> to vector<512x128xf32>
    %12 = vector.shape_cast %9 : vector<512x128xf32> to vector<1x512x128xf32>
    tpu.vector_store %arg7[%c0_4, %c0_5, %c0_6], %12 {strides = array<i32>} : memref<1x512x128xf32, #tpu.memory_space<vmem>>, vector<1x512x128xf32>,
    return
  }
  func.func @transform_0(%arg0: i32, %arg1: i32) -> (i32, i32, i32) {
    %c0_i32 = arith.constant 0 : i32
    %c0_i32_0 = arith.constant 0 : i32
    %c0_i32_1 = arith.constant 0 : i32
    return %arg0, %c0_i32, %c0_i32_0 : i32, i32, i32
  }
  func.func @transform_1(%arg0: i32, %arg1: i32) -> (i32, i32, i32) {
    %c0_i32 = arith.constant 0 : i32
    %c0_i32_0 = arith.constant 0 : i32
    return %arg0, %arg1, %c0_i32 : i32, i32, i32
  }
  func.func @transform_2(%arg0: i32, %arg1: i32) -> (i32, i32, i32) {
    %c0_i32 = arith.constant 0 : i32
    %c0_i32_0 = arith.constant 0 : i32
    %c0_i32_1 = arith.constant 0 : i32
    %c0_i32_2 = arith.constant 0 : i32
    return %c0_i32, %c0_i32_0, %c0_i32_1 : i32, i32, i32
  }
  func.func @transform_3(%arg0: i32, %arg1: i32) -> (i32, i32, i32) {
    %c0_i32 = arith.constant 0 : i32
    %c0_i32_0 = arith.constant 0 : i32
    %c0_i32_1 = arith.constant 0 : i32
    %c0_i32_2 = arith.constant 0 : i32
    return %c0_i32, %c0_i32_0, %c0_i32_1 : i32, i32, i32
  }
  func.func @transform_4(%arg0: i32, %arg1: i32) -> (i32, i32, i32) {
    %c0_i32 = arith.constant 0 : i32
    %c0_i32_0 = arith.constant 0 : i32
    %c0_i32_1 = arith.constant 0 : i32
    %c0_i32_2 = arith.constant 0 : i32
    return %c0_i32, %c0_i32_0, %c0_i32_1 : i32, i32, i32
  }
  func.func @transform_5(%arg0: i32, %arg1: i32) -> (i32, i32, i32) {
    %c0_i32 = arith.constant 0 : i32
    %c0_i32_0 = arith.constant 0 : i32
    return %arg0, %arg1, %c0_i32 : i32, i32, i32
  }
}

</mosaic_0001>

<llo_original>
// kernel: ra_forward.1
$region0: #{ra_forward.1}
  #allocation0 [shape = 'u32[]', space=smem, size = 0x4, offset = 0x4, fixed_abs, tag = 'smem constant byte address 0x4 - core index']
  #allocation1 [shape = 'u32[144,128]{1,0:T(1,128)}', space=vmem, size = 0x12000, scoped, tag = 'internal scratch']
  #allocation2 [shape = 'f32[1024,128]{1,0:T(8,128)}', space=vmem, size = 0x80000, scoped, tag = 'scratch operand']
  %s0 = inlined_call_operand.vmem [shape: f32[2,1024,128], index: 0, kind: input, shape index: {}]
  %s1 = inlined_call_operand.vmem [shape: f32[2,1024,128], index: 1, kind: input, shape index: {}]
  %s2 = inlined_call_operand.vmem [shape: f32[2,128,1], index: 2, kind: input, shape index: {}]
  %s3 = inlined_call_operand.vmem [shape: f32[2,64,1024], index: 3, kind: input, shape index: {}]
  %s4 = inlined_call_operand.vmem [shape: f32[2,1024,64], index: 4, kind: input, shape index: {}]
  %s5 = inlined_call_operand.vmem [shape: f32[2,1024,128], index: 5, kind: output, shape index: {}]
  %s6 = sld [smem:[#allocation0]]
  $region57: #{ra_forward.1} parent=0
    _
  %s8 = ssub.s32 1, %s6
  %s9 = scalar_select 0, %s8, %s6
  loop: start=0, step=1, limit=6
  $region2: #{ra_forward.1} parent=0 // loop_pre_header
    _
  $region3: #{ra_forward.1} parent=0 // loop_header
    %s11 = sphi 0, %s15
    %p12 = scmp.ge.s32.totalorder %s11, 6
    %s18 = sphi 0, %s30
    %s19 = sphi 0, %s26
    %s20 = sphi 0, %s18
    %s21 = sphi 0, %s19
    %s22 = sphi 0, %s20
    %s23 = sphi 0, %s21
    %s33 = sphi 0, %s35
    %s36 = sphi 0, %s33
    %s37 = sphi 0, %s36
    %s53 = sphi 0, %s37
    %s61 = sphi 0, %s63
    %s64 = sphi 0, %s61
    %s65 = sphi 0, %s64
    %s81 = sphi 0, %s65
    %s85 = sphi 0, %s85
    %s87 = sphi 0, %s85
    %s88 = sphi 0, %s87
    %s102 = sphi 0, %s88
    %s106 = sphi 0, %s106
    %s108 = sphi 0, %s106
    %s109 = sphi 0, %s108
    %s123 = sphi 0, %s109
    %s127 = sphi 0, %s127
    %s129 = sphi 0, %s127
    %s130 = sphi 0, %s129
    %s144 = sphi 0, %s130
    %s152 = sphi 0, %s154
    %s155 = sphi 0, %s152
    %s156 = sphi 0, %s155
    %s172 = sphi 0, %s156
  $region4: #{ra_forward.1} parent=0 // loop_header_branch
    %14 = sbr.rel (%p12) target = $region8
  $region5: #{ra_forward.1} parent=0 // loop_body
    %s16 = ssub.s32 %s11, 1
    %s17 = ssub.s32 %s11, 2
    %s24 = sadd.s32 1, %s19
    %p25 = scmp.ge.s32.totalorder %s24, 2
    %s26 = scalar_select %p25, 0, %s24
    %s27 = sadd.s32 1, %s18
    %s28 = scalar_select %p25, %s27, %s18
    %p29 = scmp.ge.s32.totalorder %s28, 2
    %s30 = scalar_select %p29, 0, %s28
    %s31 = ssub.s32 %s18, %s30
    %p32 = scmp.eq.s32.totalorder %s31, 0
    %s34 = sadd.s32 %s33, 1
    %s35 = scalar_select %p32, %s33, %s34
    %p38 = pneg %p32
    %p39 = scmp.eq.s32.totalorder %s11, 3
    %p40 = por %p38, %p39
    %p41 = scmp.ne.s32.totalorder %s33, %s36
    %p42 = scmp.eq.s32.totalorder %s11, 0
    %p43 = por %p41, %p42
    %p44 = scmp.ne.s32.totalorder %s33, %s36
    %p45 = scmp.eq.s32.totalorder %s16, 3
    %p46 = por %p44, %p45
    %p47 = scmp.ne.s32.totalorder %s36, %s37
    %p48 = scmp.eq.s32.totalorder %s16, 0
    %p49 = por %p47, %p48
    %p50 = scmp.ne.s32.totalorder %s36, %s37
    %p51 = scmp.eq.s32.totalorder %s17, 3
    %p52 = por %p50, %p51
    %p54 = scmp.ne.s32.totalorder %s37, %s53
    %p55 = scmp.eq.s32.totalorder %s17, 0
    %p56 = por %p54, %p55
    %s57 = ssub.s32 %s18, %s30
    %s58 = ssub.s32 %s19, %s26
    %s59 = sor.u32 %s57, %s58
    %p60 = scmp.eq.s32.totalorder %s59, 0
    %s62 = sadd.s32 %s61, 1
    %s63 = scalar_select %p60, %s61, %s62
    %p66 = pneg %p60
    %p67 = scmp.eq.s32.totalorder %s11, 3
    %p68 = por %p66, %p67
    %p69 = scmp.ne.s32.totalorder %s61, %s64
    %p70 = scmp.eq.s32.totalorder %s11, 0
    %p71 = por %p69, %p70
    %p72 = scmp.ne.s32.totalorder %s61, %s64
    %p73 = scmp.eq.s32.totalorder %s16, 3
    %p74 = por %p72, %p73
    %p75 = scmp.ne.s32.totalorder %s64, %s65
    %p76 = scmp.eq.s32.totalorder %s16, 0
    %p77 = por %p75, %p76
    %p78 = scmp.ne.s32.totalorder %s64, %s65
    %p79 = scmp.eq.s32.totalorder %s17, 3
    %p80 = por %p78, %p79
    %p82 = scmp.ne.s32.totalorder %s65, %s81
    %p83 = scmp.eq.s32.totalorder %s17, 0
    %p84 = por %p82, %p83
    %s86 = sadd.s32 %s85, 1
    %p89 = scmp.eq.s32.totalorder %s11, 3
    %p90 = scmp.ne.s32.totalorder %s85, %s87
    %p91 = scmp.eq.s32.totalorder %s11, 0
    %p92 = por %p90, %p91
    %p93 = scmp.ne.s32.totalorder %s85, %s87
    %p94 = scmp.eq.s32.totalorder %s16, 3
    %p95 = por %p93, %p94
    %p96 = scmp.ne.s32.totalorder %s87, %s88
    %p97 = scmp.eq.s32.totalorder %s16, 0
    %p98 = por %p96, %p97
    %p99 = scmp.ne.s32.totalorder %s87, %s88
    %p100 = scmp.eq.s32.totalorder %s17, 3
    %p101 = por %p99, %p100
    %p103 = scmp.ne.s32.totalorder %s88, %s102
    %p104 = scmp.eq.s32.totalorder %s17, 0
    %p105 = por %p103, %p104
    %s107 = sadd.s32 %s106, 1
    %p110 = scmp.eq.s32.totalorder %s11, 3
    %p111 = scmp.ne.s32.totalorder %s106, %s108
    %p112 = scmp.eq.s32.totalorder %s11, 0
    %p113 = por %p111, %p112
    %p114 = scmp.ne.s32.totalorder %s106, %s108
    %p115 = scmp.eq.s32.totalorder %s16, 3
    %p116 = por %p114, %p115
    %p117 = scmp.ne.s32.totalorder %s108, %s109
    %p118 = scmp.eq.s32.totalorder %s16, 0
    %p119 = por %p117, %p118
    %p120 = scmp.ne.s32.totalorder %s108, %s109
    %p121 = scmp.eq.s32.totalorder %s17, 3
    %p122 = por %p120, %p121
    %p124 = scmp.ne.s32.totalorder %s109, %s123
    %p125 = scmp.eq.s32.totalorder %s17, 0
    %p126 = por %p124, %p125
    %s128 = sadd.s32 %s127, 1
    %p131 = scmp.eq.s32.totalorder %s11, 3
    %p132 = scmp.ne.s32.totalorder %s127, %s129
    %p133 = scmp.eq.s32.totalorder %s11, 0
    %p134 = por %p132, %p133
    %p135 = scmp.ne.s32.totalorder %s127, %s129
    %p136 = scmp.eq.s32.totalorder %s16, 3
    %p137 = por %p135, %p136
    %p138 = scmp.ne.s32.totalorder %s129, %s130
    %p139 = scmp.eq.s32.totalorder %s16, 0
    %p140 = por %p138, %p139
    %p141 = scmp.ne.s32.totalorder %s129, %s130
    %p142 = scmp.eq.s32.totalorder %s17, 3
    %p143 = por %p141, %p142
    %p145 = scmp.ne.s32.totalorder %s130, %s144
    %p146 = scmp.eq.s32.totalorder %s17, 0
    %p147 = por %p145, %p146
    %s148 = ssub.s32 %s18, %s30
    %s149 = ssub.s32 %s19, %s26
    %s150 = sor.u32 %s148, %s149
    %p151 = scmp.eq.s32.totalorder %s150, 0
    %s153 = sadd.s32 %s152, 1
    %s154 = scalar_select %p151, %s152, %s153
    %p157 = pneg %p151
    %p158 = scmp.eq.s32.totalorder %s11, 3
    %p159 = por %p157, %p158
    %p160 = scmp.ne.s32.totalorder %s152, %s155
    %p161 = scmp.eq.s32.totalorder %s11, 0
    %p162 = por %p160, %p161
    %p163 = scmp.ne.s32.totalorder %s152, %s155
    %p164 = scmp.eq.s32.totalorder %s16, 3
    %p165 = por %p163, %p164
    %p166 = scmp.ne.s32.totalorder %s155, %s156
    %p167 = scmp.eq.s32.totalorder %s16, 0
    %p168 = por %p166, %p167
    %p169 = scmp.ne.s32.totalorder %s155, %s156
    %p170 = scmp.eq.s32.totalorder %s17, 3
    %p171 = por %p169, %p170
    %p173 = scmp.ne.s32.totalorder %s156, %s172
    %p174 = scmp.eq.s32.totalorder %s17, 0
    %p175 = por %p173, %p174
    %p176 = scmp.le.s32.totalorder 1, %s11
    %p177 = scmp.lt.s32.totalorder %s11, 5
    %p178 = pnand %p176, %p177
    %p179 = pneg %p178
    // Predicated region
    $region9: #{ra_forward.1} parent=5 // pred_check
      _
    $region10: #{ra_forward.1} parent=5 // pred_check_branch
      %181 = sbr.rel (%p178) target = $region12
    $region11: #{ra_forward.1} parent=5 // pred_region
      %s182 = ssub.s32 %s11, 1
      // Predicated region
      $region13: #{ra_forward.1} parent=11 // pred_check
        %p183 = pneg %p98
      $region14: #{ra_forward.1} parent=11 // pred_check_branch
        %185 = sbr.rel (%p183) target = $region16
      $region15: #{ra_forward.1} parent=11 // pred_region
        _
      $region16: #{ra_forward.1} parent=11 // pred_fallthru
        _
      // Predicated region
      $region17: #{ra_forward.1} parent=11 // pred_check
        %p186 = pneg %p119
      $region18: #{ra_forward.1} parent=11 // pred_check_branch
        %188 = sbr.rel (%p186) target = $region20
      $region19: #{ra_forward.1} parent=11 // pred_region
        _
      $region20: #{ra_forward.1} parent=11 // pred_fallthru
        _
      // Predicated region
      $region21: #{ra_forward.1} parent=11 // pred_check
        %p189 = pneg %p140
      $region22: #{ra_forward.1} parent=11 // pred_check_branch
        %191 = sbr.rel (%p189) target = $region24
      $region23: #{ra_forward.1} parent=11 // pred_region
        _
      $region24: #{ra_forward.1} parent=11 // pred_fallthru
        _
    $region12: #{ra_forward.1} parent=5 // pred_fallthru
      _
    %p192 = scmp.lt.s32.totalorder %s11, 4
    // Predicated region
    $region25: #{ra_forward.1} parent=5 // pred_check
      %p193 = pneg %p192
    $region26: #{ra_forward.1} parent=5 // pred_check_branch
      %195 = sbr.rel (%p193) target = $region28
    $region27: #{ra_forward.1} parent=5 // pred_region
      // Predicated region
      $region29: #{ra_forward.1} parent=27 // pred_check
        %p196 = pneg %p43
      $region30: #{ra_forward.1} parent=27 // pred_check_branch
        %198 = sbr.rel (%p196) target = $region32
      $region31: #{ra_forward.1} parent=27 // pred_region
        %p199 = scmp.lt.s32.totalorder %s18, 1
        %s200 = scalar_select %p199, %s18, 1
        %s201 = smul.addr %s200, 128
        %s202 = smul.addr %s201, 8
        %s203 = scalar_lea.vmem %s0, %s202
      $region32: #{ra_forward.1} parent=27 // pred_fallthru
        _
      // Predicated region
      $region33: #{ra_forward.1} parent=27 // pred_check
        %p204 = pneg %p71
      $region34: #{ra_forward.1} parent=27 // pred_check_branch
        %206 = sbr.rel (%p204) target = $region36
      $region35: #{ra_forward.1} parent=27 // pred_region
        %s207 = smul.u32 64, %s19
        %p208 = scmp.lt.s32.totalorder %s18, 1
        %s209 = scalar_select %p208, %s18, 1
        %p210 = scmp.lt.s32.totalorder %s207, 127
        %s211 = scalar_select %p210, %s207, 127
        %s212 = smul.addr %s209, 128
        %s213 = sadd.s32 %s211, %s212
        %s214 = smul.addr %s213, 8
        %s215 = scalar_lea.vmem %s1, %s214
        %s216 = smul.u32 64, %s19
      $region36: #{ra_forward.1} parent=27 // pred_fallthru
        _
    $region28: #{ra_forward.1} parent=5 // pred_fallthru
      _
    %p217 = scmp.le.s32.totalorder 1, %s11
    %p218 = scmp.lt.s32.totalorder %s11, 5
    %p219 = pnand %p217, %p218
    %p220 = pneg %p219
    // Predicated region
    $region37: #{ra_forward.1} parent=5 // pred_check
      _
    $region38: #{ra_forward.1} parent=5 // pred_check_branch
      %222 = sbr.rel (%p219) target = $region40
    $region39: #{ra_forward.1} parent=5 // pred_region
      %s223 = ssub.s32 %s11, 1
      %p224 = scmp.lt.s32.totalorder %s20, 1
      %s225 = scalar_select %p224, %s20, 1
      %s226 = smul.addr %s225, 128
      %s227 = smul.addr %s226, 8
      %s228 = scalar_lea.vmem %s0, %s227
      %p229 = pneg %p49
      %p230 = pneg %p46
      %s231 = smul.u32 64, %s21
      %p232 = scmp.lt.s32.totalorder %s20, 1
      %s233 = scalar_select %p232, %s20, 1
      %p234 = scmp.lt.s32.totalorder %s231, 127
      %s235 = scalar_select %p234, %s231, 127
      %s236 = smul.addr %s233, 128
      %s237 = sadd.s32 %s235, %s236
      %s238 = smul.addr %s237, 8
      %s239 = scalar_lea.vmem %s1, %s238
      %p240 = pneg %p77
      %p241 = pneg %p74
      %p242 = pneg %p98
      %p243 = pneg %p95
      %p244 = pneg %p119
      %p245 = pneg %p116
      %p246 = pneg %p140
      %p247 = pneg %p137
      %p248 = pneg %p168
      %p249 = pneg %p165
      %s250 = smul.u32 64, %s21
      %p251 = scmp.lt.s32.totalorder %s20, 1
      %s252 = scalar_select %p251, %s20, 1
      %p253 = scmp.lt.s32.totalorder %s250, 127
      %s254 = scalar_select %p253, %s250, 127
      %s255 = smul.addr %s252, 128
      %s256 = sadd.s32 %s254, %s255
      %s257 = smul.addr %s256, 8
      %s258 = scalar_lea.vmem %s5, %s257
      %p259 = scmp.lt.s32.totalorder %s20, 1
      %s260 = scalar_select %p259, %s20, 1
      %s261 = smul.addr %s260, 128
      %s262 = smul.addr %s261, 8
      %s263 = scalar_lea.vmem %s0, %s262
      %s264 = smul.u32 64, %s21
      %p265 = scmp.lt.s32.totalorder %s20, 1
      %s266 = scalar_select %p265, %s20, 1
      %p267 = scmp.lt.s32.totalorder %s264, 127
      %s268 = scalar_select %p267, %s264, 127
      %s269 = smul.addr %s266, 128
      %s270 = sadd.s32 %s268, %s269
      %s271 = smul.addr %s270, 8
      %s272 = scalar_lea.vmem %s1, %s271
      %s273 = smul.u32 64, %s21
      %s274 = smul.u32 64, %s21
      %p275 = scmp.lt.s32.totalorder %s20, 1
      %s276 = scalar_select %p275, %s20, 1
      %p277 = scmp.lt.s32.totalorder %s274, 127
      %s278 = scalar_select %p277, %s274, 127
      %s279 = smul.addr %s276, 128
      %s280 = sadd.s32 %s278, %s279
      %s281 = smul.addr %s280, 8
      %s282 = scalar_lea.vmem %s5, %s281
      %s283 = smul.u32 64, %s21
      %p284 = scmp.eq.s32.totalorder %s21, 0
      // Predicated region
      $region41: #{ra_forward.1} parent=39 // pred_check
        %p285 = pneg %p284
      $region42: #{ra_forward.1} parent=39 // pred_check_branch
        %287 = sbr.rel (%p285) target = $region44
      $region43: #{ra_forward.1} parent=39 // pred_region
        %v288 = vld [vmem:[%s263] sm:$0xff]
        %v289 = vld [vmem:[%s263 + $0x8] sm:$0xff]
        %v290 = vld [vmem:[%s263 + $0x10] sm:$0xff]
        %v291 = vld [vmem:[%s263 + $0x18] sm:$0xff]
        %v292 = vld [vmem:[%s263 + $0x20] sm:$0xff]
        %v293 = vld [vmem:[%s263 + $0x28] sm:$0xff]
        %v294 = vld [vmem:[%s263 + $0x30] sm:$0xff]
        %v295 = vld [vmem:[%s263 + $0x38] sm:$0xff]
        %v296 = vld [vmem:[%s263 + $0x40] sm:$0xff]
        %v297 = vld [vmem:[%s263 + $0x48] sm:$0xff]
        %v298 = vld [vmem:[%s263 + $0x50] sm:$0xff]
        %v299 = vld [vmem:[%s263 + $0x58] sm:$0xff]
        %v300 = vld [vmem:[%s263 + $0x60] sm:$0xff]
        %v301 = vld [vmem:[%s263 + $0x68] sm:$0xff]
        %v302 = vld [vmem:[%s263 + $0x70] sm:$0xff]
        %v303 = vld [vmem:[%s263 + $0x78] sm:$0xff]
        %v304 = vld [vmem:[%s263 + $0x80] sm:$0xff]
        %v305 = vld [vmem:[%s263 + $0x88] sm:$0xff]
        %v306 = vld [vmem:[%s263 + $0x90] sm:$0xff]
        %v307 = vld [vmem:[%s263 + $0x98] sm:$0xff]
        %v308 = vld [vmem:[%s263 + $0xa0] sm:$0xff]
        %v309 = vld [vmem:[%s263 + $0xa8] sm:$0xff]
        %v310 = vld [vmem:[%s263 + $0xb0] sm:$0xff]
        %v311 = vld [vmem:[%s263 + $0xb8] sm:$0xff]
        %v312 = vld [vmem:[%s263 + $0xc0] sm:$0xff]
        %v313 = vld [vmem:[%s263 + $0xc8] sm:$0xff]
        %v314 = vld [vmem:[%s263 + $0xd0] sm:$0xff]
        %v315 = vld [vmem:[%s263 + $0xd8] sm:$0xff]
        %v316 = vld [vmem:[%s263 + $0xe0] sm:$0xff]
        %v317 = vld [vmem:[%s263 + $0xe8] sm:$0xff]
        %v318 = vld [vmem:[%s263 + $0xf0] sm:$0xff]
        %v319 = vld [vmem:[%s263 + $0xf8] sm:$0xff]
        %v320 = vld [vmem:[%s263 + $0x100] sm:$0xff]
        %v321 = vld [vmem:[%s263 + $0x108] sm:$0xff]
        %v322 = vld [vmem:[%s263 + $0x110] sm:$0xff]
        %v323 = vld [vmem:[%s263 + $0x118] sm:$0xff]
        %v324 = vld [vmem:[%s263 + $0x120] sm:$0xff]
        %v325 = vld [vmem:[%s263 + $0x128] sm:$0xff]
        %v326 = vld [vmem:[%s263 + $0x130] sm:$0xff]
        %v327 = vld [vmem:[%s263 + $0x138] sm:$0xff]
        %v328 = vld [vmem:[%s263 + $0x140] sm:$0xff]
        %v329 = vld [vmem:[%s263 + $0x148] sm:$0xff]
        %v330 = vld [vmem:[%s263 + $0x150] sm:$0xff]
        %v331 = vld [vmem:[%s263 + $0x158] sm:$0xff]
        %v332 = vld [vmem:[%s263 + $0x160] sm:$0xff]
        %v333 = vld [vmem:[%s263 + $0x168] sm:$0xff]
        %v334 = vld [vmem:[%s263 + $0x170] sm:$0xff]
        %v335 = vld [vmem:[%s263 + $0x178] sm:$0xff]
        %v336 = vld [vmem:[%s263 + $0x180] sm:$0xff]
        %v337 = vld [vmem:[%s263 + $0x188] sm:$0xff]
        %v338 = vld [vmem:[%s263 + $0x190] sm:$0xff]
        %v339 = vld [vmem:[%s263 + $0x198] sm:$0xff]
        %v340 = vld [vmem:[%s263 + $0x1a0] sm:$0xff]
        %v341 = vld [vmem:[%s263 + $0x1a8] sm:$0xff]
        %v342 = vld [vmem:[%s263 + $0x1b0] sm:$0xff]
        %v343 = vld [vmem:[%s263 + $0x1b8] sm:$0xff]
        %v344 = vld [vmem:[%s263 + $0x1c0] sm:$0xff]
        %v345 = vld [vmem:[%s263 + $0x1c8] sm:$0xff]
        %v346 = vld [vmem:[%s263 + $0x1d0] sm:$0xff]
        %v347 = vld [vmem:[%s263 + $0x1d8] sm:$0xff]
        %v348 = vld [vmem:[%s263 + $0x1e0] sm:$0xff]
        %v349 = vld [vmem:[%s263 + $0x1e8] sm:$0xff]
        %v350 = vld [vmem:[%s263 + $0x1f0] sm:$0xff]
        %v351 = vld [vmem:[%s263 + $0x1f8] sm:$0xff]
        %v352 = vld [vmem:[%s263 + $0x200] sm:$0xff]
        %v353 = vld [vmem:[%s263 + $0x208] sm:$0xff]
        %v354 = vld [vmem:[%s263 + $0x210] sm:$0xff]
        %v355 = vld [vmem:[%s263 + $0x218] sm:$0xff]
        %v356 = vld [vmem:[%s263 + $0x220] sm:$0xff]
        %v357 = vld [vmem:[%s263 + $0x228] sm:$0xff]
        %v358 = vld [vmem:[%s263 + $0x230] sm:$0xff]
        %v359 = vld [vmem:[%s263 + $0x238] sm:$0xff]
        %v360 = vld [vmem:[%s263 + $0x240] sm:$0xff]
        %v361 = vld [vmem:[%s263 + $0x248] sm:$0xff]
        %v362 = vld [vmem:[%s263 + $0x250] sm:$0xff]
        %v363 = vld [vmem:[%s263 + $0x258] sm:$0xff]
        %v364 = vld [vmem:[%s263 + $0x260] sm:$0xff]
        %v365 = vld [vmem:[%s263 + $0x268] sm:$0xff]
        %v366 = vld [vmem:[%s263 + $0x270] sm:$0xff]
        %v367 = vld [vmem:[%s263 + $0x278] sm:$0xff]
        %v368 = vld [vmem:[%s263 + $0x280] sm:$0xff]
        %v369 = vld [vmem:[%s263 + $0x288] sm:$0xff]
        %v370 = vld [vmem:[%s263 + $0x290] sm:$0xff]
        %v371 = vld [vmem:[%s263 + $0x298] sm:$0xff]
        %v372 = vld [vmem:[%s263 + $0x2a0] sm:$0xff]
        %v373 = vld [vmem:[%s263 + $0x2a8] sm:$0xff]
        %v374 = vld [vmem:[%s263 + $0x2b0] sm:$0xff]
        %v375 = vld [vmem:[%s263 + $0x2b8] sm:$0xff]
        %v376 = vld [vmem:[%s263 + $0x2c0] sm:$0xff]
        %v377 = vld [vmem:[%s263 + $0x2c8] sm:$0xff]
        %v378 = vld [vmem:[%s263 + $0x2d0] sm:$0xff]
        %v379 = vld [vmem:[%s263 + $0x2d8] sm:$0xff]
        %v380 = vld [vmem:[%s263 + $0x2e0] sm:$0xff]
        %v381 = vld [vmem:[%s263 + $0x2e8] sm:$0xff]
        %v382 = vld [vmem:[%s263 + $0x2f0] sm:$0xff]
        %v383 = vld [vmem:[%s263 + $0x2f8] sm:$0xff]
        %v384 = vld [vmem:[%s263 + $0x300] sm:$0xff]
        %v385 = vld [vmem:[%s263 + $0x308] sm:$0xff]
        %v386 = vld [vmem:[%s263 + $0x310] sm:$0xff]
        %v387 = vld [vmem:[%s263 + $0x318] sm:$0xff]
        %v388 = vld [vmem:[%s263 + $0x320] sm:$0xff]
        %v389 = vld [vmem:[%s263 + $0x328] sm:$0xff]
        %v390 = vld [vmem:[%s263 + $0x330] sm:$0xff]
        %v391 = vld [vmem:[%s263 + $0x338] sm:$0xff]
        %v392 = vld [vmem:[%s263 + $0x340] sm:$0xff]
        %v393 = vld [vmem:[%s263 + $0x348] sm:$0xff]
        %v394 = vld [vmem:[%s263 + $0x350] sm:$0xff]
        %v395 = vld [vmem:[%s263 + $0x358] sm:$0xff]
        %v396 = vld [vmem:[%s263 + $0x360] sm:$0xff]
        %v397 = vld [vmem:[%s263 + $0x368] sm:$0xff]
        %v398 = vld [vmem:[%s263 + $0x370] sm:$0xff]
        %v399 = vld [vmem:[%s263 + $0x378] sm:$0xff]
        %v400 = vld [vmem:[%s263 + $0x380] sm:$0xff]
        %v401 = vld [vmem:[%s263 + $0x388] sm:$0xff]
        %v402 = vld [vmem:[%s263 + $0x390] sm:$0xff]
        %v403 = vld [vmem:[%s263 + $0x398] sm:$0xff]
        %v404 = vld [vmem:[%s263 + $0x3a0] sm:$0xff]
        %v405 = vld [vmem:[%s263 + $0x3a8] sm:$0xff]
        %v406 = vld [vmem:[%s263 + $0x3b0] sm:$0xff]
        %v407 = vld [vmem:[%s263 + $0x3b8] sm:$0xff]
        %v408 = vld [vmem:[%s263 + $0x3c0] sm:$0xff]
        %v409 = vld [vmem:[%s263 + $0x3c8] sm:$0xff]
        %v410 = vld [vmem:[%s263 + $0x3d0] sm:$0xff]
        %v411 = vld [vmem:[%s263 + $0x3d8] sm:$0xff]
        %v412 = vld [vmem:[%s263 + $0x3e0] sm:$0xff]
        %v413 = vld [vmem:[%s263 + $0x3e8] sm:$0xff]
        %v414 = vld [vmem:[%s263 + $0x3f0] sm:$0xff]
        %v415 = vld [vmem:[%s263 + $0x3f8] sm:$0xff]
        %v416 = vld [vmem:[%s2] sm:$0xff]
        %v417 = vld [vmem:[%s2 + $0x8] sm:$0xff]
        %v418 = vld [vmem:[%s2 + $0x10] sm:$0xff]
        %v419 = vld [vmem:[%s2 + $0x18] sm:$0xff]
        %v420 = vld [vmem:[%s2 + $0x20] sm:$0xff]
        %v421 = vld [vmem:[%s2 + $0x28] sm:$0xff]
        %v422 = vld [vmem:[%s2 + $0x30] sm:$0xff]
        %v423 = vld [vmem:[%s2 + $0x38] sm:$0xff]
        %v424 = vld [vmem:[%s2 + $0x40] sm:$0xff]
        %v425 = vld [vmem:[%s2 + $0x48] sm:$0xff]
        %v426 = vld [vmem:[%s2 + $0x50] sm:$0xff]
        %v427 = vld [vmem:[%s2 + $0x58] sm:$0xff]
        %v428 = vld [vmem:[%s2 + $0x60] sm:$0xff]
        %v429 = vld [vmem:[%s2 + $0x68] sm:$0xff]
        %v430 = vld [vmem:[%s2 + $0x70] sm:$0xff]
        %v431 = vld [vmem:[%s2 + $0x78] sm:$0xff]
        %432 = vmatprep.subr.mxu0 0.0
        %433 = vmatpush1.msra.mxu0 %v431
        %434 = vmatprep.subr.mxu0 0.0
        %435 = vmatpush1.msra.mxu0 %v430
        %436 = vmatprep.subr.mxu0 0.0
        %437 = vmatpush1.msra.mxu0 %v429
        %438 = vmatprep.subr.mxu0 0.0
        %439 = vmatpush1.msra.mxu0 %v428
        %440 = vmatprep.subr.mxu0 0.0
        %441 = vmatpush1.msra.mxu0 %v427
        %442 = vmatprep.subr.mxu0 0.0
        %443 = vmatpush1.msra.mxu0 %v426
        %444 = vmatprep.subr.mxu0 0.0
        %445 = vmatpush1.msra.mxu0 %v425
        %446 = vmatprep.subr.mxu0 0.0
        %447 = vmatpush1.msra.mxu0 %v424
        %448 = vmatprep.subr.mxu0 0.0
        %449 = vmatpush1.msra.mxu0 %v423
        %450 = vmatprep.subr.mxu0 0.0
        %451 = vmatpush1.msra.mxu0 %v422
        %452 = vmatprep.subr.mxu0 0.0
        %453 = vmatpush1.msra.mxu0 %v421
        %454 = vmatprep.subr.mxu0 0.0
        %455 = vmatpush1.msra.mxu0 %v420
        %456 = vmatprep.subr.mxu0 0.0
        %457 = vmatpush1.msra.mxu0 %v419
        %458 = vmatprep.subr.mxu0 0.0
        %459 = vmatpush1.msra.mxu0 %v418
        %460 = vmatprep.subr.mxu0 0.0
        %461 = vmatpush1.msra.mxu0 %v417
        %462 = vmatprep.subr.mxu0 0.0
        %463 = vmatpush1.msra.mxu0 %v416
        %464 = vmatprep.subr.mxu0 0.0
        %465 = vmatpush2.msra.mxu0 0.0
        %466 = vmatprep.subr.mxu0 0.0
        %467 = vmatpush2.msra.mxu0 0.0
        %468 = vmatprep.subr.mxu0 0.0
        %469 = vmatpush2.msra.mxu0 0.0
        %470 = vmatprep.subr.mxu0 0.0
        %471 = vmatpush2.msra.mxu0 0.0
        %472 = vmatprep.subr.mxu0 0.0
        %473 = vmatpush2.msra.mxu0 0.0
        %474 = vmatprep.subr.mxu0 0.0
        %475 = vmatpush2.msra.mxu0 0.0
        %476 = vmatprep.subr.mxu0 0.0
        %477 = vmatpush2.msra.mxu0 0.0
        %478 = vmatprep.subr.mxu0 0.0
        %479 = vmatpush2.msra.mxu0 0.0
        %480 = vmatprep.subr.mxu0 0.0
        %481 = vmatpush2.msra.mxu0 0.0
        %482 = vmatprep.subr.mxu0 0.0
        %483 = vmatpush2.msra.mxu0 0.0
        %484 = vmatprep.subr.mxu0 0.0
        %485 = vmatpush2.msra.mxu0 0.0
        %486 = vmatprep.subr.mxu0 0.0
        %487 = vmatpush2.msra.mxu0 0.0
        %488 = vmatprep.subr.mxu0 0.0
        %489 = vmatpush2.msra.mxu0 0.0
        %490 = vmatprep.subr.mxu0 0.0
        %491 = vmatpush2.msra.mxu0 0.0
        %492 = vmatprep.subr.mxu0 0.0
        %493 = vmatpush2.msra.mxu0 0.0
        %494 = vmatprep.subr.mxu0 0.0
        %495 = vmatpush2.msra.mxu0 0.0
        %496 = vmatprep.mubr.f32.mxu0 0.0
        %497 = vmatmul.mubr.f32.gmra.mxu0 %v288
        %v498 = vpop.f32.mrf.mxu0
        %v499 = vadd.f32 0.0, %v498
        %v500 = vpop.f32.mrf.mxu0
        %501 = vmatprep.mubr.f32.mxu0 0.0
        %502 = vmatmul.mubr.f32.gmra.mxu0 %v289
        %v503 = vpop.f32.mrf.mxu0
        %v504 = vadd.f32 0.0, %v503
        %v505 = vpop.f32.mrf.mxu0
        %506 = vmatprep.mubr.f32.mxu0 0.0
        %507 = vmatmul.mubr.f32.gmra.mxu0 %v290
        %v508 = vpop.f32.mrf.mxu0
        %v509 = vadd.f32 0.0, %v508
        %v510 = vpop.f32.mrf.mxu0
        %511 = vmatprep.mubr.f32.mxu0 0.0
        %512 = vmatmul.mubr.f32.gmra.mxu0 %v291
        %v513 = vpop.f32.mrf.mxu0
        %v514 = vadd.f32 0.0, %v513
        %v515 = vpop.f32.mrf.mxu0
        %516 = vmatprep.mubr.f32.mxu0 0.0
        %517 = vmatmul.mubr.f32.gmra.mxu0 %v292
        %v518 = vpop.f32.mrf.mxu0
        %v519 = vadd.f32 0.0, %v518
        %v520 = vpop.f32.mrf.mxu0
        %521 = vmatprep.mubr.f32.mxu0 0.0
        %522 = vmatmul.mubr.f32.gmra.mxu0 %v293
        %v523 = vpop.f32.mrf.mxu0
        %v524 = vadd.f32 0.0, %v523
        %v525 = vpop.f32.mrf.mxu0
        %526 = vmatprep.mubr.f32.mxu0 0.0
        %527 = vmatmul.mubr.f32.gmra.mxu0 %v294
        %v528 = vpop.f32.mrf.mxu0
        %v529 = vadd.f32 0.0, %v528
        %v530 = vpop.f32.mrf.mxu0
        %531 = vmatprep.mubr.f32.mxu0 0.0
        %532 = vmatmul.mubr.f32.gmra.mxu0 %v295
        %v533 = vpop.f32.mrf.mxu0
        %v534 = vadd.f32 0.0, %v533
        %v535 = vpop.f32.mrf.mxu0
        %536 = vmatprep.mubr.f32.mxu0 0.0
        %537 = vmatmul.mubr.f32.gmra.mxu0 %v296
        %v538 = vpop.f32.mrf.mxu0
        %v539 = vadd.f32 0.0, %v538
        %v540 = vpop.f32.mrf.mxu0
        %541 = vmatprep.mubr.f32.mxu0 0.0
        %542 = vmatmul.mubr.f32.gmra.mxu0 %v297
        %v543 = vpop.f32.mrf.mxu0
        %v544 = vadd.f32 0.0, %v543
        %v545 = vpop.f32.mrf.mxu0
        %546 = vmatprep.mubr.f32.mxu0 0.0
        %547 = vmatmul.mubr.f32.gmra.mxu0 %v298
        %v548 = vpop.f32.mrf.mxu0
        %v549 = vadd.f32 0.0, %v548
        %v550 = vpop.f32.mrf.mxu0
        %551 = vmatprep.mubr.f32.mxu0 0.0
        %552 = vmatmul.mubr.f32.gmra.mxu0 %v299
        %v553 = vpop.f32.mrf.mxu0
        %v554 = vadd.f32 0.0, %v553
        %v555 = vpop.f32.mrf.mxu0
        %556 = vmatprep.mubr.f32.mxu0 0.0
        %557 = vmatmul.mubr.f32.gmra.mxu0 %v300
        %v558 = vpop.f32.mrf.mxu0
        %v559 = vadd.f32 0.0, %v558
        %v560 = vpop.f32.mrf.mxu0
        %561 = vmatprep.mubr.f32.mxu0 0.0
        %562 = vmatmul.mubr.f32.gmra.mxu0 %v301
        %v563 = vpop.f32.mrf.mxu0
        %v564 = vadd.f32 0.0, %v563
        %v565 = vpop.f32.mrf.mxu0
        %566 = vmatprep.mubr.f32.mxu0 0.0
        %567 = vmatmul.mubr.f32.gmra.mxu0 %v302
        %v568 = vpop.f32.mrf.mxu0
        %v569 = vadd.f32 0.0, %v568
        %v570 = vpop.f32.mrf.mxu0
        %571 = vmatprep.mubr.f32.mxu0 0.0
        %572 = vmatmul.mubr.f32.gmra.mxu0 %v303
        %v573 = vpop.f32.mrf.mxu0
        %v574 = vadd.f32 0.0, %v573
        %v575 = vpop.f32.mrf.mxu0
        %576 = vmatprep.mubr.f32.mxu0 0.0
        %577 = vmatmul.mubr.f32.gmra.mxu0 %v304
        %v578 = vpop.f32.mrf.mxu0
        %v579 = vadd.f32 0.0, %v578
        %v580 = vpop.f32.mrf.mxu0
        %581 = vmatprep.mubr.f32.mxu0 0.0
        %582 = vmatmul.mubr.f32.gmra.mxu0 %v305
        %v583 = vpop.f32.mrf.mxu0
        %v584 = vadd.f32 0.0, %v583
        %v585 = vpop.f32.mrf.mxu0
        %586 = vmatprep.mubr.f32.mxu0 0.0
        %587 = vmatmul.mubr.f32.gmra.mxu0 %v306
        %v588 = vpop.f32.mrf.mxu0
        %v589 = vadd.f32 0.0, %v588
        %v590 = vpop.f32.mrf.mxu0
        %591 = vmatprep.mubr.f32.mxu0 0.0
        %592 = vmatmul.mubr.f32.gmra.mxu0 %v307
        %v593 = vpop.f32.mrf.mxu0
        %v594 = vadd.f32 0.0, %v593
        %v595 = vpop.f32.mrf.mxu0
        %596 = vmatprep.mubr.f32.mxu0 0.0
        %597 = vmatmul.mubr.f32.gmra.mxu0 %v308
        %v598 = vpop.f32.mrf.mxu0
        %v599 = vadd.f32 0.0, %v598
        %v600 = vpop.f32.mrf.mxu0
        %601 = vmatprep.mubr.f32.mxu0 0.0
        %602 = vmatmul.mubr.f32.gmra.mxu0 %v309
        %v603 = vpop.f32.mrf.mxu0
        %v604 = vadd.f32 0.0, %v603
        %v605 = vpop.f32.mrf.mxu0
        %606 = vmatprep.mubr.f32.mxu0 0.0
        %607 = vmatmul.mubr.f32.gmra.mxu0 %v310
        %v608 = vpop.f32.mrf.mxu0
        %v609 = vadd.f32 0.0, %v608
        %v610 = vpop.f32.mrf.mxu0
        %611 = vmatprep.mubr.f32.mxu0 0.0
        %612 = vmatmul.mubr.f32.gmra.mxu0 %v311
        %v613 = vpop.f32.mrf.mxu0
        %v614 = vadd.f32 0.0, %v613
        %v615 = vpop.f32.mrf.mxu0
        %616 = vmatprep.mubr.f32.mxu0 0.0
        %617 = vmatmul.mubr.f32.gmra.mxu0 %v312
        %v618 = vpop.f32.mrf.mxu0
        %v619 = vadd.f32 0.0, %v618
        %v620 = vpop.f32.mrf.mxu0
        %621 = vmatprep.mubr.f32.mxu0 0.0
        %622 = vmatmul.mubr.f32.gmra.mxu0 %v313
        %v623 = vpop.f32.mrf.mxu0
        %v624 = vadd.f32 0.0, %v623
        %v625 = vpop.f32.mrf.mxu0
        %626 = vmatprep.mubr.f32.mxu0 0.0
        %627 = vmatmul.mubr.f32.gmra.mxu0 %v314
        %v628 = vpop.f32.mrf.mxu0
        %v629 = vadd.f32 0.0, %v628
        %v630 = vpop.f32.mrf.mxu0
        %631 = vmatprep.mubr.f32.mxu0 0.0
        %632 = vmatmul.mubr.f32.gmra.mxu0 %v315
        %v633 = vpop.f32.mrf.mxu0
        %v634 = vadd.f32 0.0, %v633
        %v635 = vpop.f32.mrf.mxu0
        %636 = vmatprep.mubr.f32.mxu0 0.0
        %637 = vmatmul.mubr.f32.gmra.mxu0 %v316
        %v638 = vpop.f32.mrf.mxu0
        %v639 = vadd.f32 0.0, %v638
        %v640 = vpop.f32.mrf.mxu0
        %641 = vmatprep.mubr.f32.mxu0 0.0
        %642 = vmatmul.mubr.f32.gmra.mxu0 %v317
        %v643 = vpop.f32.mrf.mxu0
        %v644 = vadd.f32 0.0, %v643
        %v645 = vpop.f32.mrf.mxu0
        %646 = vmatprep.mubr.f32.mxu0 0.0
        %647 = vmatmul.mubr.f32.gmra.mxu0 %v318
        %v648 = vpop.f32.mrf.mxu0
        %v649 = vadd.f32 0.0, %v648
        %v650 = vpop.f32.mrf.mxu0
        %651 = vmatprep.mubr.f32.mxu0 0.0
        %652 = vmatmul.mubr.f32.gmra.mxu0 %v319
        %v653 = vpop.f32.mrf.mxu0
        %v654 = vadd.f32 0.0, %v653
        %v655 = vpop.f32.mrf.mxu0
        %656 = vmatprep.mubr.f32.mxu0 0.0
        %657 = vmatmul.mubr.f32.gmra.mxu0 %v320
        %v658 = vpop.f32.mrf.mxu0
        %v659 = vadd.f32 0.0, %v658
        %v660 = vpop.f32.mrf.mxu0
        %661 = vmatprep.mubr.f32.mxu0 0.0
        %662 = vmatmul.mubr.f32.gmra.mxu0 %v321
        %v663 = vpop.f32.mrf.mxu0
        %v664 = vadd.f32 0.0, %v663
        %v665 = vpop.f32.mrf.mxu0
        %666 = vmatprep.mubr.f32.mxu0 0.0
        %667 = vmatmul.mubr.f32.gmra.mxu0 %v322
        %v668 = vpop.f32.mrf.mxu0
        %v669 = vadd.f32 0.0, %v668
        %v670 = vpop.f32.mrf.mxu0
        %671 = vmatprep.mubr.f32.mxu0 0.0
        %672 = vmatmul.mubr.f32.gmra.mxu0 %v323
        %v673 = vpop.f32.mrf.mxu0
        %v674 = vadd.f32 0.0, %v673
        %v675 = vpop.f32.mrf.mxu0
        %676 = vmatprep.mubr.f32.mxu0 0.0
        %677 = vmatmul.mubr.f32.gmra.mxu0 %v324
        %v678 = vpop.f32.mrf.mxu0
        %v679 = vadd.f32 0.0, %v678
        %v680 = vpop.f32.mrf.mxu0
        %681 = vmatprep.mubr.f32.mxu0 0.0
        %682 = vmatmul.mubr.f32.gmra.mxu0 %v325
        %v683 = vpop.f32.mrf.mxu0
        %v684 = vadd.f32 0.0, %v683
        %v685 = vpop.f32.mrf.mxu0
        %686 = vmatprep.mubr.f32.mxu0 0.0
        %687 = vmatmul.mubr.f32.gmra.mxu0 %v326
        %v688 = vpop.f32.mrf.mxu0
        %v689 = vadd.f32 0.0, %v688
        %v690 = vpop.f32.mrf.mxu0
        %691 = vmatprep.mubr.f32.mxu0 0.0
        %692 = vmatmul.mubr.f32.gmra.mxu0 %v327
        %v693 = vpop.f32.mrf.mxu0
        %v694 = vadd.f32 0.0, %v693
        %v695 = vpop.f32.mrf.mxu0
        %696 = vmatprep.mubr.f32.mxu0 0.0
        %697 = vmatmul.mubr.f32.gmra.mxu0 %v328
        %v698 = vpop.f32.mrf.mxu0
        %v699 = vadd.f32 0.0, %v698
        %v700 = vpop.f32.mrf.mxu0
        %701 = vmatprep.mubr.f32.mxu0 0.0
        %702 = vmatmul.mubr.f32.gmra.mxu0 %v329
        %v703 = vpop.f32.mrf.mxu0
        %v704 = vadd.f32 0.0, %v703
        %v705 = vpop.f32.mrf.mxu0
        %706 = vmatprep.mubr.f32.mxu0 0.0
        %707 = vmatmul.mubr.f32.gmra.mxu0 %v330
        %v708 = vpop.f32.mrf.mxu0
        %v709 = vadd.f32 0.0, %v708
        %v710 = vpop.f32.mrf.mxu0
        %711 = vmatprep.mubr.f32.mxu0 0.0
        %712 = vmatmul.mubr.f32.gmra.mxu0 %v331
        %v713 = vpop.f32.mrf.mxu0
        %v714 = vadd.f32 0.0, %v713
        %v715 = vpop.f32.mrf.mxu0
        %716 = vmatprep.mubr.f32.mxu0 0.0
        %717 = vmatmul.mubr.f32.gmra.mxu0 %v332
        %v718 = vpop.f32.mrf.mxu0
        %v719 = vadd.f32 0.0, %v718
        %v720 = vpop.f32.mrf.mxu0
        %721 = vmatprep.mubr.f32.mxu0 0.0
        %722 = vmatmul.mubr.f32.gmra.mxu0 %v333
        %v723 = vpop.f32.mrf.mxu0
        %v724 = vadd.f32 0.0, %v723
        %v725 = vpop.f32.mrf.mxu0
        %726 = vmatprep.mubr.f32.mxu0 0.0
        %727 = vmatmul.mubr.f32.gmra.mxu0 %v334
        %v728 = vpop.f32.mrf.mxu0
        %v729 = vadd.f32 0.0, %v728
        %v730 = vpop.f32.mrf.mxu0
        %731 = vmatprep.mubr.f32.mxu0 0.0
        %732 = vmatmul.mubr.f32.gmra.mxu0 %v335
        %v733 = vpop.f32.mrf.mxu0
        %v734 = vadd.f32 0.0, %v733
        %v735 = vpop.f32.mrf.mxu0
        %736 = vmatprep.mubr.f32.mxu0 0.0
        %737 = vmatmul.mubr.f32.gmra.mxu0 %v336
        %v738 = vpop.f32.mrf.mxu0
        %v739 = vadd.f32 0.0, %v738
        %v740 = vpop.f32.mrf.mxu0
        %741 = vmatprep.mubr.f32.mxu0 0.0
        %742 = vmatmul.mubr.f32.gmra.mxu0 %v337
        %v743 = vpop.f32.mrf.mxu0
        %v744 = vadd.f32 0.0, %v743
        %v745 = vpop.f32.mrf.mxu0
        %746 = vmatprep.mubr.f32.mxu0 0.0
        %747 = vmatmul.mubr.f32.gmra.mxu0 %v338
        %v748 = vpop.f32.mrf.mxu0
        %v749 = vadd.f32 0.0, %v748
        %v750 = vpop.f32.mrf.mxu0
        %751 = vmatprep.mubr.f32.mxu0 0.0
        %752 = vmatmul.mubr.f32.gmra.mxu0 %v339
        %v753 = vpop.f32.mrf.mxu0
        %v754 = vadd.f32 0.0, %v753
        %v755 = vpop.f32.mrf.mxu0
        %756 = vmatprep.mubr.f32.mxu0 0.0
        %757 = vmatmul.mubr.f32.gmra.mxu0 %v340
        %v758 = vpop.f32.mrf.mxu0
        %v759 = vadd.f32 0.0, %v758
        %v760 = vpop.f32.mrf.mxu0
        %761 = vmatprep.mubr.f32.mxu0 0.0
        %762 = vmatmul.mubr.f32.gmra.mxu0 %v341
        %v763 = vpop.f32.mrf.mxu0
        %v764 = vadd.f32 0.0, %v763
        %v765 = vpop.f32.mrf.mxu0
        %766 = vmatprep.mubr.f32.mxu0 0.0
        %767 = vmatmul.mubr.f32.gmra.mxu0 %v342
        %v768 = vpop.f32.mrf.mxu0
        %v769 = vadd.f32 0.0, %v768
        %v770 = vpop.f32.mrf.mxu0
        %771 = vmatprep.mubr.f32.mxu0 0.0
        %772 = vmatmul.mubr.f32.gmra.mxu0 %v343
        %v773 = vpop.f32.mrf.mxu0
        %v774 = vadd.f32 0.0, %v773
        %v775 = vpop.f32.mrf.mxu0
        %776 = vmatprep.mubr.f32.mxu0 0.0
        %777 = vmatmul.mubr.f32.gmra.mxu0 %v344
        %v778 = vpop.f32.mrf.mxu0
        %v779 = vadd.f32 0.0, %v778
        %v780 = vpop.f32.mrf.mxu0
        %781 = vmatprep.mubr.f32.mxu0 0.0
        %782 = vmatmul.mubr.f32.gmra.mxu0 %v345
        %v783 = vpop.f32.mrf.mxu0
        %v784 = vadd.f32 0.0, %v783
        %v785 = vpop.f32.mrf.mxu0
        %786 = vmatprep.mubr.f32.mxu0 0.0
        %787 = vmatmul.mubr.f32.gmra.mxu0 %v346
        %v788 = vpop.f32.mrf.mxu0
        %v789 = vadd.f32 0.0, %v788
        %v790 = vpop.f32.mrf.mxu0
        %791 = vmatprep.mubr.f32.mxu0 0.0
        %792 = vmatmul.mubr.f32.gmra.mxu0 %v347
        %v793 = vpop.f32.mrf.mxu0
        %v794 = vadd.f32 0.0, %v793
        %v795 = vpop.f32.mrf.mxu0
        %796 = vmatprep.mubr.f32.mxu0 0.0
        %797 = vmatmul.mubr.f32.gmra.mxu0 %v348
        %v798 = vpop.f32.mrf.mxu0
        %v799 = vadd.f32 0.0, %v798
        %v800 = vpop.f32.mrf.mxu0
        %801 = vmatprep.mubr.f32.mxu0 0.0
        %802 = vmatmul.mubr.f32.gmra.mxu0 %v349
        %v803 = vpop.f32.mrf.mxu0
        %v804 = vadd.f32 0.0, %v803
        %v805 = vpop.f32.mrf.mxu0
        %806 = vmatprep.mubr.f32.mxu0 0.0
        %807 = vmatmul.mubr.f32.gmra.mxu0 %v350
        %v808 = vpop.f32.mrf.mxu0
        %v809 = vadd.f32 0.0, %v808
        %v810 = vpop.f32.mrf.mxu0
        %811 = vmatprep.mubr.f32.mxu0 0.0
        %812 = vmatmul.mubr.f32.gmra.mxu0 %v351
        %v813 = vpop.f32.mrf.mxu0
        %v814 = vadd.f32 0.0, %v813
        %v815 = vpop.f32.mrf.mxu0
        %816 = vmatprep.mubr.f32.mxu0 0.0
        %817 = vmatmul.mubr.f32.gmra.mxu0 %v352
        %v818 = vpop.f32.mrf.mxu0
        %v819 = vadd.f32 0.0, %v818
        %v820 = vpop.f32.mrf.mxu0
        %821 = vmatprep.mubr.f32.mxu0 0.0
        %822 = vmatmul.mubr.f32.gmra.mxu0 %v353
        %v823 = vpop.f32.mrf.mxu0
        %v824 = vadd.f32 0.0, %v823
        %v825 = vpop.f32.mrf.mxu0
        %826 = vmatprep.mubr.f32.mxu0 0.0
        %827 = vmatmul.mubr.f32.gmra.mxu0 %v354
        %v828 = vpop.f32.mrf.mxu0
        %v829 = vadd.f32 0.0, %v828
        %v830 = vpop.f32.mrf.mxu0
        %831 = vmatprep.mubr.f32.mxu0 0.0
        %832 = vmatmul.mubr.f32.gmra.mxu0 %v355
        %v833 = vpop.f32.mrf.mxu0
        %v834 = vadd.f32 0.0, %v833
        %v835 = vpop.f32.mrf.mxu0
        %836 = vmatprep.mubr.f32.mxu0 0.0
        %837 = vmatmul.mubr.f32.gmra.mxu0 %v356
        %v838 = vpop.f32.mrf.mxu0
        %v839 = vadd.f32 0.0, %v838
        %v840 = vpop.f32.mrf.mxu0
        %841 = vmatprep.mubr.f32.mxu0 0.0
        %842 = vmatmul.mubr.f32.gmra.mxu0 %v357
        %v843 = vpop.f32.mrf.mxu0
        %v844 = vadd.f32 0.0, %v843
        %v845 = vpop.f32.mrf.mxu0
        %846 = vmatprep.mubr.f32.mxu0 0.0
        %847 = vmatmul.mubr.f32.gmra.mxu0 %v358
        %v848 = vpop.f32.mrf.mxu0
        %v849 = vadd.f32 0.0, %v848
        %v850 = vpop.f32.mrf.mxu0
        %851 = vmatprep.mubr.f32.mxu0 0.0
        %852 = vmatmul.mubr.f32.gmra.mxu0 %v359
        %v853 = vpop.f32.mrf.mxu0
        %v854 = vadd.f32 0.0, %v853
        %v855 = vpop.f32.mrf.mxu0
        %856 = vmatprep.mubr.f32.mxu0 0.0
        %857 = vmatmul.mubr.f32.gmra.mxu0 %v360
        %v858 = vpop.f32.mrf.mxu0
        %v859 = vadd.f32 0.0, %v858
        %v860 = vpop.f32.mrf.mxu0
        %861 = vmatprep.mubr.f32.mxu0 0.0
        %862 = vmatmul.mubr.f32.gmra.mxu0 %v361
        %v863 = vpop.f32.mrf.mxu0
        %v864 = vadd.f32 0.0, %v863
        %v865 = vpop.f32.mrf.mxu0
        %866 = vmatprep.mubr.f32.mxu0 0.0
        %867 = vmatmul.mubr.f32.gmra.mxu0 %v362
        %v868 = vpop.f32.mrf.mxu0
        %v869 = vadd.f32 0.0, %v868
        %v870 = vpop.f32.mrf.mxu0
        %871 = vmatprep.mubr.f32.mxu0 0.0
        %872 = vmatmul.mubr.f32.gmra.mxu0 %v363
        %v873 = vpop.f32.mrf.mxu0
        %v874 = vadd.f32 0.0, %v873
        %v875 = vpop.f32.mrf.mxu0
        %876 = vmatprep.mubr.f32.mxu0 0.0
        %877 = vmatmul.mubr.f32.gmra.mxu0 %v364
        %v878 = vpop.f32.mrf.mxu0
        %v879 = vadd.f32 0.0, %v878
        %v880 = vpop.f32.mrf.mxu0
        %881 = vmatprep.mubr.f32.mxu0 0.0
        %882 = vmatmul.mubr.f32.gmra.mxu0 %v365
        %v883 = vpop.f32.mrf.mxu0
        %v884 = vadd.f32 0.0, %v883
        %v885 = vpop.f32.mrf.mxu0
        %886 = vmatprep.mubr.f32.mxu0 0.0
        %887 = vmatmul.mubr.f32.gmra.mxu0 %v366
        %v888 = vpop.f32.mrf.mxu0
        %v889 = vadd.f32 0.0, %v888
        %v890 = vpop.f32.mrf.mxu0
        %891 = vmatprep.mubr.f32.mxu0 0.0
        %892 = vmatmul.mubr.f32.gmra.mxu0 %v367
        %v893 = vpop.f32.mrf.mxu0
        %v894 = vadd.f32 0.0, %v893
        %v895 = vpop.f32.mrf.mxu0
        %896 = vmatprep.mubr.f32.mxu0 0.0
        %897 = vmatmul.mubr.f32.gmra.mxu0 %v368
        %v898 = vpop.f32.mrf.mxu0
        %v899 = vadd.f32 0.0, %v898
        %v900 = vpop.f32.mrf.mxu0
        %901 = vmatprep.mubr.f32.mxu0 0.0
        %902 = vmatmul.mubr.f32.gmra.mxu0 %v369
        %v903 = vpop.f32.mrf.mxu0
        %v904 = vadd.f32 0.0, %v903
        %v905 = vpop.f32.mrf.mxu0
        %906 = vmatprep.mubr.f32.mxu0 0.0
        %907 = vmatmul.mubr.f32.gmra.mxu0 %v370
        %v908 = vpop.f32.mrf.mxu0
        %v909 = vadd.f32 0.0, %v908
        %v910 = vpop.f32.mrf.mxu0
        %911 = vmatprep.mubr.f32.mxu0 0.0
        %912 = vmatmul.mubr.f32.gmra.mxu0 %v371
        %v913 = vpop.f32.mrf.mxu0
        %v914 = vadd.f32 0.0, %v913
        %v915 = vpop.f32.mrf.mxu0
        %916 = vmatprep.mubr.f32.mxu0 0.0
        %917 = vmatmul.mubr.f32.gmra.mxu0 %v372
        %v918 = vpop.f32.mrf.mxu0
        %v919 = vadd.f32 0.0, %v918
        %v920 = vpop.f32.mrf.mxu0
        %921 = vmatprep.mubr.f32.mxu0 0.0
        %922 = vmatmul.mubr.f32.gmra.mxu0 %v373
        %v923 = vpop.f32.mrf.mxu0
        %v924 = vadd.f32 0.0, %v923
        %v925 = vpop.f32.mrf.mxu0
        %926 = vmatprep.mubr.f32.mxu0 0.0
        %927 = vmatmul.mubr.f32.gmra.mxu0 %v374
        %v928 = vpop.f32.mrf.mxu0
        %v929 = vadd.f32 0.0, %v928
        %v930 = vpop.f32.mrf.mxu0
        %931 = vmatprep.mubr.f32.mxu0 0.0
        %932 = vmatmul.mubr.f32.gmra.mxu0 %v375
        %v933 = vpop.f32.mrf.mxu0
        %v934 = vadd.f32 0.0, %v933
        %v935 = vpop.f32.mrf.mxu0
        %936 = vmatprep.mubr.f32.mxu0 0.0
        %937 = vmatmul.mubr.f32.gmra.mxu0 %v376
        %v938 = vpop.f32.mrf.mxu0
        %v939 = vadd.f32 0.0, %v938
        %v940 = vpop.f32.mrf.mxu0
        %941 = vmatprep.mubr.f32.mxu0 0.0
        %942 = vmatmul.mubr.f32.gmra.mxu0 %v377
        %v943 = vpop.f32.mrf.mxu0
        %v944 = vadd.f32 0.0, %v943
        %v945 = vpop.f32.mrf.mxu0
        %946 = vmatprep.mubr.f32.mxu0 0.0
        %947 = vmatmul.mubr.f32.gmra.mxu0 %v378
        %v948 = vpop.f32.mrf.mxu0
        %v949 = vadd.f32 0.0, %v948
        %v950 = vpop.f32.mrf.mxu0
        %951 = vmatprep.mubr.f32.mxu0 0.0
        %952 = vmatmul.mubr.f32.gmra.mxu0 %v379
        %v953 = vpop.f32.mrf.mxu0
        %v954 = vadd.f32 0.0, %v953
        %v955 = vpop.f32.mrf.mxu0
        %956 = vmatprep.mubr.f32.mxu0 0.0
        %957 = vmatmul.mubr.f32.gmra.mxu0 %v380
        %v958 = vpop.f32.mrf.mxu0
        %v959 = vadd.f32 0.0, %v958
        %v960 = vpop.f32.mrf.mxu0
        %961 = vmatprep.mubr.f32.mxu0 0.0
        %962 = vmatmul.mubr.f32.gmra.mxu0 %v381
        %v963 = vpop.f32.mrf.mxu0
        %v964 = vadd.f32 0.0, %v963
        %v965 = vpop.f32.mrf.mxu0
        %966 = vmatprep.mubr.f32.mxu0 0.0
        %967 = vmatmul.mubr.f32.gmra.mxu0 %v382
        %v968 = vpop.f32.mrf.mxu0
        %v969 = vadd.f32 0.0, %v968
        %v970 = vpop.f32.mrf.mxu0
        %971 = vmatprep.mubr.f32.mxu0 0.0
        %972 = vmatmul.mubr.f32.gmra.mxu0 %v383
        %v973 = vpop.f32.mrf.mxu0
        %v974 = vadd.f32 0.0, %v973
        %v975 = vpop.f32.mrf.mxu0
        %976 = vmatprep.mubr.f32.mxu0 0.0
        %977 = vmatmul.mubr.f32.gmra.mxu0 %v384
        %v978 = vpop.f32.mrf.mxu0
        %v979 = vadd.f32 0.0, %v978
        %v980 = vpop.f32.mrf.mxu0
        %981 = vmatprep.mubr.f32.mxu0 0.0
        %982 = vmatmul.mubr.f32.gmra.mxu0 %v385
        %v983 = vpop.f32.mrf.mxu0
        %v984 = vadd.f32 0.0, %v983
        %v985 = vpop.f32.mrf.mxu0
        %986 = vmatprep.mubr.f32.mxu0 0.0
        %987 = vmatmul.mubr.f32.gmra.mxu0 %v386
        %v988 = vpop.f32.mrf.mxu0
        %v989 = vadd.f32 0.0, %v988
        %v990 = vpop.f32.mrf.mxu0
        %991 = vmatprep.mubr.f32.mxu0 0.0
        %992 = vmatmul.mubr.f32.gmra.mxu0 %v387
        %v993 = vpop.f32.mrf.mxu0
        %v994 = vadd.f32 0.0, %v993
        %v995 = vpop.f32.mrf.mxu0
        %996 = vmatprep.mubr.f32.mxu0 0.0
        %997 = vmatmul.mubr.f32.gmra.mxu0 %v388
        %v998 = vpop.f32.mrf.mxu0
        %v999 = vadd.f32 0.0, %v998
        %v1000 = vpop.f32.mrf.mxu0
        %1001 = vmatprep.mubr.f32.mxu0 0.0
        %1002 = vmatmul.mubr.f32.gmra.mxu0 %v389
        %v1003 = vpop.f32.mrf.mxu0
        %v1004 = vadd.f32 0.0, %v1003
        %v1005 = vpop.f32.mrf.mxu0
        %1006 = vmatprep.mubr.f32.mxu0 0.0
        %1007 = vmatmul.mubr.f32.gmra.mxu0 %v390
        %v1008 = vpop.f32.mrf.mxu0
        %v1009 = vadd.f32 0.0, %v1008
        %v1010 = vpop.f32.mrf.mxu0
        %1011 = vmatprep.mubr.f32.mxu0 0.0
        %1012 = vmatmul.mubr.f32.gmra.mxu0 %v391
        %v1013 = vpop.f32.mrf.mxu0
        %v1014 = vadd.f32 0.0, %v1013
        %v1015 = vpop.f32.mrf.mxu0
        %1016 = vmatprep.mubr.f32.mxu0 0.0
        %1017 = vmatmul.mubr.f32.gmra.mxu0 %v392
        %v1018 = vpop.f32.mrf.mxu0
        %v1019 = vadd.f32 0.0, %v1018
        %v1020 = vpop.f32.mrf.mxu0
        %1021 = vmatprep.mubr.f32.mxu0 0.0
        %1022 = vmatmul.mubr.f32.gmra.mxu0 %v393
        %v1023 = vpop.f32.mrf.mxu0
        %v1024 = vadd.f32 0.0, %v1023
        %v1025 = vpop.f32.mrf.mxu0
        %1026 = vmatprep.mubr.f32.mxu0 0.0
        %1027 = vmatmul.mubr.f32.gmra.mxu0 %v394
        %v1028 = vpop.f32.mrf.mxu0
        %v1029 = vadd.f32 0.0, %v1028
        %v1030 = vpop.f32.mrf.mxu0
        %1031 = vmatprep.mubr.f32.mxu0 0.0
        %1032 = vmatmul.mubr.f32.gmra.mxu0 %v395
        %v1033 = vpop.f32.mrf.mxu0
        %v1034 = vadd.f32 0.0, %v1033
        %v1035 = vpop.f32.mrf.mxu0
        %1036 = vmatprep.mubr.f32.mxu0 0.0
        %1037 = vmatmul.mubr.f32.gmra.mxu0 %v396
        %v1038 = vpop.f32.mrf.mxu0
        %v1039 = vadd.f32 0.0, %v1038
        %v1040 = vpop.f32.mrf.mxu0
        %1041 = vmatprep.mubr.f32.mxu0 0.0
        %1042 = vmatmul.mubr.f32.gmra.mxu0 %v397
        %v1043 = vpop.f32.mrf.mxu0
        %v1044 = vadd.f32 0.0, %v1043
        %v1045 = vpop.f32.mrf.mxu0
        %1046 = vmatprep.mubr.f32.mxu0 0.0
        %1047 = vmatmul.mubr.f32.gmra.mxu0 %v398
        %v1048 = vpop.f32.mrf.mxu0
        %v1049 = vadd.f32 0.0, %v1048
        %v1050 = vpop.f32.mrf.mxu0
        %1051 = vmatprep.mubr.f32.mxu0 0.0
        %1052 = vmatmul.mubr.f32.gmra.mxu0 %v399
        %v1053 = vpop.f32.mrf.mxu0
        %v1054 = vadd.f32 0.0, %v1053
        %v1055 = vpop.f32.mrf.mxu0
        %1056 = vmatprep.mubr.f32.mxu0 0.0
        %1057 = vmatmul.mubr.f32.gmra.mxu0 %v400
        %v1058 = vpop.f32.mrf.mxu0
        %v1059 = vadd.f32 0.0, %v1058
        %v1060 = vpop.f32.mrf.mxu0
        %1061 = vmatprep.mubr.f32.mxu0 0.0
        %1062 = vmatmul.mubr.f32.gmra.mxu0 %v401
        %v1063 = vpop.f32.mrf.mxu0
        %v1064 = vadd.f32 0.0, %v1063
        %v1065 = vpop.f32.mrf.mxu0
        %1066 = vmatprep.mubr.f32.mxu0 0.0
        %1067 = vmatmul.mubr.f32.gmra.mxu0 %v402
        %v1068 = vpop.f32.mrf.mxu0
        %v1069 = vadd.f32 0.0, %v1068
        %v1070 = vpop.f32.mrf.mxu0
        %1071 = vmatprep.mubr.f32.mxu0 0.0
        %1072 = vmatmul.mubr.f32.gmra.mxu0 %v403
        %v1073 = vpop.f32.mrf.mxu0
        %v1074 = vadd.f32 0.0, %v1073
        %v1075 = vpop.f32.mrf.mxu0
        %1076 = vmatprep.mubr.f32.mxu0 0.0
        %1077 = vmatmul.mubr.f32.gmra.mxu0 %v404
        %v1078 = vpop.f32.mrf.mxu0
        %v1079 = vadd.f32 0.0, %v1078
        %v1080 = vpop.f32.mrf.mxu0
        %1081 = vmatprep.mubr.f32.mxu0 0.0
        %1082 = vmatmul.mubr.f32.gmra.mxu0 %v405
        %v1083 = vpop.f32.mrf.mxu0
        %v1084 = vadd.f32 0.0, %v1083
        %v1085 = vpop.f32.mrf.mxu0
        %1086 = vmatprep.mubr.f32.mxu0 0.0
        %1087 = vmatmul.mubr.f32.gmra.mxu0 %v406
        %v1088 = vpop.f32.mrf.mxu0
        %v1089 = vadd.f32 0.0, %v1088
        %v1090 = vpop.f32.mrf.mxu0
        %1091 = vmatprep.mubr.f32.mxu0 0.0
        %1092 = vmatmul.mubr.f32.gmra.mxu0 %v407
        %v1093 = vpop.f32.mrf.mxu0
        %v1094 = vadd.f32 0.0, %v1093
        %v1095 = vpop.f32.mrf.mxu0
        %1096 = vmatprep.mubr.f32.mxu0 0.0
        %1097 = vmatmul.mubr.f32.gmra.mxu0 %v408
        %v1098 = vpop.f32.mrf.mxu0
        %v1099 = vadd.f32 0.0, %v1098
        %v1100 = vpop.f32.mrf.mxu0
        %1101 = vmatprep.mubr.f32.mxu0 0.0
        %1102 = vmatmul.mubr.f32.gmra.mxu0 %v409
        %v1103 = vpop.f32.mrf.mxu0
        %v1104 = vadd.f32 0.0, %v1103
        %v1105 = vpop.f32.mrf.mxu0
        %1106 = vmatprep.mubr.f32.mxu0 0.0
        %1107 = vmatmul.mubr.f32.gmra.mxu0 %v410
        %v1108 = vpop.f32.mrf.mxu0
        %v1109 = vadd.f32 0.0, %v1108
        %v1110 = vpop.f32.mrf.mxu0
        %1111 = vmatprep.mubr.f32.mxu0 0.0
        %1112 = vmatmul.mubr.f32.gmra.mxu0 %v411
        %v1113 = vpop.f32.mrf.mxu0
        %v1114 = vadd.f32 0.0, %v1113
        %v1115 = vpop.f32.mrf.mxu0
        %1116 = vmatprep.mubr.f32.mxu0 0.0
        %1117 = vmatmul.mubr.f32.gmra.mxu0 %v412
        %v1118 = vpop.f32.mrf.mxu0
        %v1119 = vadd.f32 0.0, %v1118
        %v1120 = vpop.f32.mrf.mxu0
        %1121 = vmatprep.mubr.f32.mxu0 0.0
        %1122 = vmatmul.mubr.f32.gmra.mxu0 %v413
        %v1123 = vpop.f32.mrf.mxu0
        %v1124 = vadd.f32 0.0, %v1123
        %v1125 = vpop.f32.mrf.mxu0
        %1126 = vmatprep.mubr.f32.mxu0 0.0
        %1127 = vmatmul.mubr.f32.gmra.mxu0 %v414
        %v1128 = vpop.f32.mrf.mxu0
        %v1129 = vadd.f32 0.0, %v1128
        %v1130 = vpop.f32.mrf.mxu0
        %1131 = vmatprep.mubr.f32.mxu0 0.0
        %1132 = vmatmul.mubr.f32.gmra.mxu0 %v415
        %v1133 = vpop.f32.mrf.mxu0
        %v1134 = vadd.f32 0.0, %v1133
        %v1135 = vpop.f32.mrf.mxu0
        %1136 = vdwg.mxu0
        %v1137 = vld [vmem:[%s3] sm:$0xff]
        %v1138 = vld [vmem:[%s3 + $0x8] sm:$0xff]
        %v1139 = vld [vmem:[%s3 + $0x10] sm:$0xff]
        %v1140 = vld [vmem:[%s3 + $0x18] sm:$0xff]
        %v1141 = vld [vmem:[%s3 + $0x20] sm:$0xff]
        %v1142 = vld [vmem:[%s3 + $0x28] sm:$0xff]
        %v1143 = vld [vmem:[%s3 + $0x30] sm:$0xff]
        %v1144 = vld [vmem:[%s3 + $0x38] sm:$0xff]
        %v1145 = vld [vmem:[%s3 + $0x40] sm:$0xff]
        %v1146 = vld [vmem:[%s3 + $0x48] sm:$0xff]
        %v1147 = vld [vmem:[%s3 + $0x50] sm:$0xff]
        %v1148 = vld [vmem:[%s3 + $0x58] sm:$0xff]
        %v1149 = vld [vmem:[%s3 + $0x60] sm:$0xff]
        %v1150 = vld [vmem:[%s3 + $0x68] sm:$0xff]
        %v1151 = vld [vmem:[%s3 + $0x70] sm:$0xff]
        %v1152 = vld [vmem:[%s3 + $0x78] sm:$0xff]
        %v1153 = vld [vmem:[%s3 + $0x80] sm:$0xff]
        %v1154 = vld [vmem:[%s3 + $0x88] sm:$0xff]
        %v1155 = vld [vmem:[%s3 + $0x90] sm:$0xff]
        %v1156 = vld [vmem:[%s3 + $0x98] sm:$0xff]
        %v1157 = vld [vmem:[%s3 + $0xa0] sm:$0xff]
        %v1158 = vld [vmem:[%s3 + $0xa8] sm:$0xff]
        %v1159 = vld [vmem:[%s3 + $0xb0] sm:$0xff]
        %v1160 = vld [vmem:[%s3 + $0xb8] sm:$0xff]
        %v1161 = vld [vmem:[%s3 + $0xc0] sm:$0xff]
        %v1162 = vld [vmem:[%s3 + $0xc8] sm:$0xff]
        %v1163 = vld [vmem:[%s3 + $0xd0] sm:$0xff]
        %v1164 = vld [vmem:[%s3 + $0xd8] sm:$0xff]
        %v1165 = vld [vmem:[%s3 + $0xe0] sm:$0xff]
        %v1166 = vld [vmem:[%s3 + $0xe8] sm:$0xff]
        %v1167 = vld [vmem:[%s3 + $0xf0] sm:$0xff]
        %v1168 = vld [vmem:[%s3 + $0xf8] sm:$0xff]
        %v1169 = vld [vmem:[%s3 + $0x100] sm:$0xff]
        %v1170 = vld [vmem:[%s3 + $0x108] sm:$0xff]
        %v1171 = vld [vmem:[%s3 + $0x110] sm:$0xff]
        %v1172 = vld [vmem:[%s3 + $0x118] sm:$0xff]
        %v1173 = vld [vmem:[%s3 + $0x120] sm:$0xff]
        %v1174 = vld [vmem:[%s3 + $0x128] sm:$0xff]
        %v1175 = vld [vmem:[%s3 + $0x130] sm:$0xff]
        %v1176 = vld [vmem:[%s3 + $0x138] sm:$0xff]
        %v1177 = vld [vmem:[%s3 + $0x140] sm:$0xff]
        %v1178 = vld [vmem:[%s3 + $0x148] sm:$0xff]
        %v1179 = vld [vmem:[%s3 + $0x150] sm:$0xff]
        %v1180 = vld [vmem:[%s3 + $0x158] sm:$0xff]
        %v1181 = vld [vmem:[%s3 + $0x160] sm:$0xff]
        %v1182 = vld [vmem:[%s3 + $0x168] sm:$0xff]
        %v1183 = vld [vmem:[%s3 + $0x170] sm:$0xff]
        %v1184 = vld [vmem:[%s3 + $0x178] sm:$0xff]
        %v1185 = vld [vmem:[%s3 + $0x180] sm:$0xff]
        %v1186 = vld [vmem:[%s3 + $0x188] sm:$0xff]
        %v1187 = vld [vmem:[%s3 + $0x190] sm:$0xff]
        %v1188 = vld [vmem:[%s3 + $0x198] sm:$0xff]
        %v1189 = vld [vmem:[%s3 + $0x1a0] sm:$0xff]
        %v1190 = vld [vmem:[%s3 + $0x1a8] sm:$0xff]
        %v1191 = vld [vmem:[%s3 + $0x1b0] sm:$0xff]
        %v1192 = vld [vmem:[%s3 + $0x1b8] sm:$0xff]
        %v1193 = vld [vmem:[%s3 + $0x1c0] sm:$0xff]
        %v1194 = vld [vmem:[%s3 + $0x1c8] sm:$0xff]
        %v1195 = vld [vmem:[%s3 + $0x1d0] sm:$0xff]
        %v1196 = vld [vmem:[%s3 + $0x1d8] sm:$0xff]
        %v1197 = vld [vmem:[%s3 + $0x1e0] sm:$0xff]
        %v1198 = vld [vmem:[%s3 + $0x1e8] sm:$0xff]
        %v1199 = vld [vmem:[%s3 + $0x1f0] sm:$0xff]
        %v1200 = vld [vmem:[%s3 + $0x1f8] sm:$0xff]
        %s1201 = scalar_lea.vmem %s2, 128
        %v1202 = vld [vmem:[%s1201] sm:$0xff]
        %v1203 = vld [vmem:[%s1201 + $0x8] sm:$0xff]
        %v1204 = vld [vmem:[%s1201 + $0x10] sm:$0xff]
        %v1205 = vld [vmem:[%s1201 + $0x18] sm:$0xff]
        %v1206 = vld [vmem:[%s1201 + $0x20] sm:$0xff]
        %v1207 = vld [vmem:[%s1201 + $0x28] sm:$0xff]
        %v1208 = vld [vmem:[%s1201 + $0x30] sm:$0xff]
        %v1209 = vld [vmem:[%s1201 + $0x38] sm:$0xff]
        %v1210 = vld [vmem:[%s1201 + $0x40] sm:$0xff]
        %v1211 = vld [vmem:[%s1201 + $0x48] sm:$0xff]
        %v1212 = vld [vmem:[%s1201 + $0x50] sm:$0xff]
        %v1213 = vld [vmem:[%s1201 + $0x58] sm:$0xff]
        %v1214 = vld [vmem:[%s1201 + $0x60] sm:$0xff]
        %v1215 = vld [vmem:[%s1201 + $0x68] sm:$0xff]
        %v1216 = vld [vmem:[%s1201 + $0x70] sm:$0xff]
        %v1217 = vld [vmem:[%s1201 + $0x78] sm:$0xff]
        %1218 = vmatprep.subr.mxu0 0.0
        %1219 = vmatpush1.msra.mxu0 %v1217
        %1220 = vmatprep.subr.mxu0 0.0
        %1221 = vmatpush1.msra.mxu0 %v1216
        %1222 = vmatprep.subr.mxu0 0.0
        %1223 = vmatpush1.msra.mxu0 %v1215
        %1224 = vmatprep.subr.mxu0 0.0
        %1225 = vmatpush1.msra.mxu0 %v1214
        %1226 = vmatprep.subr.mxu0 0.0
        %1227 = vmatpush1.msra.mxu0 %v1213
        %1228 = vmatprep.subr.mxu0 0.0
        %1229 = vmatpush1.msra.mxu0 %v1212
        %1230 = vmatprep.subr.mxu0 0.0
        %1231 = vmatpush1.msra.mxu0 %v1211
        %1232 = vmatprep.subr.mxu0 0.0
        %1233 = vmatpush1.msra.mxu0 %v1210
        %1234 = vmatprep.subr.mxu0 0.0
        %1235 = vmatpush1.msra.mxu0 %v1209
        %1236 = vmatprep.subr.mxu0 0.0
        %1237 = vmatpush1.msra.mxu0 %v1208
        %1238 = vmatprep.subr.mxu0 0.0
        %1239 = vmatpush1.msra.mxu0 %v1207
        %1240 = vmatprep.subr.mxu0 0.0
        %1241 = vmatpush1.msra.mxu0 %v1206
        %1242 = vmatprep.subr.mxu0 0.0
        %1243 = vmatpush1.msra.mxu0 %v1205
        %1244 = vmatprep.subr.mxu0 0.0
        %1245 = vmatpush1.msra.mxu0 %v1204
        %1246 = vmatprep.subr.mxu0 0.0
        %1247 = vmatpush1.msra.mxu0 %v1203
        %1248 = vmatprep.subr.mxu0 0.0
        %1249 = vmatpush1.msra.mxu0 %v1202
        %1250 = vmatprep.subr.mxu0 0.0
        %1251 = vmatpush2.msra.mxu0 0.0
        %1252 = vmatprep.subr.mxu0 0.0
        %1253 = vmatpush2.msra.mxu0 0.0
        %1254 = vmatprep.subr.mxu0 0.0
        %1255 = vmatpush2.msra.mxu0 0.0
        %1256 = vmatprep.subr.mxu0 0.0
        %1257 = vmatpush2.msra.mxu0 0.0
        %1258 = vmatprep.subr.mxu0 0.0
        %1259 = vmatpush2.msra.mxu0 0.0
        %1260 = vmatprep.subr.mxu0 0.0
        %1261 = vmatpush2.msra.mxu0 0.0
        %1262 = vmatprep.subr.mxu0 0.0
        %1263 = vmatpush2.msra.mxu0 0.0
        %1264 = vmatprep.subr.mxu0 0.0
        %1265 = vmatpush2.msra.mxu0 0.0
        %1266 = vmatprep.subr.mxu0 0.0
        %1267 = vmatpush2.msra.mxu0 0.0
        %1268 = vmatprep.subr.mxu0 0.0
        %1269 = vmatpush2.msra.mxu0 0.0
        %1270 = vmatprep.subr.mxu0 0.0
        %1271 = vmatpush2.msra.mxu0 0.0
        %1272 = vmatprep.subr.mxu0 0.0
        %1273 = vmatpush2.msra.mxu0 0.0
        %1274 = vmatprep.subr.mxu0 0.0
        %1275 = vmatpush2.msra.mxu0 0.0
        %1276 = vmatprep.subr.mxu0 0.0
        %1277 = vmatpush2.msra.mxu0 0.0
        %1278 = vmatprep.subr.mxu0 0.0
        %1279 = vmatpush2.msra.mxu0 0.0
        %1280 = vmatprep.subr.mxu0 0.0
        %1281 = vmatpush2.msra.mxu0 0.0
        %1282 = vmatprep.mubr.f32.mxu0 0.0
        %1283 = vmatmul.mubr.f32.gmra.mxu0 %v288
        %v1284 = vpop.f32.mrf.mxu0
        %v1285 = vadd.f32 0.0, %v1284
        %v1286 = vpop.f32.mrf.mxu0
        %1287 = vmatprep.mubr.f32.mxu0 0.0
        %1288 = vmatmul.mubr.f32.gmra.mxu0 %v289
        %v1289 = vpop.f32.mrf.mxu0
        %v1290 = vadd.f32 0.0, %v1289
        %v1291 = vpop.f32.mrf.mxu0
        %1292 = vmatprep.mubr.f32.mxu0 0.0
        %1293 = vmatmul.mubr.f32.gmra.mxu0 %v290
        %v1294 = vpop.f32.mrf.mxu0
        %v1295 = vadd.f32 0.0, %v1294
        %v1296 = vpop.f32.mrf.mxu0
        %1297 = vmatprep.mubr.f32.mxu0 0.0
        %1298 = vmatmul.mubr.f32.gmra.mxu0 %v291
        %v1299 = vpop.f32.mrf.mxu0
        %v1300 = vadd.f32 0.0, %v1299
        %v1301 = vpop.f32.mrf.mxu0
        %1302 = vmatprep.mubr.f32.mxu0 0.0
        %1303 = vmatmul.mubr.f32.gmra.mxu0 %v292
        %v1304 = vpop.f32.mrf.mxu0
        %v1305 = vadd.f32 0.0, %v1304
        %v1306 = vpop.f32.mrf.mxu0
        %1307 = vmatprep.mubr.f32.mxu0 0.0
        %1308 = vmatmul.mubr.f32.gmra.mxu0 %v293
        %v1309 = vpop.f32.mrf.mxu0
        %v1310 = vadd.f32 0.0, %v1309
        %v1311 = vpop.f32.mrf.mxu0
        %1312 = vmatprep.mubr.f32.mxu0 0.0
        %1313 = vmatmul.mubr.f32.gmra.mxu0 %v294
        %v1314 = vpop.f32.mrf.mxu0
        %v1315 = vadd.f32 0.0, %v1314
        %v1316 = vpop.f32.mrf.mxu0
        %1317 = vmatprep.mubr.f32.mxu0 0.0
        %1318 = vmatmul.mubr.f32.gmra.mxu0 %v295
        %v1319 = vpop.f32.mrf.mxu0
        %v1320 = vadd.f32 0.0, %v1319
        %v1321 = vpop.f32.mrf.mxu0
        %1322 = vmatprep.mubr.f32.mxu0 0.0
        %1323 = vmatmul.mubr.f32.gmra.mxu0 %v296
        %v1324 = vpop.f32.mrf.mxu0
        %v1325 = vadd.f32 0.0, %v1324
        %v1326 = vpop.f32.mrf.mxu0
        %1327 = vmatprep.mubr.f32.mxu0 0.0
        %1328 = vmatmul.mubr.f32.gmra.mxu0 %v297
        %v1329 = vpop.f32.mrf.mxu0
        %v1330 = vadd.f32 0.0, %v1329
        %v1331 = vpop.f32.mrf.mxu0
        %1332 = vmatprep.mubr.f32.mxu0 0.0
        %1333 = vmatmul.mubr.f32.gmra.mxu0 %v298
        %v1334 = vpop.f32.mrf.mxu0
        %v1335 = vadd.f32 0.0, %v1334
        %v1336 = vpop.f32.mrf.mxu0
        %1337 = vmatprep.mubr.f32.mxu0 0.0
        %1338 = vmatmul.mubr.f32.gmra.mxu0 %v299
        %v1339 = vpop.f32.mrf.mxu0
        %v1340 = vadd.f32 0.0, %v1339
        %v1341 = vpop.f32.mrf.mxu0
        %1342 = vmatprep.mubr.f32.mxu0 0.0
        %1343 = vmatmul.mubr.f32.gmra.mxu0 %v300
        %v1344 = vpop.f32.mrf.mxu0
        %v1345 = vadd.f32 0.0, %v1344
        %v1346 = vpop.f32.mrf.mxu0
        %1347 = vmatprep.mubr.f32.mxu0 0.0
        %1348 = vmatmul.mubr.f32.gmra.mxu0 %v301
        %v1349 = vpop.f32.mrf.mxu0
        %v1350 = vadd.f32 0.0, %v1349
        %v1351 = vpop.f32.mrf.mxu0
        %1352 = vmatprep.mubr.f32.mxu0 0.0
        %1353 = vmatmul.mubr.f32.gmra.mxu0 %v302
        %v1354 = vpop.f32.mrf.mxu0
        %v1355 = vadd.f32 0.0, %v1354
        %v1356 = vpop.f32.mrf.mxu0
        %1357 = vmatprep.mubr.f32.mxu0 0.0
        %1358 = vmatmul.mubr.f32.gmra.mxu0 %v303
        %v1359 = vpop.f32.mrf.mxu0
        %v1360 = vadd.f32 0.0, %v1359
        %v1361 = vpop.f32.mrf.mxu0
        %1362 = vmatprep.mubr.f32.mxu0 0.0
        %1363 = vmatmul.mubr.f32.gmra.mxu0 %v304
        %v1364 = vpop.f32.mrf.mxu0
        %v1365 = vadd.f32 0.0, %v1364
        %v1366 = vpop.f32.mrf.mxu0
        %1367 = vmatprep.mubr.f32.mxu0 0.0
        %1368 = vmatmul.mubr.f32.gmra.mxu0 %v305
        %v1369 = vpop.f32.mrf.mxu0
        %v1370 = vadd.f32 0.0, %v1369
        %v1371 = vpop.f32.mrf.mxu0
        %1372 = vmatprep.mubr.f32.mxu0 0.0
        %1373 = vmatmul.mubr.f32.gmra.mxu0 %v306
        %v1374 = vpop.f32.mrf.mxu0
        %v1375 = vadd.f32 0.0, %v1374
        %v1376 = vpop.f32.mrf.mxu0
        %1377 = vmatprep.mubr.f32.mxu0 0.0
        %1378 = vmatmul.mubr.f32.gmra.mxu0 %v307
        %v1379 = vpop.f32.mrf.mxu0
        %v1380 = vadd.f32 0.0, %v1379
        %v1381 = vpop.f32.mrf.mxu0
        %1382 = vmatprep.mubr.f32.mxu0 0.0
        %1383 = vmatmul.mubr.f32.gmra.mxu0 %v308
        %v1384 = vpop.f32.mrf.mxu0
        %v1385 = vadd.f32 0.0, %v1384
        %v1386 = vpop.f32.mrf.mxu0
        %1387 = vmatprep.mubr.f32.mxu0 0.0
        %1388 = vmatmul.mubr.f32.gmra.mxu0 %v309
        %v1389 = vpop.f32.mrf.mxu0
        %v1390 = vadd.f32 0.0, %v1389
        %v1391 = vpop.f32.mrf.mxu0
        %1392 = vmatprep.mubr.f32.mxu0 0.0
        %1393 = vmatmul.mubr.f32.gmra.mxu0 %v310
        %v1394 = vpop.f32.mrf.mxu0
        %v1395 = vadd.f32 0.0, %v1394
        %v1396 = vpop.f32.mrf.mxu0
        %1397 = vmatprep.mubr.f32.mxu0 0.0
        %1398 = vmatmul.mubr.f32.gmra.mxu0 %v311
        %v1399 = vpop.f32.mrf.mxu0
        %v1400 = vadd.f32 0.0, %v1399
        %v1401 = vpop.f32.mrf.mxu0
        %1402 = vmatprep.mubr.f32.mxu0 0.0
        %1403 = vmatmul.mubr.f32.gmra.mxu0 %v312
        %v1404 = vpop.f32.mrf.mxu0
        %v1405 = vadd.f32 0.0, %v1404
        %v1406 = vpop.f32.mrf.mxu0
        %1407 = vmatprep.mubr.f32.mxu0 0.0
        %1408 = vmatmul.mubr.f32.gmra.mxu0 %v313
        %v1409 = vpop.f32.mrf.mxu0
        %v1410 = vadd.f32 0.0, %v1409
        %v1411 = vpop.f32.mrf.mxu0
        %1412 = vmatprep.mubr.f32.mxu0 0.0
        %1413 = vmatmul.mubr.f32.gmra.mxu0 %v314
        %v1414 = vpop.f32.mrf.mxu0
        %v1415 = vadd.f32 0.0, %v1414
        %v1416 = vpop.f32.mrf.mxu0
        %1417 = vmatprep.mubr.f32.mxu0 0.0
        %1418 = vmatmul.mubr.f32.gmra.mxu0 %v315
        %v1419 = vpop.f32.mrf.mxu0
        %v1420 = vadd.f32 0.0, %v1419
        %v1421 = vpop.f32.mrf.mxu0
        %1422 = vmatprep.mubr.f32.mxu0 0.0
        %1423 = vmatmul.mubr.f32.gmra.mxu0 %v316
        %v1424 = vpop.f32.mrf.mxu0
        %v1425 = vadd.f32 0.0, %v1424
        %v1426 = vpop.f32.mrf.mxu0
        %1427 = vmatprep.mubr.f32.mxu0 0.0
        %1428 = vmatmul.mubr.f32.gmra.mxu0 %v317
        %v1429 = vpop.f32.mrf.mxu0
        %v1430 = vadd.f32 0.0, %v1429
        %v1431 = vpop.f32.mrf.mxu0
        %1432 = vmatprep.mubr.f32.mxu0 0.0
        %1433 = vmatmul.mubr.f32.gmra.mxu0 %v318
        %v1434 = vpop.f32.mrf.mxu0
        %v1435 = vadd.f32 0.0, %v1434
        %v1436 = vpop.f32.mrf.mxu0
        %1437 = vmatprep.mubr.f32.mxu0 0.0
        %1438 = vmatmul.mubr.f32.gmra.mxu0 %v319
        %v1439 = vpop.f32.mrf.mxu0
        %v1440 = vadd.f32 0.0, %v1439
        %v1441 = vpop.f32.mrf.mxu0
        %1442 = vmatprep.mubr.f32.mxu0 0.0
        %1443 = vmatmul.mubr.f32.gmra.mxu0 %v320
        %v1444 = vpop.f32.mrf.mxu0
        %v1445 = vadd.f32 0.0, %v1444
        %v1446 = vpop.f32.mrf.mxu0
        %1447 = vmatprep.mubr.f32.mxu0 0.0
        %1448 = vmatmul.mubr.f32.gmra.mxu0 %v321
        %v1449 = vpop.f32.mrf.mxu0
        %v1450 = vadd.f32 0.0, %v1449
        %v1451 = vpop.f32.mrf.mxu0
        %1452 = vmatprep.mubr.f32.mxu0 0.0
        %1453 = vmatmul.mubr.f32.gmra.mxu0 %v322
        %v1454 = vpop.f32.mrf.mxu0
        %v1455 = vadd.f32 0.0, %v1454
        %v1456 = vpop.f32.mrf.mxu0
        %1457 = vmatprep.mubr.f32.mxu0 0.0
        %1458 = vmatmul.mubr.f32.gmra.mxu0 %v323
        %v1459 = vpop.f32.mrf.mxu0
        %v1460 = vadd.f32 0.0, %v1459
        %v1461 = vpop.f32.mrf.mxu0
        %1462 = vmatprep.mubr.f32.mxu0 0.0
        %1463 = vmatmul.mubr.f32.gmra.mxu0 %v324
        %v1464 = vpop.f32.mrf.mxu0
        %v1465 = vadd.f32 0.0, %v1464
        %v1466 = vpop.f32.mrf.mxu0
        %1467 = vmatprep.mubr.f32.mxu0 0.0
        %1468 = vmatmul.mubr.f32.gmra.mxu0 %v325
        %v1469 = vpop.f32.mrf.mxu0
        %v1470 = vadd.f32 0.0, %v1469
        %v1471 = vpop.f32.mrf.mxu0
        %1472 = vmatprep.mubr.f32.mxu0 0.0
        %1473 = vmatmul.mubr.f32.gmra.mxu0 %v326
        %v1474 = vpop.f32.mrf.mxu0
        %v1475 = vadd.f32 0.0, %v1474
        %v1476 = vpop.f32.mrf.mxu0
        %1477 = vmatprep.mubr.f32.mxu0 0.0
        %1478 = vmatmul.mubr.f32.gmra.mxu0 %v327
        %v1479 = vpop.f32.mrf.mxu0
        %v1480 = vadd.f32 0.0, %v1479
        %v1481 = vpop.f32.mrf.mxu0
        %1482 = vmatprep.mubr.f32.mxu0 0.0
        %1483 = vmatmul.mubr.f32.gmra.mxu0 %v328
        %v1484 = vpop.f32.mrf.mxu0
        %v1485 = vadd.f32 0.0, %v1484
        %v1486 = vpop.f32.mrf.mxu0
        %1487 = vmatprep.mubr.f32.mxu0 0.0
        %1488 = vmatmul.mubr.f32.gmra.mxu0 %v329
        %v1489 = vpop.f32.mrf.mxu0
        %v1490 = vadd.f32 0.0, %v1489
        %v1491 = vpop.f32.mrf.mxu0
        %1492 = vmatprep.mubr.f32.mxu0 0.0
        %1493 = vmatmul.mubr.f32.gmra.mxu0 %v330
        %v1494 = vpop.f32.mrf.mxu0
        %v1495 = vadd.f32 0.0, %v1494
        %v1496 = vpop.f32.mrf.mxu0
        %1497 = vmatprep.mubr.f32.mxu0 0.0
        %1498 = vmatmul.mubr.f32.gmra.mxu0 %v331
        %v1499 = vpop.f32.mrf.mxu0
        %v1500 = vadd.f32 0.0, %v1499
        %v1501 = vpop.f32.mrf.mxu0
        %1502 = vmatprep.mubr.f32.mxu0 0.0
        %1503 = vmatmul.mubr.f32.gmra.mxu0 %v332
        %v1504 = vpop.f32.mrf.mxu0
        %v1505 = vadd.f32 0.0, %v1504
        %v1506 = vpop.f32.mrf.mxu0
        %1507 = vmatprep.mubr.f32.mxu0 0.0
        %1508 = vmatmul.mubr.f32.gmra.mxu0 %v333
        %v1509 = vpop.f32.mrf.mxu0
        %v1510 = vadd.f32 0.0, %v1509
        %v1511 = vpop.f32.mrf.mxu0
        %1512 = vmatprep.mubr.f32.mxu0 0.0
        %1513 = vmatmul.mubr.f32.gmra.mxu0 %v334
        %v1514 = vpop.f32.mrf.mxu0
        %v1515 = vadd.f32 0.0, %v1514
        %v1516 = vpop.f32.mrf.mxu0
        %1517 = vmatprep.mubr.f32.mxu0 0.0
        %1518 = vmatmul.mubr.f32.gmra.mxu0 %v335
        %v1519 = vpop.f32.mrf.mxu0
        %v1520 = vadd.f32 0.0, %v1519
        %v1521 = vpop.f32.mrf.mxu0
        %1522 = vmatprep.mubr.f32.mxu0 0.0
        %1523 = vmatmul.mubr.f32.gmra.mxu0 %v336
        %v1524 = vpop.f32.mrf.mxu0
        %v1525 = vadd.f32 0.0, %v1524
        %v1526 = vpop.f32.mrf.mxu0
        %1527 = vmatprep.mubr.f32.mxu0 0.0
        %1528 = vmatmul.mubr.f32.gmra.mxu0 %v337
        %v1529 = vpop.f32.mrf.mxu0
        %v1530 = vadd.f32 0.0, %v1529
        %v1531 = vpop.f32.mrf.mxu0
        %1532 = vmatprep.mubr.f32.mxu0 0.0
        %1533 = vmatmul.mubr.f32.gmra.mxu0 %v338
        %v1534 = vpop.f32.mrf.mxu0
        %v1535 = vadd.f32 0.0, %v1534
        %v1536 = vpop.f32.mrf.mxu0
        %1537 = vmatprep.mubr.f32.mxu0 0.0
        %1538 = vmatmul.mubr.f32.gmra.mxu0 %v339
        %v1539 = vpop.f32.mrf.mxu0
        %v1540 = vadd.f32 0.0, %v1539
        %v1541 = vpop.f32.mrf.mxu0
        %1542 = vmatprep.mubr.f32.mxu0 0.0
        %1543 = vmatmul.mubr.f32.gmra.mxu0 %v340
        %v1544 = vpop.f32.mrf.mxu0
        %v1545 = vadd.f32 0.0, %v1544
        %v1546 = vpop.f32.mrf.mxu0
        %1547 = vmatprep.mubr.f32.mxu0 0.0
        %1548 = vmatmul.mubr.f32.gmra.mxu0 %v341
        %v1549 = vpop.f32.mrf.mxu0
        %v1550 = vadd.f32 0.0, %v1549
        %v1551 = vpop.f32.mrf.mxu0
        %1552 = vmatprep.mubr.f32.mxu0 0.0
        %1553 = vmatmul.mubr.f32.gmra.mxu0 %v342
        %v1554 = vpop.f32.mrf.mxu0
        %v1555 = vadd.f32 0.0, %v1554
        %v1556 = vpop.f32.mrf.mxu0
        %1557 = vmatprep.mubr.f32.mxu0 0.0
        %1558 = vmatmul.mubr.f32.gmra.mxu0 %v343
        %v1559 = vpop.f32.mrf.mxu0
        %v1560 = vadd.f32 0.0, %v1559
        %v1561 = vpop.f32.mrf.mxu0
        %1562 = vmatprep.mubr.f32.mxu0 0.0
        %1563 = vmatmul.mubr.f32.gmra.mxu0 %v344
        %v1564 = vpop.f32.mrf.mxu0
        %v1565 = vadd.f32 0.0, %v1564
        %v1566 = vpop.f32.mrf.mxu0
        %1567 = vmatprep.mubr.f32.mxu0 0.0
        %1568 = vmatmul.mubr.f32.gmra.mxu0 %v345
        %v1569 = vpop.f32.mrf.mxu0
        %v1570 = vadd.f32 0.0, %v1569
        %v1571 = vpop.f32.mrf.mxu0
        %1572 = vmatprep.mubr.f32.mxu0 0.0
        %1573 = vmatmul.mubr.f32.gmra.mxu0 %v346
        %v1574 = vpop.f32.mrf.mxu0
        %v1575 = vadd.f32 0.0, %v1574
        %v1576 = vpop.f32.mrf.mxu0
        %1577 = vmatprep.mubr.f32.mxu0 0.0
        %1578 = vmatmul.mubr.f32.gmra.mxu0 %v347
        %v1579 = vpop.f32.mrf.mxu0
        %v1580 = vadd.f32 0.0, %v1579
        %v1581 = vpop.f32.mrf.mxu0
        %1582 = vmatprep.mubr.f32.mxu0 0.0
        %1583 = vmatmul.mubr.f32.gmra.mxu0 %v348
        %v1584 = vpop.f32.mrf.mxu0
        %v1585 = vadd.f32 0.0, %v1584
        %v1586 = vpop.f32.mrf.mxu0
        %1587 = vmatprep.mubr.f32.mxu0 0.0
        %1588 = vmatmul.mubr.f32.gmra.mxu0 %v349
        %v1589 = vpop.f32.mrf.mxu0
        %v1590 = vadd.f32 0.0, %v1589
        %v1591 = vpop.f32.mrf.mxu0
        %1592 = vmatprep.mubr.f32.mxu0 0.0
        %1593 = vmatmul.mubr.f32.gmra.mxu0 %v350
        %v1594 = vpop.f32.mrf.mxu0
        %v1595 = vadd.f32 0.0, %v1594
        %v1596 = vpop.f32.mrf.mxu0
        %1597 = vmatprep.mubr.f32.mxu0 0.0
        %1598 = vmatmul.mubr.f32.gmra.mxu0 %v351
        %v1599 = vpop.f32.mrf.mxu0
        %v1600 = vadd.f32 0.0, %v1599
        %v1601 = vpop.f32.mrf.mxu0
        %1602 = vmatprep.mubr.f32.mxu0 0.0
        %1603 = vmatmul.mubr.f32.gmra.mxu0 %v352
        %v1604 = vpop.f32.mrf.mxu0
        %v1605 = vadd.f32 0.0, %v1604
        %v1606 = vpop.f32.mrf.mxu0
        %1607 = vmatprep.mubr.f32.mxu0 0.0
        %1608 = vmatmul.mubr.f32.gmra.mxu0 %v353
        %v1609 = vpop.f32.mrf.mxu0
        %v1610 = vadd.f32 0.0, %v1609
        %v1611 = vpop.f32.mrf.mxu0
        %1612 = vmatprep.mubr.f32.mxu0 0.0
        %1613 = vmatmul.mubr.f32.gmra.mxu0 %v354
        %v1614 = vpop.f32.mrf.mxu0
        %v1615 = vadd.f32 0.0, %v1614
        %v1616 = vpop.f32.mrf.mxu0
        %1617 = vmatprep.mubr.f32.mxu0 0.0
        %1618 = vmatmul.mubr.f32.gmra.mxu0 %v355
        %v1619 = vpop.f32.mrf.mxu0
        %v1620 = vadd.f32 0.0, %v1619
        %v1621 = vpop.f32.mrf.mxu0
        %1622 = vmatprep.mubr.f32.mxu0 0.0
        %1623 = vmatmul.mubr.f32.gmra.mxu0 %v356
        %v1624 = vpop.f32.mrf.mxu0
        %v1625 = vadd.f32 0.0, %v1624
        %v1626 = vpop.f32.mrf.mxu0
        %1627 = vmatprep.mubr.f32.mxu0 0.0
        %1628 = vmatmul.mubr.f32.gmra.mxu0 %v357
        %v1629 = vpop.f32.mrf.mxu0
        %v1630 = vadd.f32 0.0, %v1629
        %v1631 = vpop.f32.mrf.mxu0
        %1632 = vmatprep.mubr.f32.mxu0 0.0
        %1633 = vmatmul.mubr.f32.gmra.mxu0 %v358
        %v1634 = vpop.f32.mrf.mxu0
        %v1635 = vadd.f32 0.0, %v1634
        %v1636 = vpop.f32.mrf.mxu0
        %1637 = vmatprep.mubr.f32.mxu0 0.0
        %1638 = vmatmul.mubr.f32.gmra.mxu0 %v359
        %v1639 = vpop.f32.mrf.mxu0
        %v1640 = vadd.f32 0.0, %v1639
        %v1641 = vpop.f32.mrf.mxu0
        %1642 = vmatprep.mubr.f32.mxu0 0.0
        %1643 = vmatmul.mubr.f32.gmra.mxu0 %v360
        %v1644 = vpop.f32.mrf.mxu0
        %v1645 = vadd.f32 0.0, %v1644
        %v1646 = vpop.f32.mrf.mxu0
        %1647 = vmatprep.mubr.f32.mxu0 0.0
        %1648 = vmatmul.mubr.f32.gmra.mxu0 %v361
        %v1649 = vpop.f32.mrf.mxu0
        %v1650 = vadd.f32 0.0, %v1649
        %v1651 = vpop.f32.mrf.mxu0
        %1652 = vmatprep.mubr.f32.mxu0 0.0
        %1653 = vmatmul.mubr.f32.gmra.mxu0 %v362
        %v1654 = vpop.f32.mrf.mxu0
        %v1655 = vadd.f32 0.0, %v1654
        %v1656 = vpop.f32.mrf.mxu0
        %1657 = vmatprep.mubr.f32.mxu0 0.0
        %1658 = vmatmul.mubr.f32.gmra.mxu0 %v363
        %v1659 = vpop.f32.mrf.mxu0
        %v1660 = vadd.f32 0.0, %v1659
        %v1661 = vpop.f32.mrf.mxu0
        %1662 = vmatprep.mubr.f32.mxu0 0.0
        %1663 = vmatmul.mubr.f32.gmra.mxu0 %v364
        %v1664 = vpop.f32.mrf.mxu0
        %v1665 = vadd.f32 0.0, %v1664
        %v1666 = vpop.f32.mrf.mxu0
        %1667 = vmatprep.mubr.f32.mxu0 0.0
        %1668 = vmatmul.mubr.f32.gmra.mxu0 %v365
        %v1669 = vpop.f32.mrf.mxu0
        %v1670 = vadd.f32 0.0, %v1669
        %v1671 = vpop.f32.mrf.mxu0
        %1672 = vmatprep.mubr.f32.mxu0 0.0
        %1673 = vmatmul.mubr.f32.gmra.mxu0 %v366
        %v1674 = vpop.f32.mrf.mxu0
        %v1675 = vadd.f32 0.0, %v1674
        %v1676 = vpop.f32.mrf.mxu0
        %1677 = vmatprep.mubr.f32.mxu0 0.0
        %1678 = vmatmul.mubr.f32.gmra.mxu0 %v367
        %v1679 = vpop.f32.mrf.mxu0
        %v1680 = vadd.f32 0.0, %v1679
        %v1681 = vpop.f32.mrf.mxu0
        %1682 = vmatprep.mubr.f32.mxu0 0.0
        %1683 = vmatmul.mubr.f32.gmra.mxu0 %v368
        %v1684 = vpop.f32.mrf.mxu0
        %v1685 = vadd.f32 0.0, %v1684
        %v1686 = vpop.f32.mrf.mxu0
        %1687 = vmatprep.mubr.f32.mxu0 0.0
        %1688 = vmatmul.mubr.f32.gmra.mxu0 %v369
        %v1689 = vpop.f32.mrf.mxu0
        %v1690 = vadd.f32 0.0, %v1689
        %v1691 = vpop.f32.mrf.mxu0
        %1692 = vmatprep.mubr.f32.mxu0 0.0
        %1693 = vmatmul.mubr.f32.gmra.mxu0 %v370
        %v1694 = vpop.f32.mrf.mxu0
        %v1695 = vadd.f32 0.0, %v1694
        %v1696 = vpop.f32.mrf.mxu0
        %1697 = vmatprep.mubr.f32.mxu0 0.0
        %1698 = vmatmul.mubr.f32.gmra.mxu0 %v371
        %v1699 = vpop.f32.mrf.mxu0
        %v1700 = vadd.f32 0.0, %v1699
        %v1701 = vpop.f32.mrf.mxu0
        %1702 = vmatprep.mubr.f32.mxu0 0.0
        %1703 = vmatmul.mubr.f32.gmra.mxu0 %v372
        %v1704 = vpop.f32.mrf.mxu0
        %v1705 = vadd.f32 0.0, %v1704
        %v1706 = vpop.f32.mrf.mxu0
        %1707 = vmatprep.mubr.f32.mxu0 0.0
        %1708 = vmatmul.mubr.f32.gmra.mxu0 %v373
        %v1709 = vpop.f32.mrf.mxu0
        %v1710 = vadd.f32 0.0, %v1709
        %v1711 = vpop.f32.mrf.mxu0
        %1712 = vmatprep.mubr.f32.mxu0 0.0
        %1713 = vmatmul.mubr.f32.gmra.mxu0 %v374
        %v1714 = vpop.f32.mrf.mxu0
        %v1715 = vadd.f32 0.0, %v1714
        %v1716 = vpop.f32.mrf.mxu0
        %1717 = vmatprep.mubr.f32.mxu0 0.0
        %1718 = vmatmul.mubr.f32.gmra.mxu0 %v375
        %v1719 = vpop.f32.mrf.mxu0
        %v1720 = vadd.f32 0.0, %v1719
        %v1721 = vpop.f32.mrf.mxu0
        %1722 = vmatprep.mubr.f32.mxu0 0.0
        %1723 = vmatmul.mubr.f32.gmra.mxu0 %v376
        %v1724 = vpop.f32.mrf.mxu0
        %v1725 = vadd.f32 0.0, %v1724
        %v1726 = vpop.f32.mrf.mxu0
        %1727 = vmatprep.mubr.f32.mxu0 0.0
        %1728 = vmatmul.mubr.f32.gmra.mxu0 %v377
        %v1729 = vpop.f32.mrf.mxu0
        %v1730 = vadd.f32 0.0, %v1729
        %v1731 = vpop.f32.mrf.mxu0
        %1732 = vmatprep.mubr.f32.mxu0 0.0
        %1733 = vmatmul.mubr.f32.gmra.mxu0 %v378
        %v1734 = vpop.f32.mrf.mxu0
        %v1735 = vadd.f32 0.0, %v1734
        %v1736 = vpop.f32.mrf.mxu0
        %1737 = vmatprep.mubr.f32.mxu0 0.0
        %1738 = vmatmul.mubr.f32.gmra.mxu0 %v379
        %v1739 = vpop.f32.mrf.mxu0
        %v1740 = vadd.f32 0.0, %v1739
        %v1741 = vpop.f32.mrf.mxu0
        %1742 = vmatprep.mubr.f32.mxu0 0.0
        %1743 = vmatmul.mubr.f32.gmra.mxu0 %v380
        %v1744 = vpop.f32.mrf.mxu0
        %v1745 = vadd.f32 0.0, %v1744
        %v1746 = vpop.f32.mrf.mxu0
        %1747 = vmatprep.mubr.f32.mxu0 0.0
        %1748 = vmatmul.mubr.f32.gmra.mxu0 %v381
        %v1749 = vpop.f32.mrf.mxu0
        %v1750 = vadd.f32 0.0, %v1749
        %v1751 = vpop.f32.mrf.mxu0
        %1752 = vmatprep.mubr.f32.mxu0 0.0
        %1753 = vmatmul.mubr.f32.gmra.mxu0 %v382
        %v1754 = vpop.f32.mrf.mxu0
        %v1755 = vadd.f32 0.0, %v1754
        %v1756 = vpop.f32.mrf.mxu0
        %1757 = vmatprep.mubr.f32.mxu0 0.0
        %1758 = vmatmul.mubr.f32.gmra.mxu0 %v383
        %v1759 = vpop.f32.mrf.mxu0
        %v1760 = vadd.f32 0.0, %v1759
        %v1761 = vpop.f32.mrf.mxu0
        %1762 = vmatprep.mubr.f32.mxu0 0.0
        %1763 = vmatmul.mubr.f32.gmra.mxu0 %v384
        %v1764 = vpop.f32.mrf.mxu0
        %v1765 = vadd.f32 0.0, %v1764
        %v1766 = vpop.f32.mrf.mxu0
        %1767 = vmatprep.mubr.f32.mxu0 0.0
        %1768 = vmatmul.mubr.f32.gmra.mxu0 %v385
        %v1769 = vpop.f32.mrf.mxu0
        %v1770 = vadd.f32 0.0, %v1769
        %v1771 = vpop.f32.mrf.mxu0
        %1772 = vmatprep.mubr.f32.mxu0 0.0
        %1773 = vmatmul.mubr.f32.gmra.mxu0 %v386
        %v1774 = vpop.f32.mrf.mxu0
        %v1775 = vadd.f32 0.0, %v1774
        %v1776 = vpop.f32.mrf.mxu0
        %1777 = vmatprep.mubr.f32.mxu0 0.0
        %1778 = vmatmul.mubr.f32.gmra.mxu0 %v387
        %v1779 = vpop.f32.mrf.mxu0
        %v1780 = vadd.f32 0.0, %v1779
        %v1781 = vpop.f32.mrf.mxu0
        %1782 = vmatprep.mubr.f32.mxu0 0.0
        %1783 = vmatmul.mubr.f32.gmra.mxu0 %v388
        %v1784 = vpop.f32.mrf.mxu0
        %v1785 = vadd.f32 0.0, %v1784
        %v1786 = vpop.f32.mrf.mxu0
        %1787 = vmatprep.mubr.f32.mxu0 0.0
        %1788 = vmatmul.mubr.f32.gmra.mxu0 %v389
        %v1789 = vpop.f32.mrf.mxu0
        %v1790 = vadd.f32 0.0, %v1789
        %v1791 = vpop.f32.mrf.mxu0
        %1792 = vmatprep.mubr.f32.mxu0 0.0
        %1793 = vmatmul.mubr.f32.gmra.mxu0 %v390
        %v1794 = vpop.f32.mrf.mxu0
        %v1795 = vadd.f32 0.0, %v1794
        %v1796 = vpop.f32.mrf.mxu0
        %1797 = vmatprep.mubr.f32.mxu0 0.0
        %1798 = vmatmul.mubr.f32.gmra.mxu0 %v391
        %v1799 = vpop.f32.mrf.mxu0
        %v1800 = vadd.f32 0.0, %v1799
        %v1801 = vpop.f32.mrf.mxu0
        %1802 = vmatprep.mubr.f32.mxu0 0.0
        %1803 = vmatmul.mubr.f32.gmra.mxu0 %v392
        %v1804 = vpop.f32.mrf.mxu0
        %v1805 = vadd.f32 0.0, %v1804
        %v1806 = vpop.f32.mrf.mxu0
        %1807 = vmatprep.mubr.f32.mxu0 0.0
        %1808 = vmatmul.mubr.f32.gmra.mxu0 %v393
        %v1809 = vpop.f32.mrf.mxu0
        %v1810 = vadd.f32 0.0, %v1809
        %v1811 = vpop.f32.mrf.mxu0
        %1812 = vmatprep.mubr.f32.mxu0 0.0
        %1813 = vmatmul.mubr.f32.gmra.mxu0 %v394
        %v1814 = vpop.f32.mrf.mxu0
        %v1815 = vadd.f32 0.0, %v1814
        %v1816 = vpop.f32.mrf.mxu0
        %1817 = vmatprep.mubr.f32.mxu0 0.0
        %1818 = vmatmul.mubr.f32.gmra.mxu0 %v395
        %v1819 = vpop.f32.mrf.mxu0
        %v1820 = vadd.f32 0.0, %v1819
        %v1821 = vpop.f32.mrf.mxu0
        %1822 = vmatprep.mubr.f32.mxu0 0.0
        %1823 = vmatmul.mubr.f32.gmra.mxu0 %v396
        %v1824 = vpop.f32.mrf.mxu0
        %v1825 = vadd.f32 0.0, %v1824
        %v1826 = vpop.f32.mrf.mxu0
        %1827 = vmatprep.mubr.f32.mxu0 0.0
        %1828 = vmatmul.mubr.f32.gmra.mxu0 %v397
        %v1829 = vpop.f32.mrf.mxu0
        %v1830 = vadd.f32 0.0, %v1829
        %v1831 = vpop.f32.mrf.mxu0
        %1832 = vmatprep.mubr.f32.mxu0 0.0
        %1833 = vmatmul.mubr.f32.gmra.mxu0 %v398
        %v1834 = vpop.f32.mrf.mxu0
        %v1835 = vadd.f32 0.0, %v1834
        %v1836 = vpop.f32.mrf.mxu0
        %1837 = vmatprep.mubr.f32.mxu0 0.0
        %1838 = vmatmul.mubr.f32.gmra.mxu0 %v399
        %v1839 = vpop.f32.mrf.mxu0
        %v1840 = vadd.f32 0.0, %v1839
        %v1841 = vpop.f32.mrf.mxu0
        %1842 = vmatprep.mubr.f32.mxu0 0.0
        %1843 = vmatmul.mubr.f32.gmra.mxu0 %v400
        %v1844 = vpop.f32.mrf.mxu0
        %v1845 = vadd.f32 0.0, %v1844
        %v1846 = vpop.f32.mrf.mxu0
        %1847 = vmatprep.mubr.f32.mxu0 0.0
        %1848 = vmatmul.mubr.f32.gmra.mxu0 %v401
        %v1849 = vpop.f32.mrf.mxu0
        %v1850 = vadd.f32 0.0, %v1849
        %v1851 = vpop.f32.mrf.mxu0
        %1852 = vmatprep.mubr.f32.mxu0 0.0
        %1853 = vmatmul.mubr.f32.gmra.mxu0 %v402
        %v1854 = vpop.f32.mrf.mxu0
        %v1855 = vadd.f32 0.0, %v1854
        %v1856 = vpop.f32.mrf.mxu0
        %1857 = vmatprep.mubr.f32.mxu0 0.0
        %1858 = vmatmul.mubr.f32.gmra.mxu0 %v403
        %v1859 = vpop.f32.mrf.mxu0
        %v1860 = vadd.f32 0.0, %v1859
        %v1861 = vpop.f32.mrf.mxu0
        %1862 = vmatprep.mubr.f32.mxu0 0.0
        %1863 = vmatmul.mubr.f32.gmra.mxu0 %v404
        %v1864 = vpop.f32.mrf.mxu0
        %v1865 = vadd.f32 0.0, %v1864
        %v1866 = vpop.f32.mrf.mxu0
        %1867 = vmatprep.mubr.f32.mxu0 0.0
        %1868 = vmatmul.mubr.f32.gmra.mxu0 %v405
        %v1869 = vpop.f32.mrf.mxu0
        %v1870 = vadd.f32 0.0, %v1869
        %v1871 = vpop.f32.mrf.mxu0
        %1872 = vmatprep.mubr.f32.mxu0 0.0
        %1873 = vmatmul.mubr.f32.gmra.mxu0 %v406
        %v1874 = vpop.f32.mrf.mxu0
        %v1875 = vadd.f32 0.0, %v1874
        %v1876 = vpop.f32.mrf.mxu0
        %1877 = vmatprep.mubr.f32.mxu0 0.0
        %1878 = vmatmul.mubr.f32.gmra.mxu0 %v407
        %v1879 = vpop.f32.mrf.mxu0
        %v1880 = vadd.f32 0.0, %v1879
        %v1881 = vpop.f32.mrf.mxu0
        %1882 = vmatprep.mubr.f32.mxu0 0.0
        %1883 = vmatmul.mubr.f32.gmra.mxu0 %v408
        %v1884 = vpop.f32.mrf.mxu0
        %v1885 = vadd.f32 0.0, %v1884
        %v1886 = vpop.f32.mrf.mxu0
        %1887 = vmatprep.mubr.f32.mxu0 0.0
        %1888 = vmatmul.mubr.f32.gmra.mxu0 %v409
        %v1889 = vpop.f32.mrf.mxu0
        %v1890 = vadd.f32 0.0, %v1889
        %v1891 = vpop.f32.mrf.mxu0
        %1892 = vmatprep.mubr.f32.mxu0 0.0
        %1893 = vmatmul.mubr.f32.gmra.mxu0 %v410
        %v1894 = vpop.f32.mrf.mxu0
        %v1895 = vadd.f32 0.0, %v1894
        %v1896 = vpop.f32.mrf.mxu0
        %1897 = vmatprep.mubr.f32.mxu0 0.0
        %1898 = vmatmul.mubr.f32.gmra.mxu0 %v411
        %v1899 = vpop.f32.mrf.mxu0
        %v1900 = vadd.f32 0.0, %v1899
        %v1901 = vpop.f32.mrf.mxu0
        %1902 = vmatprep.mubr.f32.mxu0 0.0
        %1903 = vmatmul.mubr.f32.gmra.mxu0 %v412
        %v1904 = vpop.f32.mrf.mxu0
        %v1905 = vadd.f32 0.0, %v1904
        %v1906 = vpop.f32.mrf.mxu0
        %1907 = vmatprep.mubr.f32.mxu0 0.0
        %1908 = vmatmul.mubr.f32.gmra.mxu0 %v413
        %v1909 = vpop.f32.mrf.mxu0
        %v1910 = vadd.f32 0.0, %v1909
        %v1911 = vpop.f32.mrf.mxu0
        %1912 = vmatprep.mubr.f32.mxu0 0.0
        %1913 = vmatmul.mubr.f32.gmra.mxu0 %v414
        %v1914 = vpop.f32.mrf.mxu0
        %v1915 = vadd.f32 0.0, %v1914
        %v1916 = vpop.f32.mrf.mxu0
        %1917 = vmatprep.mubr.f32.mxu0 0.0
        %1918 = vmatmul.mubr.f32.gmra.mxu0 %v415
        %v1919 = vpop.f32.mrf.mxu0
        %v1920 = vadd.f32 0.0, %v1919
        %v1921 = vpop.f32.mrf.mxu0
        %1922 = vdwg.mxu0
        %s1923 = scalar_lea.vmem %s3, 512
        %v1924 = vld [vmem:[%s1923] sm:$0xff]
        %v1925 = vld [vmem:[%s1923 + $0x8] sm:$0xff]
        %v1926 = vld [vmem:[%s1923 + $0x10] sm:$0xff]
        %v1927 = vld [vmem:[%s1923 + $0x18] sm:$0xff]
        %v1928 = vld [vmem:[%s1923 + $0x20] sm:$0xff]
        %v1929 = vld [vmem:[%s1923 + $0x28] sm:$0xff]
        %v1930 = vld [vmem:[%s1923 + $0x30] sm:$0xff]
        %v1931 = vld [vmem:[%s1923 + $0x38] sm:$0xff]
        %v1932 = vld [vmem:[%s1923 + $0x40] sm:$0xff]
        %v1933 = vld [vmem:[%s1923 + $0x48] sm:$0xff]
        %v1934 = vld [vmem:[%s1923 + $0x50] sm:$0xff]
        %v1935 = vld [vmem:[%s1923 + $0x58] sm:$0xff]
        %v1936 = vld [vmem:[%s1923 + $0x60] sm:$0xff]
        %v1937 = vld [vmem:[%s1923 + $0x68] sm:$0xff]
        %v1938 = vld [vmem:[%s1923 + $0x70] sm:$0xff]
        %v1939 = vld [vmem:[%s1923 + $0x78] sm:$0xff]
        %v1940 = vld [vmem:[%s1923 + $0x80] sm:$0xff]
        %v1941 = vld [vmem:[%s1923 + $0x88] sm:$0xff]
        %v1942 = vld [vmem:[%s1923 + $0x90] sm:$0xff]
        %v1943 = vld [vmem:[%s1923 + $0x98] sm:$0xff]
        %v1944 = vld [vmem:[%s1923 + $0xa0] sm:$0xff]
        %v1945 = vld [vmem:[%s1923 + $0xa8] sm:$0xff]
        %v1946 = vld [vmem:[%s1923 + $0xb0] sm:$0xff]
        %v1947 = vld [vmem:[%s1923 + $0xb8] sm:$0xff]
        %v1948 = vld [vmem:[%s1923 + $0xc0] sm:$0xff]
        %v1949 = vld [vmem:[%s1923 + $0xc8] sm:$0xff]
        %v1950 = vld [vmem:[%s1923 + $0xd0] sm:$0xff]
        %v1951 = vld [vmem:[%s1923 + $0xd8] sm:$0xff]
        %v1952 = vld [vmem:[%s1923 + $0xe0] sm:$0xff]
        %v1953 = vld [vmem:[%s1923 + $0xe8] sm:$0xff]
        %v1954 = vld [vmem:[%s1923 + $0xf0] sm:$0xff]
        %v1955 = vld [vmem:[%s1923 + $0xf8] sm:$0xff]
        %v1956 = vld [vmem:[%s1923 + $0x100] sm:$0xff]
        %v1957 = vld [vmem:[%s1923 + $0x108] sm:$0xff]
        %v1958 = vld [vmem:[%s1923 + $0x110] sm:$0xff]
        %v1959 = vld [vmem:[%s1923 + $0x118] sm:$0xff]
        %v1960 = vld [vmem:[%s1923 + $0x120] sm:$0xff]
        %v1961 = vld [vmem:[%s1923 + $0x128] sm:$0xff]
        %v1962 = vld [vmem:[%s1923 + $0x130] sm:$0xff]
        %v1963 = vld [vmem:[%s1923 + $0x138] sm:$0xff]
        %v1964 = vld [vmem:[%s1923 + $0x140] sm:$0xff]
        %v1965 = vld [vmem:[%s1923 + $0x148] sm:$0xff]
        %v1966 = vld [vmem:[%s1923 + $0x150] sm:$0xff]
        %v1967 = vld [vmem:[%s1923 + $0x158] sm:$0xff]
        %v1968 = vld [vmem:[%s1923 + $0x160] sm:$0xff]
        %v1969 = vld [vmem:[%s1923 + $0x168] sm:$0xff]
        %v1970 = vld [vmem:[%s1923 + $0x170] sm:$0xff]
        %v1971 = vld [vmem:[%s1923 + $0x178] sm:$0xff]
        %v1972 = vld [vmem:[%s1923 + $0x180] sm:$0xff]
        %v1973 = vld [vmem:[%s1923 + $0x188] sm:$0xff]
        %v1974 = vld [vmem:[%s1923 + $0x190] sm:$0xff]
        %v1975 = vld [vmem:[%s1923 + $0x198] sm:$0xff]
        %v1976 = vld [vmem:[%s1923 + $0x1a0] sm:$0xff]
        %v1977 = vld [vmem:[%s1923 + $0x1a8] sm:$0xff]
        %v1978 = vld [vmem:[%s1923 + $0x1b0] sm:$0xff]
        %v1979 = vld [vmem:[%s1923 + $0x1b8] sm:$0xff]
        %v1980 = vld [vmem:[%s1923 + $0x1c0] sm:$0xff]
        %v1981 = vld [vmem:[%s1923 + $0x1c8] sm:$0xff]
        %v1982 = vld [vmem:[%s1923 + $0x1d0] sm:$0xff]
        %v1983 = vld [vmem:[%s1923 + $0x1d8] sm:$0xff]
        %v1984 = vld [vmem:[%s1923 + $0x1e0] sm:$0xff]
        %v1985 = vld [vmem:[%s1923 + $0x1e8] sm:$0xff]
        %v1986 = vld [vmem:[%s1923 + $0x1f0] sm:$0xff]
        %v1987 = vld [vmem:[%s1923 + $0x1f8] sm:$0xff]
        %1988 = vmatprep.subr.mxu0 0.0
        %1989 = vmatpush1.msra.mxu0 %v1360
        %1990 = vmatprep.subr.mxu0 0.0
        %1991 = vmatpush1.msra.mxu0 %v1355
        %1992 = vmatprep.subr.mxu0 0.0
        %1993 = vmatpush1.msra.mxu0 %v1350
        %1994 = vmatprep.subr.mxu0 0.0
        %1995 = vmatpush1.msra.mxu0 %v1345
        %1996 = vmatprep.subr.mxu0 0.0
        %1997 = vmatpush1.msra.mxu0 %v1340
        %1998 = vmatprep.subr.mxu0 0.0
        %1999 = vmatpush1.msra.mxu0 %v1335
        %2000 = vmatprep.subr.mxu0 0.0
        %2001 = vmatpush1.msra.mxu0 %v1330
        %2002 = vmatprep.subr.mxu0 0.0
        %2003 = vmatpush1.msra.mxu0 %v1325
        %2004 = vmatprep.subr.mxu0 0.0
        %2005 = vmatpush1.msra.mxu0 %v1320
        %2006 = vmatprep.subr.mxu0 0.0
        %2007 = vmatpush1.msra.mxu0 %v1315
        %2008 = vmatprep.subr.mxu0 0.0
        %2009 = vmatpush1.msra.mxu0 %v1310
        %2010 = vmatprep.subr.mxu0 0.0
        %2011 = vmatpush1.msra.mxu0 %v1305
        %2012 = vmatprep.subr.mxu0 0.0
        %2013 = vmatpush1.msra.mxu0 %v1300
        %2014 = vmatprep.subr.mxu0 0.0
        %2015 = vmatpush1.msra.mxu0 %v1295
        %2016 = vmatprep.subr.mxu0 0.0
        %2017 = vmatpush1.msra.mxu0 %v1290
        %2018 = vmatprep.subr.mxu0 0.0
        %2019 = vmatpush1.msra.mxu0 %v1285
        %2020 = vmatprep.subr.mxu0 0.0
        %2021 = vmatpush2.msra.mxu0 %v1440
        %2022 = vmatprep.subr.mxu0 0.0
        %2023 = vmatpush2.msra.mxu0 %v1435
        %2024 = vmatprep.subr.mxu0 0.0
        %2025 = vmatpush2.msra.mxu0 %v1430
        %2026 = vmatprep.subr.mxu0 0.0
        %2027 = vmatpush2.msra.mxu0 %v1425
        %2028 = vmatprep.subr.mxu0 0.0
        %2029 = vmatpush2.msra.mxu0 %v1420
        %2030 = vmatprep.subr.mxu0 0.0
        %2031 = vmatpush2.msra.mxu0 %v1415
        %2032 = vmatprep.subr.mxu0 0.0
        %2033 = vmatpush2.msra.mxu0 %v1410
        %2034 = vmatprep.subr.mxu0 0.0
        %2035 = vmatpush2.msra.mxu0 %v1405
        %2036 = vmatprep.subr.mxu0 0.0
        %2037 = vmatpush2.msra.mxu0 %v1400
        %2038 = vmatprep.subr.mxu0 0.0
        %2039 = vmatpush2.msra.mxu0 %v1395
        %2040 = vmatprep.subr.mxu0 0.0
        %2041 = vmatpush2.msra.mxu0 %v1390
        %2042 = vmatprep.subr.mxu0 0.0
        %2043 = vmatpush2.msra.mxu0 %v1385
        %2044 = vmatprep.subr.mxu0 0.0
        %2045 = vmatpush2.msra.mxu0 %v1380
        %2046 = vmatprep.subr.mxu0 0.0
        %2047 = vmatpush2.msra.mxu0 %v1375
        %2048 = vmatprep.subr.mxu0 0.0
        %2049 = vmatpush2.msra.mxu0 %v1370
        %2050 = vmatprep.subr.mxu0 0.0
        %2051 = vmatpush2.msra.mxu0 %v1365
        %2052 = vmatprep.mubr.f32.mxu0 %v1925
        %2053 = vmatmul.mubr.f32.gmra.mxu0 %v1924
        %v2054 = vpop.f32.mrf.mxu0
        %v2055 = vadd.f32 0.0, %v2054
        %v2056 = vpop.f32.mrf.mxu0
        %2057 = vmatprep.mubr.f32.mxu0 %v1933
        %2058 = vmatmul.mubr.f32.gmra.mxu0 %v1932
        %v2059 = vpop.f32.mrf.mxu0
        %v2060 = vadd.f32 0.0, %v2059
        %v2061 = vpop.f32.mrf.mxu0
        %2062 = vmatprep.mubr.f32.mxu0 %v1941
        %2063 = vmatmul.mubr.f32.gmra.mxu0 %v1940
        %v2064 = vpop.f32.mrf.mxu0
        %v2065 = vadd.f32 0.0, %v2064
        %v2066 = vpop.f32.mrf.mxu0
        %2067 = vmatprep.mubr.f32.mxu0 %v1949
        %2068 = vmatmul.mubr.f32.gmra.mxu0 %v1948
        %v2069 = vpop.f32.mrf.mxu0
        %v2070 = vadd.f32 0.0, %v2069
        %v2071 = vpop.f32.mrf.mxu0
        %2072 = vmatprep.mubr.f32.mxu0 %v1957
        %2073 = vmatmul.mubr.f32.gmra.mxu0 %v1956
        %v2074 = vpop.f32.mrf.mxu0
        %v2075 = vadd.f32 0.0, %v2074
        %v2076 = vpop.f32.mrf.mxu0
        %2077 = vmatprep.mubr.f32.mxu0 %v1965
        %2078 = vmatmul.mubr.f32.gmra.mxu0 %v1964
        %v2079 = vpop.f32.mrf.mxu0
        %v2080 = vadd.f32 0.0, %v2079
        %v2081 = vpop.f32.mrf.mxu0
        %2082 = vmatprep.mubr.f32.mxu0 %v1973
        %2083 = vmatmul.mubr.f32.gmra.mxu0 %v1972
        %v2084 = vpop.f32.mrf.mxu0
        %v2085 = vadd.f32 0.0, %v2084
        %v2086 = vpop.f32.mrf.mxu0
        %2087 = vmatprep.mubr.f32.mxu0 %v1981
        %2088 = vmatmul.mubr.f32.gmra.mxu0 %v1980
        %v2089 = vpop.f32.mrf.mxu0
        %v2090 = vadd.f32 0.0, %v2089
        %v2091 = vpop.f32.mrf.mxu0
        %2092 = vdwg.mxu0
        %2093 = vmatprep.subr.mxu0 0.0
        %2094 = vmatpush1.msra.mxu0 %v1520
        %2095 = vmatprep.subr.mxu0 0.0
        %2096 = vmatpush1.msra.mxu0 %v1515
        %2097 = vmatprep.subr.mxu0 0.0
        %2098 = vmatpush1.msra.mxu0 %v1510
        %2099 = vmatprep.subr.mxu0 0.0
        %2100 = vmatpush1.msra.mxu0 %v1505
        %2101 = vmatprep.subr.mxu0 0.0
        %2102 = vmatpush1.msra.mxu0 %v1500
        %2103 = vmatprep.subr.mxu0 0.0
        %2104 = vmatpush1.msra.mxu0 %v1495
        %2105 = vmatprep.subr.mxu0 0.0
        %2106 = vmatpush1.msra.mxu0 %v1490
        %2107 = vmatprep.subr.mxu0 0.0
        %2108 = vmatpush1.msra.mxu0 %v1485
        %2109 = vmatprep.subr.mxu0 0.0
        %2110 = vmatpush1.msra.mxu0 %v1480
        %2111 = vmatprep.subr.mxu0 0.0
        %2112 = vmatpush1.msra.mxu0 %v1475
        %2113 = vmatprep.subr.mxu0 0.0
        %2114 = vmatpush1.msra.mxu0 %v1470
        %2115 = vmatprep.subr.mxu0 0.0
        %2116 = vmatpush1.msra.mxu0 %v1465
        %2117 = vmatprep.subr.mxu0 0.0
        %2118 = vmatpush1.msra.mxu0 %v1460
        %2119 = vmatprep.subr.mxu0 0.0
        %2120 = vmatpush1.msra.mxu0 %v1455
        %2121 = vmatprep.subr.mxu0 0.0
        %2122 = vmatpush1.msra.mxu0 %v1450
        %2123 = vmatprep.subr.mxu0 0.0
        %2124 = vmatpush1.msra.mxu0 %v1445
        %2125 = vmatprep.subr.mxu0 0.0
        %2126 = vmatpush2.msra.mxu0 %v1600
        %2127 = vmatprep.subr.mxu0 0.0
        %2128 = vmatpush2.msra.mxu0 %v1595
        %2129 = vmatprep.subr.mxu0 0.0
        %2130 = vmatpush2.msra.mxu0 %v1590
        %2131 = vmatprep.subr.mxu0 0.0
        %2132 = vmatpush2.msra.mxu0 %v1585
        %2133 = vmatprep.subr.mxu0 0.0
        %2134 = vmatpush2.msra.mxu0 %v1580
        %2135 = vmatprep.subr.mxu0 0.0
        %2136 = vmatpush2.msra.mxu0 %v1575
        %2137 = vmatprep.subr.mxu0 0.0
        %2138 = vmatpush2.msra.mxu0 %v1570
        %2139 = vmatprep.subr.mxu0 0.0
        %2140 = vmatpush2.msra.mxu0 %v1565
        %2141 = vmatprep.subr.mxu0 0.0
        %2142 = vmatpush2.msra.mxu0 %v1560
        %2143 = vmatprep.subr.mxu0 0.0
        %2144 = vmatpush2.msra.mxu0 %v1555
        %2145 = vmatprep.subr.mxu0 0.0
        %2146 = vmatpush2.msra.mxu0 %v1550
        %2147 = vmatprep.subr.mxu0 0.0
        %2148 = vmatpush2.msra.mxu0 %v1545
        %2149 = vmatprep.subr.mxu0 0.0
        %2150 = vmatpush2.msra.mxu0 %v1540
        %2151 = vmatprep.subr.mxu0 0.0
        %2152 = vmatpush2.msra.mxu0 %v1535
        %2153 = vmatprep.subr.mxu0 0.0
        %2154 = vmatpush2.msra.mxu0 %v1530
        %2155 = vmatprep.subr.mxu0 0.0
        %2156 = vmatpush2.msra.mxu0 %v1525
        %2157 = vmatprep.mubr.f32.mxu0 %v1927
        %2158 = vmatmul.mubr.f32.gmra.mxu0 %v1926
        %v2159 = vpop.f32.mrf.mxu0
        %v2160 = vadd.f32 %v2055, %v2159
        %v2161 = vpop.f32.mrf.mxu0
        %2162 = vmatprep.mubr.f32.mxu0 %v1935
        %2163 = vmatmul.mubr.f32.gmra.mxu0 %v1934
        %v2164 = vpop.f32.mrf.mxu0
        %v2165 = vadd.f32 %v2060, %v2164
        %v2166 = vpop.f32.mrf.mxu0
        %2167 = vmatprep.mubr.f32.mxu0 %v1943
        %2168 = vmatmul.mubr.f32.gmra.mxu0 %v1942
        %v2169 = vpop.f32.mrf.mxu0
        %v2170 = vadd.f32 %v2065, %v2169
        %v2171 = vpop.f32.mrf.mxu0
        %2172 = vmatprep.mubr.f32.mxu0 %v1951
        %2173 = vmatmul.mubr.f32.gmra.mxu0 %v1950
        %v2174 = vpop.f32.mrf.mxu0
        %v2175 = vadd.f32 %v2070, %v2174
        %v2176 = vpop.f32.mrf.mxu0
        %2177 = vmatprep.mubr.f32.mxu0 %v1959
        %2178 = vmatmul.mubr.f32.gmra.mxu0 %v1958
        %v2179 = vpop.f32.mrf.mxu0
        %v2180 = vadd.f32 %v2075, %v2179
        %v2181 = vpop.f32.mrf.mxu0
        %2182 = vmatprep.mubr.f32.mxu0 %v1967
        %2183 = vmatmul.mubr.f32.gmra.mxu0 %v1966
        %v2184 = vpop.f32.mrf.mxu0
        %v2185 = vadd.f32 %v2080, %v2184
        %v2186 = vpop.f32.mrf.mxu0
        %2187 = vmatprep.mubr.f32.mxu0 %v1975
        %2188 = vmatmul.mubr.f32.gmra.mxu0 %v1974
        %v2189 = vpop.f32.mrf.mxu0
        %v2190 = vadd.f32 %v2085, %v2189
        %v2191 = vpop.f32.mrf.mxu0
        %2192 = vmatprep.mubr.f32.mxu0 %v1983
        %2193 = vmatmul.mubr.f32.gmra.mxu0 %v1982
        %v2194 = vpop.f32.mrf.mxu0
        %v2195 = vadd.f32 %v2090, %v2194
        %v2196 = vpop.f32.mrf.mxu0
        %2197 = vdwg.mxu0
        %2198 = vmatprep.subr.mxu0 0.0
        %2199 = vmatpush1.msra.mxu0 %v1680
        %2200 = vmatprep.subr.mxu0 0.0
        %2201 = vmatpush1.msra.mxu0 %v1675
        %2202 = vmatprep.subr.mxu0 0.0
        %2203 = vmatpush1.msra.mxu0 %v1670
        %2204 = vmatprep.subr.mxu0 0.0
        %2205 = vmatpush1.msra.mxu0 %v1665
        %2206 = vmatprep.subr.mxu0 0.0
        %2207 = vmatpush1.msra.mxu0 %v1660
        %2208 = vmatprep.subr.mxu0 0.0
        %2209 = vmatpush1.msra.mxu0 %v1655
        %2210 = vmatprep.subr.mxu0 0.0
        %2211 = vmatpush1.msra.mxu0 %v1650
        %2212 = vmatprep.subr.mxu0 0.0
        %2213 = vmatpush1.msra.mxu0 %v1645
        %2214 = vmatprep.subr.mxu0 0.0
        %2215 = vmatpush1.msra.mxu0 %v1640
        %2216 = vmatprep.subr.mxu0 0.0
        %2217 = vmatpush1.msra.mxu0 %v1635
        %2218 = vmatprep.subr.mxu0 0.0
        %2219 = vmatpush1.msra.mxu0 %v1630
        %2220 = vmatprep.subr.mxu0 0.0
        %2221 = vmatpush1.msra.mxu0 %v1625
        %2222 = vmatprep.subr.mxu0 0.0
        %2223 = vmatpush1.msra.mxu0 %v1620
        %2224 = vmatprep.subr.mxu0 0.0
        %2225 = vmatpush1.msra.mxu0 %v1615
        %2226 = vmatprep.subr.mxu0 0.0
        %2227 = vmatpush1.msra.mxu0 %v1610
        %2228 = vmatprep.subr.mxu0 0.0
        %2229 = vmatpush1.msra.mxu0 %v1605
        %2230 = vmatprep.subr.mxu0 0.0
        %2231 = vmatpush2.msra.mxu0 %v1760
        %2232 = vmatprep.subr.mxu0 0.0
        %2233 = vmatpush2.msra.mxu0 %v1755
        %2234 = vmatprep.subr.mxu0 0.0
        %2235 = vmatpush2.msra.mxu0 %v1750
        %2236 = vmatprep.subr.mxu0 0.0
        %2237 = vmatpush2.msra.mxu0 %v1745
        %2238 = vmatprep.subr.mxu0 0.0
        %2239 = vmatpush2.msra.mxu0 %v1740
        %2240 = vmatprep.subr.mxu0 0.0
        %2241 = vmatpush2.msra.mxu0 %v1735
        %2242 = vmatprep.subr.mxu0 0.0
        %2243 = vmatpush2.msra.mxu0 %v1730
        %2244 = vmatprep.subr.mxu0 0.0
        %2245 = vmatpush2.msra.mxu0 %v1725
        %2246 = vmatprep.subr.mxu0 0.0
        %2247 = vmatpush2.msra.mxu0 %v1720
        %2248 = vmatprep.subr.mxu0 0.0
        %2249 = vmatpush2.msra.mxu0 %v1715
        %2250 = vmatprep.subr.mxu0 0.0
        %2251 = vmatpush2.msra.mxu0 %v1710
        %2252 = vmatprep.subr.mxu0 0.0
        %2253 = vmatpush2.msra.mxu0 %v1705
        %2254 = vmatprep.subr.mxu0 0.0
        %2255 = vmatpush2.msra.mxu0 %v1700
        %2256 = vmatprep.subr.mxu0 0.0
        %2257 = vmatpush2.msra.mxu0 %v1695
        %2258 = vmatprep.subr.mxu0 0.0
        %2259 = vmatpush2.msra.mxu0 %v1690
        %2260 = vmatprep.subr.mxu0 0.0
        %2261 = vmatpush2.msra.mxu0 %v1685
        %2262 = vmatprep.mubr.f32.mxu0 %v1929
        %2263 = vmatmul.mubr.f32.gmra.mxu0 %v1928
        %v2264 = vpop.f32.mrf.mxu0
        %v2265 = vadd.f32 %v2160, %v2264
        %v2266 = vpop.f32.mrf.mxu0
        %2267 = vmatprep.mubr.f32.mxu0 %v1937
        %2268 = vmatmul.mubr.f32.gmra.mxu0 %v1936
        %v2269 = vpop.f32.mrf.mxu0
        %v2270 = vadd.f32 %v2165, %v2269
        %v2271 = vpop.f32.mrf.mxu0
        %2272 = vmatprep.mubr.f32.mxu0 %v1945
        %2273 = vmatmul.mubr.f32.gmra.mxu0 %v1944
        %v2274 = vpop.f32.mrf.mxu0
        %v2275 = vadd.f32 %v2170, %v2274
        %v2276 = vpop.f32.mrf.mxu0
        %2277 = vmatprep.mubr.f32.mxu0 %v1953
        %2278 = vmatmul.mubr.f32.gmra.mxu0 %v1952
        %v2279 = vpop.f32.mrf.mxu0
        %v2280 = vadd.f32 %v2175, %v2279
        %v2281 = vpop.f32.mrf.mxu0
        %2282 = vmatprep.mubr.f32.mxu0 %v1961
        %2283 = vmatmul.mubr.f32.gmra.mxu0 %v1960
        %v2284 = vpop.f32.mrf.mxu0
        %v2285 = vadd.f32 %v2180, %v2284
        %v2286 = vpop.f32.mrf.mxu0
        %2287 = vmatprep.mubr.f32.mxu0 %v1969
        %2288 = vmatmul.mubr.f32.gmra.mxu0 %v1968
        %v2289 = vpop.f32.mrf.mxu0
        %v2290 = vadd.f32 %v2185, %v2289
        %v2291 = vpop.f32.mrf.mxu0
        %2292 = vmatprep.mubr.f32.mxu0 %v1977
        %2293 = vmatmul.mubr.f32.gmra.mxu0 %v1976
        %v2294 = vpop.f32.mrf.mxu0
        %v2295 = vadd.f32 %v2190, %v2294
        %v2296 = vpop.f32.mrf.mxu0
        %2297 = vmatprep.mubr.f32.mxu0 %v1985
        %2298 = vmatmul.mubr.f32.gmra.mxu0 %v1984
        %v2299 = vpop.f32.mrf.mxu0
        %v2300 = vadd.f32 %v2195, %v2299
        %v2301 = vpop.f32.mrf.mxu0
        %2302 = vdwg.mxu0
        %2303 = vmatprep.subr.mxu0 0.0
        %2304 = vmatpush1.msra.mxu0 %v1840
        %2305 = vmatprep.subr.mxu0 0.0
        %2306 = vmatpush1.msra.mxu0 %v1835
        %2307 = vmatprep.subr.mxu0 0.0
        %2308 = vmatpush1.msra.mxu0 %v1830
        %2309 = vmatprep.subr.mxu0 0.0
        %2310 = vmatpush1.msra.mxu0 %v1825
        %2311 = vmatprep.subr.mxu0 0.0
        %2312 = vmatpush1.msra.mxu0 %v1820
        %2313 = vmatprep.subr.mxu0 0.0
        %2314 = vmatpush1.msra.mxu0 %v1815
        %2315 = vmatprep.subr.mxu0 0.0
        %2316 = vmatpush1.msra.mxu0 %v1810
        %2317 = vmatprep.subr.mxu0 0.0
        %2318 = vmatpush1.msra.mxu0 %v1805
        %2319 = vmatprep.subr.mxu0 0.0
        %2320 = vmatpush1.msra.mxu0 %v1800
        %2321 = vmatprep.subr.mxu0 0.0
        %2322 = vmatpush1.msra.mxu0 %v1795
        %2323 = vmatprep.subr.mxu0 0.0
        %2324 = vmatpush1.msra.mxu0 %v1790
        %2325 = vmatprep.subr.mxu0 0.0
        %2326 = vmatpush1.msra.mxu0 %v1785
        %2327 = vmatprep.subr.mxu0 0.0
        %2328 = vmatpush1.msra.mxu0 %v1780
        %2329 = vmatprep.subr.mxu0 0.0
        %2330 = vmatpush1.msra.mxu0 %v1775
        %2331 = vmatprep.subr.mxu0 0.0
        %2332 = vmatpush1.msra.mxu0 %v1770
        %2333 = vmatprep.subr.mxu0 0.0
        %2334 = vmatpush1.msra.mxu0 %v1765
        %2335 = vmatprep.subr.mxu0 0.0
        %2336 = vmatpush2.msra.mxu0 %v1920
        %2337 = vmatprep.subr.mxu0 0.0
        %2338 = vmatpush2.msra.mxu0 %v1915
        %2339 = vmatprep.subr.mxu0 0.0
        %2340 = vmatpush2.msra.mxu0 %v1910
        %2341 = vmatprep.subr.mxu0 0.0
        %2342 = vmatpush2.msra.mxu0 %v1905
        %2343 = vmatprep.subr.mxu0 0.0
        %2344 = vmatpush2.msra.mxu0 %v1900
        %2345 = vmatprep.subr.mxu0 0.0
        %2346 = vmatpush2.msra.mxu0 %v1895
        %2347 = vmatprep.subr.mxu0 0.0
        %2348 = vmatpush2.msra.mxu0 %v1890
        %2349 = vmatprep.subr.mxu0 0.0
        %2350 = vmatpush2.msra.mxu0 %v1885
        %2351 = vmatprep.subr.mxu0 0.0
        %2352 = vmatpush2.msra.mxu0 %v1880
        %2353 = vmatprep.subr.mxu0 0.0
        %2354 = vmatpush2.msra.mxu0 %v1875
        %2355 = vmatprep.subr.mxu0 0.0
        %2356 = vmatpush2.msra.mxu0 %v1870
        %2357 = vmatprep.subr.mxu0 0.0
        %2358 = vmatpush2.msra.mxu0 %v1865
        %2359 = vmatprep.subr.mxu0 0.0
        %2360 = vmatpush2.msra.mxu0 %v1860
        %2361 = vmatprep.subr.mxu0 0.0
        %2362 = vmatpush2.msra.mxu0 %v1855
        %2363 = vmatprep.subr.mxu0 0.0
        %2364 = vmatpush2.msra.mxu0 %v1850
        %2365 = vmatprep.subr.mxu0 0.0
        %2366 = vmatpush2.msra.mxu0 %v1845
        %2367 = vmatprep.mubr.f32.mxu0 %v1931
        %2368 = vmatmul.mubr.f32.gmra.mxu0 %v1930
        %v2369 = vpop.f32.mrf.mxu0
        %v2370 = vadd.f32 %v2265, %v2369
        %v2371 = vpop.f32.mrf.mxu0
        %2372 = vmatprep.mubr.f32.mxu0 %v1939
        %2373 = vmatmul.mubr.f32.gmra.mxu0 %v1938
        %v2374 = vpop.f32.mrf.mxu0
        %v2375 = vadd.f32 %v2270, %v2374
        %v2376 = vpop.f32.mrf.mxu0
        %2377 = vmatprep.mubr.f32.mxu0 %v1947
        %2378 = vmatmul.mubr.f32.gmra.mxu0 %v1946
        %v2379 = vpop.f32.mrf.mxu0
        %v2380 = vadd.f32 %v2275, %v2379
        %v2381 = vpop.f32.mrf.mxu0
        %2382 = vmatprep.mubr.f32.mxu0 %v1955
        %2383 = vmatmul.mubr.f32.gmra.mxu0 %v1954
        %v2384 = vpop.f32.mrf.mxu0
        %v2385 = vadd.f32 %v2280, %v2384
        %v2386 = vpop.f32.mrf.mxu0
        %2387 = vmatprep.mubr.f32.mxu0 %v1963
        %2388 = vmatmul.mubr.f32.gmra.mxu0 %v1962
        %v2389 = vpop.f32.mrf.mxu0
        %v2390 = vadd.f32 %v2285, %v2389
        %v2391 = vpop.f32.mrf.mxu0
        %2392 = vmatprep.mubr.f32.mxu0 %v1971
        %2393 = vmatmul.mubr.f32.gmra.mxu0 %v1970
        %v2394 = vpop.f32.mrf.mxu0
        %v2395 = vadd.f32 %v2290, %v2394
        %v2396 = vpop.f32.mrf.mxu0
        %2397 = vmatprep.mubr.f32.mxu0 %v1979
        %2398 = vmatmul.mubr.f32.gmra.mxu0 %v1978
        %v2399 = vpop.f32.mrf.mxu0
        %v2400 = vadd.f32 %v2295, %v2399
        %v2401 = vpop.f32.mrf.mxu0
        %2402 = vmatprep.mubr.f32.mxu0 %v1987
        %2403 = vmatmul.mubr.f32.gmra.mxu0 %v1986
        %v2404 = vpop.f32.mrf.mxu0
        %v2405 = vadd.f32 %v2300, %v2404
        %v2406 = vpop.f32.mrf.mxu0
        %2407 = vdwg.mxu0
        %2408 = vmatprep.subr.mxu0 0.0
        %2409 = vmatpush1.msra.mxu0 %v574
        %2410 = vmatprep.subr.mxu0 0.0
        %2411 = vmatpush1.msra.mxu0 %v569
        %2412 = vmatprep.subr.mxu0 0.0
        %2413 = vmatpush1.msra.mxu0 %v564
        %2414 = vmatprep.subr.mxu0 0.0
        %2415 = vmatpush1.msra.mxu0 %v559
        %2416 = vmatprep.subr.mxu0 0.0
        %2417 = vmatpush1.msra.mxu0 %v554
        %2418 = vmatprep.subr.mxu0 0.0
        %2419 = vmatpush1.msra.mxu0 %v549
        %2420 = vmatprep.subr.mxu0 0.0
        %2421 = vmatpush1.msra.mxu0 %v544
        %2422 = vmatprep.subr.mxu0 0.0
        %2423 = vmatpush1.msra.mxu0 %v539
        %2424 = vmatprep.subr.mxu0 0.0
        %2425 = vmatpush1.msra.mxu0 %v534
        %2426 = vmatprep.subr.mxu0 0.0
        %2427 = vmatpush1.msra.mxu0 %v529
        %2428 = vmatprep.subr.mxu0 0.0
        %2429 = vmatpush1.msra.mxu0 %v524
        %2430 = vmatprep.subr.mxu0 0.0
        %2431 = vmatpush1.msra.mxu0 %v519
        %2432 = vmatprep.subr.mxu0 0.0
        %2433 = vmatpush1.msra.mxu0 %v514
        %2434 = vmatprep.subr.mxu0 0.0
        %2435 = vmatpush1.msra.mxu0 %v509
        %2436 = vmatprep.subr.mxu0 0.0
        %2437 = vmatpush1.msra.mxu0 %v504
        %2438 = vmatprep.subr.mxu0 0.0
        %2439 = vmatpush1.msra.mxu0 %v499
        %2440 = vmatprep.subr.mxu0 0.0
        %2441 = vmatpush2.msra.mxu0 %v654
        %2442 = vmatprep.subr.mxu0 0.0
        %2443 = vmatpush2.msra.mxu0 %v649
        %2444 = vmatprep.subr.mxu0 0.0
        %2445 = vmatpush2.msra.mxu0 %v644
        %2446 = vmatprep.subr.mxu0 0.0
        %2447 = vmatpush2.msra.mxu0 %v639
        %2448 = vmatprep.subr.mxu0 0.0
        %2449 = vmatpush2.msra.mxu0 %v634
        %2450 = vmatprep.subr.mxu0 0.0
        %2451 = vmatpush2.msra.mxu0 %v629
        %2452 = vmatprep.subr.mxu0 0.0
        %2453 = vmatpush2.msra.mxu0 %v624
        %2454 = vmatprep.subr.mxu0 0.0
        %2455 = vmatpush2.msra.mxu0 %v619
        %2456 = vmatprep.subr.mxu0 0.0
        %2457 = vmatpush2.msra.mxu0 %v614
        %2458 = vmatprep.subr.mxu0 0.0
        %2459 = vmatpush2.msra.mxu0 %v609
        %2460 = vmatprep.subr.mxu0 0.0
        %2461 = vmatpush2.msra.mxu0 %v604
        %2462 = vmatprep.subr.mxu0 0.0
        %2463 = vmatpush2.msra.mxu0 %v599
        %2464 = vmatprep.subr.mxu0 0.0
        %2465 = vmatpush2.msra.mxu0 %v594
        %2466 = vmatprep.subr.mxu0 0.0
        %2467 = vmatpush2.msra.mxu0 %v589
        %2468 = vmatprep.subr.mxu0 0.0
        %2469 = vmatpush2.msra.mxu0 %v584
        %2470 = vmatprep.subr.mxu0 0.0
        %2471 = vmatpush2.msra.mxu0 %v579
        %2472 = vmatprep.mubr.f32.mxu0 %v1138
        %2473 = vmatmul.mubr.f32.gmra.mxu0 %v1137
        %v2474 = vpop.f32.mrf.mxu0
        %v2475 = vadd.f32 %v2370, %v2474
        %v2476 = vpop.f32.mrf.mxu0
        %2477 = vmatprep.mubr.f32.mxu0 %v1146
        %2478 = vmatmul.mubr.f32.gmra.mxu0 %v1145
        %v2479 = vpop.f32.mrf.mxu0
        %v2480 = vadd.f32 %v2375, %v2479
        %v2481 = vpop.f32.mrf.mxu0
        %2482 = vmatprep.mubr.f32.mxu0 %v1154
        %2483 = vmatmul.mubr.f32.gmra.mxu0 %v1153
        %v2484 = vpop.f32.mrf.mxu0
        %v2485 = vadd.f32 %v2380, %v2484
        %v2486 = vpop.f32.mrf.mxu0
        %2487 = vmatprep.mubr.f32.mxu0 %v1162
        %2488 = vmatmul.mubr.f32.gmra.mxu0 %v1161
        %v2489 = vpop.f32.mrf.mxu0
        %v2490 = vadd.f32 %v2385, %v2489
        %v2491 = vpop.f32.mrf.mxu0
        %2492 = vmatprep.mubr.f32.mxu0 %v1170
        %2493 = vmatmul.mubr.f32.gmra.mxu0 %v1169
        %v2494 = vpop.f32.mrf.mxu0
        %v2495 = vadd.f32 %v2390, %v2494
        %v2496 = vpop.f32.mrf.mxu0
        %2497 = vmatprep.mubr.f32.mxu0 %v1178
        %2498 = vmatmul.mubr.f32.gmra.mxu0 %v1177
        %v2499 = vpop.f32.mrf.mxu0
        %v2500 = vadd.f32 %v2395, %v2499
        %v2501 = vpop.f32.mrf.mxu0
        %2502 = vmatprep.mubr.f32.mxu0 %v1186
        %2503 = vmatmul.mubr.f32.gmra.mxu0 %v1185
        %v2504 = vpop.f32.mrf.mxu0
        %v2505 = vadd.f32 %v2400, %v2504
        %v2506 = vpop.f32.mrf.mxu0
        %2507 = vmatprep.mubr.f32.mxu0 %v1194
        %2508 = vmatmul.mubr.f32.gmra.mxu0 %v1193
        %v2509 = vpop.f32.mrf.mxu0
        %v2510 = vadd.f32 %v2405, %v2509
        %v2511 = vpop.f32.mrf.mxu0
        %2512 = vdwg.mxu0
        %2513 = vmatprep.subr.mxu0 0.0
        %2514 = vmatpush1.msra.mxu0 %v734
        %2515 = vmatprep.subr.mxu0 0.0
        %2516 = vmatpush1.msra.mxu0 %v729
        %2517 = vmatprep.subr.mxu0 0.0
        %2518 = vmatpush1.msra.mxu0 %v724
        %2519 = vmatprep.subr.mxu0 0.0
        %2520 = vmatpush1.msra.mxu0 %v719
        %2521 = vmatprep.subr.mxu0 0.0
        %2522 = vmatpush1.msra.mxu0 %v714
        %2523 = vmatprep.subr.mxu0 0.0
        %2524 = vmatpush1.msra.mxu0 %v709
        %2525 = vmatprep.subr.mxu0 0.0
        %2526 = vmatpush1.msra.mxu0 %v704
        %2527 = vmatprep.subr.mxu0 0.0
        %2528 = vmatpush1.msra.mxu0 %v699
        %2529 = vmatprep.subr.mxu0 0.0
        %2530 = vmatpush1.msra.mxu0 %v694
        %2531 = vmatprep.subr.mxu0 0.0
        %2532 = vmatpush1.msra.mxu0 %v689
        %2533 = vmatprep.subr.mxu0 0.0
        %2534 = vmatpush1.msra.mxu0 %v684
        %2535 = vmatprep.subr.mxu0 0.0
        %2536 = vmatpush1.msra.mxu0 %v679
        %2537 = vmatprep.subr.mxu0 0.0
        %2538 = vmatpush1.msra.mxu0 %v674
        %2539 = vmatprep.subr.mxu0 0.0
        %2540 = vmatpush1.msra.mxu0 %v669
        %2541 = vmatprep.subr.mxu0 0.0
        %2542 = vmatpush1.msra.mxu0 %v664
        %2543 = vmatprep.subr.mxu0 0.0
        %2544 = vmatpush1.msra.mxu0 %v659
        %2545 = vmatprep.subr.mxu0 0.0
        %2546 = vmatpush2.msra.mxu0 %v814
        %2547 = vmatprep.subr.mxu0 0.0
        %2548 = vmatpush2.msra.mxu0 %v809
        %2549 = vmatprep.subr.mxu0 0.0
        %2550 = vmatpush2.msra.mxu0 %v804
        %2551 = vmatprep.subr.mxu0 0.0
        %2552 = vmatpush2.msra.mxu0 %v799
        %2553 = vmatprep.subr.mxu0 0.0
        %2554 = vmatpush2.msra.mxu0 %v794
        %2555 = vmatprep.subr.mxu0 0.0
        %2556 = vmatpush2.msra.mxu0 %v789
        %2557 = vmatprep.subr.mxu0 0.0
        %2558 = vmatpush2.msra.mxu0 %v784
        %2559 = vmatprep.subr.mxu0 0.0
        %2560 = vmatpush2.msra.mxu0 %v779
        %2561 = vmatprep.subr.mxu0 0.0
        %2562 = vmatpush2.msra.mxu0 %v774
        %2563 = vmatprep.subr.mxu0 0.0
        %2564 = vmatpush2.msra.mxu0 %v769
        %2565 = vmatprep.subr.mxu0 0.0
        %2566 = vmatpush2.msra.mxu0 %v764
        %2567 = vmatprep.subr.mxu0 0.0
        %2568 = vmatpush2.msra.mxu0 %v759
        %2569 = vmatprep.subr.mxu0 0.0
        %2570 = vmatpush2.msra.mxu0 %v754
        %2571 = vmatprep.subr.mxu0 0.0
        %2572 = vmatpush2.msra.mxu0 %v749
        %2573 = vmatprep.subr.mxu0 0.0
        %2574 = vmatpush2.msra.mxu0 %v744
        %2575 = vmatprep.subr.mxu0 0.0
        %2576 = vmatpush2.msra.mxu0 %v739
        %2577 = vmatprep.mubr.f32.mxu0 %v1140
        %2578 = vmatmul.mubr.f32.gmra.mxu0 %v1139
        %v2579 = vpop.f32.mrf.mxu0
        %v2580 = vadd.f32 %v2475, %v2579
        %v2581 = vpop.f32.mrf.mxu0
        %2582 = vmatprep.mubr.f32.mxu0 %v1148
        %2583 = vmatmul.mubr.f32.gmra.mxu0 %v1147
        %v2584 = vpop.f32.mrf.mxu0
        %v2585 = vadd.f32 %v2480, %v2584
        %v2586 = vpop.f32.mrf.mxu0
        %2587 = vmatprep.mubr.f32.mxu0 %v1156
        %2588 = vmatmul.mubr.f32.gmra.mxu0 %v1155
        %v2589 = vpop.f32.mrf.mxu0
        %v2590 = vadd.f32 %v2485, %v2589
        %v2591 = vpop.f32.mrf.mxu0
        %2592 = vmatprep.mubr.f32.mxu0 %v1164
        %2593 = vmatmul.mubr.f32.gmra.mxu0 %v1163
        %v2594 = vpop.f32.mrf.mxu0
        %v2595 = vadd.f32 %v2490, %v2594
        %v2596 = vpop.f32.mrf.mxu0
        %2597 = vmatprep.mubr.f32.mxu0 %v1172
        %2598 = vmatmul.mubr.f32.gmra.mxu0 %v1171
        %v2599 = vpop.f32.mrf.mxu0
        %v2600 = vadd.f32 %v2495, %v2599
        %v2601 = vpop.f32.mrf.mxu0
        %2602 = vmatprep.mubr.f32.mxu0 %v1180
        %2603 = vmatmul.mubr.f32.gmra.mxu0 %v1179
        %v2604 = vpop.f32.mrf.mxu0
        %v2605 = vadd.f32 %v2500, %v2604
        %v2606 = vpop.f32.mrf.mxu0
        %2607 = vmatprep.mubr.f32.mxu0 %v1188
        %2608 = vmatmul.mubr.f32.gmra.mxu0 %v1187
        %v2609 = vpop.f32.mrf.mxu0
        %v2610 = vadd.f32 %v2505, %v2609
        %v2611 = vpop.f32.mrf.mxu0
        %2612 = vmatprep.mubr.f32.mxu0 %v1196
        %2613 = vmatmul.mubr.f32.gmra.mxu0 %v1195
        %v2614 = vpop.f32.mrf.mxu0
        %v2615 = vadd.f32 %v2510, %v2614
        %v2616 = vpop.f32.mrf.mxu0
        %2617 = vdwg.mxu0
        %2618 = vmatprep.subr.mxu0 0.0
        %2619 = vmatpush1.msra.mxu0 %v894
        %2620 = vmatprep.subr.mxu0 0.0
        %2621 = vmatpush1.msra.mxu0 %v889
        %2622 = vmatprep.subr.mxu0 0.0
        %2623 = vmatpush1.msra.mxu0 %v884
        %2624 = vmatprep.subr.mxu0 0.0
        %2625 = vmatpush1.msra.mxu0 %v879
        %2626 = vmatprep.subr.mxu0 0.0
        %2627 = vmatpush1.msra.mxu0 %v874
        %2628 = vmatprep.subr.mxu0 0.0
        %2629 = vmatpush1.msra.mxu0 %v869
        %2630 = vmatprep.subr.mxu0 0.0
        %2631 = vmatpush1.msra.mxu0 %v864
        %2632 = vmatprep.subr.mxu0 0.0
        %2633 = vmatpush1.msra.mxu0 %v859
        %2634 = vmatprep.subr.mxu0 0.0
        %2635 = vmatpush1.msra.mxu0 %v854
        %2636 = vmatprep.subr.mxu0 0.0
        %2637 = vmatpush1.msra.mxu0 %v849
        %2638 = vmatprep.subr.mxu0 0.0
        %2639 = vmatpush1.msra.mxu0 %v844
        %2640 = vmatprep.subr.mxu0 0.0
        %2641 = vmatpush1.msra.mxu0 %v839
        %2642 = vmatprep.subr.mxu0 0.0
        %2643 = vmatpush1.msra.mxu0 %v834
        %2644 = vmatprep.subr.mxu0 0.0
        %2645 = vmatpush1.msra.mxu0 %v829
        %2646 = vmatprep.subr.mxu0 0.0
        %2647 = vmatpush1.msra.mxu0 %v824
        %2648 = vmatprep.subr.mxu0 0.0
        %2649 = vmatpush1.msra.mxu0 %v819
        %2650 = vmatprep.subr.mxu0 0.0
        %2651 = vmatpush2.msra.mxu0 %v974
        %2652 = vmatprep.subr.mxu0 0.0
        %2653 = vmatpush2.msra.mxu0 %v969
        %2654 = vmatprep.subr.mxu0 0.0
        %2655 = vmatpush2.msra.mxu0 %v964
        %2656 = vmatprep.subr.mxu0 0.0
        %2657 = vmatpush2.msra.mxu0 %v959
        %2658 = vmatprep.subr.mxu0 0.0
        %2659 = vmatpush2.msra.mxu0 %v954
        %2660 = vmatprep.subr.mxu0 0.0
        %2661 = vmatpush2.msra.mxu0 %v949
        %2662 = vmatprep.subr.mxu0 0.0
        %2663 = vmatpush2.msra.mxu0 %v944
        %2664 = vmatprep.subr.mxu0 0.0
        %2665 = vmatpush2.msra.mxu0 %v939
        %2666 = vmatprep.subr.mxu0 0.0
        %2667 = vmatpush2.msra.mxu0 %v934
        %2668 = vmatprep.subr.mxu0 0.0
        %2669 = vmatpush2.msra.mxu0 %v929
        %2670 = vmatprep.subr.mxu0 0.0
        %2671 = vmatpush2.msra.mxu0 %v924
        %2672 = vmatprep.subr.mxu0 0.0
        %2673 = vmatpush2.msra.mxu0 %v919
        %2674 = vmatprep.subr.mxu0 0.0
        %2675 = vmatpush2.msra.mxu0 %v914
        %2676 = vmatprep.subr.mxu0 0.0
        %2677 = vmatpush2.msra.mxu0 %v909
        %2678 = vmatprep.subr.mxu0 0.0
        %2679 = vmatpush2.msra.mxu0 %v904
        %2680 = vmatprep.subr.mxu0 0.0
        %2681 = vmatpush2.msra.mxu0 %v899
        %2682 = vmatprep.mubr.f32.mxu0 %v1142
        %2683 = vmatmul.mubr.f32.gmra.mxu0 %v1141
        %v2684 = vpop.f32.mrf.mxu0
        %v2685 = vadd.f32 %v2580, %v2684
        %v2686 = vpop.f32.mrf.mxu0
        %2687 = vmatprep.mubr.f32.mxu0 %v1150
        %2688 = vmatmul.mubr.f32.gmra.mxu0 %v1149
        %v2689 = vpop.f32.mrf.mxu0
        %v2690 = vadd.f32 %v2585, %v2689
        %v2691 = vpop.f32.mrf.mxu0
        %2692 = vmatprep.mubr.f32.mxu0 %v1158
        %2693 = vmatmul.mubr.f32.gmra.mxu0 %v1157
        %v2694 = vpop.f32.mrf.mxu0
        %v2695 = vadd.f32 %v2590, %v2694
        %v2696 = vpop.f32.mrf.mxu0
        %2697 = vmatprep.mubr.f32.mxu0 %v1166
        %2698 = vmatmul.mubr.f32.gmra.mxu0 %v1165
        %v2699 = vpop.f32.mrf.mxu0
        %v2700 = vadd.f32 %v2595, %v2699
        %v2701 = vpop.f32.mrf.mxu0
        %2702 = vmatprep.mubr.f32.mxu0 %v1174
        %2703 = vmatmul.mubr.f32.gmra.mxu0 %v1173
        %v2704 = vpop.f32.mrf.mxu0
        %v2705 = vadd.f32 %v2600, %v2704
        %v2706 = vpop.f32.mrf.mxu0
        %2707 = vmatprep.mubr.f32.mxu0 %v1182
        %2708 = vmatmul.mubr.f32.gmra.mxu0 %v1181
        %v2709 = vpop.f32.mrf.mxu0
        %v2710 = vadd.f32 %v2605, %v2709
        %v2711 = vpop.f32.mrf.mxu0
        %2712 = vmatprep.mubr.f32.mxu0 %v1190
        %2713 = vmatmul.mubr.f32.gmra.mxu0 %v1189
        %v2714 = vpop.f32.mrf.mxu0
        %v2715 = vadd.f32 %v2610, %v2714
        %v2716 = vpop.f32.mrf.mxu0
        %2717 = vmatprep.mubr.f32.mxu0 %v1198
        %2718 = vmatmul.mubr.f32.gmra.mxu0 %v1197
        %v2719 = vpop.f32.mrf.mxu0
        %v2720 = vadd.f32 %v2615, %v2719
        %v2721 = vpop.f32.mrf.mxu0
        %2722 = vdwg.mxu0
        %2723 = vmatprep.subr.mxu0 0.0
        %2724 = vmatpush1.msra.mxu0 %v1054
        %2725 = vmatprep.subr.mxu0 0.0
        %2726 = vmatpush1.msra.mxu0 %v1049
        %2727 = vmatprep.subr.mxu0 0.0
        %2728 = vmatpush1.msra.mxu0 %v1044
        %2729 = vmatprep.subr.mxu0 0.0
        %2730 = vmatpush1.msra.mxu0 %v1039
        %2731 = vmatprep.subr.mxu0 0.0
        %2732 = vmatpush1.msra.mxu0 %v1034
        %2733 = vmatprep.subr.mxu0 0.0
        %2734 = vmatpush1.msra.mxu0 %v1029
        %2735 = vmatprep.subr.mxu0 0.0
        %2736 = vmatpush1.msra.mxu0 %v1024
        %2737 = vmatprep.subr.mxu0 0.0
        %2738 = vmatpush1.msra.mxu0 %v1019
        %2739 = vmatprep.subr.mxu0 0.0
        %2740 = vmatpush1.msra.mxu0 %v1014
        %2741 = vmatprep.subr.mxu0 0.0
        %2742 = vmatpush1.msra.mxu0 %v1009
        %2743 = vmatprep.subr.mxu0 0.0
        %2744 = vmatpush1.msra.mxu0 %v1004
        %2745 = vmatprep.subr.mxu0 0.0
        %2746 = vmatpush1.msra.mxu0 %v999
        %2747 = vmatprep.subr.mxu0 0.0
        %2748 = vmatpush1.msra.mxu0 %v994
        %2749 = vmatprep.subr.mxu0 0.0
        %2750 = vmatpush1.msra.mxu0 %v989
        %2751 = vmatprep.subr.mxu0 0.0
        %2752 = vmatpush1.msra.mxu0 %v984
        %2753 = vmatprep.subr.mxu0 0.0
        %2754 = vmatpush1.msra.mxu0 %v979
        %2755 = vmatprep.subr.mxu0 0.0
        %2756 = vmatpush2.msra.mxu0 %v1134
        %2757 = vmatprep.subr.mxu0 0.0
        %2758 = vmatpush2.msra.mxu0 %v1129
        %2759 = vmatprep.subr.mxu0 0.0
        %2760 = vmatpush2.msra.mxu0 %v1124
        %2761 = vmatprep.subr.mxu0 0.0
        %2762 = vmatpush2.msra.mxu0 %v1119
        %2763 = vmatprep.subr.mxu0 0.0
        %2764 = vmatpush2.msra.mxu0 %v1114
        %2765 = vmatprep.subr.mxu0 0.0
        %2766 = vmatpush2.msra.mxu0 %v1109
        %2767 = vmatprep.subr.mxu0 0.0
        %2768 = vmatpush2.msra.mxu0 %v1104
        %2769 = vmatprep.subr.mxu0 0.0
        %2770 = vmatpush2.msra.mxu0 %v1099
        %2771 = vmatprep.subr.mxu0 0.0
        %2772 = vmatpush2.msra.mxu0 %v1094
        %2773 = vmatprep.subr.mxu0 0.0
        %2774 = vmatpush2.msra.mxu0 %v1089
        %2775 = vmatprep.subr.mxu0 0.0
        %2776 = vmatpush2.msra.mxu0 %v1084
        %2777 = vmatprep.subr.mxu0 0.0
        %2778 = vmatpush2.msra.mxu0 %v1079
        %2779 = vmatprep.subr.mxu0 0.0
        %2780 = vmatpush2.msra.mxu0 %v1074
        %2781 = vmatprep.subr.mxu0 0.0
        %2782 = vmatpush2.msra.mxu0 %v1069
        %2783 = vmatprep.subr.mxu0 0.0
        %2784 = vmatpush2.msra.mxu0 %v1064
        %2785 = vmatprep.subr.mxu0 0.0
        %2786 = vmatpush2.msra.mxu0 %v1059
        %2787 = vmatprep.mubr.f32.mxu0 %v1144
        %2788 = vmatmul.mubr.f32.gmra.mxu0 %v1143
        %v2789 = vpop.f32.mrf.mxu0
        %v2790 = vadd.f32 %v2685, %v2789
        %v2791 = vpop.f32.mrf.mxu0
        %2792 = vmatprep.mubr.f32.mxu0 %v1152
        %2793 = vmatmul.mubr.f32.gmra.mxu0 %v1151
        %v2794 = vpop.f32.mrf.mxu0
        %v2795 = vadd.f32 %v2690, %v2794
        %v2796 = vpop.f32.mrf.mxu0
        %2797 = vmatprep.mubr.f32.mxu0 %v1160
        %2798 = vmatmul.mubr.f32.gmra.mxu0 %v1159
        %v2799 = vpop.f32.mrf.mxu0
        %v2800 = vadd.f32 %v2695, %v2799
        %v2801 = vpop.f32.mrf.mxu0
        %2802 = vmatprep.mubr.f32.mxu0 %v1168
        %2803 = vmatmul.mubr.f32.gmra.mxu0 %v1167
        %v2804 = vpop.f32.mrf.mxu0
        %v2805 = vadd.f32 %v2700, %v2804
        %v2806 = vpop.f32.mrf.mxu0
        %2807 = vmatprep.mubr.f32.mxu0 %v1176
        %2808 = vmatmul.mubr.f32.gmra.mxu0 %v1175
        %v2809 = vpop.f32.mrf.mxu0
        %v2810 = vadd.f32 %v2705, %v2809
        %v2811 = vpop.f32.mrf.mxu0
        %2812 = vmatprep.mubr.f32.mxu0 %v1184
        %2813 = vmatmul.mubr.f32.gmra.mxu0 %v1183
        %v2814 = vpop.f32.mrf.mxu0
        %v2815 = vadd.f32 %v2710, %v2814
        %v2816 = vpop.f32.mrf.mxu0
        %2817 = vmatprep.mubr.f32.mxu0 %v1192
        %2818 = vmatmul.mubr.f32.gmra.mxu0 %v1191
        %v2819 = vpop.f32.mrf.mxu0
        %v2820 = vadd.f32 %v2715, %v2819
        %v2821 = vpop.f32.mrf.mxu0
        %2822 = vmatprep.mubr.f32.mxu0 %v1200
        %2823 = vmatmul.mubr.f32.gmra.mxu0 %v1199
        %v2824 = vpop.f32.mrf.mxu0
        %v2825 = vadd.f32 %v2720, %v2824
        %v2826 = vpop.f32.mrf.mxu0
        %2827 = vdwg.mxu0
        %v2828 = vmax.f32 %v2790, 0.0
        %v2829 = vmax.f32 %v2795, 0.0
        %v2830 = vmax.f32 %v2800, 0.0
        %v2831 = vmax.f32 %v2805, 0.0
        %v2832 = vmax.f32 %v2810, 0.0
        %v2833 = vmax.f32 %v2815, 0.0
        %v2834 = vmax.f32 %v2820, 0.0
        %v2835 = vmax.f32 %v2825, 0.0
        %v2836 = vlaneseq
        %v2837 = vand.u32 %v2836, 127
        %v2838 = vld [vmem:[%s4] sm:$0xff]
        %v2839 = vld [vmem:[%s4 + $0x8] sm:$0xff]
        %v2840 = vld [vmem:[%s4 + $0x10] sm:$0xff]
        %v2841 = vld [vmem:[%s4 + $0x18] sm:$0xff]
        %v2842 = vld [vmem:[%s4 + $0x20] sm:$0xff]
        %v2843 = vld [vmem:[%s4 + $0x28] sm:$0xff]
        %v2844 = vld [vmem:[%s4 + $0x30] sm:$0xff]
        %v2845 = vld [vmem:[%s4 + $0x38] sm:$0xff]
        %v2846 = vld [vmem:[%s4 + $0x40] sm:$0xff]
        %v2847 = vld [vmem:[%s4 + $0x48] sm:$0xff]
        %v2848 = vld [vmem:[%s4 + $0x50] sm:$0xff]
        %v2849 = vld [vmem:[%s4 + $0x58] sm:$0xff]
        %v2850 = vld [vmem:[%s4 + $0x60] sm:$0xff]
        %v2851 = vld [vmem:[%s4 + $0x68] sm:$0xff]
        %v2852 = vld [vmem:[%s4 + $0x70] sm:$0xff]
        %v2853 = vld [vmem:[%s4 + $0x78] sm:$0xff]
        %v2854 = vld [vmem:[%s4 + $0x80] sm:$0xff]
        %v2855 = vld [vmem:[%s4 + $0x88] sm:$0xff]
        %v2856 = vld [vmem:[%s4 + $0x90] sm:$0xff]
        %v2857 = vld [vmem:[%s4 + $0x98] sm:$0xff]
        %v2858 = vld [vmem:[%s4 + $0xa0] sm:$0xff]
        %v2859 = vld [vmem:[%s4 + $0xa8] sm:$0xff]
        %v2860 = vld [vmem:[%s4 + $0xb0] sm:$0xff]
        %v2861 = vld [vmem:[%s4 + $0xb8] sm:$0xff]
        %v2862 = vld [vmem:[%s4 + $0xc0] sm:$0xff]
        %v2863 = vld [vmem:[%s4 + $0xc8] sm:$0xff]
        %v2864 = vld [vmem:[%s4 + $0xd0] sm:$0xff]
        %v2865 = vld [vmem:[%s4 + $0xd8] sm:$0xff]
        %v2866 = vld [vmem:[%s4 + $0xe0] sm:$0xff]
        %v2867 = vld [vmem:[%s4 + $0xe8] sm:$0xff]
        %v2868 = vld [vmem:[%s4 + $0xf0] sm:$0xff]
        %v2869 = vld [vmem:[%s4 + $0xf8] sm:$0xff]
        %v2870 = vld [vmem:[%s4 + $0x100] sm:$0xff]
        %v2871 = vld [vmem:[%s4 + $0x108] sm:$0xff]
        %v2872 = vld [vmem:[%s4 + $0x110] sm:$0xff]
        %v2873 = vld [vmem:[%s4 + $0x118] sm:$0xff]
        %v2874 = vld [vmem:[%s4 + $0x120] sm:$0xff]
        %v2875 = vld [vmem:[%s4 + $0x128] sm:$0xff]
        %v2876 = vld [vmem:[%s4 + $0x130] sm:$0xff]
        %v2877 = vld [vmem:[%s4 + $0x138] sm:$0xff]
        %v2878 = vld [vmem:[%s4 + $0x140] sm:$0xff]
        %v2879 = vld [vmem:[%s4 + $0x148] sm:$0xff]
        %v2880 = vld [vmem:[%s4 + $0x150] sm:$0xff]
        %v2881 = vld [vmem:[%s4 + $0x158] sm:$0xff]
        %v2882 = vld [vmem:[%s4 + $0x160] sm:$0xff]
        %v2883 = vld [vmem:[%s4 + $0x168] sm:$0xff]
        %v2884 = vld [vmem:[%s4 + $0x170] sm:$0xff]
        %v2885 = vld [vmem:[%s4 + $0x178] sm:$0xff]
        %v2886 = vld [vmem:[%s4 + $0x180] sm:$0xff]
        %v2887 = vld [vmem:[%s4 + $0x188] sm:$0xff]
        %v2888 = vld [vmem:[%s4 + $0x190] sm:$0xff]
        %v2889 = vld [vmem:[%s4 + $0x198] sm:$0xff]
        %v2890 = vld [vmem:[%s4 + $0x1a0] sm:$0xff]
        %v2891 = vld [vmem:[%s4 + $0x1a8] sm:$0xff]
        %v2892 = vld [vmem:[%s4 + $0x1b0] sm:$0xff]
        %v2893 = vld [vmem:[%s4 + $0x1b8] sm:$0xff]
        %v2894 = vld [vmem:[%s4 + $0x1c0] sm:$0xff]
        %v2895 = vld [vmem:[%s4 + $0x1c8] sm:$0xff]
        %v2896 = vld [vmem:[%s4 + $0x1d0] sm:$0xff]
        %v2897 = vld [vmem:[%s4 + $0x1d8] sm:$0xff]
        %v2898 = vld [vmem:[%s4 + $0x1e0] sm:$0xff]
        %v2899 = vld [vmem:[%s4 + $0x1e8] sm:$0xff]
        %v2900 = vld [vmem:[%s4 + $0x1f0] sm:$0xff]
        %v2901 = vld [vmem:[%s4 + $0x1f8] sm:$0xff]
        %v2902 = vld [vmem:[%s4 + $0x200] sm:$0xff]
        %v2903 = vld [vmem:[%s4 + $0x208] sm:$0xff]
        %v2904 = vld [vmem:[%s4 + $0x210] sm:$0xff]
        %v2905 = vld [vmem:[%s4 + $0x218] sm:$0xff]
        %v2906 = vld [vmem:[%s4 + $0x220] sm:$0xff]
        %v2907 = vld [vmem:[%s4 + $0x228] sm:$0xff]
        %v2908 = vld [vmem:[%s4 + $0x230] sm:$0xff]
        %v2909 = vld [vmem:[%s4 + $0x238] sm:$0xff]
        %v2910 = vld [vmem:[%s4 + $0x240] sm:$0xff]
        %v2911 = vld [vmem:[%s4 + $0x248] sm:$0xff]
        %v2912 = vld [vmem:[%s4 + $0x250] sm:$0xff]
        %v2913 = vld [vmem:[%s4 + $0x258] sm:$0xff]
        %v2914 = vld [vmem:[%s4 + $0x260] sm:$0xff]
        %v2915 = vld [vmem:[%s4 + $0x268] sm:$0xff]
        %v2916 = vld [vmem:[%s4 + $0x270] sm:$0xff]
        %v2917 = vld [vmem:[%s4 + $0x278] sm:$0xff]
        %v2918 = vld [vmem:[%s4 + $0x280] sm:$0xff]
        %v2919 = vld [vmem:[%s4 + $0x288] sm:$0xff]
        %v2920 = vld [vmem:[%s4 + $0x290] sm:$0xff]
        %v2921 = vld [vmem:[%s4 + $0x298] sm:$0xff]
        %v2922 = vld [vmem:[%s4 + $0x2a0] sm:$0xff]
        %v2923 = vld [vmem:[%s4 + $0x2a8] sm:$0xff]
        %v2924 = vld [vmem:[%s4 + $0x2b0] sm:$0xff]
        %v2925 = vld [vmem:[%s4 + $0x2b8] sm:$0xff]
        %v2926 = vld [vmem:[%s4 + $0x2c0] sm:$0xff]
        %v2927 = vld [vmem:[%s4 + $0x2c8] sm:$0xff]
        %v2928 = vld [vmem:[%s4 + $0x2d0] sm:$0xff]
        %v2929 = vld [vmem:[%s4 + $0x2d8] sm:$0xff]
        %v2930 = vld [vmem:[%s4 + $0x2e0] sm:$0xff]
        %v2931 = vld [vmem:[%s4 + $0x2e8] sm:$0xff]
        %v2932 = vld [vmem:[%s4 + $0x2f0] sm:$0xff]
        %v2933 = vld [vmem:[%s4 + $0x2f8] sm:$0xff]
        %v2934 = vld [vmem:[%s4 + $0x300] sm:$0xff]
        %v2935 = vld [vmem:[%s4 + $0x308] sm:$0xff]
        %v2936 = vld [vmem:[%s4 + $0x310] sm:$0xff]
        %v2937 = vld [vmem:[%s4 + $0x318] sm:$0xff]
        %v2938 = vld [vmem:[%s4 + $0x320] sm:$0xff]
        %v2939 = vld [vmem:[%s4 + $0x328] sm:$0xff]
        %v2940 = vld [vmem:[%s4 + $0x330] sm:$0xff]
        %v2941 = vld [vmem:[%s4 + $0x338] sm:$0xff]
        %v2942 = vld [vmem:[%s4 + $0x340] sm:$0xff]
        %v2943 = vld [vmem:[%s4 + $0x348] sm:$0xff]
        %v2944 = vld [vmem:[%s4 + $0x350] sm:$0xff]
        %v2945 = vld [vmem:[%s4 + $0x358] sm:$0xff]
        %v2946 = vld [vmem:[%s4 + $0x360] sm:$0xff]
        %v2947 = vld [vmem:[%s4 + $0x368] sm:$0xff]
        %v2948 = vld [vmem:[%s4 + $0x370] sm:$0xff]
        %v2949 = vld [vmem:[%s4 + $0x378] sm:$0xff]
        %v2950 = vld [vmem:[%s4 + $0x380] sm:$0xff]
        %v2951 = vld [vmem:[%s4 + $0x388] sm:$0xff]
        %v2952 = vld [vmem:[%s4 + $0x390] sm:$0xff]
        %v2953 = vld [vmem:[%s4 + $0x398] sm:$0xff]
        %v2954 = vld [vmem:[%s4 + $0x3a0] sm:$0xff]
        %v2955 = vld [vmem:[%s4 + $0x3a8] sm:$0xff]
        %v2956 = vld [vmem:[%s4 + $0x3b0] sm:$0xff]
        %v2957 = vld [vmem:[%s4 + $0x3b8] sm:$0xff]
        %v2958 = vld [vmem:[%s4 + $0x3c0] sm:$0xff]
        %v2959 = vld [vmem:[%s4 + $0x3c8] sm:$0xff]
        %v2960 = vld [vmem:[%s4 + $0x3d0] sm:$0xff]
        %v2961 = vld [vmem:[%s4 + $0x3d8] sm:$0xff]
        %v2962 = vld [vmem:[%s4 + $0x3e0] sm:$0xff]
        %v2963 = vld [vmem:[%s4 + $0x3e8] sm:$0xff]
        %v2964 = vld [vmem:[%s4 + $0x3f0] sm:$0xff]
        %v2965 = vld [vmem:[%s4 + $0x3f8] sm:$0xff]
        %vm2966 = vcmask 523264
        %v2968 = vsel %vm2966, %v2838, 0
        %v2971 = vsel %vm2966, %v2839, 0
        %v2974 = vsel %vm2966, %v2840, 0
        %v2977 = vsel %vm2966, %v2841, 0
        %v2980 = vsel %vm2966, %v2842, 0
        %v2983 = vsel %vm2966, %v2843, 0
        %v2986 = vsel %vm2966, %v2844, 0
        %v2989 = vsel %vm2966, %v2845, 0
        %v2992 = vsel %vm2966, %v2846, 0
        %v2995 = vsel %vm2966, %v2847, 0
        %v2998 = vsel %vm2966, %v2848, 0
        %v3001 = vsel %vm2966, %v2849, 0
        %v3004 = vsel %vm2966, %v2850, 0
        %v3007 = vsel %vm2966, %v2851, 0
        %v3010 = vsel %vm2966, %v2852, 0
        %v3013 = vsel %vm2966, %v2853, 0
        %v3016 = vsel %vm2966, %v2854, 0
        %v3019 = vsel %vm2966, %v2855, 0
        %v3022 = vsel %vm2966, %v2856, 0
        %v3025 = vsel %vm2966, %v2857, 0
        %v3028 = vsel %vm2966, %v2858, 0
        %v3031 = vsel %vm2966, %v2859, 0
        %v3034 = vsel %vm2966, %v2860, 0
        %v3037 = vsel %vm2966, %v2861, 0
        %v3040 = vsel %vm2966, %v2862, 0
        %v3043 = vsel %vm2966, %v2863, 0
        %v3046 = vsel %vm2966, %v2864, 0
        %v3049 = vsel %vm2966, %v2865, 0
        %v3052 = vsel %vm2966, %v2866, 0
        %v3055 = vsel %vm2966, %v2867, 0
        %v3058 = vsel %vm2966, %v2868, 0
        %v3061 = vsel %vm2966, %v2869, 0
        %v3064 = vsel %vm2966, %v2870, 0
        %v3067 = vsel %vm2966, %v2871, 0
        %v3070 = vsel %vm2966, %v2872, 0
        %v3073 = vsel %vm2966, %v2873, 0
        %v3076 = vsel %vm2966, %v2874, 0
        %v3079 = vsel %vm2966, %v2875, 0
        %v3082 = vsel %vm2966, %v2876, 0
        %v3085 = vsel %vm2966, %v2877, 0
        %v3088 = vsel %vm2966, %v2878, 0
        %v3091 = vsel %vm2966, %v2879, 0
        %v3094 = vsel %vm2966, %v2880, 0
        %v3097 = vsel %vm2966, %v2881, 0
        %v3100 = vsel %vm2966, %v2882, 0
        %v3103 = vsel %vm2966, %v2883, 0
        %v3106 = vsel %vm2966, %v2884, 0
        %v3109 = vsel %vm2966, %v2885, 0
        %v3112 = vsel %vm2966, %v2886, 0
        %v3115 = vsel %vm2966, %v2887, 0
        %v3118 = vsel %vm2966, %v2888, 0
        %v3121 = vsel %vm2966, %v2889, 0
        %v3124 = vsel %vm2966, %v2890, 0
        %v3127 = vsel %vm2966, %v2891, 0
        %v3130 = vsel %vm2966, %v2892, 0
        %v3133 = vsel %vm2966, %v2893, 0
        %v3136 = vsel %vm2966, %v2894, 0
        %v3139 = vsel %vm2966, %v2895, 0
        %v3142 = vsel %vm2966, %v2896, 0
        %v3145 = vsel %vm2966, %v2897, 0
        %v3148 = vsel %vm2966, %v2898, 0
        %v3151 = vsel %vm2966, %v2899, 0
        %v3154 = vsel %vm2966, %v2900, 0
        %v3157 = vsel %vm2966, %v2901, 0
        %v3160 = vsel %vm2966, %v2902, 0
        %v3163 = vsel %vm2966, %v2903, 0
        %v3166 = vsel %vm2966, %v2904, 0
        %v3169 = vsel %vm2966, %v2905, 0
        %v3172 = vsel %vm2966, %v2906, 0
        %v3175 = vsel %vm2966, %v2907, 0
        %v3178 = vsel %vm2966, %v2908, 0
        %v3181 = vsel %vm2966, %v2909, 0
        %v3184 = vsel %vm2966, %v2910, 0
        %v3187 = vsel %vm2966, %v2911, 0
        %v3190 = vsel %vm2966, %v2912, 0
        %v3193 = vsel %vm2966, %v2913, 0
        %v3196 = vsel %vm2966, %v2914, 0
        %v3199 = vsel %vm2966, %v2915, 0
        %v3202 = vsel %vm2966, %v2916, 0
        %v3205 = vsel %vm2966, %v2917, 0
        %v3208 = vsel %vm2966, %v2918, 0
        %v3211 = vsel %vm2966, %v2919, 0
        %v3214 = vsel %vm2966, %v2920, 0
        %v3217 = vsel %vm2966, %v2921, 0
        %v3220 = vsel %vm2966, %v2922, 0
        %v3223 = vsel %vm2966, %v2923, 0
        %v3226 = vsel %vm2966, %v2924, 0
        %v3229 = vsel %vm2966, %v2925, 0
        %v3232 = vsel %vm2966, %v2926, 0
        %v3235 = vsel %vm2966, %v2927, 0
        %v3238 = vsel %vm2966, %v2928, 0
        %v3241 = vsel %vm2966, %v2929, 0
        %v3244 = vsel %vm2966, %v2930, 0
        %v3247 = vsel %vm2966, %v2931, 0
        %v3250 = vsel %vm2966, %v2932, 0
        %v3253 = vsel %vm2966, %v2933, 0
        %v3256 = vsel %vm2966, %v2934, 0
        %v3259 = vsel %vm2966, %v2935, 0
        %v3262 = vsel %vm2966, %v2936, 0
        %v3265 = vsel %vm2966, %v2937, 0
        %v3268 = vsel %vm2966, %v2938, 0
        %v3271 = vsel %vm2966, %v2939, 0
        %v3274 = vsel %vm2966, %v2940, 0
        %v3277 = vsel %vm2966, %v2941, 0
        %v3280 = vsel %vm2966, %v2942, 0
        %v3283 = vsel %vm2966, %v2943, 0
        %v3286 = vsel %vm2966, %v2944, 0
        %v3289 = vsel %vm2966, %v2945, 0
        %v3292 = vsel %vm2966, %v2946, 0
        %v3295 = vsel %vm2966, %v2947, 0
        %v3298 = vsel %vm2966, %v2948, 0
        %v3301 = vsel %vm2966, %v2949, 0
        %v3304 = vsel %vm2966, %v2950, 0
        %v3307 = vsel %vm2966, %v2951, 0
        %v3310 = vsel %vm2966, %v2952, 0
        %v3313 = vsel %vm2966, %v2953, 0
        %v3316 = vsel %vm2966, %v2954, 0
        %v3319 = vsel %vm2966, %v2955, 0
        %v3322 = vsel %vm2966, %v2956, 0
        %v3325 = vsel %vm2966, %v2957, 0
        %v3328 = vsel %vm2966, %v2958, 0
        %v3331 = vsel %vm2966, %v2959, 0
        %v3334 = vsel %vm2966, %v2960, 0
        %v3337 = vsel %vm2966, %v2961, 0
        %v3340 = vsel %vm2966, %v2962, 0
        %v3343 = vsel %vm2966, %v2963, 0
        %v3346 = vsel %vm2966, %v2964, 0
        %v3349 = vsel %vm2966, %v2965, 0
        %3351 = vmatprep.subr.mxu0 0.0
        %3352 = vmatpush1.msra.mxu0 0.0
        %3353 = vmatprep.subr.mxu0 0.0
        %3354 = vmatpush1.msra.mxu0 0.0
        %3355 = vmatprep.subr.mxu0 0.0
        %3356 = vmatpush1.msra.mxu0 0.0
        %3357 = vmatprep.subr.mxu0 0.0
        %3358 = vmatpush1.msra.mxu0 0.0
        %3359 = vmatprep.subr.mxu0 0.0
        %3360 = vmatpush1.msra.mxu0 0.0
        %3361 = vmatprep.subr.mxu0 0.0
        %3362 = vmatpush1.msra.mxu0 0.0
        %3363 = vmatprep.subr.mxu0 0.0
        %3364 = vmatpush1.msra.mxu0 0.0
        %3365 = vmatprep.subr.mxu0 0.0
        %3366 = vmatpush1.msra.mxu0 0.0
        %3367 = vmatprep.subr.mxu0 0.0
        %3368 = vmatpush1.msra.mxu0 %v2835
        %3369 = vmatprep.subr.mxu0 0.0
        %3370 = vmatpush1.msra.mxu0 %v2834
        %3371 = vmatprep.subr.mxu0 0.0
        %3372 = vmatpush1.msra.mxu0 %v2833
        %3373 = vmatprep.subr.mxu0 0.0
        %3374 = vmatpush1.msra.mxu0 %v2832
        %3375 = vmatprep.subr.mxu0 0.0
        %3376 = vmatpush1.msra.mxu0 %v2831
        %3377 = vmatprep.subr.mxu0 0.0
        %3378 = vmatpush1.msra.mxu0 %v2830
        %3379 = vmatprep.subr.mxu0 0.0
        %3380 = vmatpush1.msra.mxu0 %v2829
        %3381 = vmatprep.subr.mxu0 0.0
        %3382 = vmatpush1.msra.mxu0 %v2828
        %3383 = vmatprep.subr.mxu0 0.0
        %3384 = vmatpush2.msra.mxu0 0.0
        %3385 = vmatprep.subr.mxu0 0.0
        %3386 = vmatpush2.msra.mxu0 0.0
        %3387 = vmatprep.subr.mxu0 0.0
        %3388 = vmatpush2.msra.mxu0 0.0
        %3389 = vmatprep.subr.mxu0 0.0
        %3390 = vmatpush2.msra.mxu0 0.0
        %3391 = vmatprep.subr.mxu0 0.0
        %3392 = vmatpush2.msra.mxu0 0.0
        %3393 = vmatprep.subr.mxu0 0.0
        %3394 = vmatpush2.msra.mxu0 0.0
        %3395 = vmatprep.subr.mxu0 0.0
        %3396 = vmatpush2.msra.mxu0 0.0
        %3397 = vmatprep.subr.mxu0 0.0
        %3398 = vmatpush2.msra.mxu0 0.0
        %3399 = vmatprep.subr.mxu0 0.0
        %3400 = vmatpush2.msra.mxu0 0.0
        %3401 = vmatprep.subr.mxu0 0.0
        %3402 = vmatpush2.msra.mxu0 0.0
        %3403 = vmatprep.subr.mxu0 0.0
        %3404 = vmatpush2.msra.mxu0 0.0
        %3405 = vmatprep.subr.mxu0 0.0
        %3406 = vmatpush2.msra.mxu0 0.0
        %3407 = vmatprep.subr.mxu0 0.0
        %3408 = vmatpush2.msra.mxu0 0.0
        %3409 = vmatprep.subr.mxu0 0.0
        %3410 = vmatpush2.msra.mxu0 0.0
        %3411 = vmatprep.subr.mxu0 0.0
        %3412 = vmatpush2.msra.mxu0 0.0
        %3413 = vmatprep.subr.mxu0 0.0
        %3414 = vmatpush2.msra.mxu0 0.0
        %3415 = vmatprep.mubr.f32.mxu0 0.0
        %3416 = vmatmul.mubr.f32.gmra.mxu0 %v2968
        %v3417 = vpop.f32.mrf.mxu0
        %v3418 = vadd.f32 0.0, %v3417
        %v3419 = vpop.f32.mrf.mxu0
        %3420 = vmatprep.mubr.f32.mxu0 0.0
        %3421 = vmatmul.mubr.f32.gmra.mxu0 %v2971
        %v3422 = vpop.f32.mrf.mxu0
        %v3423 = vadd.f32 0.0, %v3422
        %v3424 = vpop.f32.mrf.mxu0
        %3425 = vmatprep.mubr.f32.mxu0 0.0
        %3426 = vmatmul.mubr.f32.gmra.mxu0 %v2974
        %v3427 = vpop.f32.mrf.mxu0
        %v3428 = vadd.f32 0.0, %v3427
        %v3429 = vpop.f32.mrf.mxu0
        %3430 = vmatprep.mubr.f32.mxu0 0.0
        %3431 = vmatmul.mubr.f32.gmra.mxu0 %v2977
        %v3432 = vpop.f32.mrf.mxu0
        %v3433 = vadd.f32 0.0, %v3432
        %v3434 = vpop.f32.mrf.mxu0
        %3435 = vmatprep.mubr.f32.mxu0 0.0
        %3436 = vmatmul.mubr.f32.gmra.mxu0 %v2980
        %v3437 = vpop.f32.mrf.mxu0
        %v3438 = vadd.f32 0.0, %v3437
        %v3439 = vpop.f32.mrf.mxu0
        %3440 = vmatprep.mubr.f32.mxu0 0.0
        %3441 = vmatmul.mubr.f32.gmra.mxu0 %v2983
        %v3442 = vpop.f32.mrf.mxu0
        %v3443 = vadd.f32 0.0, %v3442
        %v3444 = vpop.f32.mrf.mxu0
        %3445 = vmatprep.mubr.f32.mxu0 0.0
        %3446 = vmatmul.mubr.f32.gmra.mxu0 %v2986
        %v3447 = vpop.f32.mrf.mxu0
        %v3448 = vadd.f32 0.0, %v3447
        %v3449 = vpop.f32.mrf.mxu0
        %3450 = vmatprep.mubr.f32.mxu0 0.0
        %3451 = vmatmul.mubr.f32.gmra.mxu0 %v2989
        %v3452 = vpop.f32.mrf.mxu0
        %v3453 = vadd.f32 0.0, %v3452
        %v3454 = vpop.f32.mrf.mxu0
        %3455 = vmatprep.mubr.f32.mxu0 0.0
        %3456 = vmatmul.mubr.f32.gmra.mxu0 %v2992
        %v3457 = vpop.f32.mrf.mxu0
        %v3458 = vadd.f32 0.0, %v3457
        %v3459 = vpop.f32.mrf.mxu0
        %3460 = vmatprep.mubr.f32.mxu0 0.0
        %3461 = vmatmul.mubr.f32.gmra.mxu0 %v2995
        %v3462 = vpop.f32.mrf.mxu0
        %v3463 = vadd.f32 0.0, %v3462
        %v3464 = vpop.f32.mrf.mxu0
        %3465 = vmatprep.mubr.f32.mxu0 0.0
        %3466 = vmatmul.mubr.f32.gmra.mxu0 %v2998
        %v3467 = vpop.f32.mrf.mxu0
        %v3468 = vadd.f32 0.0, %v3467
        %v3469 = vpop.f32.mrf.mxu0
        %3470 = vmatprep.mubr.f32.mxu0 0.0
        %3471 = vmatmul.mubr.f32.gmra.mxu0 %v3001
        %v3472 = vpop.f32.mrf.mxu0
        %v3473 = vadd.f32 0.0, %v3472
        %v3474 = vpop.f32.mrf.mxu0
        %3475 = vmatprep.mubr.f32.mxu0 0.0
        %3476 = vmatmul.mubr.f32.gmra.mxu0 %v3004
        %v3477 = vpop.f32.mrf.mxu0
        %v3478 = vadd.f32 0.0, %v3477
        %v3479 = vpop.f32.mrf.mxu0
        %3480 = vmatprep.mubr.f32.mxu0 0.0
        %3481 = vmatmul.mubr.f32.gmra.mxu0 %v3007
        %v3482 = vpop.f32.mrf.mxu0
        %v3483 = vadd.f32 0.0, %v3482
        %v3484 = vpop.f32.mrf.mxu0
        %3485 = vmatprep.mubr.f32.mxu0 0.0
        %3486 = vmatmul.mubr.f32.gmra.mxu0 %v3010
        %v3487 = vpop.f32.mrf.mxu0
        %v3488 = vadd.f32 0.0, %v3487
        %v3489 = vpop.f32.mrf.mxu0
        %3490 = vmatprep.mubr.f32.mxu0 0.0
        %3491 = vmatmul.mubr.f32.gmra.mxu0 %v3013
        %v3492 = vpop.f32.mrf.mxu0
        %v3493 = vadd.f32 0.0, %v3492
        %v3494 = vpop.f32.mrf.mxu0
        %3495 = vmatprep.mubr.f32.mxu0 0.0
        %3496 = vmatmul.mubr.f32.gmra.mxu0 %v3016
        %v3497 = vpop.f32.mrf.mxu0
        %v3498 = vadd.f32 0.0, %v3497
        %v3499 = vpop.f32.mrf.mxu0
        %3500 = vmatprep.mubr.f32.mxu0 0.0
        %3501 = vmatmul.mubr.f32.gmra.mxu0 %v3019
        %v3502 = vpop.f32.mrf.mxu0
        %v3503 = vadd.f32 0.0, %v3502
        %v3504 = vpop.f32.mrf.mxu0
        %3505 = vmatprep.mubr.f32.mxu0 0.0
        %3506 = vmatmul.mubr.f32.gmra.mxu0 %v3022
        %v3507 = vpop.f32.mrf.mxu0
        %v3508 = vadd.f32 0.0, %v3507
        %v3509 = vpop.f32.mrf.mxu0
        %3510 = vmatprep.mubr.f32.mxu0 0.0
        %3511 = vmatmul.mubr.f32.gmra.mxu0 %v3025
        %v3512 = vpop.f32.mrf.mxu0
        %v3513 = vadd.f32 0.0, %v3512
        %v3514 = vpop.f32.mrf.mxu0
        %3515 = vmatprep.mubr.f32.mxu0 0.0
        %3516 = vmatmul.mubr.f32.gmra.mxu0 %v3028
        %v3517 = vpop.f32.mrf.mxu0
        %v3518 = vadd.f32 0.0, %v3517
        %v3519 = vpop.f32.mrf.mxu0
        %3520 = vmatprep.mubr.f32.mxu0 0.0
        %3521 = vmatmul.mubr.f32.gmra.mxu0 %v3031
        %v3522 = vpop.f32.mrf.mxu0
        %v3523 = vadd.f32 0.0, %v3522
        %v3524 = vpop.f32.mrf.mxu0
        %3525 = vmatprep.mubr.f32.mxu0 0.0
        %3526 = vmatmul.mubr.f32.gmra.mxu0 %v3034
        %v3527 = vpop.f32.mrf.mxu0
        %v3528 = vadd.f32 0.0, %v3527
        %v3529 = vpop.f32.mrf.mxu0
        %3530 = vmatprep.mubr.f32.mxu0 0.0
        %3531 = vmatmul.mubr.f32.gmra.mxu0 %v3037
        %v3532 = vpop.f32.mrf.mxu0
        %v3533 = vadd.f32 0.0, %v3532
        %v3534 = vpop.f32.mrf.mxu0
        %3535 = vmatprep.mubr.f32.mxu0 0.0
        %3536 = vmatmul.mubr.f32.gmra.mxu0 %v3040
        %v3537 = vpop.f32.mrf.mxu0
        %v3538 = vadd.f32 0.0, %v3537
        %v3539 = vpop.f32.mrf.mxu0
        %3540 = vmatprep.mubr.f32.mxu0 0.0
        %3541 = vmatmul.mubr.f32.gmra.mxu0 %v3043
        %v3542 = vpop.f32.mrf.mxu0
        %v3543 = vadd.f32 0.0, %v3542
        %v3544 = vpop.f32.mrf.mxu0
        %3545 = vmatprep.mubr.f32.mxu0 0.0
        %3546 = vmatmul.mubr.f32.gmra.mxu0 %v3046
        %v3547 = vpop.f32.mrf.mxu0
        %v3548 = vadd.f32 0.0, %v3547
        %v3549 = vpop.f32.mrf.mxu0
        %3550 = vmatprep.mubr.f32.mxu0 0.0
        %3551 = vmatmul.mubr.f32.gmra.mxu0 %v3049
        %v3552 = vpop.f32.mrf.mxu0
        %v3553 = vadd.f32 0.0, %v3552
        %v3554 = vpop.f32.mrf.mxu0
        %3555 = vmatprep.mubr.f32.mxu0 0.0
        %3556 = vmatmul.mubr.f32.gmra.mxu0 %v3052
        %v3557 = vpop.f32.mrf.mxu0
        %v3558 = vadd.f32 0.0, %v3557
        %v3559 = vpop.f32.mrf.mxu0
        %3560 = vmatprep.mubr.f32.mxu0 0.0
        %3561 = vmatmul.mubr.f32.gmra.mxu0 %v3055
        %v3562 = vpop.f32.mrf.mxu0
        %v3563 = vadd.f32 0.0, %v3562
        %v3564 = vpop.f32.mrf.mxu0
        %3565 = vmatprep.mubr.f32.mxu0 0.0
        %3566 = vmatmul.mubr.f32.gmra.mxu0 %v3058
        %v3567 = vpop.f32.mrf.mxu0
        %v3568 = vadd.f32 0.0, %v3567
        %v3569 = vpop.f32.mrf.mxu0
        %3570 = vmatprep.mubr.f32.mxu0 0.0
        %3571 = vmatmul.mubr.f32.gmra.mxu0 %v3061
        %v3572 = vpop.f32.mrf.mxu0
        %v3573 = vadd.f32 0.0, %v3572
        %v3574 = vpop.f32.mrf.mxu0
        %3575 = vmatprep.mubr.f32.mxu0 0.0
        %3576 = vmatmul.mubr.f32.gmra.mxu0 %v3064
        %v3577 = vpop.f32.mrf.mxu0
        %v3578 = vadd.f32 0.0, %v3577
        %v3579 = vpop.f32.mrf.mxu0
        %3580 = vmatprep.mubr.f32.mxu0 0.0
        %3581 = vmatmul.mubr.f32.gmra.mxu0 %v3067
        %v3582 = vpop.f32.mrf.mxu0
        %v3583 = vadd.f32 0.0, %v3582
        %v3584 = vpop.f32.mrf.mxu0
        %3585 = vmatprep.mubr.f32.mxu0 0.0
        %3586 = vmatmul.mubr.f32.gmra.mxu0 %v3070
        %v3587 = vpop.f32.mrf.mxu0
        %v3588 = vadd.f32 0.0, %v3587
        %v3589 = vpop.f32.mrf.mxu0
        %3590 = vmatprep.mubr.f32.mxu0 0.0
        %3591 = vmatmul.mubr.f32.gmra.mxu0 %v3073
        %v3592 = vpop.f32.mrf.mxu0
        %v3593 = vadd.f32 0.0, %v3592
        %v3594 = vpop.f32.mrf.mxu0
        %3595 = vmatprep.mubr.f32.mxu0 0.0
        %3596 = vmatmul.mubr.f32.gmra.mxu0 %v3076
        %v3597 = vpop.f32.mrf.mxu0
        %v3598 = vadd.f32 0.0, %v3597
        %v3599 = vpop.f32.mrf.mxu0
        %3600 = vmatprep.mubr.f32.mxu0 0.0
        %3601 = vmatmul.mubr.f32.gmra.mxu0 %v3079
        %v3602 = vpop.f32.mrf.mxu0
        %v3603 = vadd.f32 0.0, %v3602
        %v3604 = vpop.f32.mrf.mxu0
        %3605 = vmatprep.mubr.f32.mxu0 0.0
        %3606 = vmatmul.mubr.f32.gmra.mxu0 %v3082
        %v3607 = vpop.f32.mrf.mxu0
        %v3608 = vadd.f32 0.0, %v3607
        %v3609 = vpop.f32.mrf.mxu0
        %3610 = vmatprep.mubr.f32.mxu0 0.0
        %3611 = vmatmul.mubr.f32.gmra.mxu0 %v3085
        %v3612 = vpop.f32.mrf.mxu0
        %v3613 = vadd.f32 0.0, %v3612
        %v3614 = vpop.f32.mrf.mxu0
        %3615 = vmatprep.mubr.f32.mxu0 0.0
        %3616 = vmatmul.mubr.f32.gmra.mxu0 %v3088
        %v3617 = vpop.f32.mrf.mxu0
        %v3618 = vadd.f32 0.0, %v3617
        %v3619 = vpop.f32.mrf.mxu0
        %3620 = vmatprep.mubr.f32.mxu0 0.0
        %3621 = vmatmul.mubr.f32.gmra.mxu0 %v3091
        %v3622 = vpop.f32.mrf.mxu0
        %v3623 = vadd.f32 0.0, %v3622
        %v3624 = vpop.f32.mrf.mxu0
        %3625 = vmatprep.mubr.f32.mxu0 0.0
        %3626 = vmatmul.mubr.f32.gmra.mxu0 %v3094
        %v3627 = vpop.f32.mrf.mxu0
        %v3628 = vadd.f32 0.0, %v3627
        %v3629 = vpop.f32.mrf.mxu0
        %3630 = vmatprep.mubr.f32.mxu0 0.0
        %3631 = vmatmul.mubr.f32.gmra.mxu0 %v3097
        %v3632 = vpop.f32.mrf.mxu0
        %v3633 = vadd.f32 0.0, %v3632
        %v3634 = vpop.f32.mrf.mxu0
        %3635 = vmatprep.mubr.f32.mxu0 0.0
        %3636 = vmatmul.mubr.f32.gmra.mxu0 %v3100
        %v3637 = vpop.f32.mrf.mxu0
        %v3638 = vadd.f32 0.0, %v3637
        %v3639 = vpop.f32.mrf.mxu0
        %3640 = vmatprep.mubr.f32.mxu0 0.0
        %3641 = vmatmul.mubr.f32.gmra.mxu0 %v3103
        %v3642 = vpop.f32.mrf.mxu0
        %v3643 = vadd.f32 0.0, %v3642
        %v3644 = vpop.f32.mrf.mxu0
        %3645 = vmatprep.mubr.f32.mxu0 0.0
        %3646 = vmatmul.mubr.f32.gmra.mxu0 %v3106
        %v3647 = vpop.f32.mrf.mxu0
        %v3648 = vadd.f32 0.0, %v3647
        %v3649 = vpop.f32.mrf.mxu0
        %3650 = vmatprep.mubr.f32.mxu0 0.0
        %3651 = vmatmul.mubr.f32.gmra.mxu0 %v3109
        %v3652 = vpop.f32.mrf.mxu0
        %v3653 = vadd.f32 0.0, %v3652
        %v3654 = vpop.f32.mrf.mxu0
        %3655 = vmatprep.mubr.f32.mxu0 0.0
        %3656 = vmatmul.mubr.f32.gmra.mxu0 %v3112
        %v3657 = vpop.f32.mrf.mxu0
        %v3658 = vadd.f32 0.0, %v3657
        %v3659 = vpop.f32.mrf.mxu0
        %3660 = vmatprep.mubr.f32.mxu0 0.0
        %3661 = vmatmul.mubr.f32.gmra.mxu0 %v3115
        %v3662 = vpop.f32.mrf.mxu0
        %v3663 = vadd.f32 0.0, %v3662
        %v3664 = vpop.f32.mrf.mxu0
        %3665 = vmatprep.mubr.f32.mxu0 0.0
        %3666 = vmatmul.mubr.f32.gmra.mxu0 %v3118
        %v3667 = vpop.f32.mrf.mxu0
        %v3668 = vadd.f32 0.0, %v3667
        %v3669 = vpop.f32.mrf.mxu0
        %3670 = vmatprep.mubr.f32.mxu0 0.0
        %3671 = vmatmul.mubr.f32.gmra.mxu0 %v3121
        %v3672 = vpop.f32.mrf.mxu0
        %v3673 = vadd.f32 0.0, %v3672
        %v3674 = vpop.f32.mrf.mxu0
        %3675 = vmatprep.mubr.f32.mxu0 0.0
        %3676 = vmatmul.mubr.f32.gmra.mxu0 %v3124
        %v3677 = vpop.f32.mrf.mxu0
        %v3678 = vadd.f32 0.0, %v3677
        %v3679 = vpop.f32.mrf.mxu0
        %3680 = vmatprep.mubr.f32.mxu0 0.0
        %3681 = vmatmul.mubr.f32.gmra.mxu0 %v3127
        %v3682 = vpop.f32.mrf.mxu0
        %v3683 = vadd.f32 0.0, %v3682
        %v3684 = vpop.f32.mrf.mxu0
        %3685 = vmatprep.mubr.f32.mxu0 0.0
        %3686 = vmatmul.mubr.f32.gmra.mxu0 %v3130
        %v3687 = vpop.f32.mrf.mxu0
        %v3688 = vadd.f32 0.0, %v3687
        %v3689 = vpop.f32.mrf.mxu0
        %3690 = vmatprep.mubr.f32.mxu0 0.0
        %3691 = vmatmul.mubr.f32.gmra.mxu0 %v3133
        %v3692 = vpop.f32.mrf.mxu0
        %v3693 = vadd.f32 0.0, %v3692
        %v3694 = vpop.f32.mrf.mxu0
        %3695 = vmatprep.mubr.f32.mxu0 0.0
        %3696 = vmatmul.mubr.f32.gmra.mxu0 %v3136
        %v3697 = vpop.f32.mrf.mxu0
        %v3698 = vadd.f32 0.0, %v3697
        %v3699 = vpop.f32.mrf.mxu0
        %3700 = vmatprep.mubr.f32.mxu0 0.0
        %3701 = vmatmul.mubr.f32.gmra.mxu0 %v3139
        %v3702 = vpop.f32.mrf.mxu0
        %v3703 = vadd.f32 0.0, %v3702
        %v3704 = vpop.f32.mrf.mxu0
        %3705 = vmatprep.mubr.f32.mxu0 0.0
        %3706 = vmatmul.mubr.f32.gmra.mxu0 %v3142
        %v3707 = vpop.f32.mrf.mxu0
        %v3708 = vadd.f32 0.0, %v3707
        %v3709 = vpop.f32.mrf.mxu0
        %3710 = vmatprep.mubr.f32.mxu0 0.0
        %3711 = vmatmul.mubr.f32.gmra.mxu0 %v3145
        %v3712 = vpop.f32.mrf.mxu0
        %v3713 = vadd.f32 0.0, %v3712
        %v3714 = vpop.f32.mrf.mxu0
        %3715 = vmatprep.mubr.f32.mxu0 0.0
        %3716 = vmatmul.mubr.f32.gmra.mxu0 %v3148
        %v3717 = vpop.f32.mrf.mxu0
        %v3718 = vadd.f32 0.0, %v3717
        %v3719 = vpop.f32.mrf.mxu0
        %3720 = vmatprep.mubr.f32.mxu0 0.0
        %3721 = vmatmul.mubr.f32.gmra.mxu0 %v3151
        %v3722 = vpop.f32.mrf.mxu0
        %v3723 = vadd.f32 0.0, %v3722
        %v3724 = vpop.f32.mrf.mxu0
        %3725 = vmatprep.mubr.f32.mxu0 0.0
        %3726 = vmatmul.mubr.f32.gmra.mxu0 %v3154
        %v3727 = vpop.f32.mrf.mxu0
        %v3728 = vadd.f32 0.0, %v3727
        %v3729 = vpop.f32.mrf.mxu0
        %3730 = vmatprep.mubr.f32.mxu0 0.0
        %3731 = vmatmul.mubr.f32.gmra.mxu0 %v3157
        %v3732 = vpop.f32.mrf.mxu0
        %v3733 = vadd.f32 0.0, %v3732
        %v3734 = vpop.f32.mrf.mxu0
        %3735 = vmatprep.mubr.f32.mxu0 0.0
        %3736 = vmatmul.mubr.f32.gmra.mxu0 %v3160
        %v3737 = vpop.f32.mrf.mxu0
        %v3738 = vadd.f32 0.0, %v3737
        %v3739 = vpop.f32.mrf.mxu0
        %3740 = vmatprep.mubr.f32.mxu0 0.0
        %3741 = vmatmul.mubr.f32.gmra.mxu0 %v3163
        %v3742 = vpop.f32.mrf.mxu0
        %v3743 = vadd.f32 0.0, %v3742
        %v3744 = vpop.f32.mrf.mxu0
        %3745 = vmatprep.mubr.f32.mxu0 0.0
        %3746 = vmatmul.mubr.f32.gmra.mxu0 %v3166
        %v3747 = vpop.f32.mrf.mxu0
        %v3748 = vadd.f32 0.0, %v3747
        %v3749 = vpop.f32.mrf.mxu0
        %3750 = vmatprep.mubr.f32.mxu0 0.0
        %3751 = vmatmul.mubr.f32.gmra.mxu0 %v3169
        %v3752 = vpop.f32.mrf.mxu0
        %v3753 = vadd.f32 0.0, %v3752
        %v3754 = vpop.f32.mrf.mxu0
        %3755 = vmatprep.mubr.f32.mxu0 0.0
        %3756 = vmatmul.mubr.f32.gmra.mxu0 %v3172
        %v3757 = vpop.f32.mrf.mxu0
        %v3758 = vadd.f32 0.0, %v3757
        %v3759 = vpop.f32.mrf.mxu0
        %3760 = vmatprep.mubr.f32.mxu0 0.0
        %3761 = vmatmul.mubr.f32.gmra.mxu0 %v3175
        %v3762 = vpop.f32.mrf.mxu0
        %v3763 = vadd.f32 0.0, %v3762
        %v3764 = vpop.f32.mrf.mxu0
        %3765 = vmatprep.mubr.f32.mxu0 0.0
        %3766 = vmatmul.mubr.f32.gmra.mxu0 %v3178
        %v3767 = vpop.f32.mrf.mxu0
        %v3768 = vadd.f32 0.0, %v3767
        %v3769 = vpop.f32.mrf.mxu0
        %3770 = vmatprep.mubr.f32.mxu0 0.0
        %3771 = vmatmul.mubr.f32.gmra.mxu0 %v3181
        %v3772 = vpop.f32.mrf.mxu0
        %v3773 = vadd.f32 0.0, %v3772
        %v3774 = vpop.f32.mrf.mxu0
        %3775 = vmatprep.mubr.f32.mxu0 0.0
        %3776 = vmatmul.mubr.f32.gmra.mxu0 %v3184
        %v3777 = vpop.f32.mrf.mxu0
        %v3778 = vadd.f32 0.0, %v3777
        %v3779 = vpop.f32.mrf.mxu0
        %3780 = vmatprep.mubr.f32.mxu0 0.0
        %3781 = vmatmul.mubr.f32.gmra.mxu0 %v3187
        %v3782 = vpop.f32.mrf.mxu0
        %v3783 = vadd.f32 0.0, %v3782
        %v3784 = vpop.f32.mrf.mxu0
        %3785 = vmatprep.mubr.f32.mxu0 0.0
        %3786 = vmatmul.mubr.f32.gmra.mxu0 %v3190
        %v3787 = vpop.f32.mrf.mxu0
        %v3788 = vadd.f32 0.0, %v3787
        %v3789 = vpop.f32.mrf.mxu0
        %3790 = vmatprep.mubr.f32.mxu0 0.0
        %3791 = vmatmul.mubr.f32.gmra.mxu0 %v3193
        %v3792 = vpop.f32.mrf.mxu0
        %v3793 = vadd.f32 0.0, %v3792
        %v3794 = vpop.f32.mrf.mxu0
        %3795 = vmatprep.mubr.f32.mxu0 0.0
        %3796 = vmatmul.mubr.f32.gmra.mxu0 %v3196
        %v3797 = vpop.f32.mrf.mxu0
        %v3798 = vadd.f32 0.0, %v3797
        %v3799 = vpop.f32.mrf.mxu0
        %3800 = vmatprep.mubr.f32.mxu0 0.0
        %3801 = vmatmul.mubr.f32.gmra.mxu0 %v3199
        %v3802 = vpop.f32.mrf.mxu0
        %v3803 = vadd.f32 0.0, %v3802
        %v3804 = vpop.f32.mrf.mxu0
        %3805 = vmatprep.mubr.f32.mxu0 0.0
        %3806 = vmatmul.mubr.f32.gmra.mxu0 %v3202
        %v3807 = vpop.f32.mrf.mxu0
        %v3808 = vadd.f32 0.0, %v3807
        %v3809 = vpop.f32.mrf.mxu0
        %3810 = vmatprep.mubr.f32.mxu0 0.0
        %3811 = vmatmul.mubr.f32.gmra.mxu0 %v3205
        %v3812 = vpop.f32.mrf.mxu0
        %v3813 = vadd.f32 0.0, %v3812
        %v3814 = vpop.f32.mrf.mxu0
        %3815 = vmatprep.mubr.f32.mxu0 0.0
        %3816 = vmatmul.mubr.f32.gmra.mxu0 %v3208
        %v3817 = vpop.f32.mrf.mxu0
        %v3818 = vadd.f32 0.0, %v3817
        %v3819 = vpop.f32.mrf.mxu0
        %3820 = vmatprep.mubr.f32.mxu0 0.0
        %3821 = vmatmul.mubr.f32.gmra.mxu0 %v3211
        %v3822 = vpop.f32.mrf.mxu0
        %v3823 = vadd.f32 0.0, %v3822
        %v3824 = vpop.f32.mrf.mxu0
        %3825 = vmatprep.mubr.f32.mxu0 0.0
        %3826 = vmatmul.mubr.f32.gmra.mxu0 %v3214
        %v3827 = vpop.f32.mrf.mxu0
        %v3828 = vadd.f32 0.0, %v3827
        %v3829 = vpop.f32.mrf.mxu0
        %3830 = vmatprep.mubr.f32.mxu0 0.0
        %3831 = vmatmul.mubr.f32.gmra.mxu0 %v3217
        %v3832 = vpop.f32.mrf.mxu0
        %v3833 = vadd.f32 0.0, %v3832
        %v3834 = vpop.f32.mrf.mxu0
        %3835 = vmatprep.mubr.f32.mxu0 0.0
        %3836 = vmatmul.mubr.f32.gmra.mxu0 %v3220
        %v3837 = vpop.f32.mrf.mxu0
        %v3838 = vadd.f32 0.0, %v3837
        %v3839 = vpop.f32.mrf.mxu0
        %3840 = vmatprep.mubr.f32.mxu0 0.0
        %3841 = vmatmul.mubr.f32.gmra.mxu0 %v3223
        %v3842 = vpop.f32.mrf.mxu0
        %v3843 = vadd.f32 0.0, %v3842
        %v3844 = vpop.f32.mrf.mxu0
        %3845 = vmatprep.mubr.f32.mxu0 0.0
        %3846 = vmatmul.mubr.f32.gmra.mxu0 %v3226
        %v3847 = vpop.f32.mrf.mxu0
        %v3848 = vadd.f32 0.0, %v3847
        %v3849 = vpop.f32.mrf.mxu0
        %3850 = vmatprep.mubr.f32.mxu0 0.0
        %3851 = vmatmul.mubr.f32.gmra.mxu0 %v3229
        %v3852 = vpop.f32.mrf.mxu0
        %v3853 = vadd.f32 0.0, %v3852
        %v3854 = vpop.f32.mrf.mxu0
        %3855 = vmatprep.mubr.f32.mxu0 0.0
        %3856 = vmatmul.mubr.f32.gmra.mxu0 %v3232
        %v3857 = vpop.f32.mrf.mxu0
        %v3858 = vadd.f32 0.0, %v3857
        %v3859 = vpop.f32.mrf.mxu0
        %3860 = vmatprep.mubr.f32.mxu0 0.0
        %3861 = vmatmul.mubr.f32.gmra.mxu0 %v3235
        %v3862 = vpop.f32.mrf.mxu0
        %v3863 = vadd.f32 0.0, %v3862
        %v3864 = vpop.f32.mrf.mxu0
        %3865 = vmatprep.mubr.f32.mxu0 0.0
        %3866 = vmatmul.mubr.f32.gmra.mxu0 %v3238
        %v3867 = vpop.f32.mrf.mxu0
        %v3868 = vadd.f32 0.0, %v3867
        %v3869 = vpop.f32.mrf.mxu0
        %3870 = vmatprep.mubr.f32.mxu0 0.0
        %3871 = vmatmul.mubr.f32.gmra.mxu0 %v3241
        %v3872 = vpop.f32.mrf.mxu0
        %v3873 = vadd.f32 0.0, %v3872
        %v3874 = vpop.f32.mrf.mxu0
        %3875 = vmatprep.mubr.f32.mxu0 0.0
        %3876 = vmatmul.mubr.f32.gmra.mxu0 %v3244
        %v3877 = vpop.f32.mrf.mxu0
        %v3878 = vadd.f32 0.0, %v3877
        %v3879 = vpop.f32.mrf.mxu0
        %3880 = vmatprep.mubr.f32.mxu0 0.0
        %3881 = vmatmul.mubr.f32.gmra.mxu0 %v3247
        %v3882 = vpop.f32.mrf.mxu0
        %v3883 = vadd.f32 0.0, %v3882
        %v3884 = vpop.f32.mrf.mxu0
        %3885 = vmatprep.mubr.f32.mxu0 0.0
        %3886 = vmatmul.mubr.f32.gmra.mxu0 %v3250
        %v3887 = vpop.f32.mrf.mxu0
        %v3888 = vadd.f32 0.0, %v3887
        %v3889 = vpop.f32.mrf.mxu0
        %3890 = vmatprep.mubr.f32.mxu0 0.0
        %3891 = vmatmul.mubr.f32.gmra.mxu0 %v3253
        %v3892 = vpop.f32.mrf.mxu0
        %v3893 = vadd.f32 0.0, %v3892
        %v3894 = vpop.f32.mrf.mxu0
        %3895 = vmatprep.mubr.f32.mxu0 0.0
        %3896 = vmatmul.mubr.f32.gmra.mxu0 %v3256
        %v3897 = vpop.f32.mrf.mxu0
        %v3898 = vadd.f32 0.0, %v3897
        %v3899 = vpop.f32.mrf.mxu0
        %3900 = vmatprep.mubr.f32.mxu0 0.0
        %3901 = vmatmul.mubr.f32.gmra.mxu0 %v3259
        %v3902 = vpop.f32.mrf.mxu0
        %v3903 = vadd.f32 0.0, %v3902
        %v3904 = vpop.f32.mrf.mxu0
        %3905 = vmatprep.mubr.f32.mxu0 0.0
        %3906 = vmatmul.mubr.f32.gmra.mxu0 %v3262
        %v3907 = vpop.f32.mrf.mxu0
        %v3908 = vadd.f32 0.0, %v3907
        %v3909 = vpop.f32.mrf.mxu0
        %3910 = vmatprep.mubr.f32.mxu0 0.0
        %3911 = vmatmul.mubr.f32.gmra.mxu0 %v3265
        %v3912 = vpop.f32.mrf.mxu0
        %v3913 = vadd.f32 0.0, %v3912
        %v3914 = vpop.f32.mrf.mxu0
        %3915 = vmatprep.mubr.f32.mxu0 0.0
        %3916 = vmatmul.mubr.f32.gmra.mxu0 %v3268
        %v3917 = vpop.f32.mrf.mxu0
        %v3918 = vadd.f32 0.0, %v3917
        %v3919 = vpop.f32.mrf.mxu0
        %3920 = vmatprep.mubr.f32.mxu0 0.0
        %3921 = vmatmul.mubr.f32.gmra.mxu0 %v3271
        %v3922 = vpop.f32.mrf.mxu0
        %v3923 = vadd.f32 0.0, %v3922
        %v3924 = vpop.f32.mrf.mxu0
        %3925 = vmatprep.mubr.f32.mxu0 0.0
        %3926 = vmatmul.mubr.f32.gmra.mxu0 %v3274
        %v3927 = vpop.f32.mrf.mxu0
        %v3928 = vadd.f32 0.0, %v3927
        %v3929 = vpop.f32.mrf.mxu0
        %3930 = vmatprep.mubr.f32.mxu0 0.0
        %3931 = vmatmul.mubr.f32.gmra.mxu0 %v3277
        %v3932 = vpop.f32.mrf.mxu0
        %v3933 = vadd.f32 0.0, %v3932
        %v3934 = vpop.f32.mrf.mxu0
        %3935 = vmatprep.mubr.f32.mxu0 0.0
        %3936 = vmatmul.mubr.f32.gmra.mxu0 %v3280
        %v3937 = vpop.f32.mrf.mxu0
        %v3938 = vadd.f32 0.0, %v3937
        %v3939 = vpop.f32.mrf.mxu0
        %3940 = vmatprep.mubr.f32.mxu0 0.0
        %3941 = vmatmul.mubr.f32.gmra.mxu0 %v3283
        %v3942 = vpop.f32.mrf.mxu0
        %v3943 = vadd.f32 0.0, %v3942
        %v3944 = vpop.f32.mrf.mxu0
        %3945 = vmatprep.mubr.f32.mxu0 0.0
        %3946 = vmatmul.mubr.f32.gmra.mxu0 %v3286
        %v3947 = vpop.f32.mrf.mxu0
        %v3948 = vadd.f32 0.0, %v3947
        %v3949 = vpop.f32.mrf.mxu0
        %3950 = vmatprep.mubr.f32.mxu0 0.0
        %3951 = vmatmul.mubr.f32.gmra.mxu0 %v3289
        %v3952 = vpop.f32.mrf.mxu0
        %v3953 = vadd.f32 0.0, %v3952
        %v3954 = vpop.f32.mrf.mxu0
        %3955 = vmatprep.mubr.f32.mxu0 0.0
        %3956 = vmatmul.mubr.f32.gmra.mxu0 %v3292
        %v3957 = vpop.f32.mrf.mxu0
        %v3958 = vadd.f32 0.0, %v3957
        %v3959 = vpop.f32.mrf.mxu0
        %3960 = vmatprep.mubr.f32.mxu0 0.0
        %3961 = vmatmul.mubr.f32.gmra.mxu0 %v3295
        %v3962 = vpop.f32.mrf.mxu0
        %v3963 = vadd.f32 0.0, %v3962
        %v3964 = vpop.f32.mrf.mxu0
        %3965 = vmatprep.mubr.f32.mxu0 0.0
        %3966 = vmatmul.mubr.f32.gmra.mxu0 %v3298
        %v3967 = vpop.f32.mrf.mxu0
        %v3968 = vadd.f32 0.0, %v3967
        %v3969 = vpop.f32.mrf.mxu0
        %3970 = vmatprep.mubr.f32.mxu0 0.0
        %3971 = vmatmul.mubr.f32.gmra.mxu0 %v3301
        %v3972 = vpop.f32.mrf.mxu0
        %v3973 = vadd.f32 0.0, %v3972
        %v3974 = vpop.f32.mrf.mxu0
        %3975 = vmatprep.mubr.f32.mxu0 0.0
        %3976 = vmatmul.mubr.f32.gmra.mxu0 %v3304
        %v3977 = vpop.f32.mrf.mxu0
        %v3978 = vadd.f32 0.0, %v3977
        %v3979 = vpop.f32.mrf.mxu0
        %3980 = vmatprep.mubr.f32.mxu0 0.0
        %3981 = vmatmul.mubr.f32.gmra.mxu0 %v3307
        %v3982 = vpop.f32.mrf.mxu0
        %v3983 = vadd.f32 0.0, %v3982
        %v3984 = vpop.f32.mrf.mxu0
        %3985 = vmatprep.mubr.f32.mxu0 0.0
        %3986 = vmatmul.mubr.f32.gmra.mxu0 %v3310
        %v3987 = vpop.f32.mrf.mxu0
        %v3988 = vadd.f32 0.0, %v3987
        %v3989 = vpop.f32.mrf.mxu0
        %3990 = vmatprep.mubr.f32.mxu0 0.0
        %3991 = vmatmul.mubr.f32.gmra.mxu0 %v3313
        %v3992 = vpop.f32.mrf.mxu0
        %v3993 = vadd.f32 0.0, %v3992
        %v3994 = vpop.f32.mrf.mxu0
        %3995 = vmatprep.mubr.f32.mxu0 0.0
        %3996 = vmatmul.mubr.f32.gmra.mxu0 %v3316
        %v3997 = vpop.f32.mrf.mxu0
        %v3998 = vadd.f32 0.0, %v3997
        %v3999 = vpop.f32.mrf.mxu0
        %4000 = vmatprep.mubr.f32.mxu0 0.0
        %4001 = vmatmul.mubr.f32.gmra.mxu0 %v3319
        %v4002 = vpop.f32.mrf.mxu0
        %v4003 = vadd.f32 0.0, %v4002
        %v4004 = vpop.f32.mrf.mxu0
        %4005 = vmatprep.mubr.f32.mxu0 0.0
        %4006 = vmatmul.mubr.f32.gmra.mxu0 %v3322
        %v4007 = vpop.f32.mrf.mxu0
        %v4008 = vadd.f32 0.0, %v4007
        %v4009 = vpop.f32.mrf.mxu0
        %4010 = vmatprep.mubr.f32.mxu0 0.0
        %4011 = vmatmul.mubr.f32.gmra.mxu0 %v3325
        %v4012 = vpop.f32.mrf.mxu0
        %v4013 = vadd.f32 0.0, %v4012
        %v4014 = vpop.f32.mrf.mxu0
        %4015 = vmatprep.mubr.f32.mxu0 0.0
        %4016 = vmatmul.mubr.f32.gmra.mxu0 %v3328
        %v4017 = vpop.f32.mrf.mxu0
        %v4018 = vadd.f32 0.0, %v4017
        %v4019 = vpop.f32.mrf.mxu0
        %4020 = vmatprep.mubr.f32.mxu0 0.0
        %4021 = vmatmul.mubr.f32.gmra.mxu0 %v3331
        %v4022 = vpop.f32.mrf.mxu0
        %v4023 = vadd.f32 0.0, %v4022
        %v4024 = vpop.f32.mrf.mxu0
        %4025 = vmatprep.mubr.f32.mxu0 0.0
        %4026 = vmatmul.mubr.f32.gmra.mxu0 %v3334
        %v4027 = vpop.f32.mrf.mxu0
        %v4028 = vadd.f32 0.0, %v4027
        %v4029 = vpop.f32.mrf.mxu0
        %4030 = vmatprep.mubr.f32.mxu0 0.0
        %4031 = vmatmul.mubr.f32.gmra.mxu0 %v3337
        %v4032 = vpop.f32.mrf.mxu0
        %v4033 = vadd.f32 0.0, %v4032
        %v4034 = vpop.f32.mrf.mxu0
        %4035 = vmatprep.mubr.f32.mxu0 0.0
        %4036 = vmatmul.mubr.f32.gmra.mxu0 %v3340
        %v4037 = vpop.f32.mrf.mxu0
        %v4038 = vadd.f32 0.0, %v4037
        %v4039 = vpop.f32.mrf.mxu0
        %4040 = vmatprep.mubr.f32.mxu0 0.0
        %4041 = vmatmul.mubr.f32.gmra.mxu0 %v3343
        %v4042 = vpop.f32.mrf.mxu0
        %v4043 = vadd.f32 0.0, %v4042
        %v4044 = vpop.f32.mrf.mxu0
        %4045 = vmatprep.mubr.f32.mxu0 0.0
        %4046 = vmatmul.mubr.f32.gmra.mxu0 %v3346
        %v4047 = vpop.f32.mrf.mxu0
        %v4048 = vadd.f32 0.0, %v4047
        %v4049 = vpop.f32.mrf.mxu0
        %4050 = vmatprep.mubr.f32.mxu0 0.0
        %4051 = vmatmul.mubr.f32.gmra.mxu0 %v3349
        %v4052 = vpop.f32.mrf.mxu0
        %v4053 = vadd.f32 0.0, %v4052
        %v4054 = vpop.f32.mrf.mxu0
        %4055 = vdwg.mxu0
        %vm4056 = vcmp.ge.s32.totalorder %v2837, 0
        %vm4057 = vcmp.lt.s32.totalorder %v2837, 64
        %vm4058 = vmand %vm4056, %vm4057
        %v4059 = vsel %vm4058, 1, 0
        %v4060 = vcvt.s32.f32 %v4059
        %4062 = vset.pattern.permute.xlu0 0
        %4063 = vperm.xlu0 %4062, %v3418
        %v4064 = vpop.permute.xlu0 %4063
        %4067 = vset.pattern.permute.xlu0 0
        %4068 = vperm.xlu0 %4067, %v3423
        %v4069 = vpop.permute.xlu0 %4068
        %4072 = vset.pattern.permute.xlu0 0
        %4073 = vperm.xlu0 %4072, %v3428
        %v4074 = vpop.permute.xlu0 %4073
        %4077 = vset.pattern.permute.xlu0 0
        %4078 = vperm.xlu0 %4077, %v3433
        %v4079 = vpop.permute.xlu0 %4078
        %4082 = vset.pattern.permute.xlu0 0
        %4083 = vperm.xlu0 %4082, %v3438
        %v4084 = vpop.permute.xlu0 %4083
        %4087 = vset.pattern.permute.xlu0 0
        %4088 = vperm.xlu0 %4087, %v3443
        %v4089 = vpop.permute.xlu0 %4088
        %4092 = vset.pattern.permute.xlu0 0
        %4093 = vperm.xlu0 %4092, %v3448
        %v4094 = vpop.permute.xlu0 %4093
        %4097 = vset.pattern.permute.xlu0 0
        %4098 = vperm.xlu0 %4097, %v3453
        %v4099 = vpop.permute.xlu0 %4098
        %4102 = vset.pattern.permute.xlu0 0
        %4103 = vperm.xlu0 %4102, %v3458
        %v4104 = vpop.permute.xlu0 %4103
        %4107 = vset.pattern.permute.xlu0 0
        %4108 = vperm.xlu0 %4107, %v3463
        %v4109 = vpop.permute.xlu0 %4108
        %4112 = vset.pattern.permute.xlu0 0
        %4113 = vperm.xlu0 %4112, %v3468
        %v4114 = vpop.permute.xlu0 %4113
        %4117 = vset.pattern.permute.xlu0 0
        %4118 = vperm.xlu0 %4117, %v3473
        %v4119 = vpop.permute.xlu0 %4118
        %4122 = vset.pattern.permute.xlu0 0
        %4123 = vperm.xlu0 %4122, %v3478
        %v4124 = vpop.permute.xlu0 %4123
        %4127 = vset.pattern.permute.xlu0 0
        %4128 = vperm.xlu0 %4127, %v3483
        %v4129 = vpop.permute.xlu0 %4128
        %4132 = vset.pattern.permute.xlu0 0
        %4133 = vperm.xlu0 %4132, %v3488
        %v4134 = vpop.permute.xlu0 %4133
        %4137 = vset.pattern.permute.xlu0 0
        %4138 = vperm.xlu0 %4137, %v3493
        %v4139 = vpop.permute.xlu0 %4138
        %4142 = vset.pattern.permute.xlu0 0
        %4143 = vperm.xlu0 %4142, %v3498
        %v4144 = vpop.permute.xlu0 %4143
        %4147 = vset.pattern.permute.xlu0 0
        %4148 = vperm.xlu0 %4147, %v3503
        %v4149 = vpop.permute.xlu0 %4148
        %4152 = vset.pattern.permute.xlu0 0
        %4153 = vperm.xlu0 %4152, %v3508
        %v4154 = vpop.permute.xlu0 %4153
        %4157 = vset.pattern.permute.xlu0 0
        %4158 = vperm.xlu0 %4157, %v3513
        %v4159 = vpop.permute.xlu0 %4158
        %4162 = vset.pattern.permute.xlu0 0
        %4163 = vperm.xlu0 %4162, %v3518
        %v4164 = vpop.permute.xlu0 %4163
        %4167 = vset.pattern.permute.xlu0 0
        %4168 = vperm.xlu0 %4167, %v3523
        %v4169 = vpop.permute.xlu0 %4168
        %4172 = vset.pattern.permute.xlu0 0
        %4173 = vperm.xlu0 %4172, %v3528
        %v4174 = vpop.permute.xlu0 %4173
        %4177 = vset.pattern.permute.xlu0 0
        %4178 = vperm.xlu0 %4177, %v3533
        %v4179 = vpop.permute.xlu0 %4178
        %4182 = vset.pattern.permute.xlu0 0
        %4183 = vperm.xlu0 %4182, %v3538
        %v4184 = vpop.permute.xlu0 %4183
        %4187 = vset.pattern.permute.xlu0 0
        %4188 = vperm.xlu0 %4187, %v3543
        %v4189 = vpop.permute.xlu0 %4188
        %4192 = vset.pattern.permute.xlu0 0
        %4193 = vperm.xlu0 %4192, %v3548
        %v4194 = vpop.permute.xlu0 %4193
        %4197 = vset.pattern.permute.xlu0 0
        %4198 = vperm.xlu0 %4197, %v3553
        %v4199 = vpop.permute.xlu0 %4198
        %4202 = vset.pattern.permute.xlu0 0
        %4203 = vperm.xlu0 %4202, %v3558
        %v4204 = vpop.permute.xlu0 %4203
        %4207 = vset.pattern.permute.xlu0 0
        %4208 = vperm.xlu0 %4207, %v3563
        %v4209 = vpop.permute.xlu0 %4208
        %4212 = vset.pattern.permute.xlu0 0
        %4213 = vperm.xlu0 %4212, %v3568
        %v4214 = vpop.permute.xlu0 %4213
        %4217 = vset.pattern.permute.xlu0 0
        %4218 = vperm.xlu0 %4217, %v3573
        %v4219 = vpop.permute.xlu0 %4218
        %4222 = vset.pattern.permute.xlu0 0
        %4223 = vperm.xlu0 %4222, %v3578
        %v4224 = vpop.permute.xlu0 %4223
        %4227 = vset.pattern.permute.xlu0 0
        %4228 = vperm.xlu0 %4227, %v3583
        %v4229 = vpop.permute.xlu0 %4228
        %4232 = vset.pattern.permute.xlu0 0
        %4233 = vperm.xlu0 %4232, %v3588
        %v4234 = vpop.permute.xlu0 %4233
        %4237 = vset.pattern.permute.xlu0 0
        %4238 = vperm.xlu0 %4237, %v3593
        %v4239 = vpop.permute.xlu0 %4238
        %4242 = vset.pattern.permute.xlu0 0
        %4243 = vperm.xlu0 %4242, %v3598
        %v4244 = vpop.permute.xlu0 %4243
        %4247 = vset.pattern.permute.xlu0 0
        %4248 = vperm.xlu0 %4247, %v3603
        %v4249 = vpop.permute.xlu0 %4248
        %4252 = vset.pattern.permute.xlu0 0
        %4253 = vperm.xlu0 %4252, %v3608
        %v4254 = vpop.permute.xlu0 %4253
        %4257 = vset.pattern.permute.xlu0 0
        %4258 = vperm.xlu0 %4257, %v3613
        %v4259 = vpop.permute.xlu0 %4258
        %4262 = vset.pattern.permute.xlu0 0
        %4263 = vperm.xlu0 %4262, %v3618
        %v4264 = vpop.permute.xlu0 %4263
        %4267 = vset.pattern.permute.xlu0 0
        %4268 = vperm.xlu0 %4267, %v3623
        %v4269 = vpop.permute.xlu0 %4268
        %4272 = vset.pattern.permute.xlu0 0
        %4273 = vperm.xlu0 %4272, %v3628
        %v4274 = vpop.permute.xlu0 %4273
        %4277 = vset.pattern.permute.xlu0 0
        %4278 = vperm.xlu0 %4277, %v3633
        %v4279 = vpop.permute.xlu0 %4278
        %4282 = vset.pattern.permute.xlu0 0
        %4283 = vperm.xlu0 %4282, %v3638
        %v4284 = vpop.permute.xlu0 %4283
        %4287 = vset.pattern.permute.xlu0 0
        %4288 = vperm.xlu0 %4287, %v3643
        %v4289 = vpop.permute.xlu0 %4288
        %4292 = vset.pattern.permute.xlu0 0
        %4293 = vperm.xlu0 %4292, %v3648
        %v4294 = vpop.permute.xlu0 %4293
        %4297 = vset.pattern.permute.xlu0 0
        %4298 = vperm.xlu0 %4297, %v3653
        %v4299 = vpop.permute.xlu0 %4298
        %4302 = vset.pattern.permute.xlu0 0
        %4303 = vperm.xlu0 %4302, %v3658
        %v4304 = vpop.permute.xlu0 %4303
        %4307 = vset.pattern.permute.xlu0 0
        %4308 = vperm.xlu0 %4307, %v3663
        %v4309 = vpop.permute.xlu0 %4308
        %4312 = vset.pattern.permute.xlu0 0
        %4313 = vperm.xlu0 %4312, %v3668
        %v4314 = vpop.permute.xlu0 %4313
        %4317 = vset.pattern.permute.xlu0 0
        %4318 = vperm.xlu0 %4317, %v3673
        %v4319 = vpop.permute.xlu0 %4318
        %4322 = vset.pattern.permute.xlu0 0
        %4323 = vperm.xlu0 %4322, %v3678
        %v4324 = vpop.permute.xlu0 %4323
        %4327 = vset.pattern.permute.xlu0 0
        %4328 = vperm.xlu0 %4327, %v3683
        %v4329 = vpop.permute.xlu0 %4328
        %4332 = vset.pattern.permute.xlu0 0
        %4333 = vperm.xlu0 %4332, %v3688
        %v4334 = vpop.permute.xlu0 %4333
        %4337 = vset.pattern.permute.xlu0 0
        %4338 = vperm.xlu0 %4337, %v3693
        %v4339 = vpop.permute.xlu0 %4338
        %4342 = vset.pattern.permute.xlu0 0
        %4343 = vperm.xlu0 %4342, %v3698
        %v4344 = vpop.permute.xlu0 %4343
        %4347 = vset.pattern.permute.xlu0 0
        %4348 = vperm.xlu0 %4347, %v3703
        %v4349 = vpop.permute.xlu0 %4348
        %4352 = vset.pattern.permute.xlu0 0
        %4353 = vperm.xlu0 %4352, %v3708
        %v4354 = vpop.permute.xlu0 %4353
        %4357 = vset.pattern.permute.xlu0 0
        %4358 = vperm.xlu0 %4357, %v3713
        %v4359 = vpop.permute.xlu0 %4358
        %4362 = vset.pattern.permute.xlu0 0
        %4363 = vperm.xlu0 %4362, %v3718
        %v4364 = vpop.permute.xlu0 %4363
        %4367 = vset.pattern.permute.xlu0 0
        %4368 = vperm.xlu0 %4367, %v3723
        %v4369 = vpop.permute.xlu0 %4368
        %4372 = vset.pattern.permute.xlu0 0
        %4373 = vperm.xlu0 %4372, %v3728
        %v4374 = vpop.permute.xlu0 %4373
        %4377 = vset.pattern.permute.xlu0 0
        %4378 = vperm.xlu0 %4377, %v3733
        %v4379 = vpop.permute.xlu0 %4378
        %4382 = vset.pattern.permute.xlu0 0
        %4383 = vperm.xlu0 %4382, %v3738
        %v4384 = vpop.permute.xlu0 %4383
        %4387 = vset.pattern.permute.xlu0 0
        %4388 = vperm.xlu0 %4387, %v3743
        %v4389 = vpop.permute.xlu0 %4388
        %4392 = vset.pattern.permute.xlu0 0
        %4393 = vperm.xlu0 %4392, %v3748
        %v4394 = vpop.permute.xlu0 %4393
        %4397 = vset.pattern.permute.xlu0 0
        %4398 = vperm.xlu0 %4397, %v3753
        %v4399 = vpop.permute.xlu0 %4398
        %4402 = vset.pattern.permute.xlu0 0
        %4403 = vperm.xlu0 %4402, %v3758
        %v4404 = vpop.permute.xlu0 %4403
        %4407 = vset.pattern.permute.xlu0 0
        %4408 = vperm.xlu0 %4407, %v3763
        %v4409 = vpop.permute.xlu0 %4408
        %4412 = vset.pattern.permute.xlu0 0
        %4413 = vperm.xlu0 %4412, %v3768
        %v4414 = vpop.permute.xlu0 %4413
        %4417 = vset.pattern.permute.xlu0 0
        %4418 = vperm.xlu0 %4417, %v3773
        %v4419 = vpop.permute.xlu0 %4418
        %4422 = vset.pattern.permute.xlu0 0
        %4423 = vperm.xlu0 %4422, %v3778
        %v4424 = vpop.permute.xlu0 %4423
        %4427 = vset.pattern.permute.xlu0 0
        %4428 = vperm.xlu0 %4427, %v3783
        %v4429 = vpop.permute.xlu0 %4428
        %4432 = vset.pattern.permute.xlu0 0
        %4433 = vperm.xlu0 %4432, %v3788
        %v4434 = vpop.permute.xlu0 %4433
        %4437 = vset.pattern.permute.xlu0 0
        %4438 = vperm.xlu0 %4437, %v3793
        %v4439 = vpop.permute.xlu0 %4438
        %4442 = vset.pattern.permute.xlu0 0
        %4443 = vperm.xlu0 %4442, %v3798
        %v4444 = vpop.permute.xlu0 %4443
        %4447 = vset.pattern.permute.xlu0 0
        %4448 = vperm.xlu0 %4447, %v3803
        %v4449 = vpop.permute.xlu0 %4448
        %4452 = vset.pattern.permute.xlu0 0
        %4453 = vperm.xlu0 %4452, %v3808
        %v4454 = vpop.permute.xlu0 %4453
        %4457 = vset.pattern.permute.xlu0 0
        %4458 = vperm.xlu0 %4457, %v3813
        %v4459 = vpop.permute.xlu0 %4458
        %4462 = vset.pattern.permute.xlu0 0
        %4463 = vperm.xlu0 %4462, %v3818
        %v4464 = vpop.permute.xlu0 %4463
        %4467 = vset.pattern.permute.xlu0 0
        %4468 = vperm.xlu0 %4467, %v3823
        %v4469 = vpop.permute.xlu0 %4468
        %4472 = vset.pattern.permute.xlu0 0
        %4473 = vperm.xlu0 %4472, %v3828
        %v4474 = vpop.permute.xlu0 %4473
        %4477 = vset.pattern.permute.xlu0 0
        %4478 = vperm.xlu0 %4477, %v3833
        %v4479 = vpop.permute.xlu0 %4478
        %4482 = vset.pattern.permute.xlu0 0
        %4483 = vperm.xlu0 %4482, %v3838
        %v4484 = vpop.permute.xlu0 %4483
        %4487 = vset.pattern.permute.xlu0 0
        %4488 = vperm.xlu0 %4487, %v3843
        %v4489 = vpop.permute.xlu0 %4488
        %4492 = vset.pattern.permute.xlu0 0
        %4493 = vperm.xlu0 %4492, %v3848
        %v4494 = vpop.permute.xlu0 %4493
        %4497 = vset.pattern.permute.xlu0 0
        %4498 = vperm.xlu0 %4497, %v3853
        %v4499 = vpop.permute.xlu0 %4498
        %4502 = vset.pattern.permute.xlu0 0
        %4503 = vperm.xlu0 %4502, %v3858
        %v4504 = vpop.permute.xlu0 %4503
        %4507 = vset.pattern.permute.xlu0 0
        %4508 = vperm.xlu0 %4507, %v3863
        %v4509 = vpop.permute.xlu0 %4508
        %4512 = vset.pattern.permute.xlu0 0
        %4513 = vperm.xlu0 %4512, %v3868
        %v4514 = vpop.permute.xlu0 %4513
        %4517 = vset.pattern.permute.xlu0 0
        %4518 = vperm.xlu0 %4517, %v3873
        %v4519 = vpop.permute.xlu0 %4518
        %4522 = vset.pattern.permute.xlu0 0
        %4523 = vperm.xlu0 %4522, %v3878
        %v4524 = vpop.permute.xlu0 %4523
        %4527 = vset.pattern.permute.xlu0 0
        %4528 = vperm.xlu0 %4527, %v3883
        %v4529 = vpop.permute.xlu0 %4528
        %4532 = vset.pattern.permute.xlu0 0
        %4533 = vperm.xlu0 %4532, %v3888
        %v4534 = vpop.permute.xlu0 %4533
        %4537 = vset.pattern.permute.xlu0 0
        %4538 = vperm.xlu0 %4537, %v3893
        %v4539 = vpop.permute.xlu0 %4538
        %4542 = vset.pattern.permute.xlu0 0
        %4543 = vperm.xlu0 %4542, %v3898
        %v4544 = vpop.permute.xlu0 %4543
        %4547 = vset.pattern.permute.xlu0 0
        %4548 = vperm.xlu0 %4547, %v3903
        %v4549 = vpop.permute.xlu0 %4548
        %4552 = vset.pattern.permute.xlu0 0
        %4553 = vperm.xlu0 %4552, %v3908
        %v4554 = vpop.permute.xlu0 %4553
        %4557 = vset.pattern.permute.xlu0 0
        %4558 = vperm.xlu0 %4557, %v3913
        %v4559 = vpop.permute.xlu0 %4558
        %4562 = vset.pattern.permute.xlu0 0
        %4563 = vperm.xlu0 %4562, %v3918
        %v4564 = vpop.permute.xlu0 %4563
        %4567 = vset.pattern.permute.xlu0 0
        %4568 = vperm.xlu0 %4567, %v3923
        %v4569 = vpop.permute.xlu0 %4568
        %4572 = vset.pattern.permute.xlu0 0
        %4573 = vperm.xlu0 %4572, %v3928
        %v4574 = vpop.permute.xlu0 %4573
        %4577 = vset.pattern.permute.xlu0 0
        %4578 = vperm.xlu0 %4577, %v3933
        %v4579 = vpop.permute.xlu0 %4578
        %4582 = vset.pattern.permute.xlu0 0
        %4583 = vperm.xlu0 %4582, %v3938
        %v4584 = vpop.permute.xlu0 %4583
        %4587 = vset.pattern.permute.xlu0 0
        %4588 = vperm.xlu0 %4587, %v3943
        %v4589 = vpop.permute.xlu0 %4588
        %4592 = vset.pattern.permute.xlu0 0
        %4593 = vperm.xlu0 %4592, %v3948
        %v4594 = vpop.permute.xlu0 %4593
        %4597 = vset.pattern.permute.xlu0 0
        %4598 = vperm.xlu0 %4597, %v3953
        %v4599 = vpop.permute.xlu0 %4598
        %4602 = vset.pattern.permute.xlu0 0
        %4603 = vperm.xlu0 %4602, %v3958
        %v4604 = vpop.permute.xlu0 %4603
        %4607 = vset.pattern.permute.xlu0 0
        %4608 = vperm.xlu0 %4607, %v3963
        %v4609 = vpop.permute.xlu0 %4608
        %4612 = vset.pattern.permute.xlu0 0
        %4613 = vperm.xlu0 %4612, %v3968
        %v4614 = vpop.permute.xlu0 %4613
        %4617 = vset.pattern.permute.xlu0 0
        %4618 = vperm.xlu0 %4617, %v3973
        %v4619 = vpop.permute.xlu0 %4618
        %4622 = vset.pattern.permute.xlu0 0
        %4623 = vperm.xlu0 %4622, %v3978
        %v4624 = vpop.permute.xlu0 %4623
        %4627 = vset.pattern.permute.xlu0 0
        %4628 = vperm.xlu0 %4627, %v3983
        %v4629 = vpop.permute.xlu0 %4628
        %4632 = vset.pattern.permute.xlu0 0
        %4633 = vperm.xlu0 %4632, %v3988
        %v4634 = vpop.permute.xlu0 %4633
        %4637 = vset.pattern.permute.xlu0 0
        %4638 = vperm.xlu0 %4637, %v3993
        %v4639 = vpop.permute.xlu0 %4638
        %4642 = vset.pattern.permute.xlu0 0
        %4643 = vperm.xlu0 %4642, %v3998
        %v4644 = vpop.permute.xlu0 %4643
        %4647 = vset.pattern.permute.xlu0 0
        %4648 = vperm.xlu0 %4647, %v4003
        %v4649 = vpop.permute.xlu0 %4648
        %4652 = vset.pattern.permute.xlu0 0
        %4653 = vperm.xlu0 %4652, %v4008
        %v4654 = vpop.permute.xlu0 %4653
        %4657 = vset.pattern.permute.xlu0 0
        %4658 = vperm.xlu0 %4657, %v4013
        %v4659 = vpop.permute.xlu0 %4658
        %4662 = vset.pattern.permute.xlu0 0
        %4663 = vperm.xlu0 %4662, %v4018
        %v4664 = vpop.permute.xlu0 %4663
        %4667 = vset.pattern.permute.xlu0 0
        %4668 = vperm.xlu0 %4667, %v4023
        %v4669 = vpop.permute.xlu0 %4668
        %4672 = vset.pattern.permute.xlu0 0
        %4673 = vperm.xlu0 %4672, %v4028
        %v4674 = vpop.permute.xlu0 %4673
        %4677 = vset.pattern.permute.xlu0 0
        %4678 = vperm.xlu0 %4677, %v4033
        %v4679 = vpop.permute.xlu0 %4678
        %4682 = vset.pattern.permute.xlu0 0
        %4683 = vperm.xlu0 %4682, %v4038
        %v4684 = vpop.permute.xlu0 %4683
        %4687 = vset.pattern.permute.xlu0 0
        %4688 = vperm.xlu0 %4687, %v4043
        %v4689 = vpop.permute.xlu0 %4688
        %4692 = vset.pattern.permute.xlu0 0
        %4693 = vperm.xlu0 %4692, %v4048
        %v4694 = vpop.permute.xlu0 %4693
        %4697 = vset.pattern.permute.xlu0 0
        %4698 = vperm.xlu0 %4697, %v4053
        %v4699 = vpop.permute.xlu0 %4698
        %v4701 = vmul.f32 %v4064, %v4060
        %v4702 = vmul.f32 %v4069, %v4060
        %v4703 = vmul.f32 %v4074, %v4060
        %v4704 = vmul.f32 %v4079, %v4060
        %v4705 = vmul.f32 %v4084, %v4060
        %v4706 = vmul.f32 %v4089, %v4060
        %v4707 = vmul.f32 %v4094, %v4060
        %v4708 = vmul.f32 %v4099, %v4060
        %v4709 = vmul.f32 %v4104, %v4060
        %v4710 = vmul.f32 %v4109, %v4060
        %v4711 = vmul.f32 %v4114, %v4060
        %v4712 = vmul.f32 %v4119, %v4060
        %v4713 = vmul.f32 %v4124, %v4060
        %v4714 = vmul.f32 %v4129, %v4060
        %v4715 = vmul.f32 %v4134, %v4060
        %v4716 = vmul.f32 %v4139, %v4060
        %v4717 = vmul.f32 %v4144, %v4060
        %v4718 = vmul.f32 %v4149, %v4060
        %v4719 = vmul.f32 %v4154, %v4060
        %v4720 = vmul.f32 %v4159, %v4060
        %v4721 = vmul.f32 %v4164, %v4060
        %v4722 = vmul.f32 %v4169, %v4060
        %v4723 = vmul.f32 %v4174, %v4060
        %v4724 = vmul.f32 %v4179, %v4060
        %v4725 = vmul.f32 %v4184, %v4060
        %v4726 = vmul.f32 %v4189, %v4060
        %v4727 = vmul.f32 %v4194, %v4060
        %v4728 = vmul.f32 %v4199, %v4060
        %v4729 = vmul.f32 %v4204, %v4060
        %v4730 = vmul.f32 %v4209, %v4060
        %v4731 = vmul.f32 %v4214, %v4060
        %v4732 = vmul.f32 %v4219, %v4060
        %v4733 = vmul.f32 %v4224, %v4060
        %v4734 = vmul.f32 %v4229, %v4060
        %v4735 = vmul.f32 %v4234, %v4060
        %v4736 = vmul.f32 %v4239, %v4060
        %v4737 = vmul.f32 %v4244, %v4060
        %v4738 = vmul.f32 %v4249, %v4060
        %v4739 = vmul.f32 %v4254, %v4060
        %v4740 = vmul.f32 %v4259, %v4060
        %v4741 = vmul.f32 %v4264, %v4060
        %v4742 = vmul.f32 %v4269, %v4060
        %v4743 = vmul.f32 %v4274, %v4060
        %v4744 = vmul.f32 %v4279, %v4060
        %v4745 = vmul.f32 %v4284, %v4060
        %v4746 = vmul.f32 %v4289, %v4060
        %v4747 = vmul.f32 %v4294, %v4060
        %v4748 = vmul.f32 %v4299, %v4060
        %v4749 = vmul.f32 %v4304, %v4060
        %v4750 = vmul.f32 %v4309, %v4060
        %v4751 = vmul.f32 %v4314, %v4060
        %v4752 = vmul.f32 %v4319, %v4060
        %v4753 = vmul.f32 %v4324, %v4060
        %v4754 = vmul.f32 %v4329, %v4060
        %v4755 = vmul.f32 %v4334, %v4060
        %v4756 = vmul.f32 %v4339, %v4060
        %v4757 = vmul.f32 %v4344, %v4060
        %v4758 = vmul.f32 %v4349, %v4060
        %v4759 = vmul.f32 %v4354, %v4060
        %v4760 = vmul.f32 %v4359, %v4060
        %v4761 = vmul.f32 %v4364, %v4060
        %v4762 = vmul.f32 %v4369, %v4060
        %v4763 = vmul.f32 %v4374, %v4060
        %v4764 = vmul.f32 %v4379, %v4060
        %v4765 = vmul.f32 %v4384, %v4060
        %v4766 = vmul.f32 %v4389, %v4060
        %v4767 = vmul.f32 %v4394, %v4060
        %v4768 = vmul.f32 %v4399, %v4060
        %v4769 = vmul.f32 %v4404, %v4060
        %v4770 = vmul.f32 %v4409, %v4060
        %v4771 = vmul.f32 %v4414, %v4060
        %v4772 = vmul.f32 %v4419, %v4060
        %v4773 = vmul.f32 %v4424, %v4060
        %v4774 = vmul.f32 %v4429, %v4060
        %v4775 = vmul.f32 %v4434, %v4060
        %v4776 = vmul.f32 %v4439, %v4060
        %v4777 = vmul.f32 %v4444, %v4060
        %v4778 = vmul.f32 %v4449, %v4060
        %v4779 = vmul.f32 %v4454, %v4060
        %v4780 = vmul.f32 %v4459, %v4060
        %v4781 = vmul.f32 %v4464, %v4060
        %v4782 = vmul.f32 %v4469, %v4060
        %v4783 = vmul.f32 %v4474, %v4060
        %v4784 = vmul.f32 %v4479, %v4060
        %v4785 = vmul.f32 %v4484, %v4060
        %v4786 = vmul.f32 %v4489, %v4060
        %v4787 = vmul.f32 %v4494, %v4060
        %v4788 = vmul.f32 %v4499, %v4060
        %v4789 = vmul.f32 %v4504, %v4060
        %v4790 = vmul.f32 %v4509, %v4060
        %v4791 = vmul.f32 %v4514, %v4060
        %v4792 = vmul.f32 %v4519, %v4060
        %v4793 = vmul.f32 %v4524, %v4060
        %v4794 = vmul.f32 %v4529, %v4060
        %v4795 = vmul.f32 %v4534, %v4060
        %v4796 = vmul.f32 %v4539, %v4060
        %v4797 = vmul.f32 %v4544, %v4060
        %v4798 = vmul.f32 %v4549, %v4060
        %v4799 = vmul.f32 %v4554, %v4060
        %v4800 = vmul.f32 %v4559, %v4060
        %v4801 = vmul.f32 %v4564, %v4060
        %v4802 = vmul.f32 %v4569, %v4060
        %v4803 = vmul.f32 %v4574, %v4060
        %v4804 = vmul.f32 %v4579, %v4060
        %v4805 = vmul.f32 %v4584, %v4060
        %v4806 = vmul.f32 %v4589, %v4060
        %v4807 = vmul.f32 %v4594, %v4060
        %v4808 = vmul.f32 %v4599, %v4060
        %v4809 = vmul.f32 %v4604, %v4060
        %v4810 = vmul.f32 %v4609, %v4060
        %v4811 = vmul.f32 %v4614, %v4060
        %v4812 = vmul.f32 %v4619, %v4060
        %v4813 = vmul.f32 %v4624, %v4060
        %v4814 = vmul.f32 %v4629, %v4060
        %v4815 = vmul.f32 %v4634, %v4060
        %v4816 = vmul.f32 %v4639, %v4060
        %v4817 = vmul.f32 %v4644, %v4060
        %v4818 = vmul.f32 %v4649, %v4060
        %v4819 = vmul.f32 %v4654, %v4060
        %v4820 = vmul.f32 %v4659, %v4060
        %v4821 = vmul.f32 %v4664, %v4060
        %v4822 = vmul.f32 %v4669, %v4060
        %v4823 = vmul.f32 %v4674, %v4060
        %v4824 = vmul.f32 %v4679, %v4060
        %v4825 = vmul.f32 %v4684, %v4060
        %v4826 = vmul.f32 %v4689, %v4060
        %v4827 = vmul.f32 %v4694, %v4060
        %v4828 = vmul.f32 %v4699, %v4060
        %v4829 = vadd.f32 %v4701, 0.0
        %v4830 = vadd.f32 %v4702, 0.0
        %v4831 = vadd.f32 %v4703, 0.0
        %v4832 = vadd.f32 %v4704, 0.0
        %v4833 = vadd.f32 %v4705, 0.0
        %v4834 = vadd.f32 %v4706, 0.0
        %v4835 = vadd.f32 %v4707, 0.0
        %v4836 = vadd.f32 %v4708, 0.0
        %v4837 = vadd.f32 %v4709, 0.0
        %v4838 = vadd.f32 %v4710, 0.0
        %v4839 = vadd.f32 %v4711, 0.0
        %v4840 = vadd.f32 %v4712, 0.0
        %v4841 = vadd.f32 %v4713, 0.0
        %v4842 = vadd.f32 %v4714, 0.0
        %v4843 = vadd.f32 %v4715, 0.0
        %v4844 = vadd.f32 %v4716, 0.0
        %v4845 = vadd.f32 %v4717, 0.0
        %v4846 = vadd.f32 %v4718, 0.0
        %v4847 = vadd.f32 %v4719, 0.0
        %v4848 = vadd.f32 %v4720, 0.0
        %v4849 = vadd.f32 %v4721, 0.0
        %v4850 = vadd.f32 %v4722, 0.0
        %v4851 = vadd.f32 %v4723, 0.0
        %v4852 = vadd.f32 %v4724, 0.0
        %v4853 = vadd.f32 %v4725, 0.0
        %v4854 = vadd.f32 %v4726, 0.0
        %v4855 = vadd.f32 %v4727, 0.0
        %v4856 = vadd.f32 %v4728, 0.0
        %v4857 = vadd.f32 %v4729, 0.0
        %v4858 = vadd.f32 %v4730, 0.0
        %v4859 = vadd.f32 %v4731, 0.0
        %v4860 = vadd.f32 %v4732, 0.0
        %v4861 = vadd.f32 %v4733, 0.0
        %v4862 = vadd.f32 %v4734, 0.0
        %v4863 = vadd.f32 %v4735, 0.0
        %v4864 = vadd.f32 %v4736, 0.0
        %v4865 = vadd.f32 %v4737, 0.0
        %v4866 = vadd.f32 %v4738, 0.0
        %v4867 = vadd.f32 %v4739, 0.0
        %v4868 = vadd.f32 %v4740, 0.0
        %v4869 = vadd.f32 %v4741, 0.0
        %v4870 = vadd.f32 %v4742, 0.0
        %v4871 = vadd.f32 %v4743, 0.0
        %v4872 = vadd.f32 %v4744, 0.0
        %v4873 = vadd.f32 %v4745, 0.0
        %v4874 = vadd.f32 %v4746, 0.0
        %v4875 = vadd.f32 %v4747, 0.0
        %v4876 = vadd.f32 %v4748, 0.0
        %v4877 = vadd.f32 %v4749, 0.0
        %v4878 = vadd.f32 %v4750, 0.0
        %v4879 = vadd.f32 %v4751, 0.0
        %v4880 = vadd.f32 %v4752, 0.0
        %v4881 = vadd.f32 %v4753, 0.0
        %v4882 = vadd.f32 %v4754, 0.0
        %v4883 = vadd.f32 %v4755, 0.0
        %v4884 = vadd.f32 %v4756, 0.0
        %v4885 = vadd.f32 %v4757, 0.0
        %v4886 = vadd.f32 %v4758, 0.0
        %v4887 = vadd.f32 %v4759, 0.0
        %v4888 = vadd.f32 %v4760, 0.0
        %v4889 = vadd.f32 %v4761, 0.0
        %v4890 = vadd.f32 %v4762, 0.0
        %v4891 = vadd.f32 %v4763, 0.0
        %v4892 = vadd.f32 %v4764, 0.0
        %v4893 = vadd.f32 %v4765, 0.0
        %v4894 = vadd.f32 %v4766, 0.0
        %v4895 = vadd.f32 %v4767, 0.0
        %v4896 = vadd.f32 %v4768, 0.0
        %v4897 = vadd.f32 %v4769, 0.0
        %v4898 = vadd.f32 %v4770, 0.0
        %v4899 = vadd.f32 %v4771, 0.0
        %v4900 = vadd.f32 %v4772, 0.0
        %v4901 = vadd.f32 %v4773, 0.0
        %v4902 = vadd.f32 %v4774, 0.0
        %v4903 = vadd.f32 %v4775, 0.0
        %v4904 = vadd.f32 %v4776, 0.0
        %v4905 = vadd.f32 %v4777, 0.0
        %v4906 = vadd.f32 %v4778, 0.0
        %v4907 = vadd.f32 %v4779, 0.0
        %v4908 = vadd.f32 %v4780, 0.0
        %v4909 = vadd.f32 %v4781, 0.0
        %v4910 = vadd.f32 %v4782, 0.0
        %v4911 = vadd.f32 %v4783, 0.0
        %v4912 = vadd.f32 %v4784, 0.0
        %v4913 = vadd.f32 %v4785, 0.0
        %v4914 = vadd.f32 %v4786, 0.0
        %v4915 = vadd.f32 %v4787, 0.0
        %v4916 = vadd.f32 %v4788, 0.0
        %v4917 = vadd.f32 %v4789, 0.0
        %v4918 = vadd.f32 %v4790, 0.0
        %v4919 = vadd.f32 %v4791, 0.0
        %v4920 = vadd.f32 %v4792, 0.0
        %v4921 = vadd.f32 %v4793, 0.0
        %v4922 = vadd.f32 %v4794, 0.0
        %v4923 = vadd.f32 %v4795, 0.0
        %v4924 = vadd.f32 %v4796, 0.0
        %v4925 = vadd.f32 %v4797, 0.0
        %v4926 = vadd.f32 %v4798, 0.0
        %v4927 = vadd.f32 %v4799, 0.0
        %v4928 = vadd.f32 %v4800, 0.0
        %v4929 = vadd.f32 %v4801, 0.0
        %v4930 = vadd.f32 %v4802, 0.0
        %v4931 = vadd.f32 %v4803, 0.0
        %v4932 = vadd.f32 %v4804, 0.0
        %v4933 = vadd.f32 %v4805, 0.0
        %v4934 = vadd.f32 %v4806, 0.0
        %v4935 = vadd.f32 %v4807, 0.0
        %v4936 = vadd.f32 %v4808, 0.0
        %v4937 = vadd.f32 %v4809, 0.0
        %v4938 = vadd.f32 %v4810, 0.0
        %v4939 = vadd.f32 %v4811, 0.0
        %v4940 = vadd.f32 %v4812, 0.0
        %v4941 = vadd.f32 %v4813, 0.0
        %v4942 = vadd.f32 %v4814, 0.0
        %v4943 = vadd.f32 %v4815, 0.0
        %v4944 = vadd.f32 %v4816, 0.0
        %v4945 = vadd.f32 %v4817, 0.0
        %v4946 = vadd.f32 %v4818, 0.0
        %v4947 = vadd.f32 %v4819, 0.0
        %v4948 = vadd.f32 %v4820, 0.0
        %v4949 = vadd.f32 %v4821, 0.0
        %v4950 = vadd.f32 %v4822, 0.0
        %v4951 = vadd.f32 %v4823, 0.0
        %v4952 = vadd.f32 %v4824, 0.0
        %v4953 = vadd.f32 %v4825, 0.0
        %v4954 = vadd.f32 %v4826, 0.0
        %v4955 = vadd.f32 %v4827, 0.0
        %v4956 = vadd.f32 %v4828, 0.0
        %s4957 = scalar_lea.vmem %s4, 1024
        %v4958 = vld [vmem:[%s4957] sm:$0xff]
        %v4959 = vld [vmem:[%s4957 + $0x8] sm:$0xff]
        %v4960 = vld [vmem:[%s4957 + $0x10] sm:$0xff]
        %v4961 = vld [vmem:[%s4957 + $0x18] sm:$0xff]
        %v4962 = vld [vmem:[%s4957 + $0x20] sm:$0xff]
        %v4963 = vld [vmem:[%s4957 + $0x28] sm:$0xff]
        %v4964 = vld [vmem:[%s4957 + $0x30] sm:$0xff]
        %v4965 = vld [vmem:[%s4957 + $0x38] sm:$0xff]
        %v4966 = vld [vmem:[%s4957 + $0x40] sm:$0xff]
        %v4967 = vld [vmem:[%s4957 + $0x48] sm:$0xff]
        %v4968 = vld [vmem:[%s4957 + $0x50] sm:$0xff]
        %v4969 = vld [vmem:[%s4957 + $0x58] sm:$0xff]
        %v4970 = vld [vmem:[%s4957 + $0x60] sm:$0xff]
        %v4971 = vld [vmem:[%s4957 + $0x68] sm:$0xff]
        %v4972 = vld [vmem:[%s4957 + $0x70] sm:$0xff]
        %v4973 = vld [vmem:[%s4957 + $0x78] sm:$0xff]
        %v4974 = vld [vmem:[%s4957 + $0x80] sm:$0xff]
        %v4975 = vld [vmem:[%s4957 + $0x88] sm:$0xff]
        %v4976 = vld [vmem:[%s4957 + $0x90] sm:$0xff]
        %v4977 = vld [vmem:[%s4957 + $0x98] sm:$0xff]
        %v4978 = vld [vmem:[%s4957 + $0xa0] sm:$0xff]
        %v4979 = vld [vmem:[%s4957 + $0xa8] sm:$0xff]
        %v4980 = vld [vmem:[%s4957 + $0xb0] sm:$0xff]
        %v4981 = vld [vmem:[%s4957 + $0xb8] sm:$0xff]
        %v4982 = vld [vmem:[%s4957 + $0xc0] sm:$0xff]
        %v4983 = vld [vmem:[%s4957 + $0xc8] sm:$0xff]
        %v4984 = vld [vmem:[%s4957 + $0xd0] sm:$0xff]
        %v4985 = vld [vmem:[%s4957 + $0xd8] sm:$0xff]
        %v4986 = vld [vmem:[%s4957 + $0xe0] sm:$0xff]
        %v4987 = vld [vmem:[%s4957 + $0xe8] sm:$0xff]
        %v4988 = vld [vmem:[%s4957 + $0xf0] sm:$0xff]
        %v4989 = vld [vmem:[%s4957 + $0xf8] sm:$0xff]
        %v4990 = vld [vmem:[%s4957 + $0x100] sm:$0xff]
        %v4991 = vld [vmem:[%s4957 + $0x108] sm:$0xff]
        %v4992 = vld [vmem:[%s4957 + $0x110] sm:$0xff]
        %v4993 = vld [vmem:[%s4957 + $0x118] sm:$0xff]
        %v4994 = vld [vmem:[%s4957 + $0x120] sm:$0xff]
        %v4995 = vld [vmem:[%s4957 + $0x128] sm:$0xff]
        %v4996 = vld [vmem:[%s4957 + $0x130] sm:$0xff]
        %v4997 = vld [vmem:[%s4957 + $0x138] sm:$0xff]
        %v4998 = vld [vmem:[%s4957 + $0x140] sm:$0xff]
        %v4999 = vld [vmem:[%s4957 + $0x148] sm:$0xff]
        %v5000 = vld [vmem:[%s4957 + $0x150] sm:$0xff]
        %v5001 = vld [vmem:[%s4957 + $0x158] sm:$0xff]
        %v5002 = vld [vmem:[%s4957 + $0x160] sm:$0xff]
        %v5003 = vld [vmem:[%s4957 + $0x168] sm:$0xff]
        %v5004 = vld [vmem:[%s4957 + $0x170] sm:$0xff]
        %v5005 = vld [vmem:[%s4957 + $0x178] sm:$0xff]
        %v5006 = vld [vmem:[%s4957 + $0x180] sm:$0xff]
        %v5007 = vld [vmem:[%s4957 + $0x188] sm:$0xff]
        %v5008 = vld [vmem:[%s4957 + $0x190] sm:$0xff]
        %v5009 = vld [vmem:[%s4957 + $0x198] sm:$0xff]
        %v5010 = vld [vmem:[%s4957 + $0x1a0] sm:$0xff]
        %v5011 = vld [vmem:[%s4957 + $0x1a8] sm:$0xff]
        %v5012 = vld [vmem:[%s4957 + $0x1b0] sm:$0xff]
        %v5013 = vld [vmem:[%s4957 + $0x1b8] sm:$0xff]
        %v5014 = vld [vmem:[%s4957 + $0x1c0] sm:$0xff]
        %v5015 = vld [vmem:[%s4957 + $0x1c8] sm:$0xff]
        %v5016 = vld [vmem:[%s4957 + $0x1d0] sm:$0xff]
        %v5017 = vld [vmem:[%s4957 + $0x1d8] sm:$0xff]
        %v5018 = vld [vmem:[%s4957 + $0x1e0] sm:$0xff]
        %v5019 = vld [vmem:[%s4957 + $0x1e8] sm:$0xff]
        %v5020 = vld [vmem:[%s4957 + $0x1f0] sm:$0xff]
        %v5021 = vld [vmem:[%s4957 + $0x1f8] sm:$0xff]
        %v5022 = vld [vmem:[%s4957 + $0x200] sm:$0xff]
        %v5023 = vld [vmem:[%s4957 + $0x208] sm:$0xff]
        %v5024 = vld [vmem:[%s4957 + $0x210] sm:$0xff]
        %v5025 = vld [vmem:[%s4957 + $0x218] sm:$0xff]
        %v5026 = vld [vmem:[%s4957 + $0x220] sm:$0xff]
        %v5027 = vld [vmem:[%s4957 + $0x228] sm:$0xff]
        %v5028 = vld [vmem:[%s4957 + $0x230] sm:$0xff]
        %v5029 = vld [vmem:[%s4957 + $0x238] sm:$0xff]
        %v5030 = vld [vmem:[%s4957 + $0x240] sm:$0xff]
        %v5031 = vld [vmem:[%s4957 + $0x248] sm:$0xff]
        %v5032 = vld [vmem:[%s4957 + $0x250] sm:$0xff]
        %v5033 = vld [vmem:[%s4957 + $0x258] sm:$0xff]
        %v5034 = vld [vmem:[%s4957 + $0x260] sm:$0xff]
        %v5035 = vld [vmem:[%s4957 + $0x268] sm:$0xff]
        %v5036 = vld [vmem:[%s4957 + $0x270] sm:$0xff]
        %v5037 = vld [vmem:[%s4957 + $0x278] sm:$0xff]
        %v5038 = vld [vmem:[%s4957 + $0x280] sm:$0xff]
        %v5039 = vld [vmem:[%s4957 + $0x288] sm:$0xff]
        %v5040 = vld [vmem:[%s4957 + $0x290] sm:$0xff]
        %v5041 = vld [vmem:[%s4957 + $0x298] sm:$0xff]
        %v5042 = vld [vmem:[%s4957 + $0x2a0] sm:$0xff]
        %v5043 = vld [vmem:[%s4957 + $0x2a8] sm:$0xff]
        %v5044 = vld [vmem:[%s4957 + $0x2b0] sm:$0xff]
        %v5045 = vld [vmem:[%s4957 + $0x2b8] sm:$0xff]
        %v5046 = vld [vmem:[%s4957 + $0x2c0] sm:$0xff]
        %v5047 = vld [vmem:[%s4957 + $0x2c8] sm:$0xff]
        %v5048 = vld [vmem:[%s4957 + $0x2d0] sm:$0xff]
        %v5049 = vld [vmem:[%s4957 + $0x2d8] sm:$0xff]
        %v5050 = vld [vmem:[%s4957 + $0x2e0] sm:$0xff]
        %v5051 = vld [vmem:[%s4957 + $0x2e8] sm:$0xff]
        %v5052 = vld [vmem:[%s4957 + $0x2f0] sm:$0xff]
        %v5053 = vld [vmem:[%s4957 + $0x2f8] sm:$0xff]
        %v5054 = vld [vmem:[%s4957 + $0x300] sm:$0xff]
        %v5055 = vld [vmem:[%s4957 + $0x308] sm:$0xff]
        %v5056 = vld [vmem:[%s4957 + $0x310] sm:$0xff]
        %v5057 = vld [vmem:[%s4957 + $0x318] sm:$0xff]
        %v5058 = vld [vmem:[%s4957 + $0x320] sm:$0xff]
        %v5059 = vld [vmem:[%s4957 + $0x328] sm:$0xff]
        %v5060 = vld [vmem:[%s4957 + $0x330] sm:$0xff]
        %v5061 = vld [vmem:[%s4957 + $0x338] sm:$0xff]
        %v5062 = vld [vmem:[%s4957 + $0x340] sm:$0xff]
        %v5063 = vld [vmem:[%s4957 + $0x348] sm:$0xff]
        %v5064 = vld [vmem:[%s4957 + $0x350] sm:$0xff]
        %v5065 = vld [vmem:[%s4957 + $0x358] sm:$0xff]
        %v5066 = vld [vmem:[%s4957 + $0x360] sm:$0xff]
        %v5067 = vld [vmem:[%s4957 + $0x368] sm:$0xff]
        %v5068 = vld [vmem:[%s4957 + $0x370] sm:$0xff]
        %v5069 = vld [vmem:[%s4957 + $0x378] sm:$0xff]
        %v5070 = vld [vmem:[%s4957 + $0x380] sm:$0xff]
        %v5071 = vld [vmem:[%s4957 + $0x388] sm:$0xff]
        %v5072 = vld [vmem:[%s4957 + $0x390] sm:$0xff]
        %v5073 = vld [vmem:[%s4957 + $0x398] sm:$0xff]
        %v5074 = vld [vmem:[%s4957 + $0x3a0] sm:$0xff]
        %v5075 = vld [vmem:[%s4957 + $0x3a8] sm:$0xff]
        %v5076 = vld [vmem:[%s4957 + $0x3b0] sm:$0xff]
        %v5077 = vld [vmem:[%s4957 + $0x3b8] sm:$0xff]
        %v5078 = vld [vmem:[%s4957 + $0x3c0] sm:$0xff]
        %v5079 = vld [vmem:[%s4957 + $0x3c8] sm:$0xff]
        %v5080 = vld [vmem:[%s4957 + $0x3d0] sm:$0xff]
        %v5081 = vld [vmem:[%s4957 + $0x3d8] sm:$0xff]
        %v5082 = vld [vmem:[%s4957 + $0x3e0] sm:$0xff]
        %v5083 = vld [vmem:[%s4957 + $0x3e8] sm:$0xff]
        %v5084 = vld [vmem:[%s4957 + $0x3f0] sm:$0xff]
        %v5085 = vld [vmem:[%s4957 + $0x3f8] sm:$0xff]
        %v5087 = vsel %vm2966, %v4958, 0
        %v5090 = vsel %vm2966, %v4959, 0
        %v5093 = vsel %vm2966, %v4960, 0
        %v5096 = vsel %vm2966, %v4961, 0
        %v5099 = vsel %vm2966, %v4962, 0
        %v5102 = vsel %vm2966, %v4963, 0
        %v5105 = vsel %vm2966, %v4964, 0
        %v5108 = vsel %vm2966, %v4965, 0
        %v5111 = vsel %vm2966, %v4966, 0
        %v5114 = vsel %vm2966, %v4967, 0
        %v5117 = vsel %vm2966, %v4968, 0
        %v5120 = vsel %vm2966, %v4969, 0
        %v5123 = vsel %vm2966, %v4970, 0
        %v5126 = vsel %vm2966, %v4971, 0
        %v5129 = vsel %vm2966, %v4972, 0
        %v5132 = vsel %vm2966, %v4973, 0
        %v5135 = vsel %vm2966, %v4974, 0
        %v5138 = vsel %vm2966, %v4975, 0
        %v5141 = vsel %vm2966, %v4976, 0
        %v5144 = vsel %vm2966, %v4977, 0
        %v5147 = vsel %vm2966, %v4978, 0
        %v5150 = vsel %vm2966, %v4979, 0
        %v5153 = vsel %vm2966, %v4980, 0
        %v5156 = vsel %vm2966, %v4981, 0
        %v5159 = vsel %vm2966, %v4982, 0
        %v5162 = vsel %vm2966, %v4983, 0
        %v5165 = vsel %vm2966, %v4984, 0
        %v5168 = vsel %vm2966, %v4985, 0
        %v5171 = vsel %vm2966, %v4986, 0
        %v5174 = vsel %vm2966, %v4987, 0
        %v5177 = vsel %vm2966, %v4988, 0
        %v5180 = vsel %vm2966, %v4989, 0
        %v5183 = vsel %vm2966, %v4990, 0
        %v5186 = vsel %vm2966, %v4991, 0
        %v5189 = vsel %vm2966, %v4992, 0
        %v5192 = vsel %vm2966, %v4993, 0
        %v5195 = vsel %vm2966, %v4994, 0
        %v5198 = vsel %vm2966, %v4995, 0
        %v5201 = vsel %vm2966, %v4996, 0
        %v5204 = vsel %vm2966, %v4997, 0
        %v5207 = vsel %vm2966, %v4998, 0
        %v5210 = vsel %vm2966, %v4999, 0
        %v5213 = vsel %vm2966, %v5000, 0
        %v5216 = vsel %vm2966, %v5001, 0
        %v5219 = vsel %vm2966, %v5002, 0
        %v5222 = vsel %vm2966, %v5003, 0
        %v5225 = vsel %vm2966, %v5004, 0
        %v5228 = vsel %vm2966, %v5005, 0
        %v5231 = vsel %vm2966, %v5006, 0
        %v5234 = vsel %vm2966, %v5007, 0
        %v5237 = vsel %vm2966, %v5008, 0
        %v5240 = vsel %vm2966, %v5009, 0
        %v5243 = vsel %vm2966, %v5010, 0
        %v5246 = vsel %vm2966, %v5011, 0
        %v5249 = vsel %vm2966, %v5012, 0
        %v5252 = vsel %vm2966, %v5013, 0
        %v5255 = vsel %vm2966, %v5014, 0
        %v5258 = vsel %vm2966, %v5015, 0
        %v5261 = vsel %vm2966, %v5016, 0
        %v5264 = vsel %vm2966, %v5017, 0
        %v5267 = vsel %vm2966, %v5018, 0
        %v5270 = vsel %vm2966, %v5019, 0
        %v5273 = vsel %vm2966, %v5020, 0
        %v5276 = vsel %vm2966, %v5021, 0
        %v5279 = vsel %vm2966, %v5022, 0
        %v5282 = vsel %vm2966, %v5023, 0
        %v5285 = vsel %vm2966, %v5024, 0
        %v5288 = vsel %vm2966, %v5025, 0
        %v5291 = vsel %vm2966, %v5026, 0
        %v5294 = vsel %vm2966, %v5027, 0
        %v5297 = vsel %vm2966, %v5028, 0
        %v5300 = vsel %vm2966, %v5029, 0
        %v5303 = vsel %vm2966, %v5030, 0
        %v5306 = vsel %vm2966, %v5031, 0
        %v5309 = vsel %vm2966, %v5032, 0
        %v5312 = vsel %vm2966, %v5033, 0
        %v5315 = vsel %vm2966, %v5034, 0
        %v5318 = vsel %vm2966, %v5035, 0
        %v5321 = vsel %vm2966, %v5036, 0
        %v5324 = vsel %vm2966, %v5037, 0
        %v5327 = vsel %vm2966, %v5038, 0
        %v5330 = vsel %vm2966, %v5039, 0
        %v5333 = vsel %vm2966, %v5040, 0
        %v5336 = vsel %vm2966, %v5041, 0
        %v5339 = vsel %vm2966, %v5042, 0
        %v5342 = vsel %vm2966, %v5043, 0
        %v5345 = vsel %vm2966, %v5044, 0
        %v5348 = vsel %vm2966, %v5045, 0
        %v5351 = vsel %vm2966, %v5046, 0
        %v5354 = vsel %vm2966, %v5047, 0
        %v5357 = vsel %vm2966, %v5048, 0
        %v5360 = vsel %vm2966, %v5049, 0
        %v5363 = vsel %vm2966, %v5050, 0
        %v5366 = vsel %vm2966, %v5051, 0
        %v5369 = vsel %vm2966, %v5052, 0
        %v5372 = vsel %vm2966, %v5053, 0
        %v5375 = vsel %vm2966, %v5054, 0
        %v5378 = vsel %vm2966, %v5055, 0
        %v5381 = vsel %vm2966, %v5056, 0
        %v5384 = vsel %vm2966, %v5057, 0
        %v5387 = vsel %vm2966, %v5058, 0
        %v5390 = vsel %vm2966, %v5059, 0
        %v5393 = vsel %vm2966, %v5060, 0
        %v5396 = vsel %vm2966, %v5061, 0
        %v5399 = vsel %vm2966, %v5062, 0
        %v5402 = vsel %vm2966, %v5063, 0
        %v5405 = vsel %vm2966, %v5064, 0
        %v5408 = vsel %vm2966, %v5065, 0
        %v5411 = vsel %vm2966, %v5066, 0
        %v5414 = vsel %vm2966, %v5067, 0
        %v5417 = vsel %vm2966, %v5068, 0
        %v5420 = vsel %vm2966, %v5069, 0
        %v5423 = vsel %vm2966, %v5070, 0
        %v5426 = vsel %vm2966, %v5071, 0
        %v5429 = vsel %vm2966, %v5072, 0
        %v5432 = vsel %vm2966, %v5073, 0
        %v5435 = vsel %vm2966, %v5074, 0
        %v5438 = vsel %vm2966, %v5075, 0
        %v5441 = vsel %vm2966, %v5076, 0
        %v5444 = vsel %vm2966, %v5077, 0
        %v5447 = vsel %vm2966, %v5078, 0
        %v5450 = vsel %vm2966, %v5079, 0
        %v5453 = vsel %vm2966, %v5080, 0
        %v5456 = vsel %vm2966, %v5081, 0
        %v5459 = vsel %vm2966, %v5082, 0
        %v5462 = vsel %vm2966, %v5083, 0
        %v5465 = vsel %vm2966, %v5084, 0
        %v5468 = vsel %vm2966, %v5085, 0
        %5470 = vmatprep.subr.mxu0 0.0
        %5471 = vmatpush1.msra.mxu0 0.0
        %5472 = vmatprep.subr.mxu0 0.0
        %5473 = vmatpush1.msra.mxu0 0.0
        %5474 = vmatprep.subr.mxu0 0.0
        %5475 = vmatpush1.msra.mxu0 0.0
        %5476 = vmatprep.subr.mxu0 0.0
        %5477 = vmatpush1.msra.mxu0 0.0
        %5478 = vmatprep.subr.mxu0 0.0
        %5479 = vmatpush1.msra.mxu0 0.0
        %5480 = vmatprep.subr.mxu0 0.0
        %5481 = vmatpush1.msra.mxu0 0.0
        %5482 = vmatprep.subr.mxu0 0.0
        %5483 = vmatpush1.msra.mxu0 0.0
        %5484 = vmatprep.subr.mxu0 0.0
        %5485 = vmatpush1.msra.mxu0 0.0
        %5486 = vmatprep.subr.mxu0 0.0
        %5487 = vmatpush1.msra.mxu0 %v2835
        %5488 = vmatprep.subr.mxu0 0.0
        %5489 = vmatpush1.msra.mxu0 %v2834
        %5490 = vmatprep.subr.mxu0 0.0
        %5491 = vmatpush1.msra.mxu0 %v2833
        %5492 = vmatprep.subr.mxu0 0.0
        %5493 = vmatpush1.msra.mxu0 %v2832
        %5494 = vmatprep.subr.mxu0 0.0
        %5495 = vmatpush1.msra.mxu0 %v2831
        %5496 = vmatprep.subr.mxu0 0.0
        %5497 = vmatpush1.msra.mxu0 %v2830
        %5498 = vmatprep.subr.mxu0 0.0
        %5499 = vmatpush1.msra.mxu0 %v2829
        %5500 = vmatprep.subr.mxu0 0.0
        %5501 = vmatpush1.msra.mxu0 %v2828
        %5502 = vmatprep.subr.mxu0 0.0
        %5503 = vmatpush2.msra.mxu0 0.0
        %5504 = vmatprep.subr.mxu0 0.0
        %5505 = vmatpush2.msra.mxu0 0.0
        %5506 = vmatprep.subr.mxu0 0.0
        %5507 = vmatpush2.msra.mxu0 0.0
        %5508 = vmatprep.subr.mxu0 0.0
        %5509 = vmatpush2.msra.mxu0 0.0
        %5510 = vmatprep.subr.mxu0 0.0
        %5511 = vmatpush2.msra.mxu0 0.0
        %5512 = vmatprep.subr.mxu0 0.0
        %5513 = vmatpush2.msra.mxu0 0.0
        %5514 = vmatprep.subr.mxu0 0.0
        %5515 = vmatpush2.msra.mxu0 0.0
        %5516 = vmatprep.subr.mxu0 0.0
        %5517 = vmatpush2.msra.mxu0 0.0
        %5518 = vmatprep.subr.mxu0 0.0
        %5519 = vmatpush2.msra.mxu0 0.0
        %5520 = vmatprep.subr.mxu0 0.0
        %5521 = vmatpush2.msra.mxu0 0.0
        %5522 = vmatprep.subr.mxu0 0.0
        %5523 = vmatpush2.msra.mxu0 0.0
        %5524 = vmatprep.subr.mxu0 0.0
        %5525 = vmatpush2.msra.mxu0 0.0
        %5526 = vmatprep.subr.mxu0 0.0
        %5527 = vmatpush2.msra.mxu0 0.0
        %5528 = vmatprep.subr.mxu0 0.0
        %5529 = vmatpush2.msra.mxu0 0.0
        %5530 = vmatprep.subr.mxu0 0.0
        %5531 = vmatpush2.msra.mxu0 0.0
        %5532 = vmatprep.subr.mxu0 0.0
        %5533 = vmatpush2.msra.mxu0 0.0
        %5534 = vmatprep.mubr.f32.mxu0 0.0
        %5535 = vmatmul.mubr.f32.gmra.mxu0 %v5087
        %v5536 = vpop.f32.mrf.mxu0
        %v5537 = vadd.f32 0.0, %v5536
        %v5538 = vpop.f32.mrf.mxu0
        %5539 = vmatprep.mubr.f32.mxu0 0.0
        %5540 = vmatmul.mubr.f32.gmra.mxu0 %v5090
        %v5541 = vpop.f32.mrf.mxu0
        %v5542 = vadd.f32 0.0, %v5541
        %v5543 = vpop.f32.mrf.mxu0
        %5544 = vmatprep.mubr.f32.mxu0 0.0
        %5545 = vmatmul.mubr.f32.gmra.mxu0 %v5093
        %v5546 = vpop.f32.mrf.mxu0
        %v5547 = vadd.f32 0.0, %v5546
        %v5548 = vpop.f32.mrf.mxu0
        %5549 = vmatprep.mubr.f32.mxu0 0.0
        %5550 = vmatmul.mubr.f32.gmra.mxu0 %v5096
        %v5551 = vpop.f32.mrf.mxu0
        %v5552 = vadd.f32 0.0, %v5551
        %v5553 = vpop.f32.mrf.mxu0
        %5554 = vmatprep.mubr.f32.mxu0 0.0
        %5555 = vmatmul.mubr.f32.gmra.mxu0 %v5099
        %v5556 = vpop.f32.mrf.mxu0
        %v5557 = vadd.f32 0.0, %v5556
        %v5558 = vpop.f32.mrf.mxu0
        %5559 = vmatprep.mubr.f32.mxu0 0.0
        %5560 = vmatmul.mubr.f32.gmra.mxu0 %v5102
        %v5561 = vpop.f32.mrf.mxu0
        %v5562 = vadd.f32 0.0, %v5561
        %v5563 = vpop.f32.mrf.mxu0
        %5564 = vmatprep.mubr.f32.mxu0 0.0
        %5565 = vmatmul.mubr.f32.gmra.mxu0 %v5105
        %v5566 = vpop.f32.mrf.mxu0
        %v5567 = vadd.f32 0.0, %v5566
        %v5568 = vpop.f32.mrf.mxu0
        %5569 = vmatprep.mubr.f32.mxu0 0.0
        %5570 = vmatmul.mubr.f32.gmra.mxu0 %v5108
        %v5571 = vpop.f32.mrf.mxu0
        %v5572 = vadd.f32 0.0, %v5571
        %v5573 = vpop.f32.mrf.mxu0
        %5574 = vmatprep.mubr.f32.mxu0 0.0
        %5575 = vmatmul.mubr.f32.gmra.mxu0 %v5111
        %v5576 = vpop.f32.mrf.mxu0
        %v5577 = vadd.f32 0.0, %v5576
        %v5578 = vpop.f32.mrf.mxu0
        %5579 = vmatprep.mubr.f32.mxu0 0.0
        %5580 = vmatmul.mubr.f32.gmra.mxu0 %v5114
        %v5581 = vpop.f32.mrf.mxu0
        %v5582 = vadd.f32 0.0, %v5581
        %v5583 = vpop.f32.mrf.mxu0
        %5584 = vmatprep.mubr.f32.mxu0 0.0
        %5585 = vmatmul.mubr.f32.gmra.mxu0 %v5117
        %v5586 = vpop.f32.mrf.mxu0
        %v5587 = vadd.f32 0.0, %v5586
        %v5588 = vpop.f32.mrf.mxu0
        %5589 = vmatprep.mubr.f32.mxu0 0.0
        %5590 = vmatmul.mubr.f32.gmra.mxu0 %v5120
        %v5591 = vpop.f32.mrf.mxu0
        %v5592 = vadd.f32 0.0, %v5591
        %v5593 = vpop.f32.mrf.mxu0
        %5594 = vmatprep.mubr.f32.mxu0 0.0
        %5595 = vmatmul.mubr.f32.gmra.mxu0 %v5123
        %v5596 = vpop.f32.mrf.mxu0
        %v5597 = vadd.f32 0.0, %v5596
        %v5598 = vpop.f32.mrf.mxu0
        %5599 = vmatprep.mubr.f32.mxu0 0.0
        %5600 = vmatmul.mubr.f32.gmra.mxu0 %v5126
        %v5601 = vpop.f32.mrf.mxu0
        %v5602 = vadd.f32 0.0, %v5601
        %v5603 = vpop.f32.mrf.mxu0
        %5604 = vmatprep.mubr.f32.mxu0 0.0
        %5605 = vmatmul.mubr.f32.gmra.mxu0 %v5129
        %v5606 = vpop.f32.mrf.mxu0
        %v5607 = vadd.f32 0.0, %v5606
        %v5608 = vpop.f32.mrf.mxu0
        %5609 = vmatprep.mubr.f32.mxu0 0.0
        %5610 = vmatmul.mubr.f32.gmra.mxu0 %v5132
        %v5611 = vpop.f32.mrf.mxu0
        %v5612 = vadd.f32 0.0, %v5611
        %v5613 = vpop.f32.mrf.mxu0
        %5614 = vmatprep.mubr.f32.mxu0 0.0
        %5615 = vmatmul.mubr.f32.gmra.mxu0 %v5135
        %v5616 = vpop.f32.mrf.mxu0
        %v5617 = vadd.f32 0.0, %v5616
        %v5618 = vpop.f32.mrf.mxu0
        %5619 = vmatprep.mubr.f32.mxu0 0.0
        %5620 = vmatmul.mubr.f32.gmra.mxu0 %v5138
        %v5621 = vpop.f32.mrf.mxu0
        %v5622 = vadd.f32 0.0, %v5621
        %v5623 = vpop.f32.mrf.mxu0
        %5624 = vmatprep.mubr.f32.mxu0 0.0
        %5625 = vmatmul.mubr.f32.gmra.mxu0 %v5141
        %v5626 = vpop.f32.mrf.mxu0
        %v5627 = vadd.f32 0.0, %v5626
        %v5628 = vpop.f32.mrf.mxu0
        %5629 = vmatprep.mubr.f32.mxu0 0.0
        %5630 = vmatmul.mubr.f32.gmra.mxu0 %v5144
        %v5631 = vpop.f32.mrf.mxu0
        %v5632 = vadd.f32 0.0, %v5631
        %v5633 = vpop.f32.mrf.mxu0
        %5634 = vmatprep.mubr.f32.mxu0 0.0
        %5635 = vmatmul.mubr.f32.gmra.mxu0 %v5147
        %v5636 = vpop.f32.mrf.mxu0
        %v5637 = vadd.f32 0.0, %v5636
        %v5638 = vpop.f32.mrf.mxu0
        %5639 = vmatprep.mubr.f32.mxu0 0.0
        %5640 = vmatmul.mubr.f32.gmra.mxu0 %v5150
        %v5641 = vpop.f32.mrf.mxu0
        %v5642 = vadd.f32 0.0, %v5641
        %v5643 = vpop.f32.mrf.mxu0
        %5644 = vmatprep.mubr.f32.mxu0 0.0
        %5645 = vmatmul.mubr.f32.gmra.mxu0 %v5153
        %v5646 = vpop.f32.mrf.mxu0
        %v5647 = vadd.f32 0.0, %v5646
        %v5648 = vpop.f32.mrf.mxu0
        %5649 = vmatprep.mubr.f32.mxu0 0.0
        %5650 = vmatmul.mubr.f32.gmra.mxu0 %v5156
        %v5651 = vpop.f32.mrf.mxu0
        %v5652 = vadd.f32 0.0, %v5651
        %v5653 = vpop.f32.mrf.mxu0
        %5654 = vmatprep.mubr.f32.mxu0 0.0
        %5655 = vmatmul.mubr.f32.gmra.mxu0 %v5159
        %v5656 = vpop.f32.mrf.mxu0
        %v5657 = vadd.f32 0.0, %v5656
        %v5658 = vpop.f32.mrf.mxu0
        %5659 = vmatprep.mubr.f32.mxu0 0.0
        %5660 = vmatmul.mubr.f32.gmra.mxu0 %v5162
        %v5661 = vpop.f32.mrf.mxu0
        %v5662 = vadd.f32 0.0, %v5661
        %v5663 = vpop.f32.mrf.mxu0
        %5664 = vmatprep.mubr.f32.mxu0 0.0
        %5665 = vmatmul.mubr.f32.gmra.mxu0 %v5165
        %v5666 = vpop.f32.mrf.mxu0
        %v5667 = vadd.f32 0.0, %v5666
        %v5668 = vpop.f32.mrf.mxu0
        %5669 = vmatprep.mubr.f32.mxu0 0.0
        %5670 = vmatmul.mubr.f32.gmra.mxu0 %v5168
        %v5671 = vpop.f32.mrf.mxu0
        %v5672 = vadd.f32 0.0, %v5671
        %v5673 = vpop.f32.mrf.mxu0
        %5674 = vmatprep.mubr.f32.mxu0 0.0
        %5675 = vmatmul.mubr.f32.gmra.mxu0 %v5171
        %v5676 = vpop.f32.mrf.mxu0
        %v5677 = vadd.f32 0.0, %v5676
        %v5678 = vpop.f32.mrf.mxu0
        %5679 = vmatprep.mubr.f32.mxu0 0.0
        %5680 = vmatmul.mubr.f32.gmra.mxu0 %v5174
        %v5681 = vpop.f32.mrf.mxu0
        %v5682 = vadd.f32 0.0, %v5681
        %v5683 = vpop.f32.mrf.mxu0
        %5684 = vmatprep.mubr.f32.mxu0 0.0
        %5685 = vmatmul.mubr.f32.gmra.mxu0 %v5177
        %v5686 = vpop.f32.mrf.mxu0
        %v5687 = vadd.f32 0.0, %v5686
        %v5688 = vpop.f32.mrf.mxu0
        %5689 = vmatprep.mubr.f32.mxu0 0.0
        %5690 = vmatmul.mubr.f32.gmra.mxu0 %v5180
        %v5691 = vpop.f32.mrf.mxu0
        %v5692 = vadd.f32 0.0, %v5691
        %v5693 = vpop.f32.mrf.mxu0
        %5694 = vmatprep.mubr.f32.mxu0 0.0
        %5695 = vmatmul.mubr.f32.gmra.mxu0 %v5183
        %v5696 = vpop.f32.mrf.mxu0
        %v5697 = vadd.f32 0.0, %v5696
        %v5698 = vpop.f32.mrf.mxu0
        %5699 = vmatprep.mubr.f32.mxu0 0.0
        %5700 = vmatmul.mubr.f32.gmra.mxu0 %v5186
        %v5701 = vpop.f32.mrf.mxu0
        %v5702 = vadd.f32 0.0, %v5701
        %v5703 = vpop.f32.mrf.mxu0
        %5704 = vmatprep.mubr.f32.mxu0 0.0
        %5705 = vmatmul.mubr.f32.gmra.mxu0 %v5189
        %v5706 = vpop.f32.mrf.mxu0
        %v5707 = vadd.f32 0.0, %v5706
        %v5708 = vpop.f32.mrf.mxu0
        %5709 = vmatprep.mubr.f32.mxu0 0.0
        %5710 = vmatmul.mubr.f32.gmra.mxu0 %v5192
        %v5711 = vpop.f32.mrf.mxu0
        %v5712 = vadd.f32 0.0, %v5711
        %v5713 = vpop.f32.mrf.mxu0
        %5714 = vmatprep.mubr.f32.mxu0 0.0
        %5715 = vmatmul.mubr.f32.gmra.mxu0 %v5195
        %v5716 = vpop.f32.mrf.mxu0
        %v5717 = vadd.f32 0.0, %v5716
        %v5718 = vpop.f32.mrf.mxu0
        %5719 = vmatprep.mubr.f32.mxu0 0.0
        %5720 = vmatmul.mubr.f32.gmra.mxu0 %v5198
        %v5721 = vpop.f32.mrf.mxu0
        %v5722 = vadd.f32 0.0, %v5721
        %v5723 = vpop.f32.mrf.mxu0
        %5724 = vmatprep.mubr.f32.mxu0 0.0
        %5725 = vmatmul.mubr.f32.gmra.mxu0 %v5201
        %v5726 = vpop.f32.mrf.mxu0
        %v5727 = vadd.f32 0.0, %v5726
        %v5728 = vpop.f32.mrf.mxu0
        %5729 = vmatprep.mubr.f32.mxu0 0.0
        %5730 = vmatmul.mubr.f32.gmra.mxu0 %v5204
        %v5731 = vpop.f32.mrf.mxu0
        %v5732 = vadd.f32 0.0, %v5731
        %v5733 = vpop.f32.mrf.mxu0
        %5734 = vmatprep.mubr.f32.mxu0 0.0
        %5735 = vmatmul.mubr.f32.gmra.mxu0 %v5207
        %v5736 = vpop.f32.mrf.mxu0
        %v5737 = vadd.f32 0.0, %v5736
        %v5738 = vpop.f32.mrf.mxu0
        %5739 = vmatprep.mubr.f32.mxu0 0.0
        %5740 = vmatmul.mubr.f32.gmra.mxu0 %v5210
        %v5741 = vpop.f32.mrf.mxu0
        %v5742 = vadd.f32 0.0, %v5741
        %v5743 = vpop.f32.mrf.mxu0
        %5744 = vmatprep.mubr.f32.mxu0 0.0
        %5745 = vmatmul.mubr.f32.gmra.mxu0 %v5213
        %v5746 = vpop.f32.mrf.mxu0
        %v5747 = vadd.f32 0.0, %v5746
        %v5748 = vpop.f32.mrf.mxu0
        %5749 = vmatprep.mubr.f32.mxu0 0.0
        %5750 = vmatmul.mubr.f32.gmra.mxu0 %v5216
        %v5751 = vpop.f32.mrf.mxu0
        %v5752 = vadd.f32 0.0, %v5751
        %v5753 = vpop.f32.mrf.mxu0
        %5754 = vmatprep.mubr.f32.mxu0 0.0
        %5755 = vmatmul.mubr.f32.gmra.mxu0 %v5219
        %v5756 = vpop.f32.mrf.mxu0
        %v5757 = vadd.f32 0.0, %v5756
        %v5758 = vpop.f32.mrf.mxu0
        %5759 = vmatprep.mubr.f32.mxu0 0.0
        %5760 = vmatmul.mubr.f32.gmra.mxu0 %v5222
        %v5761 = vpop.f32.mrf.mxu0
        %v5762 = vadd.f32 0.0, %v5761
        %v5763 = vpop.f32.mrf.mxu0
        %5764 = vmatprep.mubr.f32.mxu0 0.0
        %5765 = vmatmul.mubr.f32.gmra.mxu0 %v5225
        %v5766 = vpop.f32.mrf.mxu0
        %v5767 = vadd.f32 0.0, %v5766
        %v5768 = vpop.f32.mrf.mxu0
        %5769 = vmatprep.mubr.f32.mxu0 0.0
        %5770 = vmatmul.mubr.f32.gmra.mxu0 %v5228
        %v5771 = vpop.f32.mrf.mxu0
        %v5772 = vadd.f32 0.0, %v5771
        %v5773 = vpop.f32.mrf.mxu0
        %5774 = vmatprep.mubr.f32.mxu0 0.0
        %5775 = vmatmul.mubr.f32.gmra.mxu0 %v5231
        %v5776 = vpop.f32.mrf.mxu0
        %v5777 = vadd.f32 0.0, %v5776
        %v5778 = vpop.f32.mrf.mxu0
        %5779 = vmatprep.mubr.f32.mxu0 0.0
        %5780 = vmatmul.mubr.f32.gmra.mxu0 %v5234
        %v5781 = vpop.f32.mrf.mxu0
        %v5782 = vadd.f32 0.0, %v5781
        %v5783 = vpop.f32.mrf.mxu0
        %5784 = vmatprep.mubr.f32.mxu0 0.0
        %5785 = vmatmul.mubr.f32.gmra.mxu0 %v5237
        %v5786 = vpop.f32.mrf.mxu0
        %v5787 = vadd.f32 0.0, %v5786
        %v5788 = vpop.f32.mrf.mxu0
        %5789 = vmatprep.mubr.f32.mxu0 0.0
        %5790 = vmatmul.mubr.f32.gmra.mxu0 %v5240
        %v5791 = vpop.f32.mrf.mxu0
        %v5792 = vadd.f32 0.0, %v5791
        %v5793 = vpop.f32.mrf.mxu0
        %5794 = vmatprep.mubr.f32.mxu0 0.0
        %5795 = vmatmul.mubr.f32.gmra.mxu0 %v5243
        %v5796 = vpop.f32.mrf.mxu0
        %v5797 = vadd.f32 0.0, %v5796
        %v5798 = vpop.f32.mrf.mxu0
        %5799 = vmatprep.mubr.f32.mxu0 0.0
        %5800 = vmatmul.mubr.f32.gmra.mxu0 %v5246
        %v5801 = vpop.f32.mrf.mxu0
        %v5802 = vadd.f32 0.0, %v5801
        %v5803 = vpop.f32.mrf.mxu0
        %5804 = vmatprep.mubr.f32.mxu0 0.0
        %5805 = vmatmul.mubr.f32.gmra.mxu0 %v5249
        %v5806 = vpop.f32.mrf.mxu0
        %v5807 = vadd.f32 0.0, %v5806
        %v5808 = vpop.f32.mrf.mxu0
        %5809 = vmatprep.mubr.f32.mxu0 0.0
        %5810 = vmatmul.mubr.f32.gmra.mxu0 %v5252
        %v5811 = vpop.f32.mrf.mxu0
        %v5812 = vadd.f32 0.0, %v5811
        %v5813 = vpop.f32.mrf.mxu0
        %5814 = vmatprep.mubr.f32.mxu0 0.0
        %5815 = vmatmul.mubr.f32.gmra.mxu0 %v5255
        %v5816 = vpop.f32.mrf.mxu0
        %v5817 = vadd.f32 0.0, %v5816
        %v5818 = vpop.f32.mrf.mxu0
        %5819 = vmatprep.mubr.f32.mxu0 0.0
        %5820 = vmatmul.mubr.f32.gmra.mxu0 %v5258
        %v5821 = vpop.f32.mrf.mxu0
        %v5822 = vadd.f32 0.0, %v5821
        %v5823 = vpop.f32.mrf.mxu0
        %5824 = vmatprep.mubr.f32.mxu0 0.0
        %5825 = vmatmul.mubr.f32.gmra.mxu0 %v5261
        %v5826 = vpop.f32.mrf.mxu0
        %v5827 = vadd.f32 0.0, %v5826
        %v5828 = vpop.f32.mrf.mxu0
        %5829 = vmatprep.mubr.f32.mxu0 0.0
        %5830 = vmatmul.mubr.f32.gmra.mxu0 %v5264
        %v5831 = vpop.f32.mrf.mxu0
        %v5832 = vadd.f32 0.0, %v5831
        %v5833 = vpop.f32.mrf.mxu0
        %5834 = vmatprep.mubr.f32.mxu0 0.0
        %5835 = vmatmul.mubr.f32.gmra.mxu0 %v5267
        %v5836 = vpop.f32.mrf.mxu0
        %v5837 = vadd.f32 0.0, %v5836
        %v5838 = vpop.f32.mrf.mxu0
        %5839 = vmatprep.mubr.f32.mxu0 0.0
        %5840 = vmatmul.mubr.f32.gmra.mxu0 %v5270
        %v5841 = vpop.f32.mrf.mxu0
        %v5842 = vadd.f32 0.0, %v5841
        %v5843 = vpop.f32.mrf.mxu0
        %5844 = vmatprep.mubr.f32.mxu0 0.0
        %5845 = vmatmul.mubr.f32.gmra.mxu0 %v5273
        %v5846 = vpop.f32.mrf.mxu0
        %v5847 = vadd.f32 0.0, %v5846
        %v5848 = vpop.f32.mrf.mxu0
        %5849 = vmatprep.mubr.f32.mxu0 0.0
        %5850 = vmatmul.mubr.f32.gmra.mxu0 %v5276
        %v5851 = vpop.f32.mrf.mxu0
        %v5852 = vadd.f32 0.0, %v5851
        %v5853 = vpop.f32.mrf.mxu0
        %5854 = vmatprep.mubr.f32.mxu0 0.0
        %5855 = vmatmul.mubr.f32.gmra.mxu0 %v5279
        %v5856 = vpop.f32.mrf.mxu0
        %v5857 = vadd.f32 0.0, %v5856
        %v5858 = vpop.f32.mrf.mxu0
        %5859 = vmatprep.mubr.f32.mxu0 0.0
        %5860 = vmatmul.mubr.f32.gmra.mxu0 %v5282
        %v5861 = vpop.f32.mrf.mxu0
        %v5862 = vadd.f32 0.0, %v5861
        %v5863 = vpop.f32.mrf.mxu0
        %5864 = vmatprep.mubr.f32.mxu0 0.0
        %5865 = vmatmul.mubr.f32.gmra.mxu0 %v5285
        %v5866 = vpop.f32.mrf.mxu0
        %v5867 = vadd.f32 0.0, %v5866
        %v5868 = vpop.f32.mrf.mxu0
        %5869 = vmatprep.mubr.f32.mxu0 0.0
        %5870 = vmatmul.mubr.f32.gmra.mxu0 %v5288
        %v5871 = vpop.f32.mrf.mxu0
        %v5872 = vadd.f32 0.0, %v5871
        %v5873 = vpop.f32.mrf.mxu0
        %5874 = vmatprep.mubr.f32.mxu0 0.0
        %5875 = vmatmul.mubr.f32.gmra.mxu0 %v5291
        %v5876 = vpop.f32.mrf.mxu0
        %v5877 = vadd.f32 0.0, %v5876
        %v5878 = vpop.f32.mrf.mxu0
        %5879 = vmatprep.mubr.f32.mxu0 0.0
        %5880 = vmatmul.mubr.f32.gmra.mxu0 %v5294
        %v5881 = vpop.f32.mrf.mxu0
        %v5882 = vadd.f32 0.0, %v5881
        %v5883 = vpop.f32.mrf.mxu0
        %5884 = vmatprep.mubr.f32.mxu0 0.0
        %5885 = vmatmul.mubr.f32.gmra.mxu0 %v5297
        %v5886 = vpop.f32.mrf.mxu0
        %v5887 = vadd.f32 0.0, %v5886
        %v5888 = vpop.f32.mrf.mxu0
        %5889 = vmatprep.mubr.f32.mxu0 0.0
        %5890 = vmatmul.mubr.f32.gmra.mxu0 %v5300
        %v5891 = vpop.f32.mrf.mxu0
        %v5892 = vadd.f32 0.0, %v5891
        %v5893 = vpop.f32.mrf.mxu0
        %5894 = vmatprep.mubr.f32.mxu0 0.0
        %5895 = vmatmul.mubr.f32.gmra.mxu0 %v5303
        %v5896 = vpop.f32.mrf.mxu0
        %v5897 = vadd.f32 0.0, %v5896
        %v5898 = vpop.f32.mrf.mxu0
        %5899 = vmatprep.mubr.f32.mxu0 0.0
        %5900 = vmatmul.mubr.f32.gmra.mxu0 %v5306
        %v5901 = vpop.f32.mrf.mxu0
        %v5902 = vadd.f32 0.0, %v5901
        %v5903 = vpop.f32.mrf.mxu0
        %5904 = vmatprep.mubr.f32.mxu0 0.0
        %5905 = vmatmul.mubr.f32.gmra.mxu0 %v5309
        %v5906 = vpop.f32.mrf.mxu0
        %v5907 = vadd.f32 0.0, %v5906
        %v5908 = vpop.f32.mrf.mxu0
        %5909 = vmatprep.mubr.f32.mxu0 0.0
        %5910 = vmatmul.mubr.f32.gmra.mxu0 %v5312
        %v5911 = vpop.f32.mrf.mxu0
        %v5912 = vadd.f32 0.0, %v5911
        %v5913 = vpop.f32.mrf.mxu0
        %5914 = vmatprep.mubr.f32.mxu0 0.0
        %5915 = vmatmul.mubr.f32.gmra.mxu0 %v5315
        %v5916 = vpop.f32.mrf.mxu0
        %v5917 = vadd.f32 0.0, %v5916
        %v5918 = vpop.f32.mrf.mxu0
        %5919 = vmatprep.mubr.f32.mxu0 0.0
        %5920 = vmatmul.mubr.f32.gmra.mxu0 %v5318
        %v5921 = vpop.f32.mrf.mxu0
        %v5922 = vadd.f32 0.0, %v5921
        %v5923 = vpop.f32.mrf.mxu0
        %5924 = vmatprep.mubr.f32.mxu0 0.0
        %5925 = vmatmul.mubr.f32.gmra.mxu0 %v5321
        %v5926 = vpop.f32.mrf.mxu0
        %v5927 = vadd.f32 0.0, %v5926
        %v5928 = vpop.f32.mrf.mxu0
        %5929 = vmatprep.mubr.f32.mxu0 0.0
        %5930 = vmatmul.mubr.f32.gmra.mxu0 %v5324
        %v5931 = vpop.f32.mrf.mxu0
        %v5932 = vadd.f32 0.0, %v5931
        %v5933 = vpop.f32.mrf.mxu0
        %5934 = vmatprep.mubr.f32.mxu0 0.0
        %5935 = vmatmul.mubr.f32.gmra.mxu0 %v5327
        %v5936 = vpop.f32.mrf.mxu0
        %v5937 = vadd.f32 0.0, %v5936
        %v5938 = vpop.f32.mrf.mxu0
        %5939 = vmatprep.mubr.f32.mxu0 0.0
        %5940 = vmatmul.mubr.f32.gmra.mxu0 %v5330
        %v5941 = vpop.f32.mrf.mxu0
        %v5942 = vadd.f32 0.0, %v5941
        %v5943 = vpop.f32.mrf.mxu0
        %5944 = vmatprep.mubr.f32.mxu0 0.0
        %5945 = vmatmul.mubr.f32.gmra.mxu0 %v5333
        %v5946 = vpop.f32.mrf.mxu0
        %v5947 = vadd.f32 0.0, %v5946
        %v5948 = vpop.f32.mrf.mxu0
        %5949 = vmatprep.mubr.f32.mxu0 0.0
        %5950 = vmatmul.mubr.f32.gmra.mxu0 %v5336
        %v5951 = vpop.f32.mrf.mxu0
        %v5952 = vadd.f32 0.0, %v5951
        %v5953 = vpop.f32.mrf.mxu0
        %5954 = vmatprep.mubr.f32.mxu0 0.0
        %5955 = vmatmul.mubr.f32.gmra.mxu0 %v5339
        %v5956 = vpop.f32.mrf.mxu0
        %v5957 = vadd.f32 0.0, %v5956
        %v5958 = vpop.f32.mrf.mxu0
        %5959 = vmatprep.mubr.f32.mxu0 0.0
        %5960 = vmatmul.mubr.f32.gmra.mxu0 %v5342
        %v5961 = vpop.f32.mrf.mxu0
        %v5962 = vadd.f32 0.0, %v5961
        %v5963 = vpop.f32.mrf.mxu0
        %5964 = vmatprep.mubr.f32.mxu0 0.0
        %5965 = vmatmul.mubr.f32.gmra.mxu0 %v5345
        %v5966 = vpop.f32.mrf.mxu0
        %v5967 = vadd.f32 0.0, %v5966
        %v5968 = vpop.f32.mrf.mxu0
        %5969 = vmatprep.mubr.f32.mxu0 0.0
        %5970 = vmatmul.mubr.f32.gmra.mxu0 %v5348
        %v5971 = vpop.f32.mrf.mxu0
        %v5972 = vadd.f32 0.0, %v5971
        %v5973 = vpop.f32.mrf.mxu0
        %5974 = vmatprep.mubr.f32.mxu0 0.0
        %5975 = vmatmul.mubr.f32.gmra.mxu0 %v5351
        %v5976 = vpop.f32.mrf.mxu0
        %v5977 = vadd.f32 0.0, %v5976
        %v5978 = vpop.f32.mrf.mxu0
        %5979 = vmatprep.mubr.f32.mxu0 0.0
        %5980 = vmatmul.mubr.f32.gmra.mxu0 %v5354
        %v5981 = vpop.f32.mrf.mxu0
        %v5982 = vadd.f32 0.0, %v5981
        %v5983 = vpop.f32.mrf.mxu0
        %5984 = vmatprep.mubr.f32.mxu0 0.0
        %5985 = vmatmul.mubr.f32.gmra.mxu0 %v5357
        %v5986 = vpop.f32.mrf.mxu0
        %v5987 = vadd.f32 0.0, %v5986
        %v5988 = vpop.f32.mrf.mxu0
        %5989 = vmatprep.mubr.f32.mxu0 0.0
        %5990 = vmatmul.mubr.f32.gmra.mxu0 %v5360
        %v5991 = vpop.f32.mrf.mxu0
        %v5992 = vadd.f32 0.0, %v5991
        %v5993 = vpop.f32.mrf.mxu0
        %5994 = vmatprep.mubr.f32.mxu0 0.0
        %5995 = vmatmul.mubr.f32.gmra.mxu0 %v5363
        %v5996 = vpop.f32.mrf.mxu0
        %v5997 = vadd.f32 0.0, %v5996
        %v5998 = vpop.f32.mrf.mxu0
        %5999 = vmatprep.mubr.f32.mxu0 0.0
        %6000 = vmatmul.mubr.f32.gmra.mxu0 %v5366
        %v6001 = vpop.f32.mrf.mxu0
        %v6002 = vadd.f32 0.0, %v6001
        %v6003 = vpop.f32.mrf.mxu0
        %6004 = vmatprep.mubr.f32.mxu0 0.0
        %6005 = vmatmul.mubr.f32.gmra.mxu0 %v5369
        %v6006 = vpop.f32.mrf.mxu0
        %v6007 = vadd.f32 0.0, %v6006
        %v6008 = vpop.f32.mrf.mxu0
        %6009 = vmatprep.mubr.f32.mxu0 0.0
        %6010 = vmatmul.mubr.f32.gmra.mxu0 %v5372
        %v6011 = vpop.f32.mrf.mxu0
        %v6012 = vadd.f32 0.0, %v6011
        %v6013 = vpop.f32.mrf.mxu0
        %6014 = vmatprep.mubr.f32.mxu0 0.0
        %6015 = vmatmul.mubr.f32.gmra.mxu0 %v5375
        %v6016 = vpop.f32.mrf.mxu0
        %v6017 = vadd.f32 0.0, %v6016
        %v6018 = vpop.f32.mrf.mxu0
        %6019 = vmatprep.mubr.f32.mxu0 0.0
        %6020 = vmatmul.mubr.f32.gmra.mxu0 %v5378
        %v6021 = vpop.f32.mrf.mxu0
        %v6022 = vadd.f32 0.0, %v6021
        %v6023 = vpop.f32.mrf.mxu0
        %6024 = vmatprep.mubr.f32.mxu0 0.0
        %6025 = vmatmul.mubr.f32.gmra.mxu0 %v5381
        %v6026 = vpop.f32.mrf.mxu0
        %v6027 = vadd.f32 0.0, %v6026
        %v6028 = vpop.f32.mrf.mxu0
        %6029 = vmatprep.mubr.f32.mxu0 0.0
        %6030 = vmatmul.mubr.f32.gmra.mxu0 %v5384
        %v6031 = vpop.f32.mrf.mxu0
        %v6032 = vadd.f32 0.0, %v6031
        %v6033 = vpop.f32.mrf.mxu0
        %6034 = vmatprep.mubr.f32.mxu0 0.0
        %6035 = vmatmul.mubr.f32.gmra.mxu0 %v5387
        %v6036 = vpop.f32.mrf.mxu0
        %v6037 = vadd.f32 0.0, %v6036
        %v6038 = vpop.f32.mrf.mxu0
        %6039 = vmatprep.mubr.f32.mxu0 0.0
        %6040 = vmatmul.mubr.f32.gmra.mxu0 %v5390
        %v6041 = vpop.f32.mrf.mxu0
        %v6042 = vadd.f32 0.0, %v6041
        %v6043 = vpop.f32.mrf.mxu0
        %6044 = vmatprep.mubr.f32.mxu0 0.0
        %6045 = vmatmul.mubr.f32.gmra.mxu0 %v5393
        %v6046 = vpop.f32.mrf.mxu0
        %v6047 = vadd.f32 0.0, %v6046
        %v6048 = vpop.f32.mrf.mxu0
        %6049 = vmatprep.mubr.f32.mxu0 0.0
        %6050 = vmatmul.mubr.f32.gmra.mxu0 %v5396
        %v6051 = vpop.f32.mrf.mxu0
        %v6052 = vadd.f32 0.0, %v6051
        %v6053 = vpop.f32.mrf.mxu0
        %6054 = vmatprep.mubr.f32.mxu0 0.0
        %6055 = vmatmul.mubr.f32.gmra.mxu0 %v5399
        %v6056 = vpop.f32.mrf.mxu0
        %v6057 = vadd.f32 0.0, %v6056
        %v6058 = vpop.f32.mrf.mxu0
        %6059 = vmatprep.mubr.f32.mxu0 0.0
        %6060 = vmatmul.mubr.f32.gmra.mxu0 %v5402
        %v6061 = vpop.f32.mrf.mxu0
        %v6062 = vadd.f32 0.0, %v6061
        %v6063 = vpop.f32.mrf.mxu0
        %6064 = vmatprep.mubr.f32.mxu0 0.0
        %6065 = vmatmul.mubr.f32.gmra.mxu0 %v5405
        %v6066 = vpop.f32.mrf.mxu0
        %v6067 = vadd.f32 0.0, %v6066
        %v6068 = vpop.f32.mrf.mxu0
        %6069 = vmatprep.mubr.f32.mxu0 0.0
        %6070 = vmatmul.mubr.f32.gmra.mxu0 %v5408
        %v6071 = vpop.f32.mrf.mxu0
        %v6072 = vadd.f32 0.0, %v6071
        %v6073 = vpop.f32.mrf.mxu0
        %6074 = vmatprep.mubr.f32.mxu0 0.0
        %6075 = vmatmul.mubr.f32.gmra.mxu0 %v5411
        %v6076 = vpop.f32.mrf.mxu0
        %v6077 = vadd.f32 0.0, %v6076
        %v6078 = vpop.f32.mrf.mxu0
        %6079 = vmatprep.mubr.f32.mxu0 0.0
        %6080 = vmatmul.mubr.f32.gmra.mxu0 %v5414
        %v6081 = vpop.f32.mrf.mxu0
        %v6082 = vadd.f32 0.0, %v6081
        %v6083 = vpop.f32.mrf.mxu0
        %6084 = vmatprep.mubr.f32.mxu0 0.0
        %6085 = vmatmul.mubr.f32.gmra.mxu0 %v5417
        %v6086 = vpop.f32.mrf.mxu0
        %v6087 = vadd.f32 0.0, %v6086
        %v6088 = vpop.f32.mrf.mxu0
        %6089 = vmatprep.mubr.f32.mxu0 0.0
        %6090 = vmatmul.mubr.f32.gmra.mxu0 %v5420
        %v6091 = vpop.f32.mrf.mxu0
        %v6092 = vadd.f32 0.0, %v6091
        %v6093 = vpop.f32.mrf.mxu0
        %6094 = vmatprep.mubr.f32.mxu0 0.0
        %6095 = vmatmul.mubr.f32.gmra.mxu0 %v5423
        %v6096 = vpop.f32.mrf.mxu0
        %v6097 = vadd.f32 0.0, %v6096
        %v6098 = vpop.f32.mrf.mxu0
        %6099 = vmatprep.mubr.f32.mxu0 0.0
        %6100 = vmatmul.mubr.f32.gmra.mxu0 %v5426
        %v6101 = vpop.f32.mrf.mxu0
        %v6102 = vadd.f32 0.0, %v6101
        %v6103 = vpop.f32.mrf.mxu0
        %6104 = vmatprep.mubr.f32.mxu0 0.0
        %6105 = vmatmul.mubr.f32.gmra.mxu0 %v5429
        %v6106 = vpop.f32.mrf.mxu0
        %v6107 = vadd.f32 0.0, %v6106
        %v6108 = vpop.f32.mrf.mxu0
        %6109 = vmatprep.mubr.f32.mxu0 0.0
        %6110 = vmatmul.mubr.f32.gmra.mxu0 %v5432
        %v6111 = vpop.f32.mrf.mxu0
        %v6112 = vadd.f32 0.0, %v6111
        %v6113 = vpop.f32.mrf.mxu0
        %6114 = vmatprep.mubr.f32.mxu0 0.0
        %6115 = vmatmul.mubr.f32.gmra.mxu0 %v5435
        %v6116 = vpop.f32.mrf.mxu0
        %v6117 = vadd.f32 0.0, %v6116
        %v6118 = vpop.f32.mrf.mxu0
        %6119 = vmatprep.mubr.f32.mxu0 0.0
        %6120 = vmatmul.mubr.f32.gmra.mxu0 %v5438
        %v6121 = vpop.f32.mrf.mxu0
        %v6122 = vadd.f32 0.0, %v6121
        %v6123 = vpop.f32.mrf.mxu0
        %6124 = vmatprep.mubr.f32.mxu0 0.0
        %6125 = vmatmul.mubr.f32.gmra.mxu0 %v5441
        %v6126 = vpop.f32.mrf.mxu0
        %v6127 = vadd.f32 0.0, %v6126
        %v6128 = vpop.f32.mrf.mxu0
        %6129 = vmatprep.mubr.f32.mxu0 0.0
        %6130 = vmatmul.mubr.f32.gmra.mxu0 %v5444
        %v6131 = vpop.f32.mrf.mxu0
        %v6132 = vadd.f32 0.0, %v6131
        %v6133 = vpop.f32.mrf.mxu0
        %6134 = vmatprep.mubr.f32.mxu0 0.0
        %6135 = vmatmul.mubr.f32.gmra.mxu0 %v5447
        %v6136 = vpop.f32.mrf.mxu0
        %v6137 = vadd.f32 0.0, %v6136
        %v6138 = vpop.f32.mrf.mxu0
        %6139 = vmatprep.mubr.f32.mxu0 0.0
        %6140 = vmatmul.mubr.f32.gmra.mxu0 %v5450
        %v6141 = vpop.f32.mrf.mxu0
        %v6142 = vadd.f32 0.0, %v6141
        %v6143 = vpop.f32.mrf.mxu0
        %6144 = vmatprep.mubr.f32.mxu0 0.0
        %6145 = vmatmul.mubr.f32.gmra.mxu0 %v5453
        %v6146 = vpop.f32.mrf.mxu0
        %v6147 = vadd.f32 0.0, %v6146
        %v6148 = vpop.f32.mrf.mxu0
        %6149 = vmatprep.mubr.f32.mxu0 0.0
        %6150 = vmatmul.mubr.f32.gmra.mxu0 %v5456
        %v6151 = vpop.f32.mrf.mxu0
        %v6152 = vadd.f32 0.0, %v6151
        %v6153 = vpop.f32.mrf.mxu0
        %6154 = vmatprep.mubr.f32.mxu0 0.0
        %6155 = vmatmul.mubr.f32.gmra.mxu0 %v5459
        %v6156 = vpop.f32.mrf.mxu0
        %v6157 = vadd.f32 0.0, %v6156
        %v6158 = vpop.f32.mrf.mxu0
        %6159 = vmatprep.mubr.f32.mxu0 0.0
        %6160 = vmatmul.mubr.f32.gmra.mxu0 %v5462
        %v6161 = vpop.f32.mrf.mxu0
        %v6162 = vadd.f32 0.0, %v6161
        %v6163 = vpop.f32.mrf.mxu0
        %6164 = vmatprep.mubr.f32.mxu0 0.0
        %6165 = vmatmul.mubr.f32.gmra.mxu0 %v5465
        %v6166 = vpop.f32.mrf.mxu0
        %v6167 = vadd.f32 0.0, %v6166
        %v6168 = vpop.f32.mrf.mxu0
        %6169 = vmatprep.mubr.f32.mxu0 0.0
        %6170 = vmatmul.mubr.f32.gmra.mxu0 %v5468
        %v6171 = vpop.f32.mrf.mxu0
        %v6172 = vadd.f32 0.0, %v6171
        %v6173 = vpop.f32.mrf.mxu0
        %6174 = vdwg.mxu0
        %vm6175 = vcmp.ge.s32.totalorder %v2837, 64
        %vm6176 = vcmp.lt.s32.totalorder %v2837, 128
        %vm6177 = vmand %vm6175, %vm6176
        %v6178 = vsel %vm6177, 1, 0
        %v6179 = vcvt.s32.f32 %v6178
        %6181 = vset.pattern.permute.xlu0 0
        %6182 = vperm.xlu0 %6181, %v5537
        %v6183 = vpop.permute.xlu0 %6182
        %6186 = vset.pattern.permute.xlu0 0
        %6187 = vperm.xlu0 %6186, %v5542
        %v6188 = vpop.permute.xlu0 %6187
        %6191 = vset.pattern.permute.xlu0 0
        %6192 = vperm.xlu0 %6191, %v5547
        %v6193 = vpop.permute.xlu0 %6192
        %6196 = vset.pattern.permute.xlu0 0
        %6197 = vperm.xlu0 %6196, %v5552
        %v6198 = vpop.permute.xlu0 %6197
        %6201 = vset.pattern.permute.xlu0 0
        %6202 = vperm.xlu0 %6201, %v5557
        %v6203 = vpop.permute.xlu0 %6202
        %6206 = vset.pattern.permute.xlu0 0
        %6207 = vperm.xlu0 %6206, %v5562
        %v6208 = vpop.permute.xlu0 %6207
        %6211 = vset.pattern.permute.xlu0 0
        %6212 = vperm.xlu0 %6211, %v5567
        %v6213 = vpop.permute.xlu0 %6212
        %6216 = vset.pattern.permute.xlu0 0
        %6217 = vperm.xlu0 %6216, %v5572
        %v6218 = vpop.permute.xlu0 %6217
        %6221 = vset.pattern.permute.xlu0 0
        %6222 = vperm.xlu0 %6221, %v5577
        %v6223 = vpop.permute.xlu0 %6222
        %6226 = vset.pattern.permute.xlu0 0
        %6227 = vperm.xlu0 %6226, %v5582
        %v6228 = vpop.permute.xlu0 %6227
        %6231 = vset.pattern.permute.xlu0 0
        %6232 = vperm.xlu0 %6231, %v5587
        %v6233 = vpop.permute.xlu0 %6232
        %6236 = vset.pattern.permute.xlu0 0
        %6237 = vperm.xlu0 %6236, %v5592
        %v6238 = vpop.permute.xlu0 %6237
        %6241 = vset.pattern.permute.xlu0 0
        %6242 = vperm.xlu0 %6241, %v5597
        %v6243 = vpop.permute.xlu0 %6242
        %6246 = vset.pattern.permute.xlu0 0
        %6247 = vperm.xlu0 %6246, %v5602
        %v6248 = vpop.permute.xlu0 %6247
        %6251 = vset.pattern.permute.xlu0 0
        %6252 = vperm.xlu0 %6251, %v5607
        %v6253 = vpop.permute.xlu0 %6252
        %6256 = vset.pattern.permute.xlu0 0
        %6257 = vperm.xlu0 %6256, %v5612
        %v6258 = vpop.permute.xlu0 %6257
        %6261 = vset.pattern.permute.xlu0 0
        %6262 = vperm.xlu0 %6261, %v5617
        %v6263 = vpop.permute.xlu0 %6262
        %6266 = vset.pattern.permute.xlu0 0
        %6267 = vperm.xlu0 %6266, %v5622
        %v6268 = vpop.permute.xlu0 %6267
        %6271 = vset.pattern.permute.xlu0 0
        %6272 = vperm.xlu0 %6271, %v5627
        %v6273 = vpop.permute.xlu0 %6272
        %6276 = vset.pattern.permute.xlu0 0
        %6277 = vperm.xlu0 %6276, %v5632
        %v6278 = vpop.permute.xlu0 %6277
        %6281 = vset.pattern.permute.xlu0 0
        %6282 = vperm.xlu0 %6281, %v5637
        %v6283 = vpop.permute.xlu0 %6282
        %6286 = vset.pattern.permute.xlu0 0
        %6287 = vperm.xlu0 %6286, %v5642
        %v6288 = vpop.permute.xlu0 %6287
        %6291 = vset.pattern.permute.xlu0 0
        %6292 = vperm.xlu0 %6291, %v5647
        %v6293 = vpop.permute.xlu0 %6292
        %6296 = vset.pattern.permute.xlu0 0
        %6297 = vperm.xlu0 %6296, %v5652
        %v6298 = vpop.permute.xlu0 %6297
        %6301 = vset.pattern.permute.xlu0 0
        %6302 = vperm.xlu0 %6301, %v5657
        %v6303 = vpop.permute.xlu0 %6302
        %6306 = vset.pattern.permute.xlu0 0
        %6307 = vperm.xlu0 %6306, %v5662
        %v6308 = vpop.permute.xlu0 %6307
        %6311 = vset.pattern.permute.xlu0 0
        %6312 = vperm.xlu0 %6311, %v5667
        %v6313 = vpop.permute.xlu0 %6312
        %6316 = vset.pattern.permute.xlu0 0
        %6317 = vperm.xlu0 %6316, %v5672
        %v6318 = vpop.permute.xlu0 %6317
        %6321 = vset.pattern.permute.xlu0 0
        %6322 = vperm.xlu0 %6321, %v5677
        %v6323 = vpop.permute.xlu0 %6322
        %6326 = vset.pattern.permute.xlu0 0
        %6327 = vperm.xlu0 %6326, %v5682
        %v6328 = vpop.permute.xlu0 %6327
        %6331 = vset.pattern.permute.xlu0 0
        %6332 = vperm.xlu0 %6331, %v5687
        %v6333 = vpop.permute.xlu0 %6332
        %6336 = vset.pattern.permute.xlu0 0
        %6337 = vperm.xlu0 %6336, %v5692
        %v6338 = vpop.permute.xlu0 %6337
        %6341 = vset.pattern.permute.xlu0 0
        %6342 = vperm.xlu0 %6341, %v5697
        %v6343 = vpop.permute.xlu0 %6342
        %6346 = vset.pattern.permute.xlu0 0
        %6347 = vperm.xlu0 %6346, %v5702
        %v6348 = vpop.permute.xlu0 %6347
        %6351 = vset.pattern.permute.xlu0 0
        %6352 = vperm.xlu0 %6351, %v5707
        %v6353 = vpop.permute.xlu0 %6352
        %6356 = vset.pattern.permute.xlu0 0
        %6357 = vperm.xlu0 %6356, %v5712
        %v6358 = vpop.permute.xlu0 %6357
        %6361 = vset.pattern.permute.xlu0 0
        %6362 = vperm.xlu0 %6361, %v5717
        %v6363 = vpop.permute.xlu0 %6362
        %6366 = vset.pattern.permute.xlu0 0
        %6367 = vperm.xlu0 %6366, %v5722
        %v6368 = vpop.permute.xlu0 %6367
        %6371 = vset.pattern.permute.xlu0 0
        %6372 = vperm.xlu0 %6371, %v5727
        %v6373 = vpop.permute.xlu0 %6372
        %6376 = vset.pattern.permute.xlu0 0
        %6377 = vperm.xlu0 %6376, %v5732
        %v6378 = vpop.permute.xlu0 %6377
        %6381 = vset.pattern.permute.xlu0 0
        %6382 = vperm.xlu0 %6381, %v5737
        %v6383 = vpop.permute.xlu0 %6382
        %6386 = vset.pattern.permute.xlu0 0
        %6387 = vperm.xlu0 %6386, %v5742
        %v6388 = vpop.permute.xlu0 %6387
        %6391 = vset.pattern.permute.xlu0 0
        %6392 = vperm.xlu0 %6391, %v5747
        %v6393 = vpop.permute.xlu0 %6392
        %6396 = vset.pattern.permute.xlu0 0
        %6397 = vperm.xlu0 %6396, %v5752
        %v6398 = vpop.permute.xlu0 %6397
        %6401 = vset.pattern.permute.xlu0 0
        %6402 = vperm.xlu0 %6401, %v5757
        %v6403 = vpop.permute.xlu0 %6402
        %6406 = vset.pattern.permute.xlu0 0
        %6407 = vperm.xlu0 %6406, %v5762
        %v6408 = vpop.permute.xlu0 %6407
        %6411 = vset.pattern.permute.xlu0 0
        %6412 = vperm.xlu0 %6411, %v5767
        %v6413 = vpop.permute.xlu0 %6412
        %6416 = vset.pattern.permute.xlu0 0
        %6417 = vperm.xlu0 %6416, %v5772
        %v6418 = vpop.permute.xlu0 %6417
        %6421 = vset.pattern.permute.xlu0 0
        %6422 = vperm.xlu0 %6421, %v5777
        %v6423 = vpop.permute.xlu0 %6422
        %6426 = vset.pattern.permute.xlu0 0
        %6427 = vperm.xlu0 %6426, %v5782
        %v6428 = vpop.permute.xlu0 %6427
        %6431 = vset.pattern.permute.xlu0 0
        %6432 = vperm.xlu0 %6431, %v5787
        %v6433 = vpop.permute.xlu0 %6432
        %6436 = vset.pattern.permute.xlu0 0
        %6437 = vperm.xlu0 %6436, %v5792
        %v6438 = vpop.permute.xlu0 %6437
        %6441 = vset.pattern.permute.xlu0 0
        %6442 = vperm.xlu0 %6441, %v5797
        %v6443 = vpop.permute.xlu0 %6442
        %6446 = vset.pattern.permute.xlu0 0
        %6447 = vperm.xlu0 %6446, %v5802
        %v6448 = vpop.permute.xlu0 %6447
        %6451 = vset.pattern.permute.xlu0 0
        %6452 = vperm.xlu0 %6451, %v5807
        %v6453 = vpop.permute.xlu0 %6452
        %6456 = vset.pattern.permute.xlu0 0
        %6457 = vperm.xlu0 %6456, %v5812
        %v6458 = vpop.permute.xlu0 %6457
        %6461 = vset.pattern.permute.xlu0 0
        %6462 = vperm.xlu0 %6461, %v5817
        %v6463 = vpop.permute.xlu0 %6462
        %6466 = vset.pattern.permute.xlu0 0
        %6467 = vperm.xlu0 %6466, %v5822
        %v6468 = vpop.permute.xlu0 %6467
        %6471 = vset.pattern.permute.xlu0 0
        %6472 = vperm.xlu0 %6471, %v5827
        %v6473 = vpop.permute.xlu0 %6472
        %6476 = vset.pattern.permute.xlu0 0
        %6477 = vperm.xlu0 %6476, %v5832
        %v6478 = vpop.permute.xlu0 %6477
        %6481 = vset.pattern.permute.xlu0 0
        %6482 = vperm.xlu0 %6481, %v5837
        %v6483 = vpop.permute.xlu0 %6482
        %6486 = vset.pattern.permute.xlu0 0
        %6487 = vperm.xlu0 %6486, %v5842
        %v6488 = vpop.permute.xlu0 %6487
        %6491 = vset.pattern.permute.xlu0 0
        %6492 = vperm.xlu0 %6491, %v5847
        %v6493 = vpop.permute.xlu0 %6492
        %6496 = vset.pattern.permute.xlu0 0
        %6497 = vperm.xlu0 %6496, %v5852
        %v6498 = vpop.permute.xlu0 %6497
        %6501 = vset.pattern.permute.xlu0 0
        %6502 = vperm.xlu0 %6501, %v5857
        %v6503 = vpop.permute.xlu0 %6502
        %6506 = vset.pattern.permute.xlu0 0
        %6507 = vperm.xlu0 %6506, %v5862
        %v6508 = vpop.permute.xlu0 %6507
        %6511 = vset.pattern.permute.xlu0 0
        %6512 = vperm.xlu0 %6511, %v5867
        %v6513 = vpop.permute.xlu0 %6512
        %6516 = vset.pattern.permute.xlu0 0
        %6517 = vperm.xlu0 %6516, %v5872
        %v6518 = vpop.permute.xlu0 %6517
        %6521 = vset.pattern.permute.xlu0 0
        %6522 = vperm.xlu0 %6521, %v5877
        %v6523 = vpop.permute.xlu0 %6522
        %6526 = vset.pattern.permute.xlu0 0
        %6527 = vperm.xlu0 %6526, %v5882
        %v6528 = vpop.permute.xlu0 %6527
        %6531 = vset.pattern.permute.xlu0 0
        %6532 = vperm.xlu0 %6531, %v5887
        %v6533 = vpop.permute.xlu0 %6532
        %6536 = vset.pattern.permute.xlu0 0
        %6537 = vperm.xlu0 %6536, %v5892
        %v6538 = vpop.permute.xlu0 %6537
        %6541 = vset.pattern.permute.xlu0 0
        %6542 = vperm.xlu0 %6541, %v5897
        %v6543 = vpop.permute.xlu0 %6542
        %6546 = vset.pattern.permute.xlu0 0
        %6547 = vperm.xlu0 %6546, %v5902
        %v6548 = vpop.permute.xlu0 %6547
        %6551 = vset.pattern.permute.xlu0 0
        %6552 = vperm.xlu0 %6551, %v5907
        %v6553 = vpop.permute.xlu0 %6552
        %6556 = vset.pattern.permute.xlu0 0
        %6557 = vperm.xlu0 %6556, %v5912
        %v6558 = vpop.permute.xlu0 %6557
        %6561 = vset.pattern.permute.xlu0 0
        %6562 = vperm.xlu0 %6561, %v5917
        %v6563 = vpop.permute.xlu0 %6562
        %6566 = vset.pattern.permute.xlu0 0
        %6567 = vperm.xlu0 %6566, %v5922
        %v6568 = vpop.permute.xlu0 %6567
        %6571 = vset.pattern.permute.xlu0 0
        %6572 = vperm.xlu0 %6571, %v5927
        %v6573 = vpop.permute.xlu0 %6572
        %6576 = vset.pattern.permute.xlu0 0
        %6577 = vperm.xlu0 %6576, %v5932
        %v6578 = vpop.permute.xlu0 %6577
        %6581 = vset.pattern.permute.xlu0 0
        %6582 = vperm.xlu0 %6581, %v5937
        %v6583 = vpop.permute.xlu0 %6582
        %6586 = vset.pattern.permute.xlu0 0
        %6587 = vperm.xlu0 %6586, %v5942
        %v6588 = vpop.permute.xlu0 %6587
        %6591 = vset.pattern.permute.xlu0 0
        %6592 = vperm.xlu0 %6591, %v5947
        %v6593 = vpop.permute.xlu0 %6592
        %6596 = vset.pattern.permute.xlu0 0
        %6597 = vperm.xlu0 %6596, %v5952
        %v6598 = vpop.permute.xlu0 %6597
        %6601 = vset.pattern.permute.xlu0 0
        %6602 = vperm.xlu0 %6601, %v5957
        %v6603 = vpop.permute.xlu0 %6602
        %6606 = vset.pattern.permute.xlu0 0
        %6607 = vperm.xlu0 %6606, %v5962
        %v6608 = vpop.permute.xlu0 %6607
        %6611 = vset.pattern.permute.xlu0 0
        %6612 = vperm.xlu0 %6611, %v5967
        %v6613 = vpop.permute.xlu0 %6612
        %6616 = vset.pattern.permute.xlu0 0
        %6617 = vperm.xlu0 %6616, %v5972
        %v6618 = vpop.permute.xlu0 %6617
        %6621 = vset.pattern.permute.xlu0 0
        %6622 = vperm.xlu0 %6621, %v5977
        %v6623 = vpop.permute.xlu0 %6622
        %6626 = vset.pattern.permute.xlu0 0
        %6627 = vperm.xlu0 %6626, %v5982
        %v6628 = vpop.permute.xlu0 %6627
        %6631 = vset.pattern.permute.xlu0 0
        %6632 = vperm.xlu0 %6631, %v5987
        %v6633 = vpop.permute.xlu0 %6632
        %6636 = vset.pattern.permute.xlu0 0
        %6637 = vperm.xlu0 %6636, %v5992
        %v6638 = vpop.permute.xlu0 %6637
        %6641 = vset.pattern.permute.xlu0 0
        %6642 = vperm.xlu0 %6641, %v5997
        %v6643 = vpop.permute.xlu0 %6642
        %6646 = vset.pattern.permute.xlu0 0
        %6647 = vperm.xlu0 %6646, %v6002
        %v6648 = vpop.permute.xlu0 %6647
        %6651 = vset.pattern.permute.xlu0 0
        %6652 = vperm.xlu0 %6651, %v6007
        %v6653 = vpop.permute.xlu0 %6652
        %6656 = vset.pattern.permute.xlu0 0
        %6657 = vperm.xlu0 %6656, %v6012
        %v6658 = vpop.permute.xlu0 %6657
        %6661 = vset.pattern.permute.xlu0 0
        %6662 = vperm.xlu0 %6661, %v6017
        %v6663 = vpop.permute.xlu0 %6662
        %6666 = vset.pattern.permute.xlu0 0
        %6667 = vperm.xlu0 %6666, %v6022
        %v6668 = vpop.permute.xlu0 %6667
        %6671 = vset.pattern.permute.xlu0 0
        %6672 = vperm.xlu0 %6671, %v6027
        %v6673 = vpop.permute.xlu0 %6672
        %6676 = vset.pattern.permute.xlu0 0
        %6677 = vperm.xlu0 %6676, %v6032
        %v6678 = vpop.permute.xlu0 %6677
        %6681 = vset.pattern.permute.xlu0 0
        %6682 = vperm.xlu0 %6681, %v6037
        %v6683 = vpop.permute.xlu0 %6682
        %6686 = vset.pattern.permute.xlu0 0
        %6687 = vperm.xlu0 %6686, %v6042
        %v6688 = vpop.permute.xlu0 %6687
        %6691 = vset.pattern.permute.xlu0 0
        %6692 = vperm.xlu0 %6691, %v6047
        %v6693 = vpop.permute.xlu0 %6692
        %6696 = vset.pattern.permute.xlu0 0
        %6697 = vperm.xlu0 %6696, %v6052
        %v6698 = vpop.permute.xlu0 %6697
        %6701 = vset.pattern.permute.xlu0 0
        %6702 = vperm.xlu0 %6701, %v6057
        %v6703 = vpop.permute.xlu0 %6702
        %6706 = vset.pattern.permute.xlu0 0
        %6707 = vperm.xlu0 %6706, %v6062
        %v6708 = vpop.permute.xlu0 %6707
        %6711 = vset.pattern.permute.xlu0 0
        %6712 = vperm.xlu0 %6711, %v6067
        %v6713 = vpop.permute.xlu0 %6712
        %6716 = vset.pattern.permute.xlu0 0
        %6717 = vperm.xlu0 %6716, %v6072
        %v6718 = vpop.permute.xlu0 %6717
        %6721 = vset.pattern.permute.xlu0 0
        %6722 = vperm.xlu0 %6721, %v6077
        %v6723 = vpop.permute.xlu0 %6722
        %6726 = vset.pattern.permute.xlu0 0
        %6727 = vperm.xlu0 %6726, %v6082
        %v6728 = vpop.permute.xlu0 %6727
        %6731 = vset.pattern.permute.xlu0 0
        %6732 = vperm.xlu0 %6731, %v6087
        %v6733 = vpop.permute.xlu0 %6732
        %6736 = vset.pattern.permute.xlu0 0
        %6737 = vperm.xlu0 %6736, %v6092
        %v6738 = vpop.permute.xlu0 %6737
        %6741 = vset.pattern.permute.xlu0 0
        %6742 = vperm.xlu0 %6741, %v6097
        %v6743 = vpop.permute.xlu0 %6742
        %6746 = vset.pattern.permute.xlu0 0
        %6747 = vperm.xlu0 %6746, %v6102
        %v6748 = vpop.permute.xlu0 %6747
        %6751 = vset.pattern.permute.xlu0 0
        %6752 = vperm.xlu0 %6751, %v6107
        %v6753 = vpop.permute.xlu0 %6752
        %6756 = vset.pattern.permute.xlu0 0
        %6757 = vperm.xlu0 %6756, %v6112
        %v6758 = vpop.permute.xlu0 %6757
        %6761 = vset.pattern.permute.xlu0 0
        %6762 = vperm.xlu0 %6761, %v6117
        %v6763 = vpop.permute.xlu0 %6762
        %6766 = vset.pattern.permute.xlu0 0
        %6767 = vperm.xlu0 %6766, %v6122
        %v6768 = vpop.permute.xlu0 %6767
        %6771 = vset.pattern.permute.xlu0 0
        %6772 = vperm.xlu0 %6771, %v6127
        %v6773 = vpop.permute.xlu0 %6772
        %6776 = vset.pattern.permute.xlu0 0
        %6777 = vperm.xlu0 %6776, %v6132
        %v6778 = vpop.permute.xlu0 %6777
        %6781 = vset.pattern.permute.xlu0 0
        %6782 = vperm.xlu0 %6781, %v6137
        %v6783 = vpop.permute.xlu0 %6782
        %6786 = vset.pattern.permute.xlu0 0
        %6787 = vperm.xlu0 %6786, %v6142
        %v6788 = vpop.permute.xlu0 %6787
        %6791 = vset.pattern.permute.xlu0 0
        %6792 = vperm.xlu0 %6791, %v6147
        %v6793 = vpop.permute.xlu0 %6792
        %6796 = vset.pattern.permute.xlu0 0
        %6797 = vperm.xlu0 %6796, %v6152
        %v6798 = vpop.permute.xlu0 %6797
        %6801 = vset.pattern.permute.xlu0 0
        %6802 = vperm.xlu0 %6801, %v6157
        %v6803 = vpop.permute.xlu0 %6802
        %6806 = vset.pattern.permute.xlu0 0
        %6807 = vperm.xlu0 %6806, %v6162
        %v6808 = vpop.permute.xlu0 %6807
        %6811 = vset.pattern.permute.xlu0 0
        %6812 = vperm.xlu0 %6811, %v6167
        %v6813 = vpop.permute.xlu0 %6812
        %6816 = vset.pattern.permute.xlu0 0
        %6817 = vperm.xlu0 %6816, %v6172
        %v6818 = vpop.permute.xlu0 %6817
        %v6820 = vmul.f32 %v6183, %v6179
        %v6821 = vmul.f32 %v6188, %v6179
        %v6822 = vmul.f32 %v6193, %v6179
        %v6823 = vmul.f32 %v6198, %v6179
        %v6824 = vmul.f32 %v6203, %v6179
        %v6825 = vmul.f32 %v6208, %v6179
        %v6826 = vmul.f32 %v6213, %v6179
        %v6827 = vmul.f32 %v6218, %v6179
        %v6828 = vmul.f32 %v6223, %v6179
        %v6829 = vmul.f32 %v6228, %v6179
        %v6830 = vmul.f32 %v6233, %v6179
        %v6831 = vmul.f32 %v6238, %v6179
        %v6832 = vmul.f32 %v6243, %v6179
        %v6833 = vmul.f32 %v6248, %v6179
        %v6834 = vmul.f32 %v6253, %v6179
        %v6835 = vmul.f32 %v6258, %v6179
        %v6836 = vmul.f32 %v6263, %v6179
        %v6837 = vmul.f32 %v6268, %v6179
        %v6838 = vmul.f32 %v6273, %v6179
        %v6839 = vmul.f32 %v6278, %v6179
        %v6840 = vmul.f32 %v6283, %v6179
        %v6841 = vmul.f32 %v6288, %v6179
        %v6842 = vmul.f32 %v6293, %v6179
        %v6843 = vmul.f32 %v6298, %v6179
        %v6844 = vmul.f32 %v6303, %v6179
        %v6845 = vmul.f32 %v6308, %v6179
        %v6846 = vmul.f32 %v6313, %v6179
        %v6847 = vmul.f32 %v6318, %v6179
        %v6848 = vmul.f32 %v6323, %v6179
        %v6849 = vmul.f32 %v6328, %v6179
        %v6850 = vmul.f32 %v6333, %v6179
        %v6851 = vmul.f32 %v6338, %v6179
        %v6852 = vmul.f32 %v6343, %v6179
        %v6853 = vmul.f32 %v6348, %v6179
        %v6854 = vmul.f32 %v6353, %v6179
        %v6855 = vmul.f32 %v6358, %v6179
        %v6856 = vmul.f32 %v6363, %v6179
        %v6857 = vmul.f32 %v6368, %v6179
        %v6858 = vmul.f32 %v6373, %v6179
        %v6859 = vmul.f32 %v6378, %v6179
        %v6860 = vmul.f32 %v6383, %v6179
        %v6861 = vmul.f32 %v6388, %v6179
        %v6862 = vmul.f32 %v6393, %v6179
        %v6863 = vmul.f32 %v6398, %v6179
        %v6864 = vmul.f32 %v6403, %v6179
        %v6865 = vmul.f32 %v6408, %v6179
        %v6866 = vmul.f32 %v6413, %v6179
        %v6867 = vmul.f32 %v6418, %v6179
        %v6868 = vmul.f32 %v6423, %v6179
        %v6869 = vmul.f32 %v6428, %v6179
        %v6870 = vmul.f32 %v6433, %v6179
        %v6871 = vmul.f32 %v6438, %v6179
        %v6872 = vmul.f32 %v6443, %v6179
        %v6873 = vmul.f32 %v6448, %v6179
        %v6874 = vmul.f32 %v6453, %v6179
        %v6875 = vmul.f32 %v6458, %v6179
        %v6876 = vmul.f32 %v6463, %v6179
        %v6877 = vmul.f32 %v6468, %v6179
        %v6878 = vmul.f32 %v6473, %v6179
        %v6879 = vmul.f32 %v6478, %v6179
        %v6880 = vmul.f32 %v6483, %v6179
        %v6881 = vmul.f32 %v6488, %v6179
        %v6882 = vmul.f32 %v6493, %v6179
        %v6883 = vmul.f32 %v6498, %v6179
        %v6884 = vmul.f32 %v6503, %v6179
        %v6885 = vmul.f32 %v6508, %v6179
        %v6886 = vmul.f32 %v6513, %v6179
        %v6887 = vmul.f32 %v6518, %v6179
        %v6888 = vmul.f32 %v6523, %v6179
        %v6889 = vmul.f32 %v6528, %v6179
        %v6890 = vmul.f32 %v6533, %v6179
        %v6891 = vmul.f32 %v6538, %v6179
        %v6892 = vmul.f32 %v6543, %v6179
        %v6893 = vmul.f32 %v6548, %v6179
        %v6894 = vmul.f32 %v6553, %v6179
        %v6895 = vmul.f32 %v6558, %v6179
        %v6896 = vmul.f32 %v6563, %v6179
        %v6897 = vmul.f32 %v6568, %v6179
        %v6898 = vmul.f32 %v6573, %v6179
        %v6899 = vmul.f32 %v6578, %v6179
        %v6900 = vmul.f32 %v6583, %v6179
        %v6901 = vmul.f32 %v6588, %v6179
        %v6902 = vmul.f32 %v6593, %v6179
        %v6903 = vmul.f32 %v6598, %v6179
        %v6904 = vmul.f32 %v6603, %v6179
        %v6905 = vmul.f32 %v6608, %v6179
        %v6906 = vmul.f32 %v6613, %v6179
        %v6907 = vmul.f32 %v6618, %v6179
        %v6908 = vmul.f32 %v6623, %v6179
        %v6909 = vmul.f32 %v6628, %v6179
        %v6910 = vmul.f32 %v6633, %v6179
        %v6911 = vmul.f32 %v6638, %v6179
        %v6912 = vmul.f32 %v6643, %v6179
        %v6913 = vmul.f32 %v6648, %v6179
        %v6914 = vmul.f32 %v6653, %v6179
        %v6915 = vmul.f32 %v6658, %v6179
        %v6916 = vmul.f32 %v6663, %v6179
        %v6917 = vmul.f32 %v6668, %v6179
        %v6918 = vmul.f32 %v6673, %v6179
        %v6919 = vmul.f32 %v6678, %v6179
        %v6920 = vmul.f32 %v6683, %v6179
        %v6921 = vmul.f32 %v6688, %v6179
        %v6922 = vmul.f32 %v6693, %v6179
        %v6923 = vmul.f32 %v6698, %v6179
        %v6924 = vmul.f32 %v6703, %v6179
        %v6925 = vmul.f32 %v6708, %v6179
        %v6926 = vmul.f32 %v6713, %v6179
        %v6927 = vmul.f32 %v6718, %v6179
        %v6928 = vmul.f32 %v6723, %v6179
        %v6929 = vmul.f32 %v6728, %v6179
        %v6930 = vmul.f32 %v6733, %v6179
        %v6931 = vmul.f32 %v6738, %v6179
        %v6932 = vmul.f32 %v6743, %v6179
        %v6933 = vmul.f32 %v6748, %v6179
        %v6934 = vmul.f32 %v6753, %v6179
        %v6935 = vmul.f32 %v6758, %v6179
        %v6936 = vmul.f32 %v6763, %v6179
        %v6937 = vmul.f32 %v6768, %v6179
        %v6938 = vmul.f32 %v6773, %v6179
        %v6939 = vmul.f32 %v6778, %v6179
        %v6940 = vmul.f32 %v6783, %v6179
        %v6941 = vmul.f32 %v6788, %v6179
        %v6942 = vmul.f32 %v6793, %v6179
        %v6943 = vmul.f32 %v6798, %v6179
        %v6944 = vmul.f32 %v6803, %v6179
        %v6945 = vmul.f32 %v6808, %v6179
        %v6946 = vmul.f32 %v6813, %v6179
        %v6947 = vmul.f32 %v6818, %v6179
        %v6948 = vadd.f32 %v4829, %v6820
        %v6949 = vadd.f32 %v4830, %v6821
        %v6950 = vadd.f32 %v4831, %v6822
        %v6951 = vadd.f32 %v4832, %v6823
        %v6952 = vadd.f32 %v4833, %v6824
        %v6953 = vadd.f32 %v4834, %v6825
        %v6954 = vadd.f32 %v4835, %v6826
        %v6955 = vadd.f32 %v4836, %v6827
        %v6956 = vadd.f32 %v4837, %v6828
        %v6957 = vadd.f32 %v4838, %v6829
        %v6958 = vadd.f32 %v4839, %v6830
        %v6959 = vadd.f32 %v4840, %v6831
        %v6960 = vadd.f32 %v4841, %v6832
        %v6961 = vadd.f32 %v4842, %v6833
        %v6962 = vadd.f32 %v4843, %v6834
        %v6963 = vadd.f32 %v4844, %v6835
        %v6964 = vadd.f32 %v4845, %v6836
        %v6965 = vadd.f32 %v4846, %v6837
        %v6966 = vadd.f32 %v4847, %v6838
        %v6967 = vadd.f32 %v4848, %v6839
        %v6968 = vadd.f32 %v4849, %v6840
        %v6969 = vadd.f32 %v4850, %v6841
        %v6970 = vadd.f32 %v4851, %v6842
        %v6971 = vadd.f32 %v4852, %v6843
        %v6972 = vadd.f32 %v4853, %v6844
        %v6973 = vadd.f32 %v4854, %v6845
        %v6974 = vadd.f32 %v4855, %v6846
        %v6975 = vadd.f32 %v4856, %v6847
        %v6976 = vadd.f32 %v4857, %v6848
        %v6977 = vadd.f32 %v4858, %v6849
        %v6978 = vadd.f32 %v4859, %v6850
        %v6979 = vadd.f32 %v4860, %v6851
        %v6980 = vadd.f32 %v4861, %v6852
        %v6981 = vadd.f32 %v4862, %v6853
        %v6982 = vadd.f32 %v4863, %v6854
        %v6983 = vadd.f32 %v4864, %v6855
        %v6984 = vadd.f32 %v4865, %v6856
        %v6985 = vadd.f32 %v4866, %v6857
        %v6986 = vadd.f32 %v4867, %v6858
        %v6987 = vadd.f32 %v4868, %v6859
        %v6988 = vadd.f32 %v4869, %v6860
        %v6989 = vadd.f32 %v4870, %v6861
        %v6990 = vadd.f32 %v4871, %v6862
        %v6991 = vadd.f32 %v4872, %v6863
        %v6992 = vadd.f32 %v4873, %v6864
        %v6993 = vadd.f32 %v4874, %v6865
        %v6994 = vadd.f32 %v4875, %v6866
        %v6995 = vadd.f32 %v4876, %v6867
        %v6996 = vadd.f32 %v4877, %v6868
        %v6997 = vadd.f32 %v4878, %v6869
        %v6998 = vadd.f32 %v4879, %v6870
        %v6999 = vadd.f32 %v4880, %v6871
        %v7000 = vadd.f32 %v4881, %v6872
        %v7001 = vadd.f32 %v4882, %v6873
        %v7002 = vadd.f32 %v4883, %v6874
        %v7003 = vadd.f32 %v4884, %v6875
        %v7004 = vadd.f32 %v4885, %v6876
        %v7005 = vadd.f32 %v4886, %v6877
        %v7006 = vadd.f32 %v4887, %v6878
        %v7007 = vadd.f32 %v4888, %v6879
        %v7008 = vadd.f32 %v4889, %v6880
        %v7009 = vadd.f32 %v4890, %v6881
        %v7010 = vadd.f32 %v4891, %v6882
        %v7011 = vadd.f32 %v4892, %v6883
        %v7012 = vadd.f32 %v4893, %v6884
        %v7013 = vadd.f32 %v4894, %v6885
        %v7014 = vadd.f32 %v4895, %v6886
        %v7015 = vadd.f32 %v4896, %v6887
        %v7016 = vadd.f32 %v4897, %v6888
        %v7017 = vadd.f32 %v4898, %v6889
        %v7018 = vadd.f32 %v4899, %v6890
        %v7019 = vadd.f32 %v4900, %v6891
        %v7020 = vadd.f32 %v4901, %v6892
        %v7021 = vadd.f32 %v4902, %v6893
        %v7022 = vadd.f32 %v4903, %v6894
        %v7023 = vadd.f32 %v4904, %v6895
        %v7024 = vadd.f32 %v4905, %v6896
        %v7025 = vadd.f32 %v4906, %v6897
        %v7026 = vadd.f32 %v4907, %v6898
        %v7027 = vadd.f32 %v4908, %v6899
        %v7028 = vadd.f32 %v4909, %v6900
        %v7029 = vadd.f32 %v4910, %v6901
        %v7030 = vadd.f32 %v4911, %v6902
        %v7031 = vadd.f32 %v4912, %v6903
        %v7032 = vadd.f32 %v4913, %v6904
        %v7033 = vadd.f32 %v4914, %v6905
        %v7034 = vadd.f32 %v4915, %v6906
        %v7035 = vadd.f32 %v4916, %v6907
        %v7036 = vadd.f32 %v4917, %v6908
        %v7037 = vadd.f32 %v4918, %v6909
        %v7038 = vadd.f32 %v4919, %v6910
        %v7039 = vadd.f32 %v4920, %v6911
        %v7040 = vadd.f32 %v4921, %v6912
        %v7041 = vadd.f32 %v4922, %v6913
        %v7042 = vadd.f32 %v4923, %v6914
        %v7043 = vadd.f32 %v4924, %v6915
        %v7044 = vadd.f32 %v4925, %v6916
        %v7045 = vadd.f32 %v4926, %v6917
        %v7046 = vadd.f32 %v4927, %v6918
        %v7047 = vadd.f32 %v4928, %v6919
        %v7048 = vadd.f32 %v4929, %v6920
        %v7049 = vadd.f32 %v4930, %v6921
        %v7050 = vadd.f32 %v4931, %v6922
        %v7051 = vadd.f32 %v4932, %v6923
        %v7052 = vadd.f32 %v4933, %v6924
        %v7053 = vadd.f32 %v4934, %v6925
        %v7054 = vadd.f32 %v4935, %v6926
        %v7055 = vadd.f32 %v4936, %v6927
        %v7056 = vadd.f32 %v4937, %v6928
        %v7057 = vadd.f32 %v4938, %v6929
        %v7058 = vadd.f32 %v4939, %v6930
        %v7059 = vadd.f32 %v4940, %v6931
        %v7060 = vadd.f32 %v4941, %v6932
        %v7061 = vadd.f32 %v4942, %v6933
        %v7062 = vadd.f32 %v4943, %v6934
        %v7063 = vadd.f32 %v4944, %v6935
        %v7064 = vadd.f32 %v4945, %v6936
        %v7065 = vadd.f32 %v4946, %v6937
        %v7066 = vadd.f32 %v4947, %v6938
        %v7067 = vadd.f32 %v4948, %v6939
        %v7068 = vadd.f32 %v4949, %v6940
        %v7069 = vadd.f32 %v4950, %v6941
        %v7070 = vadd.f32 %v4951, %v6942
        %v7071 = vadd.f32 %v4952, %v6943
        %v7072 = vadd.f32 %v4953, %v6944
        %v7073 = vadd.f32 %v4954, %v6945
        %v7074 = vadd.f32 %v4955, %v6946
        %v7075 = vadd.f32 %v4956, %v6947
        %v7076 = vxor.u32 %v6948, 2147483648
        %v7077 = vxor.u32 %v6949, 2147483648
        %v7078 = vxor.u32 %v6950, 2147483648
        %v7079 = vxor.u32 %v6951, 2147483648
        %v7080 = vxor.u32 %v6952, 2147483648
        %v7081 = vxor.u32 %v6953, 2147483648
        %v7082 = vxor.u32 %v6954, 2147483648
        %v7083 = vxor.u32 %v6955, 2147483648
        %v7084 = vxor.u32 %v6956, 2147483648
        %v7085 = vxor.u32 %v6957, 2147483648
        %v7086 = vxor.u32 %v6958, 2147483648
        %v7087 = vxor.u32 %v6959, 2147483648
        %v7088 = vxor.u32 %v6960, 2147483648
        %v7089 = vxor.u32 %v6961, 2147483648
        %v7090 = vxor.u32 %v6962, 2147483648
        %v7091 = vxor.u32 %v6963, 2147483648
        %v7092 = vxor.u32 %v6964, 2147483648
        %v7093 = vxor.u32 %v6965, 2147483648
        %v7094 = vxor.u32 %v6966, 2147483648
        %v7095 = vxor.u32 %v6967, 2147483648
        %v7096 = vxor.u32 %v6968, 2147483648
        %v7097 = vxor.u32 %v6969, 2147483648
        %v7098 = vxor.u32 %v6970, 2147483648
        %v7099 = vxor.u32 %v6971, 2147483648
        %v7100 = vxor.u32 %v6972, 2147483648
        %v7101 = vxor.u32 %v6973, 2147483648
        %v7102 = vxor.u32 %v6974, 2147483648
        %v7103 = vxor.u32 %v6975, 2147483648
        %v7104 = vxor.u32 %v6976, 2147483648
        %v7105 = vxor.u32 %v6977, 2147483648
        %v7106 = vxor.u32 %v6978, 2147483648
        %v7107 = vxor.u32 %v6979, 2147483648
        %v7108 = vxor.u32 %v6980, 2147483648
        %v7109 = vxor.u32 %v6981, 2147483648
        %v7110 = vxor.u32 %v6982, 2147483648
        %v7111 = vxor.u32 %v6983, 2147483648
        %v7112 = vxor.u32 %v6984, 2147483648
        %v7113 = vxor.u32 %v6985, 2147483648
        %v7114 = vxor.u32 %v6986, 2147483648
        %v7115 = vxor.u32 %v6987, 2147483648
        %v7116 = vxor.u32 %v6988, 2147483648
        %v7117 = vxor.u32 %v6989, 2147483648
        %v7118 = vxor.u32 %v6990, 2147483648
        %v7119 = vxor.u32 %v6991, 2147483648
        %v7120 = vxor.u32 %v6992, 2147483648
        %v7121 = vxor.u32 %v6993, 2147483648
        %v7122 = vxor.u32 %v6994, 2147483648
        %v7123 = vxor.u32 %v6995, 2147483648
        %v7124 = vxor.u32 %v6996, 2147483648
        %v7125 = vxor.u32 %v6997, 2147483648
        %v7126 = vxor.u32 %v6998, 2147483648
        %v7127 = vxor.u32 %v6999, 2147483648
        %v7128 = vxor.u32 %v7000, 2147483648
        %v7129 = vxor.u32 %v7001, 2147483648
        %v7130 = vxor.u32 %v7002, 2147483648
        %v7131 = vxor.u32 %v7003, 2147483648
        %v7132 = vxor.u32 %v7004, 2147483648
        %v7133 = vxor.u32 %v7005, 2147483648
        %v7134 = vxor.u32 %v7006, 2147483648
        %v7135 = vxor.u32 %v7007, 2147483648
        %v7136 = vxor.u32 %v7008, 2147483648
        %v7137 = vxor.u32 %v7009, 2147483648
        %v7138 = vxor.u32 %v7010, 2147483648
        %v7139 = vxor.u32 %v7011, 2147483648
        %v7140 = vxor.u32 %v7012, 2147483648
        %v7141 = vxor.u32 %v7013, 2147483648
        %v7142 = vxor.u32 %v7014, 2147483648
        %v7143 = vxor.u32 %v7015, 2147483648
        %v7144 = vxor.u32 %v7016, 2147483648
        %v7145 = vxor.u32 %v7017, 2147483648
        %v7146 = vxor.u32 %v7018, 2147483648
        %v7147 = vxor.u32 %v7019, 2147483648
        %v7148 = vxor.u32 %v7020, 2147483648
        %v7149 = vxor.u32 %v7021, 2147483648
        %v7150 = vxor.u32 %v7022, 2147483648
        %v7151 = vxor.u32 %v7023, 2147483648
        %v7152 = vxor.u32 %v7024, 2147483648
        %v7153 = vxor.u32 %v7025, 2147483648
        %v7154 = vxor.u32 %v7026, 2147483648
        %v7155 = vxor.u32 %v7027, 2147483648
        %v7156 = vxor.u32 %v7028, 2147483648
        %v7157 = vxor.u32 %v7029, 2147483648
        %v7158 = vxor.u32 %v7030, 2147483648
        %v7159 = vxor.u32 %v7031, 2147483648
        %v7160 = vxor.u32 %v7032, 2147483648
        %v7161 = vxor.u32 %v7033, 2147483648
        %v7162 = vxor.u32 %v7034, 2147483648
        %v7163 = vxor.u32 %v7035, 2147483648
        %v7164 = vxor.u32 %v7036, 2147483648
        %v7165 = vxor.u32 %v7037, 2147483648
        %v7166 = vxor.u32 %v7038, 2147483648
        %v7167 = vxor.u32 %v7039, 2147483648
        %v7168 = vxor.u32 %v7040, 2147483648
        %v7169 = vxor.u32 %v7041, 2147483648
        %v7170 = vxor.u32 %v7042, 2147483648
        %v7171 = vxor.u32 %v7043, 2147483648
        %v7172 = vxor.u32 %v7044, 2147483648
        %v7173 = vxor.u32 %v7045, 2147483648
        %v7174 = vxor.u32 %v7046, 2147483648
        %v7175 = vxor.u32 %v7047, 2147483648
        %v7176 = vxor.u32 %v7048, 2147483648
        %v7177 = vxor.u32 %v7049, 2147483648
        %v7178 = vxor.u32 %v7050, 2147483648
        %v7179 = vxor.u32 %v7051, 2147483648
        %v7180 = vxor.u32 %v7052, 2147483648
        %v7181 = vxor.u32 %v7053, 2147483648
        %v7182 = vxor.u32 %v7054, 2147483648
        %v7183 = vxor.u32 %v7055, 2147483648
        %v7184 = vxor.u32 %v7056, 2147483648
        %v7185 = vxor.u32 %v7057, 2147483648
        %v7186 = vxor.u32 %v7058, 2147483648
        %v7187 = vxor.u32 %v7059, 2147483648
        %v7188 = vxor.u32 %v7060, 2147483648
        %v7189 = vxor.u32 %v7061, 2147483648
        %v7190 = vxor.u32 %v7062, 2147483648
        %v7191 = vxor.u32 %v7063, 2147483648
        %v7192 = vxor.u32 %v7064, 2147483648
        %v7193 = vxor.u32 %v7065, 2147483648
        %v7194 = vxor.u32 %v7066, 2147483648
        %v7195 = vxor.u32 %v7067, 2147483648
        %v7196 = vxor.u32 %v7068, 2147483648
        %v7197 = vxor.u32 %v7069, 2147483648
        %v7198 = vxor.u32 %v7070, 2147483648
        %v7199 = vxor.u32 %v7071, 2147483648
        %v7200 = vxor.u32 %v7072, 2147483648
        %v7201 = vxor.u32 %v7073, 2147483648
        %v7202 = vxor.u32 %v7074, 2147483648
        %v7203 = vxor.u32 %v7075, 2147483648
        %v7204 = vmul.f32 %v7076, 1.442695
        %v7205 = vpow.pop %v7204
        %v7206 = vmul.f32 %v7077, 1.442695
        %v7207 = vpow.pop %v7206
        %v7208 = vmul.f32 %v7078, 1.442695
        %v7209 = vpow.pop %v7208
        %v7210 = vmul.f32 %v7079, 1.442695
        %v7211 = vpow.pop %v7210
        %v7212 = vmul.f32 %v7080, 1.442695
        %v7213 = vpow.pop %v7212
        %v7214 = vmul.f32 %v7081, 1.442695
        %v7215 = vpow.pop %v7214
        %v7216 = vmul.f32 %v7082, 1.442695
        %v7217 = vpow.pop %v7216
        %v7218 = vmul.f32 %v7083, 1.442695
        %v7219 = vpow.pop %v7218
        %v7220 = vmul.f32 %v7084, 1.442695
        %v7221 = vpow.pop %v7220
        %v7222 = vmul.f32 %v7085, 1.442695
        %v7223 = vpow.pop %v7222
        %v7224 = vmul.f32 %v7086, 1.442695
        %v7225 = vpow.pop %v7224
        %v7226 = vmul.f32 %v7087, 1.442695
        %v7227 = vpow.pop %v7226
        %v7228 = vmul.f32 %v7088, 1.442695
        %v7229 = vpow.pop %v7228
        %v7230 = vmul.f32 %v7089, 1.442695
        %v7231 = vpow.pop %v7230
        %v7232 = vmul.f32 %v7090, 1.442695
        %v7233 = vpow.pop %v7232
        %v7234 = vmul.f32 %v7091, 1.442695
        %v7235 = vpow.pop %v7234
        %v7236 = vmul.f32 %v7092, 1.442695
        %v7237 = vpow.pop %v7236
        %v7238 = vmul.f32 %v7093, 1.442695
        %v7239 = vpow.pop %v7238
        %v7240 = vmul.f32 %v7094, 1.442695
        %v7241 = vpow.pop %v7240
        %v7242 = vmul.f32 %v7095, 1.442695
        %v7243 = vpow.pop %v7242
        %v7244 = vmul.f32 %v7096, 1.442695
        %v7245 = vpow.pop %v7244
        %v7246 = vmul.f32 %v7097, 1.442695
        %v7247 = vpow.pop %v7246
        %v7248 = vmul.f32 %v7098, 1.442695
        %v7249 = vpow.pop %v7248
        %v7250 = vmul.f32 %v7099, 1.442695
        %v7251 = vpow.pop %v7250
        %v7252 = vmul.f32 %v7100, 1.442695
        %v7253 = vpow.pop %v7252
        %v7254 = vmul.f32 %v7101, 1.442695
        %v7255 = vpow.pop %v7254
        %v7256 = vmul.f32 %v7102, 1.442695
        %v7257 = vpow.pop %v7256
        %v7258 = vmul.f32 %v7103, 1.442695
        %v7259 = vpow.pop %v7258
        %v7260 = vmul.f32 %v7104, 1.442695
        %v7261 = vpow.pop %v7260
        %v7262 = vmul.f32 %v7105, 1.442695
        %v7263 = vpow.pop %v7262
        %v7264 = vmul.f32 %v7106, 1.442695
        %v7265 = vpow.pop %v7264
        %v7266 = vmul.f32 %v7107, 1.442695
        %v7267 = vpow.pop %v7266
        %v7268 = vmul.f32 %v7108, 1.442695
        %v7269 = vpow.pop %v7268
        %v7270 = vmul.f32 %v7109, 1.442695
        %v7271 = vpow.pop %v7270
        %v7272 = vmul.f32 %v7110, 1.442695
        %v7273 = vpow.pop %v7272
        %v7274 = vmul.f32 %v7111, 1.442695
        %v7275 = vpow.pop %v7274
        %v7276 = vmul.f32 %v7112, 1.442695
        %v7277 = vpow.pop %v7276
        %v7278 = vmul.f32 %v7113, 1.442695
        %v7279 = vpow.pop %v7278
        %v7280 = vmul.f32 %v7114, 1.442695
        %v7281 = vpow.pop %v7280
        %v7282 = vmul.f32 %v7115, 1.442695
        %v7283 = vpow.pop %v7282
        %v7284 = vmul.f32 %v7116, 1.442695
        %v7285 = vpow.pop %v7284
        %v7286 = vmul.f32 %v7117, 1.442695
        %v7287 = vpow.pop %v7286
        %v7288 = vmul.f32 %v7118, 1.442695
        %v7289 = vpow.pop %v7288
        %v7290 = vmul.f32 %v7119, 1.442695
        %v7291 = vpow.pop %v7290
        %v7292 = vmul.f32 %v7120, 1.442695
        %v7293 = vpow.pop %v7292
        %v7294 = vmul.f32 %v7121, 1.442695
        %v7295 = vpow.pop %v7294
        %v7296 = vmul.f32 %v7122, 1.442695
        %v7297 = vpow.pop %v7296
        %v7298 = vmul.f32 %v7123, 1.442695
        %v7299 = vpow.pop %v7298
        %v7300 = vmul.f32 %v7124, 1.442695
        %v7301 = vpow.pop %v7300
        %v7302 = vmul.f32 %v7125, 1.442695
        %v7303 = vpow.pop %v7302
        %v7304 = vmul.f32 %v7126, 1.442695
        %v7305 = vpow.pop %v7304
        %v7306 = vmul.f32 %v7127, 1.442695
        %v7307 = vpow.pop %v7306
        %v7308 = vmul.f32 %v7128, 1.442695
        %v7309 = vpow.pop %v7308
        %v7310 = vmul.f32 %v7129, 1.442695
        %v7311 = vpow.pop %v7310
        %v7312 = vmul.f32 %v7130, 1.442695
        %v7313 = vpow.pop %v7312
        %v7314 = vmul.f32 %v7131, 1.442695
        %v7315 = vpow.pop %v7314
        %v7316 = vmul.f32 %v7132, 1.442695
        %v7317 = vpow.pop %v7316
        %v7318 = vmul.f32 %v7133, 1.442695
        %v7319 = vpow.pop %v7318
        %v7320 = vmul.f32 %v7134, 1.442695
        %v7321 = vpow.pop %v7320
        %v7322 = vmul.f32 %v7135, 1.442695
        %v7323 = vpow.pop %v7322
        %v7324 = vmul.f32 %v7136, 1.442695
        %v7325 = vpow.pop %v7324
        %v7326 = vmul.f32 %v7137, 1.442695
        %v7327 = vpow.pop %v7326
        %v7328 = vmul.f32 %v7138, 1.442695
        %v7329 = vpow.pop %v7328
        %v7330 = vmul.f32 %v7139, 1.442695
        %v7331 = vpow.pop %v7330
        %v7332 = vmul.f32 %v7140, 1.442695
        %v7333 = vpow.pop %v7332
        %v7334 = vmul.f32 %v7141, 1.442695
        %v7335 = vpow.pop %v7334
        %v7336 = vmul.f32 %v7142, 1.442695
        %v7337 = vpow.pop %v7336
        %v7338 = vmul.f32 %v7143, 1.442695
        %v7339 = vpow.pop %v7338
        %v7340 = vmul.f32 %v7144, 1.442695
        %v7341 = vpow.pop %v7340
        %v7342 = vmul.f32 %v7145, 1.442695
        %v7343 = vpow.pop %v7342
        %v7344 = vmul.f32 %v7146, 1.442695
        %v7345 = vpow.pop %v7344
        %v7346 = vmul.f32 %v7147, 1.442695
        %v7347 = vpow.pop %v7346
        %v7348 = vmul.f32 %v7148, 1.442695
        %v7349 = vpow.pop %v7348
        %v7350 = vmul.f32 %v7149, 1.442695
        %v7351 = vpow.pop %v7350
        %v7352 = vmul.f32 %v7150, 1.442695
        %v7353 = vpow.pop %v7352
        %v7354 = vmul.f32 %v7151, 1.442695
        %v7355 = vpow.pop %v7354
        %v7356 = vmul.f32 %v7152, 1.442695
        %v7357 = vpow.pop %v7356
        %v7358 = vmul.f32 %v7153, 1.442695
        %v7359 = vpow.pop %v7358
        %v7360 = vmul.f32 %v7154, 1.442695
        %v7361 = vpow.pop %v7360
        %v7362 = vmul.f32 %v7155, 1.442695
        %v7363 = vpow.pop %v7362
        %v7364 = vmul.f32 %v7156, 1.442695
        %v7365 = vpow.pop %v7364
        %v7366 = vmul.f32 %v7157, 1.442695
        %v7367 = vpow.pop %v7366
        %v7368 = vmul.f32 %v7158, 1.442695
        %v7369 = vpow.pop %v7368
        %v7370 = vmul.f32 %v7159, 1.442695
        %v7371 = vpow.pop %v7370
        %v7372 = vmul.f32 %v7160, 1.442695
        %v7373 = vpow.pop %v7372
        %v7374 = vmul.f32 %v7161, 1.442695
        %v7375 = vpow.pop %v7374
        %v7376 = vmul.f32 %v7162, 1.442695
        %v7377 = vpow.pop %v7376
        %v7378 = vmul.f32 %v7163, 1.442695
        %v7379 = vpow.pop %v7378
        %v7380 = vmul.f32 %v7164, 1.442695
        %v7381 = vpow.pop %v7380
        %v7382 = vmul.f32 %v7165, 1.442695
        %v7383 = vpow.pop %v7382
        %v7384 = vmul.f32 %v7166, 1.442695
        %v7385 = vpow.pop %v7384
        %v7386 = vmul.f32 %v7167, 1.442695
        %v7387 = vpow.pop %v7386
        %v7388 = vmul.f32 %v7168, 1.442695
        %v7389 = vpow.pop %v7388
        %v7390 = vmul.f32 %v7169, 1.442695
        %v7391 = vpow.pop %v7390
        %v7392 = vmul.f32 %v7170, 1.442695
        %v7393 = vpow.pop %v7392
        %v7394 = vmul.f32 %v7171, 1.442695
        %v7395 = vpow.pop %v7394
        %v7396 = vmul.f32 %v7172, 1.442695
        %v7397 = vpow.pop %v7396
        %v7398 = vmul.f32 %v7173, 1.442695
        %v7399 = vpow.pop %v7398
        %v7400 = vmul.f32 %v7174, 1.442695
        %v7401 = vpow.pop %v7400
        %v7402 = vmul.f32 %v7175, 1.442695
        %v7403 = vpow.pop %v7402
        %v7404 = vmul.f32 %v7176, 1.442695
        %v7405 = vpow.pop %v7404
        %v7406 = vmul.f32 %v7177, 1.442695
        %v7407 = vpow.pop %v7406
        %v7408 = vmul.f32 %v7178, 1.442695
        %v7409 = vpow.pop %v7408
        %v7410 = vmul.f32 %v7179, 1.442695
        %v7411 = vpow.pop %v7410
        %v7412 = vmul.f32 %v7180, 1.442695
        %v7413 = vpow.pop %v7412
        %v7414 = vmul.f32 %v7181, 1.442695
        %v7415 = vpow.pop %v7414
        %v7416 = vmul.f32 %v7182, 1.442695
        %v7417 = vpow.pop %v7416
        %v7418 = vmul.f32 %v7183, 1.442695
        %v7419 = vpow.pop %v7418
        %v7420 = vmul.f32 %v7184, 1.442695
        %v7421 = vpow.pop %v7420
        %v7422 = vmul.f32 %v7185, 1.442695
        %v7423 = vpow.pop %v7422
        %v7424 = vmul.f32 %v7186, 1.442695
        %v7425 = vpow.pop %v7424
        %v7426 = vmul.f32 %v7187, 1.442695
        %v7427 = vpow.pop %v7426
        %v7428 = vmul.f32 %v7188, 1.442695
        %v7429 = vpow.pop %v7428
        %v7430 = vmul.f32 %v7189, 1.442695
        %v7431 = vpow.pop %v7430
        %v7432 = vmul.f32 %v7190, 1.442695
        %v7433 = vpow.pop %v7432
        %v7434 = vmul.f32 %v7191, 1.442695
        %v7435 = vpow.pop %v7434
        %v7436 = vmul.f32 %v7192, 1.442695
        %v7437 = vpow.pop %v7436
        %v7438 = vmul.f32 %v7193, 1.442695
        %v7439 = vpow.pop %v7438
        %v7440 = vmul.f32 %v7194, 1.442695
        %v7441 = vpow.pop %v7440
        %v7442 = vmul.f32 %v7195, 1.442695
        %v7443 = vpow.pop %v7442
        %v7444 = vmul.f32 %v7196, 1.442695
        %v7445 = vpow.pop %v7444
        %v7446 = vmul.f32 %v7197, 1.442695
        %v7447 = vpow.pop %v7446
        %v7448 = vmul.f32 %v7198, 1.442695
        %v7449 = vpow.pop %v7448
        %v7450 = vmul.f32 %v7199, 1.442695
        %v7451 = vpow.pop %v7450
        %v7452 = vmul.f32 %v7200, 1.442695
        %v7453 = vpow.pop %v7452
        %v7454 = vmul.f32 %v7201, 1.442695
        %v7455 = vpow.pop %v7454
        %v7456 = vmul.f32 %v7202, 1.442695
        %v7457 = vpow.pop %v7456
        %v7458 = vmul.f32 %v7203, 1.442695
        %v7459 = vpow.pop %v7458
        %v7460 = vadd.f32 %v7205, 1.0
        %v7461 = vadd.f32 %v7207, 1.0
        %v7462 = vadd.f32 %v7209, 1.0
        %v7463 = vadd.f32 %v7211, 1.0
        %v7464 = vadd.f32 %v7213, 1.0
        %v7465 = vadd.f32 %v7215, 1.0
        %v7466 = vadd.f32 %v7217, 1.0
        %v7467 = vadd.f32 %v7219, 1.0
        %v7468 = vadd.f32 %v7221, 1.0
        %v7469 = vadd.f32 %v7223, 1.0
        %v7470 = vadd.f32 %v7225, 1.0
        %v7471 = vadd.f32 %v7227, 1.0
        %v7472 = vadd.f32 %v7229, 1.0
        %v7473 = vadd.f32 %v7231, 1.0
        %v7474 = vadd.f32 %v7233, 1.0
        %v7475 = vadd.f32 %v7235, 1.0
        %v7476 = vadd.f32 %v7237, 1.0
        %v7477 = vadd.f32 %v7239, 1.0
        %v7478 = vadd.f32 %v7241, 1.0
        %v7479 = vadd.f32 %v7243, 1.0
        %v7480 = vadd.f32 %v7245, 1.0
        %v7481 = vadd.f32 %v7247, 1.0
        %v7482 = vadd.f32 %v7249, 1.0
        %v7483 = vadd.f32 %v7251, 1.0
        %v7484 = vadd.f32 %v7253, 1.0
        %v7485 = vadd.f32 %v7255, 1.0
        %v7486 = vadd.f32 %v7257, 1.0
        %v7487 = vadd.f32 %v7259, 1.0
        %v7488 = vadd.f32 %v7261, 1.0
        %v7489 = vadd.f32 %v7263, 1.0
        %v7490 = vadd.f32 %v7265, 1.0
        %v7491 = vadd.f32 %v7267, 1.0
        %v7492 = vadd.f32 %v7269, 1.0
        %v7493 = vadd.f32 %v7271, 1.0
        %v7494 = vadd.f32 %v7273, 1.0
        %v7495 = vadd.f32 %v7275, 1.0
        %v7496 = vadd.f32 %v7277, 1.0
        %v7497 = vadd.f32 %v7279, 1.0
        %v7498 = vadd.f32 %v7281, 1.0
        %v7499 = vadd.f32 %v7283, 1.0
        %v7500 = vadd.f32 %v7285, 1.0
        %v7501 = vadd.f32 %v7287, 1.0
        %v7502 = vadd.f32 %v7289, 1.0
        %v7503 = vadd.f32 %v7291, 1.0
        %v7504 = vadd.f32 %v7293, 1.0
        %v7505 = vadd.f32 %v7295, 1.0
        %v7506 = vadd.f32 %v7297, 1.0
        %v7507 = vadd.f32 %v7299, 1.0
        %v7508 = vadd.f32 %v7301, 1.0
        %v7509 = vadd.f32 %v7303, 1.0
        %v7510 = vadd.f32 %v7305, 1.0
        %v7511 = vadd.f32 %v7307, 1.0
        %v7512 = vadd.f32 %v7309, 1.0
        %v7513 = vadd.f32 %v7311, 1.0
        %v7514 = vadd.f32 %v7313, 1.0
        %v7515 = vadd.f32 %v7315, 1.0
        %v7516 = vadd.f32 %v7317, 1.0
        %v7517 = vadd.f32 %v7319, 1.0
        %v7518 = vadd.f32 %v7321, 1.0
        %v7519 = vadd.f32 %v7323, 1.0
        %v7520 = vadd.f32 %v7325, 1.0
        %v7521 = vadd.f32 %v7327, 1.0
        %v7522 = vadd.f32 %v7329, 1.0
        %v7523 = vadd.f32 %v7331, 1.0
        %v7524 = vadd.f32 %v7333, 1.0
        %v7525 = vadd.f32 %v7335, 1.0
        %v7526 = vadd.f32 %v7337, 1.0
        %v7527 = vadd.f32 %v7339, 1.0
        %v7528 = vadd.f32 %v7341, 1.0
        %v7529 = vadd.f32 %v7343, 1.0
        %v7530 = vadd.f32 %v7345, 1.0
        %v7531 = vadd.f32 %v7347, 1.0
        %v7532 = vadd.f32 %v7349, 1.0
        %v7533 = vadd.f32 %v7351, 1.0
        %v7534 = vadd.f32 %v7353, 1.0
        %v7535 = vadd.f32 %v7355, 1.0
        %v7536 = vadd.f32 %v7357, 1.0
        %v7537 = vadd.f32 %v7359, 1.0
        %v7538 = vadd.f32 %v7361, 1.0
        %v7539 = vadd.f32 %v7363, 1.0
        %v7540 = vadd.f32 %v7365, 1.0
        %v7541 = vadd.f32 %v7367, 1.0
        %v7542 = vadd.f32 %v7369, 1.0
        %v7543 = vadd.f32 %v7371, 1.0
        %v7544 = vadd.f32 %v7373, 1.0
        %v7545 = vadd.f32 %v7375, 1.0
        %v7546 = vadd.f32 %v7377, 1.0
        %v7547 = vadd.f32 %v7379, 1.0
        %v7548 = vadd.f32 %v7381, 1.0
        %v7549 = vadd.f32 %v7383, 1.0
        %v7550 = vadd.f32 %v7385, 1.0
        %v7551 = vadd.f32 %v7387, 1.0
        %v7552 = vadd.f32 %v7389, 1.0
        %v7553 = vadd.f32 %v7391, 1.0
        %v7554 = vadd.f32 %v7393, 1.0
        %v7555 = vadd.f32 %v7395, 1.0
        %v7556 = vadd.f32 %v7397, 1.0
        %v7557 = vadd.f32 %v7399, 1.0
        %v7558 = vadd.f32 %v7401, 1.0
        %v7559 = vadd.f32 %v7403, 1.0
        %v7560 = vadd.f32 %v7405, 1.0
        %v7561 = vadd.f32 %v7407, 1.0
        %v7562 = vadd.f32 %v7409, 1.0
        %v7563 = vadd.f32 %v7411, 1.0
        %v7564 = vadd.f32 %v7413, 1.0
        %v7565 = vadd.f32 %v7415, 1.0
        %v7566 = vadd.f32 %v7417, 1.0
        %v7567 = vadd.f32 %v7419, 1.0
        %v7568 = vadd.f32 %v7421, 1.0
        %v7569 = vadd.f32 %v7423, 1.0
        %v7570 = vadd.f32 %v7425, 1.0
        %v7571 = vadd.f32 %v7427, 1.0
        %v7572 = vadd.f32 %v7429, 1.0
        %v7573 = vadd.f32 %v7431, 1.0
        %v7574 = vadd.f32 %v7433, 1.0
        %v7575 = vadd.f32 %v7435, 1.0
        %v7576 = vadd.f32 %v7437, 1.0
        %v7577 = vadd.f32 %v7439, 1.0
        %v7578 = vadd.f32 %v7441, 1.0
        %v7579 = vadd.f32 %v7443, 1.0
        %v7580 = vadd.f32 %v7445, 1.0
        %v7581 = vadd.f32 %v7447, 1.0
        %v7582 = vadd.f32 %v7449, 1.0
        %v7583 = vadd.f32 %v7451, 1.0
        %v7584 = vadd.f32 %v7453, 1.0
        %v7585 = vadd.f32 %v7455, 1.0
        %v7586 = vadd.f32 %v7457, 1.0
        %v7587 = vadd.f32 %v7459, 1.0
        %v7588 = vrcp.pop %v7460
        %v7589 = vmul.f32 1.0, %v7588
        %v7590 = vrcp.pop %v7461
        %v7591 = vmul.f32 1.0, %v7590
        %v7592 = vrcp.pop %v7462
        %v7593 = vmul.f32 1.0, %v7592
        %v7594 = vrcp.pop %v7463
        %v7595 = vmul.f32 1.0, %v7594
        %v7596 = vrcp.pop %v7464
        %v7597 = vmul.f32 1.0, %v7596
        %v7598 = vrcp.pop %v7465
        %v7599 = vmul.f32 1.0, %v7598
        %v7600 = vrcp.pop %v7466
        %v7601 = vmul.f32 1.0, %v7600
        %v7602 = vrcp.pop %v7467
        %v7603 = vmul.f32 1.0, %v7602
        %v7604 = vrcp.pop %v7468
        %v7605 = vmul.f32 1.0, %v7604
        %v7606 = vrcp.pop %v7469
        %v7607 = vmul.f32 1.0, %v7606
        %v7608 = vrcp.pop %v7470
        %v7609 = vmul.f32 1.0, %v7608
        %v7610 = vrcp.pop %v7471
        %v7611 = vmul.f32 1.0, %v7610
        %v7612 = vrcp.pop %v7472
        %v7613 = vmul.f32 1.0, %v7612
        %v7614 = vrcp.pop %v7473
        %v7615 = vmul.f32 1.0, %v7614
        %v7616 = vrcp.pop %v7474
        %v7617 = vmul.f32 1.0, %v7616
        %v7618 = vrcp.pop %v7475
        %v7619 = vmul.f32 1.0, %v7618
        %v7620 = vrcp.pop %v7476
        %v7621 = vmul.f32 1.0, %v7620
        %v7622 = vrcp.pop %v7477
        %v7623 = vmul.f32 1.0, %v7622
        %v7624 = vrcp.pop %v7478
        %v7625 = vmul.f32 1.0, %v7624
        %v7626 = vrcp.pop %v7479
        %v7627 = vmul.f32 1.0, %v7626
        %v7628 = vrcp.pop %v7480
        %v7629 = vmul.f32 1.0, %v7628
        %v7630 = vrcp.pop %v7481
        %v7631 = vmul.f32 1.0, %v7630
        %v7632 = vrcp.pop %v7482
        %v7633 = vmul.f32 1.0, %v7632
        %v7634 = vrcp.pop %v7483
        %v7635 = vmul.f32 1.0, %v7634
        %v7636 = vrcp.pop %v7484
        %v7637 = vmul.f32 1.0, %v7636
        %v7638 = vrcp.pop %v7485
        %v7639 = vmul.f32 1.0, %v7638
        %v7640 = vrcp.pop %v7486
        %v7641 = vmul.f32 1.0, %v7640
        %v7642 = vrcp.pop %v7487
        %v7643 = vmul.f32 1.0, %v7642
        %v7644 = vrcp.pop %v7488
        %v7645 = vmul.f32 1.0, %v7644
        %v7646 = vrcp.pop %v7489
        %v7647 = vmul.f32 1.0, %v7646
        %v7648 = vrcp.pop %v7490
        %v7649 = vmul.f32 1.0, %v7648
        %v7650 = vrcp.pop %v7491
        %v7651 = vmul.f32 1.0, %v7650
        %v7652 = vrcp.pop %v7492
        %v7653 = vmul.f32 1.0, %v7652
        %v7654 = vrcp.pop %v7493
        %v7655 = vmul.f32 1.0, %v7654
        %v7656 = vrcp.pop %v7494
        %v7657 = vmul.f32 1.0, %v7656
        %v7658 = vrcp.pop %v7495
        %v7659 = vmul.f32 1.0, %v7658
        %v7660 = vrcp.pop %v7496
        %v7661 = vmul.f32 1.0, %v7660
        %v7662 = vrcp.pop %v7497
        %v7663 = vmul.f32 1.0, %v7662
        %v7664 = vrcp.pop %v7498
        %v7665 = vmul.f32 1.0, %v7664
        %v7666 = vrcp.pop %v7499
        %v7667 = vmul.f32 1.0, %v7666
        %v7668 = vrcp.pop %v7500
        %v7669 = vmul.f32 1.0, %v7668
        %v7670 = vrcp.pop %v7501
        %v7671 = vmul.f32 1.0, %v7670
        %v7672 = vrcp.pop %v7502
        %v7673 = vmul.f32 1.0, %v7672
        %v7674 = vrcp.pop %v7503
        %v7675 = vmul.f32 1.0, %v7674
        %v7676 = vrcp.pop %v7504
        %v7677 = vmul.f32 1.0, %v7676
        %v7678 = vrcp.pop %v7505
        %v7679 = vmul.f32 1.0, %v7678
        %v7680 = vrcp.pop %v7506
        %v7681 = vmul.f32 1.0, %v7680
        %v7682 = vrcp.pop %v7507
        %v7683 = vmul.f32 1.0, %v7682
        %v7684 = vrcp.pop %v7508
        %v7685 = vmul.f32 1.0, %v7684
        %v7686 = vrcp.pop %v7509
        %v7687 = vmul.f32 1.0, %v7686
        %v7688 = vrcp.pop %v7510
        %v7689 = vmul.f32 1.0, %v7688
        %v7690 = vrcp.pop %v7511
        %v7691 = vmul.f32 1.0, %v7690
        %v7692 = vrcp.pop %v7512
        %v7693 = vmul.f32 1.0, %v7692
        %v7694 = vrcp.pop %v7513
        %v7695 = vmul.f32 1.0, %v7694
        %v7696 = vrcp.pop %v7514
        %v7697 = vmul.f32 1.0, %v7696
        %v7698 = vrcp.pop %v7515
        %v7699 = vmul.f32 1.0, %v7698
        %v7700 = vrcp.pop %v7516
        %v7701 = vmul.f32 1.0, %v7700
        %v7702 = vrcp.pop %v7517
        %v7703 = vmul.f32 1.0, %v7702
        %v7704 = vrcp.pop %v7518
        %v7705 = vmul.f32 1.0, %v7704
        %v7706 = vrcp.pop %v7519
        %v7707 = vmul.f32 1.0, %v7706
        %v7708 = vrcp.pop %v7520
        %v7709 = vmul.f32 1.0, %v7708
        %v7710 = vrcp.pop %v7521
        %v7711 = vmul.f32 1.0, %v7710
        %v7712 = vrcp.pop %v7522
        %v7713 = vmul.f32 1.0, %v7712
        %v7714 = vrcp.pop %v7523
        %v7715 = vmul.f32 1.0, %v7714
        %v7716 = vrcp.pop %v7524
        %v7717 = vmul.f32 1.0, %v7716
        %v7718 = vrcp.pop %v7525
        %v7719 = vmul.f32 1.0, %v7718
        %v7720 = vrcp.pop %v7526
        %v7721 = vmul.f32 1.0, %v7720
        %v7722 = vrcp.pop %v7527
        %v7723 = vmul.f32 1.0, %v7722
        %v7724 = vrcp.pop %v7528
        %v7725 = vmul.f32 1.0, %v7724
        %v7726 = vrcp.pop %v7529
        %v7727 = vmul.f32 1.0, %v7726
        %v7728 = vrcp.pop %v7530
        %v7729 = vmul.f32 1.0, %v7728
        %v7730 = vrcp.pop %v7531
        %v7731 = vmul.f32 1.0, %v7730
        %v7732 = vrcp.pop %v7532
        %v7733 = vmul.f32 1.0, %v7732
        %v7734 = vrcp.pop %v7533
        %v7735 = vmul.f32 1.0, %v7734
        %v7736 = vrcp.pop %v7534
        %v7737 = vmul.f32 1.0, %v7736
        %v7738 = vrcp.pop %v7535
        %v7739 = vmul.f32 1.0, %v7738
        %v7740 = vrcp.pop %v7536
        %v7741 = vmul.f32 1.0, %v7740
        %v7742 = vrcp.pop %v7537
        %v7743 = vmul.f32 1.0, %v7742
        %v7744 = vrcp.pop %v7538
        %v7745 = vmul.f32 1.0, %v7744
        %v7746 = vrcp.pop %v7539
        %v7747 = vmul.f32 1.0, %v7746
        %v7748 = vrcp.pop %v7540
        %v7749 = vmul.f32 1.0, %v7748
        %v7750 = vrcp.pop %v7541
        %v7751 = vmul.f32 1.0, %v7750
        %v7752 = vrcp.pop %v7542
        %v7753 = vmul.f32 1.0, %v7752
        %v7754 = vrcp.pop %v7543
        %v7755 = vmul.f32 1.0, %v7754
        %v7756 = vrcp.pop %v7544
        %v7757 = vmul.f32 1.0, %v7756
        %v7758 = vrcp.pop %v7545
        %v7759 = vmul.f32 1.0, %v7758
        %v7760 = vrcp.pop %v7546
        %v7761 = vmul.f32 1.0, %v7760
        %v7762 = vrcp.pop %v7547
        %v7763 = vmul.f32 1.0, %v7762
        %v7764 = vrcp.pop %v7548
        %v7765 = vmul.f32 1.0, %v7764
        %v7766 = vrcp.pop %v7549
        %v7767 = vmul.f32 1.0, %v7766
        %v7768 = vrcp.pop %v7550
        %v7769 = vmul.f32 1.0, %v7768
        %v7770 = vrcp.pop %v7551
        %v7771 = vmul.f32 1.0, %v7770
        %v7772 = vrcp.pop %v7552
        %v7773 = vmul.f32 1.0, %v7772
        %v7774 = vrcp.pop %v7553
        %v7775 = vmul.f32 1.0, %v7774
        %v7776 = vrcp.pop %v7554
        %v7777 = vmul.f32 1.0, %v7776
        %v7778 = vrcp.pop %v7555
        %v7779 = vmul.f32 1.0, %v7778
        %v7780 = vrcp.pop %v7556
        %v7781 = vmul.f32 1.0, %v7780
        %v7782 = vrcp.pop %v7557
        %v7783 = vmul.f32 1.0, %v7782
        %v7784 = vrcp.pop %v7558
        %v7785 = vmul.f32 1.0, %v7784
        %v7786 = vrcp.pop %v7559
        %v7787 = vmul.f32 1.0, %v7786
        %v7788 = vrcp.pop %v7560
        %v7789 = vmul.f32 1.0, %v7788
        %v7790 = vrcp.pop %v7561
        %v7791 = vmul.f32 1.0, %v7790
        %v7792 = vrcp.pop %v7562
        %v7793 = vmul.f32 1.0, %v7792
        %v7794 = vrcp.pop %v7563
        %v7795 = vmul.f32 1.0, %v7794
        %v7796 = vrcp.pop %v7564
        %v7797 = vmul.f32 1.0, %v7796
        %v7798 = vrcp.pop %v7565
        %v7799 = vmul.f32 1.0, %v7798
        %v7800 = vrcp.pop %v7566
        %v7801 = vmul.f32 1.0, %v7800
        %v7802 = vrcp.pop %v7567
        %v7803 = vmul.f32 1.0, %v7802
        %v7804 = vrcp.pop %v7568
        %v7805 = vmul.f32 1.0, %v7804
        %v7806 = vrcp.pop %v7569
        %v7807 = vmul.f32 1.0, %v7806
        %v7808 = vrcp.pop %v7570
        %v7809 = vmul.f32 1.0, %v7808
        %v7810 = vrcp.pop %v7571
        %v7811 = vmul.f32 1.0, %v7810
        %v7812 = vrcp.pop %v7572
        %v7813 = vmul.f32 1.0, %v7812
        %v7814 = vrcp.pop %v7573
        %v7815 = vmul.f32 1.0, %v7814
        %v7816 = vrcp.pop %v7574
        %v7817 = vmul.f32 1.0, %v7816
        %v7818 = vrcp.pop %v7575
        %v7819 = vmul.f32 1.0, %v7818
        %v7820 = vrcp.pop %v7576
        %v7821 = vmul.f32 1.0, %v7820
        %v7822 = vrcp.pop %v7577
        %v7823 = vmul.f32 1.0, %v7822
        %v7824 = vrcp.pop %v7578
        %v7825 = vmul.f32 1.0, %v7824
        %v7826 = vrcp.pop %v7579
        %v7827 = vmul.f32 1.0, %v7826
        %v7828 = vrcp.pop %v7580
        %v7829 = vmul.f32 1.0, %v7828
        %v7830 = vrcp.pop %v7581
        %v7831 = vmul.f32 1.0, %v7830
        %v7832 = vrcp.pop %v7582
        %v7833 = vmul.f32 1.0, %v7832
        %v7834 = vrcp.pop %v7583
        %v7835 = vmul.f32 1.0, %v7834
        %v7836 = vrcp.pop %v7584
        %v7837 = vmul.f32 1.0, %v7836
        %v7838 = vrcp.pop %v7585
        %v7839 = vmul.f32 1.0, %v7838
        %v7840 = vrcp.pop %v7586
        %v7841 = vmul.f32 1.0, %v7840
        %v7842 = vrcp.pop %v7587
        %v7843 = vmul.f32 1.0, %v7842
        %7844 = vst [vmem:[#allocation2] sm:$0xff] %v7589
        %7845 = vst [vmem:[#allocation2 + $0x8] sm:$0xff] %v7591
        %7846 = vst [vmem:[#allocation2 + $0x10] sm:$0xff] %v7593
        %7847 = vst [vmem:[#allocation2 + $0x18] sm:$0xff] %v7595
        %7848 = vst [vmem:[#allocation2 + $0x20] sm:$0xff] %v7597
        %7849 = vst [vmem:[#allocation2 + $0x28] sm:$0xff] %v7599
        %7850 = vst [vmem:[#allocation2 + $0x30] sm:$0xff] %v7601
        %7851 = vst [vmem:[#allocation2 + $0x38] sm:$0xff] %v7603
        %7852 = vst [vmem:[#allocation2 + $0x40] sm:$0xff] %v7605
        %7853 = vst [vmem:[#allocation2 + $0x48] sm:$0xff] %v7607
        %7854 = vst [vmem:[#allocation2 + $0x50] sm:$0xff] %v7609
        %7855 = vst [vmem:[#allocation2 + $0x58] sm:$0xff] %v7611
        %7856 = vst [vmem:[#allocation2 + $0x60] sm:$0xff] %v7613
        %7857 = vst [vmem:[#allocation2 + $0x68] sm:$0xff] %v7615
        %7858 = vst [vmem:[#allocation2 + $0x70] sm:$0xff] %v7617
        %7859 = vst [vmem:[#allocation2 + $0x78] sm:$0xff] %v7619
        %7860 = vst [vmem:[#allocation2 + $0x80] sm:$0xff] %v7621
        %7861 = vst [vmem:[#allocation2 + $0x88] sm:$0xff] %v7623
        %7862 = vst [vmem:[#allocation2 + $0x90] sm:$0xff] %v7625
        %7863 = vst [vmem:[#allocation2 + $0x98] sm:$0xff] %v7627
        %7864 = vst [vmem:[#allocation2 + $0xa0] sm:$0xff] %v7629
        %7865 = vst [vmem:[#allocation2 + $0xa8] sm:$0xff] %v7631
        %7866 = vst [vmem:[#allocation2 + $0xb0] sm:$0xff] %v7633
        %7867 = vst [vmem:[#allocation2 + $0xb8] sm:$0xff] %v7635
        %7868 = vst [vmem:[#allocation2 + $0xc0] sm:$0xff] %v7637
        %7869 = vst [vmem:[#allocation2 + $0xc8] sm:$0xff] %v7639
        %7870 = vst [vmem:[#allocation2 + $0xd0] sm:$0xff] %v7641
        %7871 = vst [vmem:[#allocation2 + $0xd8] sm:$0xff] %v7643
        %7872 = vst [vmem:[#allocation2 + $0xe0] sm:$0xff] %v7645
        %7873 = vst [vmem:[#allocation2 + $0xe8] sm:$0xff] %v7647
        %7874 = vst [vmem:[#allocation2 + $0xf0] sm:$0xff] %v7649
        %7875 = vst [vmem:[#allocation2 + $0xf8] sm:$0xff] %v7651
        %7876 = vst [vmem:[#allocation2 + $0x100] sm:$0xff] %v7653
        %7877 = vst [vmem:[#allocation2 + $0x108] sm:$0xff] %v7655
        %7878 = vst [vmem:[#allocation2 + $0x110] sm:$0xff] %v7657
        %7879 = vst [vmem:[#allocation2 + $0x118] sm:$0xff] %v7659
        %7880 = vst [vmem:[#allocation2 + $0x120] sm:$0xff] %v7661
        %7881 = vst [vmem:[#allocation2 + $0x128] sm:$0xff] %v7663
        %7882 = vst [vmem:[#allocation2 + $0x130] sm:$0xff] %v7665
        %7883 = vst [vmem:[#allocation2 + $0x138] sm:$0xff] %v7667
        %7884 = vst [vmem:[#allocation2 + $0x140] sm:$0xff] %v7669
        %7885 = vst [vmem:[#allocation2 + $0x148] sm:$0xff] %v7671
        %7886 = vst [vmem:[#allocation2 + $0x150] sm:$0xff] %v7673
        %7887 = vst [vmem:[#allocation2 + $0x158] sm:$0xff] %v7675
        %7888 = vst [vmem:[#allocation2 + $0x160] sm:$0xff] %v7677
        %7889 = vst [vmem:[#allocation2 + $0x168] sm:$0xff] %v7679
        %7890 = vst [vmem:[#allocation2 + $0x170] sm:$0xff] %v7681
        %7891 = vst [vmem:[#allocation2 + $0x178] sm:$0xff] %v7683
        %7892 = vst [vmem:[#allocation2 + $0x180] sm:$0xff] %v7685
        %7893 = vst [vmem:[#allocation2 + $0x188] sm:$0xff] %v7687
        %7894 = vst [vmem:[#allocation2 + $0x190] sm:$0xff] %v7689
        %7895 = vst [vmem:[#allocation2 + $0x198] sm:$0xff] %v7691
        %7896 = vst [vmem:[#allocation2 + $0x1a0] sm:$0xff] %v7693
        %7897 = vst [vmem:[#allocation2 + $0x1a8] sm:$0xff] %v7695
        %7898 = vst [vmem:[#allocation2 + $0x1b0] sm:$0xff] %v7697
        %7899 = vst [vmem:[#allocation2 + $0x1b8] sm:$0xff] %v7699
        %7900 = vst [vmem:[#allocation2 + $0x1c0] sm:$0xff] %v7701
        %7901 = vst [vmem:[#allocation2 + $0x1c8] sm:$0xff] %v7703
        %7902 = vst [vmem:[#allocation2 + $0x1d0] sm:$0xff] %v7705
        %7903 = vst [vmem:[#allocation2 + $0x1d8] sm:$0xff] %v7707
        %7904 = vst [vmem:[#allocation2 + $0x1e0] sm:$0xff] %v7709
        %7905 = vst [vmem:[#allocation2 + $0x1e8] sm:$0xff] %v7711
        %7906 = vst [vmem:[#allocation2 + $0x1f0] sm:$0xff] %v7713
        %7907 = vst [vmem:[#allocation2 + $0x1f8] sm:$0xff] %v7715
        %7908 = vst [vmem:[#allocation2 + $0x200] sm:$0xff] %v7717
        %7909 = vst [vmem:[#allocation2 + $0x208] sm:$0xff] %v7719
        %7910 = vst [vmem:[#allocation2 + $0x210] sm:$0xff] %v7721
        %7911 = vst [vmem:[#allocation2 + $0x218] sm:$0xff] %v7723
        %7912 = vst [vmem:[#allocation2 + $0x220] sm:$0xff] %v7725
        %7913 = vst [vmem:[#allocation2 + $0x228] sm:$0xff] %v7727
        %7914 = vst [vmem:[#allocation2 + $0x230] sm:$0xff] %v7729
        %7915 = vst [vmem:[#allocation2 + $0x238] sm:$0xff] %v7731
        %7916 = vst [vmem:[#allocation2 + $0x240] sm:$0xff] %v7733
        %7917 = vst [vmem:[#allocation2 + $0x248] sm:$0xff] %v7735
        %7918 = vst [vmem:[#allocation2 + $0x250] sm:$0xff] %v7737
        %7919 = vst [vmem:[#allocation2 + $0x258] sm:$0xff] %v7739
        %7920 = vst [vmem:[#allocation2 + $0x260] sm:$0xff] %v7741
        %7921 = vst [vmem:[#allocation2 + $0x268] sm:$0xff] %v7743
        %7922 = vst [vmem:[#allocation2 + $0x270] sm:$0xff] %v7745
        %7923 = vst [vmem:[#allocation2 + $0x278] sm:$0xff] %v7747
        %7924 = vst [vmem:[#allocation2 + $0x280] sm:$0xff] %v7749
        %7925 = vst [vmem:[#allocation2 + $0x288] sm:$0xff] %v7751
        %7926 = vst [vmem:[#allocation2 + $0x290] sm:$0xff] %v7753
        %7927 = vst [vmem:[#allocation2 + $0x298] sm:$0xff] %v7755
        %7928 = vst [vmem:[#allocation2 + $0x2a0] sm:$0xff] %v7757
        %7929 = vst [vmem:[#allocation2 + $0x2a8] sm:$0xff] %v7759
        %7930 = vst [vmem:[#allocation2 + $0x2b0] sm:$0xff] %v7761
        %7931 = vst [vmem:[#allocation2 + $0x2b8] sm:$0xff] %v7763
        %7932 = vst [vmem:[#allocation2 + $0x2c0] sm:$0xff] %v7765
        %7933 = vst [vmem:[#allocation2 + $0x2c8] sm:$0xff] %v7767
        %7934 = vst [vmem:[#allocation2 + $0x2d0] sm:$0xff] %v7769
        %7935 = vst [vmem:[#allocation2 + $0x2d8] sm:$0xff] %v7771
        %7936 = vst [vmem:[#allocation2 + $0x2e0] sm:$0xff] %v7773
        %7937 = vst [vmem:[#allocation2 + $0x2e8] sm:$0xff] %v7775
        %7938 = vst [vmem:[#allocation2 + $0x2f0] sm:$0xff] %v7777
        %7939 = vst [vmem:[#allocation2 + $0x2f8] sm:$0xff] %v7779
        %7940 = vst [vmem:[#allocation2 + $0x300] sm:$0xff] %v7781
        %7941 = vst [vmem:[#allocation2 + $0x308] sm:$0xff] %v7783
        %7942 = vst [vmem:[#allocation2 + $0x310] sm:$0xff] %v7785
        %7943 = vst [vmem:[#allocation2 + $0x318] sm:$0xff] %v7787
        %7944 = vst [vmem:[#allocation2 + $0x320] sm:$0xff] %v7789
        %7945 = vst [vmem:[#allocation2 + $0x328] sm:$0xff] %v7791
        %7946 = vst [vmem:[#allocation2 + $0x330] sm:$0xff] %v7793
        %7947 = vst [vmem:[#allocation2 + $0x338] sm:$0xff] %v7795
        %7948 = vst [vmem:[#allocation2 + $0x340] sm:$0xff] %v7797
        %7949 = vst [vmem:[#allocation2 + $0x348] sm:$0xff] %v7799
        %7950 = vst [vmem:[#allocation2 + $0x350] sm:$0xff] %v7801
        %7951 = vst [vmem:[#allocation2 + $0x358] sm:$0xff] %v7803
        %7952 = vst [vmem:[#allocation2 + $0x360] sm:$0xff] %v7805
        %7953 = vst [vmem:[#allocation2 + $0x368] sm:$0xff] %v7807
        %7954 = vst [vmem:[#allocation2 + $0x370] sm:$0xff] %v7809
        %7955 = vst [vmem:[#allocation2 + $0x378] sm:$0xff] %v7811
        %7956 = vst [vmem:[#allocation2 + $0x380] sm:$0xff] %v7813
        %7957 = vst [vmem:[#allocation2 + $0x388] sm:$0xff] %v7815
        %7958 = vst [vmem:[#allocation2 + $0x390] sm:$0xff] %v7817
        %7959 = vst [vmem:[#allocation2 + $0x398] sm:$0xff] %v7819
        %7960 = vst [vmem:[#allocation2 + $0x3a0] sm:$0xff] %v7821
        %7961 = vst [vmem:[#allocation2 + $0x3a8] sm:$0xff] %v7823
        %7962 = vst [vmem:[#allocation2 + $0x3b0] sm:$0xff] %v7825
        %7963 = vst [vmem:[#allocation2 + $0x3b8] sm:$0xff] %v7827
        %7964 = vst [vmem:[#allocation2 + $0x3c0] sm:$0xff] %v7829
        %7965 = vst [vmem:[#allocation2 + $0x3c8] sm:$0xff] %v7831
        %7966 = vst [vmem:[#allocation2 + $0x3d0] sm:$0xff] %v7833
        %7967 = vst [vmem:[#allocation2 + $0x3d8] sm:$0xff] %v7835
        %7968 = vst [vmem:[#allocation2 + $0x3e0] sm:$0xff] %v7837
        %7969 = vst [vmem:[#allocation2 + $0x3e8] sm:$0xff] %v7839
        %7970 = vst [vmem:[#allocation2 + $0x3f0] sm:$0xff] %v7841
        %7971 = vst [vmem:[#allocation2 + $0x3f8] sm:$0xff] %v7843
      $region44: #{ra_forward.1} parent=39 // pred_fallthru
        _
      %s7972 = smul.u32 %s21, 512
      %v7973 = vld [vmem:[%s272] sm:$0xff]
      %v7974 = vld [vmem:[%s272 + $0x8] sm:$0xff]
      %v7975 = vld [vmem:[%s272 + $0x10] sm:$0xff]
      %v7976 = vld [vmem:[%s272 + $0x18] sm:$0xff]
      %v7977 = vld [vmem:[%s272 + $0x20] sm:$0xff]
      %v7978 = vld [vmem:[%s272 + $0x28] sm:$0xff]
      %v7979 = vld [vmem:[%s272 + $0x30] sm:$0xff]
      %v7980 = vld [vmem:[%s272 + $0x38] sm:$0xff]
      %v7981 = vld [vmem:[%s272 + $0x40] sm:$0xff]
      %v7982 = vld [vmem:[%s272 + $0x48] sm:$0xff]
      %v7983 = vld [vmem:[%s272 + $0x50] sm:$0xff]
      %v7984 = vld [vmem:[%s272 + $0x58] sm:$0xff]
      %v7985 = vld [vmem:[%s272 + $0x60] sm:$0xff]
      %v7986 = vld [vmem:[%s272 + $0x68] sm:$0xff]
      %v7987 = vld [vmem:[%s272 + $0x70] sm:$0xff]
      %v7988 = vld [vmem:[%s272 + $0x78] sm:$0xff]
      %v7989 = vld [vmem:[%s272 + $0x80] sm:$0xff]
      %v7990 = vld [vmem:[%s272 + $0x88] sm:$0xff]
      %v7991 = vld [vmem:[%s272 + $0x90] sm:$0xff]
      %v7992 = vld [vmem:[%s272 + $0x98] sm:$0xff]
      %v7993 = vld [vmem:[%s272 + $0xa0] sm:$0xff]
      %v7994 = vld [vmem:[%s272 + $0xa8] sm:$0xff]
      %v7995 = vld [vmem:[%s272 + $0xb0] sm:$0xff]
      %v7996 = vld [vmem:[%s272 + $0xb8] sm:$0xff]
      %v7997 = vld [vmem:[%s272 + $0xc0] sm:$0xff]
      %v7998 = vld [vmem:[%s272 + $0xc8] sm:$0xff]
      %v7999 = vld [vmem:[%s272 + $0xd0] sm:$0xff]
      %v8000 = vld [vmem:[%s272 + $0xd8] sm:$0xff]
      %v8001 = vld [vmem:[%s272 + $0xe0] sm:$0xff]
      %v8002 = vld [vmem:[%s272 + $0xe8] sm:$0xff]
      %v8003 = vld [vmem:[%s272 + $0xf0] sm:$0xff]
      %v8004 = vld [vmem:[%s272 + $0xf8] sm:$0xff]
      %v8005 = vld [vmem:[%s272 + $0x100] sm:$0xff]
      %v8006 = vld [vmem:[%s272 + $0x108] sm:$0xff]
      %v8007 = vld [vmem:[%s272 + $0x110] sm:$0xff]
      %v8008 = vld [vmem:[%s272 + $0x118] sm:$0xff]
      %v8009 = vld [vmem:[%s272 + $0x120] sm:$0xff]
      %v8010 = vld [vmem:[%s272 + $0x128] sm:$0xff]
      %v8011 = vld [vmem:[%s272 + $0x130] sm:$0xff]
      %v8012 = vld [vmem:[%s272 + $0x138] sm:$0xff]
      %v8013 = vld [vmem:[%s272 + $0x140] sm:$0xff]
      %v8014 = vld [vmem:[%s272 + $0x148] sm:$0xff]
      %v8015 = vld [vmem:[%s272 + $0x150] sm:$0xff]
      %v8016 = vld [vmem:[%s272 + $0x158] sm:$0xff]
      %v8017 = vld [vmem:[%s272 + $0x160] sm:$0xff]
      %v8018 = vld [vmem:[%s272 + $0x168] sm:$0xff]
      %v8019 = vld [vmem:[%s272 + $0x170] sm:$0xff]
      %v8020 = vld [vmem:[%s272 + $0x178] sm:$0xff]
      %v8021 = vld [vmem:[%s272 + $0x180] sm:$0xff]
      %v8022 = vld [vmem:[%s272 + $0x188] sm:$0xff]
      %v8023 = vld [vmem:[%s272 + $0x190] sm:$0xff]
      %v8024 = vld [vmem:[%s272 + $0x198] sm:$0xff]
      %v8025 = vld [vmem:[%s272 + $0x1a0] sm:$0xff]
      %v8026 = vld [vmem:[%s272 + $0x1a8] sm:$0xff]
      %v8027 = vld [vmem:[%s272 + $0x1b0] sm:$0xff]
      %v8028 = vld [vmem:[%s272 + $0x1b8] sm:$0xff]
      %v8029 = vld [vmem:[%s272 + $0x1c0] sm:$0xff]
      %v8030 = vld [vmem:[%s272 + $0x1c8] sm:$0xff]
      %v8031 = vld [vmem:[%s272 + $0x1d0] sm:$0xff]
      %v8032 = vld [vmem:[%s272 + $0x1d8] sm:$0xff]
      %v8033 = vld [vmem:[%s272 + $0x1e0] sm:$0xff]
      %v8034 = vld [vmem:[%s272 + $0x1e8] sm:$0xff]
      %v8035 = vld [vmem:[%s272 + $0x1f0] sm:$0xff]
      %v8036 = vld [vmem:[%s272 + $0x1f8] sm:$0xff]
      %s8037 = scalar_lea.vmem [#allocation2], %s7972
      %v8038 = vld [vmem:[%s8037] sm:$0xff]
      %v8039 = vld [vmem:[%s8037 + $0x8] sm:$0xff]
      %v8040 = vld [vmem:[%s8037 + $0x10] sm:$0xff]
      %v8041 = vld [vmem:[%s8037 + $0x18] sm:$0xff]
      %v8042 = vld [vmem:[%s8037 + $0x20] sm:$0xff]
      %v8043 = vld [vmem:[%s8037 + $0x28] sm:$0xff]
      %v8044 = vld [vmem:[%s8037 + $0x30] sm:$0xff]
      %v8045 = vld [vmem:[%s8037 + $0x38] sm:$0xff]
      %v8046 = vld [vmem:[%s8037 + $0x40] sm:$0xff]
      %v8047 = vld [vmem:[%s8037 + $0x48] sm:$0xff]
      %v8048 = vld [vmem:[%s8037 + $0x50] sm:$0xff]
      %v8049 = vld [vmem:[%s8037 + $0x58] sm:$0xff]
      %v8050 = vld [vmem:[%s8037 + $0x60] sm:$0xff]
      %v8051 = vld [vmem:[%s8037 + $0x68] sm:$0xff]
      %v8052 = vld [vmem:[%s8037 + $0x70] sm:$0xff]
      %v8053 = vld [vmem:[%s8037 + $0x78] sm:$0xff]
      %v8054 = vld [vmem:[%s8037 + $0x80] sm:$0xff]
      %v8055 = vld [vmem:[%s8037 + $0x88] sm:$0xff]
      %v8056 = vld [vmem:[%s8037 + $0x90] sm:$0xff]
      %v8057 = vld [vmem:[%s8037 + $0x98] sm:$0xff]
      %v8058 = vld [vmem:[%s8037 + $0xa0] sm:$0xff]
      %v8059 = vld [vmem:[%s8037 + $0xa8] sm:$0xff]
      %v8060 = vld [vmem:[%s8037 + $0xb0] sm:$0xff]
      %v8061 = vld [vmem:[%s8037 + $0xb8] sm:$0xff]
      %v8062 = vld [vmem:[%s8037 + $0xc0] sm:$0xff]
      %v8063 = vld [vmem:[%s8037 + $0xc8] sm:$0xff]
      %v8064 = vld [vmem:[%s8037 + $0xd0] sm:$0xff]
      %v8065 = vld [vmem:[%s8037 + $0xd8] sm:$0xff]
      %v8066 = vld [vmem:[%s8037 + $0xe0] sm:$0xff]
      %v8067 = vld [vmem:[%s8037 + $0xe8] sm:$0xff]
      %v8068 = vld [vmem:[%s8037 + $0xf0] sm:$0xff]
      %v8069 = vld [vmem:[%s8037 + $0xf8] sm:$0xff]
      %v8070 = vld [vmem:[%s8037 + $0x100] sm:$0xff]
      %v8071 = vld [vmem:[%s8037 + $0x108] sm:$0xff]
      %v8072 = vld [vmem:[%s8037 + $0x110] sm:$0xff]
      %v8073 = vld [vmem:[%s8037 + $0x118] sm:$0xff]
      %v8074 = vld [vmem:[%s8037 + $0x120] sm:$0xff]
      %v8075 = vld [vmem:[%s8037 + $0x128] sm:$0xff]
      %v8076 = vld [vmem:[%s8037 + $0x130] sm:$0xff]
      %v8077 = vld [vmem:[%s8037 + $0x138] sm:$0xff]
      %v8078 = vld [vmem:[%s8037 + $0x140] sm:$0xff]
      %v8079 = vld [vmem:[%s8037 + $0x148] sm:$0xff]
      %v8080 = vld [vmem:[%s8037 + $0x150] sm:$0xff]
      %v8081 = vld [vmem:[%s8037 + $0x158] sm:$0xff]
      %v8082 = vld [vmem:[%s8037 + $0x160] sm:$0xff]
      %v8083 = vld [vmem:[%s8037 + $0x168] sm:$0xff]
      %v8084 = vld [vmem:[%s8037 + $0x170] sm:$0xff]
      %v8085 = vld [vmem:[%s8037 + $0x178] sm:$0xff]
      %v8086 = vld [vmem:[%s8037 + $0x180] sm:$0xff]
      %v8087 = vld [vmem:[%s8037 + $0x188] sm:$0xff]
      %v8088 = vld [vmem:[%s8037 + $0x190] sm:$0xff]
      %v8089 = vld [vmem:[%s8037 + $0x198] sm:$0xff]
      %v8090 = vld [vmem:[%s8037 + $0x1a0] sm:$0xff]
      %v8091 = vld [vmem:[%s8037 + $0x1a8] sm:$0xff]
      %v8092 = vld [vmem:[%s8037 + $0x1b0] sm:$0xff]
      %v8093 = vld [vmem:[%s8037 + $0x1b8] sm:$0xff]
      %v8094 = vld [vmem:[%s8037 + $0x1c0] sm:$0xff]
      %v8095 = vld [vmem:[%s8037 + $0x1c8] sm:$0xff]
      %v8096 = vld [vmem:[%s8037 + $0x1d0] sm:$0xff]
      %v8097 = vld [vmem:[%s8037 + $0x1d8] sm:$0xff]
      %v8098 = vld [vmem:[%s8037 + $0x1e0] sm:$0xff]
      %v8099 = vld [vmem:[%s8037 + $0x1e8] sm:$0xff]
      %v8100 = vld [vmem:[%s8037 + $0x1f0] sm:$0xff]
      %v8101 = vld [vmem:[%s8037 + $0x1f8] sm:$0xff]
      %v8102 = vmul.f32 %v7973, %v8038
      %v8103 = vmul.f32 %v7974, %v8039
      %v8104 = vmul.f32 %v7975, %v8040
      %v8105 = vmul.f32 %v7976, %v8041
      %v8106 = vmul.f32 %v7977, %v8042
      %v8107 = vmul.f32 %v7978, %v8043
      %v8108 = vmul.f32 %v7979, %v8044
      %v8109 = vmul.f32 %v7980, %v8045
      %v8110 = vmul.f32 %v7981, %v8046
      %v8111 = vmul.f32 %v7982, %v8047
      %v8112 = vmul.f32 %v7983, %v8048
      %v8113 = vmul.f32 %v7984, %v8049
      %v8114 = vmul.f32 %v7985, %v8050
      %v8115 = vmul.f32 %v7986, %v8051
      %v8116 = vmul.f32 %v7987, %v8052
      %v8117 = vmul.f32 %v7988, %v8053
      %v8118 = vmul.f32 %v7989, %v8054
      %v8119 = vmul.f32 %v7990, %v8055
      %v8120 = vmul.f32 %v7991, %v8056
      %v8121 = vmul.f32 %v7992, %v8057
      %v8122 = vmul.f32 %v7993, %v8058
      %v8123 = vmul.f32 %v7994, %v8059
      %v8124 = vmul.f32 %v7995, %v8060
      %v8125 = vmul.f32 %v7996, %v8061
      %v8126 = vmul.f32 %v7997, %v8062
      %v8127 = vmul.f32 %v7998, %v8063
      %v8128 = vmul.f32 %v7999, %v8064
      %v8129 = vmul.f32 %v8000, %v8065
      %v8130 = vmul.f32 %v8001, %v8066
      %v8131 = vmul.f32 %v8002, %v8067
      %v8132 = vmul.f32 %v8003, %v8068
      %v8133 = vmul.f32 %v8004, %v8069
      %v8134 = vmul.f32 %v8005, %v8070
      %v8135 = vmul.f32 %v8006, %v8071
      %v8136 = vmul.f32 %v8007, %v8072
      %v8137 = vmul.f32 %v8008, %v8073
      %v8138 = vmul.f32 %v8009, %v8074
      %v8139 = vmul.f32 %v8010, %v8075
      %v8140 = vmul.f32 %v8011, %v8076
      %v8141 = vmul.f32 %v8012, %v8077
      %v8142 = vmul.f32 %v8013, %v8078
      %v8143 = vmul.f32 %v8014, %v8079
      %v8144 = vmul.f32 %v8015, %v8080
      %v8145 = vmul.f32 %v8016, %v8081
      %v8146 = vmul.f32 %v8017, %v8082
      %v8147 = vmul.f32 %v8018, %v8083
      %v8148 = vmul.f32 %v8019, %v8084
      %v8149 = vmul.f32 %v8020, %v8085
      %v8150 = vmul.f32 %v8021, %v8086
      %v8151 = vmul.f32 %v8022, %v8087
      %v8152 = vmul.f32 %v8023, %v8088
      %v8153 = vmul.f32 %v8024, %v8089
      %v8154 = vmul.f32 %v8025, %v8090
      %v8155 = vmul.f32 %v8026, %v8091
      %v8156 = vmul.f32 %v8027, %v8092
      %v8157 = vmul.f32 %v8028, %v8093
      %v8158 = vmul.f32 %v8029, %v8094
      %v8159 = vmul.f32 %v8030, %v8095
      %v8160 = vmul.f32 %v8031, %v8096
      %v8161 = vmul.f32 %v8032, %v8097
      %v8162 = vmul.f32 %v8033, %v8098
      %v8163 = vmul.f32 %v8034, %v8099
      %v8164 = vmul.f32 %v8035, %v8100
      %v8165 = vmul.f32 %v8036, %v8101
      %8166 = vst [vmem:[%s282] sm:$0xff] %v8102
      %8167 = vst [vmem:[%s282 + $0x8] sm:$0xff] %v8103
      %8168 = vst [vmem:[%s282 + $0x10] sm:$0xff] %v8104
      %8169 = vst [vmem:[%s282 + $0x18] sm:$0xff] %v8105
      %8170 = vst [vmem:[%s282 + $0x20] sm:$0xff] %v8106
      %8171 = vst [vmem:[%s282 + $0x28] sm:$0xff] %v8107
      %8172 = vst [vmem:[%s282 + $0x30] sm:$0xff] %v8108
      %8173 = vst [vmem:[%s282 + $0x38] sm:$0xff] %v8109
      %8174 = vst [vmem:[%s282 + $0x40] sm:$0xff] %v8110
      %8175 = vst [vmem:[%s282 + $0x48] sm:$0xff] %v8111
      %8176 = vst [vmem:[%s282 + $0x50] sm:$0xff] %v8112
      %8177 = vst [vmem:[%s282 + $0x58] sm:$0xff] %v8113
      %8178 = vst [vmem:[%s282 + $0x60] sm:$0xff] %v8114
      %8179 = vst [vmem:[%s282 + $0x68] sm:$0xff] %v8115
      %8180 = vst [vmem:[%s282 + $0x70] sm:$0xff] %v8116
      %8181 = vst [vmem:[%s282 + $0x78] sm:$0xff] %v8117
      %8182 = vst [vmem:[%s282 + $0x80] sm:$0xff] %v8118
      %8183 = vst [vmem:[%s282 + $0x88] sm:$0xff] %v8119
      %8184 = vst [vmem:[%s282 + $0x90] sm:$0xff] %v8120
      %8185 = vst [vmem:[%s282 + $0x98] sm:$0xff] %v8121
      %8186 = vst [vmem:[%s282 + $0xa0] sm:$0xff] %v8122
      %8187 = vst [vmem:[%s282 + $0xa8] sm:$0xff] %v8123
      %8188 = vst [vmem:[%s282 + $0xb0] sm:$0xff] %v8124
      %8189 = vst [vmem:[%s282 + $0xb8] sm:$0xff] %v8125
      %8190 = vst [vmem:[%s282 + $0xc0] sm:$0xff] %v8126
      %8191 = vst [vmem:[%s282 + $0xc8] sm:$0xff] %v8127
      %8192 = vst [vmem:[%s282 + $0xd0] sm:$0xff] %v8128
      %8193 = vst [vmem:[%s282 + $0xd8] sm:$0xff] %v8129
      %8194 = vst [vmem:[%s282 + $0xe0] sm:$0xff] %v8130
      %8195 = vst [vmem:[%s282 + $0xe8] sm:$0xff] %v8131
      %8196 = vst [vmem:[%s282 + $0xf0] sm:$0xff] %v8132
      %8197 = vst [vmem:[%s282 + $0xf8] sm:$0xff] %v8133
      %8198 = vst [vmem:[%s282 + $0x100] sm:$0xff] %v8134
      %8199 = vst [vmem:[%s282 + $0x108] sm:$0xff] %v8135
      %8200 = vst [vmem:[%s282 + $0x110] sm:$0xff] %v8136
      %8201 = vst [vmem:[%s282 + $0x118] sm:$0xff] %v8137
      %8202 = vst [vmem:[%s282 + $0x120] sm:$0xff] %v8138
      %8203 = vst [vmem:[%s282 + $0x128] sm:$0xff] %v8139
      %8204 = vst [vmem:[%s282 + $0x130] sm:$0xff] %v8140
      %8205 = vst [vmem:[%s282 + $0x138] sm:$0xff] %v8141
      %8206 = vst [vmem:[%s282 + $0x140] sm:$0xff] %v8142
      %8207 = vst [vmem:[%s282 + $0x148] sm:$0xff] %v8143
      %8208 = vst [vmem:[%s282 + $0x150] sm:$0xff] %v8144
      %8209 = vst [vmem:[%s282 + $0x158] sm:$0xff] %v8145
      %8210 = vst [vmem:[%s282 + $0x160] sm:$0xff] %v8146
      %8211 = vst [vmem:[%s282 + $0x168] sm:$0xff] %v8147
      %8212 = vst [vmem:[%s282 + $0x170] sm:$0xff] %v8148
      %8213 = vst [vmem:[%s282 + $0x178] sm:$0xff] %v8149
      %8214 = vst [vmem:[%s282 + $0x180] sm:$0xff] %v8150
      %8215 = vst [vmem:[%s282 + $0x188] sm:$0xff] %v8151
      %8216 = vst [vmem:[%s282 + $0x190] sm:$0xff] %v8152
      %8217 = vst [vmem:[%s282 + $0x198] sm:$0xff] %v8153
      %8218 = vst [vmem:[%s282 + $0x1a0] sm:$0xff] %v8154
      %8219 = vst [vmem:[%s282 + $0x1a8] sm:$0xff] %v8155
      %8220 = vst [vmem:[%s282 + $0x1b0] sm:$0xff] %v8156
      %8221 = vst [vmem:[%s282 + $0x1b8] sm:$0xff] %v8157
      %8222 = vst [vmem:[%s282 + $0x1c0] sm:$0xff] %v8158
      %8223 = vst [vmem:[%s282 + $0x1c8] sm:$0xff] %v8159
      %8224 = vst [vmem:[%s282 + $0x1d0] sm:$0xff] %v8160
      %8225 = vst [vmem:[%s282 + $0x1d8] sm:$0xff] %v8161
      %8226 = vst [vmem:[%s282 + $0x1e0] sm:$0xff] %v8162
      %8227 = vst [vmem:[%s282 + $0x1e8] sm:$0xff] %v8163
      %8228 = vst [vmem:[%s282 + $0x1f0] sm:$0xff] %v8164
      %8229 = vst [vmem:[%s282 + $0x1f8] sm:$0xff] %v8165
      %s8230 = smul.u32 64, %s21
      %p8231 = scmp.lt.s32.totalorder %s20, 1
      %s8232 = scalar_select %p8231, %s20, 1
      %p8233 = scmp.lt.s32.totalorder %s8230, 127
      %s8234 = scalar_select %p8233, %s8230, 127
      %s8235 = smul.addr %s8232, 128
      %s8236 = sadd.s32 %s8234, %s8235
      %s8237 = smul.addr %s8236, 8
      %s8238 = scalar_lea.vmem %s5, %s8237
      // Predicated region
      $region45: #{ra_forward.1} parent=39 // pred_check
        %p8239 = pneg %p165
      $region46: #{ra_forward.1} parent=39 // pred_check_branch
        %8241 = sbr.rel (%p8239) target = $region48
      $region47: #{ra_forward.1} parent=39 // pred_region
        %s8242 = smul.u32 64, %s21
      $region48: #{ra_forward.1} parent=39 // pred_fallthru
        _
    $region40: #{ra_forward.1} parent=5 // pred_fallthru
      _
    %p8243 = scmp.le.s32.totalorder 2, %s11
    // Predicated region
    $region49: #{ra_forward.1} parent=5 // pred_check
      %p8244 = pneg %p8243
    $region50: #{ra_forward.1} parent=5 // pred_check_branch
      %8246 = sbr.rel (%p8244) target = $region52
    $region51: #{ra_forward.1} parent=5 // pred_region
      %s8247 = ssub.s32 %s11, 2
      // Predicated region
      $region53: #{ra_forward.1} parent=51 // pred_check
        %p8248 = pneg %p171
      $region54: #{ra_forward.1} parent=51 // pred_check_branch
        %8250 = sbr.rel (%p8248) target = $region56
      $region55: #{ra_forward.1} parent=51 // pred_region
        %s8251 = smul.u32 64, %s23
        %p8252 = scmp.lt.s32.totalorder %s22, 1
        %s8253 = scalar_select %p8252, %s22, 1
        %p8254 = scmp.lt.s32.totalorder %s8251, 127
        %s8255 = scalar_select %p8254, %s8251, 127
        %s8256 = smul.addr %s8253, 128
        %s8257 = sadd.s32 %s8255, %s8256
        %s8258 = smul.addr %s8257, 8
        %s8259 = scalar_lea.vmem %s5, %s8258
      $region56: #{ra_forward.1} parent=51 // pred_fallthru
        _
    $region52: #{ra_forward.1} parent=5 // pred_fallthru
      _
  $region6: #{ra_forward.1} parent=0 // loop_footer
    %s15 = sadd.s32 1, %s11
  $region7: #{ra_forward.1} parent=0 // loop_footer_branch
    %10 = sbr.rel target = $region3
  $region8: #{ra_forward.1} parent=0 // loop_exit
    _

</llo_original>
